<compile_context>
chip_gen: v7x
topology: tpu7x:2x2x1
jax: 0.10.0
libtpu: 0.0.40
codegen_flags: <defaults>
</compile_context>

<pallas_src>
import jax
import jax.numpy as jnp
import numpy as np
from jax import lax
from jax.experimental import pallas as pl
from jax.experimental.pallas import tpu as pltpu


# ----------------------------- kernel -----------------------------

def _make_kernel(TB, CHUNK, n_chunks, k, out_lanes, unroll):
    R = TB * CHUNK

    def kernel(
        x_ref,
        # STN3D params (BN folded into W, b)
        sw1, sb1, sw2, sb2, sw3, sb3, sf1w, sf1b, sf2w, sf2b, sf3w, sf3b,
        # PointNetfeat params
        fw1, fb1, fw2, fb2, fw3, fb3,
        # classifier head params
        cw1, cb1, cw2, cb2, cw3, cb3,
        # merged output slab
        out_ref,
    ):
        def mm(h, w_ref, b_ref=None, relu=False):
            # bf16 MXU matmul with f32 accumulation; bias/ReLU stay f32 (VPU).
            y = jnp.dot(h.astype(w_ref.dtype), w_ref[...],
                        preferred_element_type=jnp.float32)
            if b_ref is not None:
                y = y + b_ref[...]
            return jnp.maximum(y, 0.0) if relu else y

        def point_block(ci, gmax, r0, r1, r2, b1, w2_ref, b2_ref, w3_ref):
            # One point chunk of the shared conv stack. r0/r1/r2 are the rows of the
            # (possibly per-example) 3->64 weight: (1, 64) or (TB, 64).
            start = pl.multiple_of(ci * CHUNK, CHUNK)
            pts_cf = x_ref[:, :, pl.ds(start, CHUNK)]          # (TB, 3, CHUNK), lane-dense load
            pts = jnp.transpose(pts_cf, (0, 2, 1))             # (TB, CHUNK, 3), small XLU transpose
            # 3->64 layer on the VPU (K=3 is too small for a useful MXU matmul).
            h = (pts[:, :, 0:1] * r0[:, None, :]
                 + pts[:, :, 1:2] * r1[:, None, :]
                 + pts[:, :, 2:3] * r2[:, None, :]) + b1        # (TB, CHUNK, 64)
            h = jnp.maximum(h, 0.0)
            h = mm(h.reshape(R, 64), w2_ref, b2_ref, relu=True)  # (R, 128)
            h = mm(h, w3_ref)                                    # (R, 1024) raw (bias hoisted)
            return jnp.maximum(gmax, jnp.max(h.reshape(TB, CHUNK, 1024), axis=1))

        neg_inf = jnp.full((TB, 1024), -jnp.inf, jnp.float32)

        # ---------------- STN3D: streamed max over points ----------------
        w1 = sw1[...]                                            # (3, 64) f32
        b1 = sb1[...]
        g = lax.fori_loop(
            0, n_chunks,
            lambda ci, acc: point_block(ci, acc, w1[0:1, :], w1[1:2, :], w1[2:3, :],
                                        b1, sw2, sb2, sw3),
            neg_inf, unroll=unroll)
        g = jnp.maximum(g + sb3[...], 0.0)                       # hoisted conv3 bias + relu

        h = mm(g, sf1w, sf1b, relu=True)                         # (TB, 512)
        h = mm(h, sf2w, sf2b, relu=True)                         # (TB, 256)
        t = mm(h, sf3w, sf3b)                                    # (TB, 9)
        # add flattened 3x3 identity (indices 0, 4, 8)
        lane = lax.broadcasted_iota(jnp.int32, (TB, 9), 1)
        t = t + jnp.where(lane % 4 == 0, 1.0, 0.0).astype(jnp.float32)

        # ---- fold the learned 3x3 transform into the first feat conv ----
        # h1 = relu((p @ trans) @ fw1 + fb1) == relu(p @ (trans @ fw1) + fb1)
        fw = fw1[...]                                            # (3, 64) f32
        fb = fb1[...]
        wr = []
        for c in range(3):
            wr.append(t[:, 3 * c + 0:3 * c + 1] * fw[0:1, :]
                      + t[:, 3 * c + 1:3 * c + 2] * fw[1:2, :]
                      + t[:, 3 * c + 2:3 * c + 3] * fw[2:3, :])  # (TB, 64)

        # ---------------- PointNetfeat: streamed max over points ----------------
        g2 = lax.fori_loop(
            0, n_chunks,
            lambda ci, acc: point_block(ci, acc, wr[0], wr[1], wr[2],
                                        fb, fw2, fb2, fw3),
            neg_inf, unroll=unroll)
        g2 = g2 + fb3[...]                                       # hoisted bias, no relu (matches PyTorch)

        # ---------------- classifier head ----------------
        h = mm(g2, cw1, cb1, relu=True)                          # (TB, 512)
        h = mm(h, cw2, cb2, relu=True)                           # (TB, 256)
        logits = mm(h, cw3, cb3)                                 # (TB, k)
        m = jnp.max(logits, axis=1, keepdims=True)
        lse = m + jnp.log(jnp.sum(jnp.exp(logits - m), axis=1, keepdims=True))
        logp = logits - lse                                      # log_softmax over classes

        # merged lane-dense output slab: lanes [0,k)=log-probs, [k,k+9)=trans
        parts = [logp, t]
        pad_w = out_lanes - k - 9
        if pad_w > 0:
            parts.append(jnp.zeros((TB, pad_w), jnp.float32))
        out_ref[0] = jnp.concatenate(parts, axis=-1)

    return kernel


# ----------------------------- wrapper -----------------------------

def _round_up(a, m):
    return ((a + m - 1) // m) * m


def _vmem_budget():
    """(target_rows, vmem_limit_bytes) based on the chip's VMEM capacity."""
    try:
        cap = pltpu.get_tpu_info().vmem_capacity_bytes
    except Exception:
        cap = 64 * 1024 * 1024          # unknown -> assume the smallest (v7x-sized) VMEM
    if cap >= 100 * 1024 * 1024:        # v5e / v6e: 128 MiB VMEM
        return 2048, 96 * 1024 * 1024
    return 1024, 48 * 1024 * 1024       # v7x: 64 MiB VMEM


def _pick_tb(B, n128):
    """Batch block: as large as possible (<=16), keeping the grid even (v7x's two
    TensorCores) or at least >= 2, and keeping the resident x block <= ~8 MiB."""
    x_bytes = 8 * n128 * 4              # channels-first example, 3->8 sublane padding, f32
    cap = int(max(1, min(16, (8 * 1024 * 1024) // max(1, x_bytes))))
    cands = [tb for tb in range(1, min(B, cap) + 1) if B % tb == 0]

    def score(tb):
        g = B // tb
        return (g >= 2 and g % 2 == 0, g >= 2, tb)

    return max(cands, key=score)


def pointnet_cls(x_bcn, params, k):
    """x_bcn: PyTorch-layout input (B, 3, N). Returns (log_probs (B,k), trans (B,3,3))."""
    B, C, N = x_bcn.shape
    assert C == 3
    OUT_LANES = 128
    assert k + 9 <= OUT_LANES, "class count too large for the merged output slab"

    x = x_bcn.astype(jnp.float32)                    # keep channels-first (B, 3, N)

    target_rows, vmem_limit = _vmem_budget()
    n128 = _round_up(N, 128)
    TB = _pick_tb(B, n128)
    G = B // TB
    CHUNK = min(max(128, (target_rows // TB) // 128 * 128), n128)
    N_pad = _round_up(N, CHUNK)
    if N_pad != N:
        # replicate the last point (max-neutral, including the no-ReLU feat layer)
        x = jnp.pad(x, ((0, 0), (0, 0), (0, N_pad - N)), mode="edge")
    n_chunks = N_pad // CHUNK
    unroll = 2 if n_chunks > 1 else 1

    flat_params = [p for wb in params for p in wb]
    kernel = _make_kernel(TB, CHUNK, n_chunks, k, OUT_LANES, unroll)

    in_specs = [pl.BlockSpec((TB, 3, N_pad), lambda i: (i, 0, 0))]
    in_specs += [pl.BlockSpec(p.shape, lambda i: (0, 0)) for p in flat_params]
    out_specs = pl.BlockSpec((1, TB, OUT_LANES), lambda i: (i, 0, 0))
    out_shape = jax.ShapeDtypeStruct((G, TB, OUT_LANES), jnp.float32)

    fn = pl.pallas_call(
        kernel,
        out_shape=out_shape,
        grid_spec=pltpu.PrefetchScalarGridSpec(
            num_scalar_prefetch=0,
            grid=(G,),
            in_specs=in_specs,
            out_specs=out_specs,
        ),
        compiler_params=pltpu.CompilerParams(
            dimension_semantics=("parallel",),
            vmem_limit_bytes=vmem_limit,
        ),
    )
    out = fn(x, *flat_params)                         # (G, TB, 128)
    logp = out[:, :, :k].reshape(B, k)
    trans = out[:, :, k:k + 9].reshape(B, 3, 3)
    return logp, trans


# ----------------------- deterministic synthetic parameters -----------------------

def _dense(key, cin, cout):
    kw, kb = jax.random.split(key)
    bound = 1.0 / np.sqrt(cin)
    w = jax.random.uniform(kw, (cin, cout), jnp.float32, -bound, bound)
    b = jax.random.uniform(kb, (1, cout), jnp.float32, -bound, bound)
    return w, b


def _bn_affine(key, c, eps=1e-5):
    k1, k2, k3, k4 = jax.random.split(key, 4)
    gamma = jax.random.uniform(k1, (c,), jnp.float32, 0.5, 1.5)
    beta = jax.random.uniform(k2, (c,), jnp.float32, -0.1, 0.1)
    mean = jax.random.uniform(k3, (c,), jnp.float32, -0.1, 0.1)
    var = jax.random.uniform(k4, (c,), jnp.float32, 0.5, 1.5)
    scale = gamma / jnp.sqrt(var + eps)
    shift = beta - mean * scale
    return scale, shift


def _fold_bn(wb, bn):
    (w, b), (scale, shift) = wb, bn
    return w * scale[None, :], b * scale[None, :] + shift[None, :]


def init_params(key, k):
    layers = [  # (cin, cout, has_bn) in kernel argument order
        (3, 64, True), (64, 128, True), (128, 1024, True),       # STN convs
        (1024, 512, True), (512, 256, True), (256, 9, False),    # STN fcs
        (3, 64, True), (64, 128, True), (128, 1024, True),       # feat convs
        (1024, 512, True), (512, 256, True), (256, k, False),    # cls fcs
    ]
    params = []
    for kk, (cin, cout, has_bn) in zip(jax.random.split(key, len(layers)), layers):
        k1, k2 = jax.random.split(kk)
        wb = _dense(k1, cin, cout)
        if has_bn:
            wb = _fold_bn(wb, _bn_affine(k2, cout))
        params.append(wb)
    return params


def quantize_params(params):
    """Cast the MXU-matmul weights to bf16. Biases and the two 3-input layers
    (computed in f32) stay f32."""
    out = []
    for w, b in params:
        if w.shape[0] == 3:
            out.append((w, b))
        else:
            out.append((w.astype(jnp.bfloat16), b))
    return out


# ----------------------- pure-JAX reference for validation -----------------------

def reference(x_bcn, params, k):
    """Mirrors the kernel's bf16 weight / bf16 matmul-input quantization (f32 accumulation)."""
    x = jnp.transpose(x_bcn, (0, 2, 1)).astype(jnp.float32)      # (B, N, 3)
    ((sw1, sb1), (sw2, sb2), (sw3, sb3), (sf1w, sf1b), (sf2w, sf2b), (sf3w, sf3b),
     (fw1, fb1), (fw2, fb2), (fw3, fb3), (cw1, cb1), (cw2, cb2), (cw3, cb3)) = params

    def mm(h, w, b, relu=True):
        y = jnp.dot(h.astype(w.dtype), w, preferred_element_type=jnp.float32) + b
        return jnp.maximum(y, 0.0) if relu else y

    h = mm(x, sw1, sb1)
    h = mm(h, sw2, sb2)
    h = mm(h, sw3, sb3)
    g = jnp.max(h, axis=1)
    h = mm(g, sf1w, sf1b)
    h = mm(h, sf2w, sf2b)
    t = mm(h, sf3w, sf3b, relu=False) + jnp.array([1, 0, 0, 0, 1, 0, 0, 0, 1], jnp.float32)
    trans = t.reshape(-1, 3, 3)
    xt = jnp.einsum('bnc,bcd->bnd', x, trans)
    h = mm(xt, fw1, fb1)
    h = mm(h, fw2, fb2)
    h = mm(h, fw3, fb3, relu=False)
    g = jnp.max(h, axis=1)
    h = mm(g, cw1, cb1)
    h = mm(h, cw2, cb2)
    logits = mm(h, cw3, cb3, relu=False)
    return jax.nn.log_softmax(logits, axis=1), trans


if __name__ == "__main__":
    B, N, K = 4, 64, 2
    key = jax.random.PRNGKey(0)
    kx, kp = jax.random.split(key)
    x = jax.random.normal(kx, (B, 3, N), jnp.float32)   # PyTorch NCW layout: (batch, 3, n_pts)
    params = quantize_params(init_params(kp, K))

    logp, trans = pointnet_cls(x, params, K)
    jax.block_until_ready((logp, trans))

    ref_logp, ref_trans = reference(x, params, K)
    # tolerance accounts for the bf16 MXU path (mirrored in the reference)
    np.testing.assert_allclose(np.asarray(logp), np.asarray(ref_logp), rtol=1e-2, atol=2e-2)
    np.testing.assert_allclose(np.asarray(trans), np.asarray(ref_trans), rtol=1e-2, atol=2e-2)

    print("KERNEL_OK")
</pallas_src>

<mosaic_0001>
module attributes {stable_mosaic.version = 11 : i64} {
  func.func @kernel(%arg0: i32, %arg1: memref<2x3x128xf32, #tpu.memory_space<vmem>>, %arg2: memref<3x64xf32, #tpu.memory_space<vmem>>, %arg3: memref<1x64xf32, #tpu.memory_space<vmem>>, %arg4: memref<64x128xbf16, #tpu.memory_space<vmem>>, %arg5: memref<1x128xf32, #tpu.memory_space<vmem>>, %arg6: memref<128x1024xbf16, #tpu.memory_space<vmem>>, %arg7: memref<1x1024xf32, #tpu.memory_space<vmem>>, %arg8: memref<1024x512xbf16, #tpu.memory_space<vmem>>, %arg9: memref<1x512xf32, #tpu.memory_space<vmem>>, %arg10: memref<512x256xbf16, #tpu.memory_space<vmem>>, %arg11: memref<1x256xf32, #tpu.memory_space<vmem>>, %arg12: memref<256x9xbf16, #tpu.memory_space<vmem>>, %arg13: memref<1x9xf32, #tpu.memory_space<vmem>>, %arg14: memref<3x64xf32, #tpu.memory_space<vmem>>, %arg15: memref<1x64xf32, #tpu.memory_space<vmem>>, %arg16: memref<64x128xbf16, #tpu.memory_space<vmem>>, %arg17: memref<1x128xf32, #tpu.memory_space<vmem>>, %arg18: memref<128x1024xbf16, #tpu.memory_space<vmem>>, %arg19: memref<1x1024xf32, #tpu.memory_space<vmem>>, %arg20: memref<1024x512xbf16, #tpu.memory_space<vmem>>, %arg21: memref<1x512xf32, #tpu.memory_space<vmem>>, %arg22: memref<512x256xbf16, #tpu.memory_space<vmem>>, %arg23: memref<1x256xf32, #tpu.memory_space<vmem>>, %arg24: memref<256x2xbf16, #tpu.memory_space<vmem>>, %arg25: memref<1x2xf32, #tpu.memory_space<vmem>>, %arg26: memref<1x2x128xf32, #tpu.memory_space<vmem>>) attributes {dimension_semantics = [#tpu.dimension_semantics<parallel>], iteration_bounds = array<i64: 2>, scalar_prefetch = 0 : i64, scratch_operands = 0 : i64, tpu.core_type = #tpu.core_type<tc>, window_params = [{transform_indices = @transform_0, window_bounds = array<i64: 2, 3, 128>}, {pipeline_mode = #tpu.pipeline_mode<synchronous>, transform_indices = @transform_1, window_bounds = array<i64: 3, 64>}, {pipeline_mode = #tpu.pipeline_mode<synchronous>, transform_indices = @transform_2, window_bounds = array<i64: 1, 64>}, {pipeline_mode = #tpu.pipeline_mode<synchronous>, transform_indices = @transform_3, window_bounds = array<i64: 64, 128>}, {pipeline_mode = #tpu.pipeline_mode<synchronous>, transform_indices = @transform_4, window_bounds = array<i64: 1, 128>}, {pipeline_mode = #tpu.pipeline_mode<synchronous>, transform_indices = @transform_5, window_bounds = array<i64: 128, 1024>}, {pipeline_mode = #tpu.pipeline_mode<synchronous>, transform_indices = @transform_6, window_bounds = array<i64: 1, 1024>}, {pipeline_mode = #tpu.pipeline_mode<synchronous>, transform_indices = @transform_7, window_bounds = array<i64: 1024, 512>}, {pipeline_mode = #tpu.pipeline_mode<synchronous>, transform_indices = @transform_8, window_bounds = array<i64: 1, 512>}, {pipeline_mode = #tpu.pipeline_mode<synchronous>, transform_indices = @transform_9, window_bounds = array<i64: 512, 256>}, {pipeline_mode = #tpu.pipeline_mode<synchronous>, transform_indices = @transform_10, window_bounds = array<i64: 1, 256>}, {pipeline_mode = #tpu.pipeline_mode<synchronous>, transform_indices = @transform_11, window_bounds = array<i64: 256, 9>}, {pipeline_mode = #tpu.pipeline_mode<synchronous>, transform_indices = @transform_12, window_bounds = array<i64: 1, 9>}, {pipeline_mode = #tpu.pipeline_mode<synchronous>, transform_indices = @transform_13, window_bounds = array<i64: 3, 64>}, {pipeline_mode = #tpu.pipeline_mode<synchronous>, transform_indices = @transform_14, window_bounds = array<i64: 1, 64>}, {pipeline_mode = #tpu.pipeline_mode<synchronous>, transform_indices = @transform_15, window_bounds = array<i64: 64, 128>}, {pipeline_mode = #tpu.pipeline_mode<synchronous>, transform_indices = @transform_16, window_bounds = array<i64: 1, 128>}, {pipeline_mode = #tpu.pipeline_mode<synchronous>, transform_indices = @transform_17, window_bounds = array<i64: 128, 1024>}, {pipeline_mode = #tpu.pipeline_mode<synchronous>, transform_indices = @transform_18, window_bounds = array<i64: 1, 1024>}, {pipeline_mode = #tpu.pipeline_mode<synchronous>, transform_indices = @transform_19, window_bounds = array<i64: 1024, 512>}, {pipeline_mode = #tpu.pipeline_mode<synchronous>, transform_indices = @transform_20, window_bounds = array<i64: 1, 512>}, {pipeline_mode = #tpu.pipeline_mode<synchronous>, transform_indices = @transform_21, window_bounds = array<i64: 512, 256>}, {pipeline_mode = #tpu.pipeline_mode<synchronous>, transform_indices = @transform_22, window_bounds = array<i64: 1, 256>}, {pipeline_mode = #tpu.pipeline_mode<synchronous>, transform_indices = @transform_23, window_bounds = array<i64: 256, 2>}, {pipeline_mode = #tpu.pipeline_mode<synchronous>, transform_indices = @transform_24, window_bounds = array<i64: 1, 2>}, {transform_indices = @transform_25, window_bounds = array<i64: 1, 2, 128>}]} {
    %cst = arith.constant 0xFF800000 : f32
    %0 = vector.broadcast %cst : f32 to vector<2x1024xf32>
    %c0 = arith.constant 0 : index
    %c0_0 = arith.constant 0 : index
    %1 = vector.load %arg2[%c0, %c0_0] : memref<3x64xf32, #tpu.memory_space<vmem>>, vector<3x64xf32>
    %c0_1 = arith.constant 0 : index
    %c0_2 = arith.constant 0 : index
    %2 = vector.load %arg3[%c0_1, %c0_2] : memref<1x64xf32, #tpu.memory_space<vmem>>, vector<1x64xf32>
    %c0_i32 = arith.constant 0 : i32
    %3 = vector.extract_strided_slice %1 {offsets = [0, 0], sizes = [1, 64], strides = [1, 1]} : vector<3x64xf32> to vector<1x64xf32>
    %4 = vector.extract_strided_slice %1 {offsets = [1, 0], sizes = [1, 64], strides = [1, 1]} : vector<3x64xf32> to vector<1x64xf32>
    %5 = vector.extract_strided_slice %1 {offsets = [2, 0], sizes = [1, 64], strides = [1, 1]} : vector<3x64xf32> to vector<1x64xf32>
    %c128_i32 = arith.constant 128 : i32
    %6 = arith.muli %c0_i32, %c128_i32 : i32
    %7 = tpu.assume_multiple %6, 128 : i32
    %c0_3 = arith.constant 0 : index
    %c0_4 = arith.constant 0 : index
    %8 = arith.index_cast %7 : i32 to index
    %9 = vector.load %arg1[%c0_3, %c0_4, %8] : memref<2x3x128xf32, #tpu.memory_space<vmem>>, vector<2x3x128xf32>
    %10 = tpu.transpose %9, [0, 2, 1] : vector<2x3x128xf32> -> vector<2x128x3xf32>
    %11 = vector.extract_strided_slice %10 {offsets = [0, 0, 0], sizes = [2, 128, 1], strides = [1, 1, 1]} : vector<2x128x3xf32> to vector<2x128x1xf32>
    %12 = vector.shape_cast %3 : vector<1x64xf32> to vector<1x1x64xf32>
    %13 = vector.broadcast %11 : vector<2x128x1xf32> to vector<2x128x64xf32>
    %14 = vector.broadcast %12 : vector<1x1x64xf32> to vector<2x128x64xf32>
    %15 = arith.mulf %13, %14 : vector<2x128x64xf32>
    %16 = vector.extract_strided_slice %10 {offsets = [0, 0, 1], sizes = [2, 128, 1], strides = [1, 1, 1]} : vector<2x128x3xf32> to vector<2x128x1xf32>
    %17 = vector.shape_cast %4 : vector<1x64xf32> to vector<1x1x64xf32>
    %18 = vector.broadcast %16 : vector<2x128x1xf32> to vector<2x128x64xf32>
    %19 = vector.broadcast %17 : vector<1x1x64xf32> to vector<2x128x64xf32>
    %20 = arith.mulf %18, %19 : vector<2x128x64xf32>
    %21 = arith.addf %15, %20 : vector<2x128x64xf32>
    %22 = vector.extract_strided_slice %10 {offsets = [0, 0, 2], sizes = [2, 128, 1], strides = [1, 1, 1]} : vector<2x128x3xf32> to vector<2x128x1xf32>
    %23 = vector.shape_cast %5 : vector<1x64xf32> to vector<1x1x64xf32>
    %24 = vector.broadcast %22 : vector<2x128x1xf32> to vector<2x128x64xf32>
    %25 = vector.broadcast %23 : vector<1x1x64xf32> to vector<2x128x64xf32>
    %26 = arith.mulf %24, %25 : vector<2x128x64xf32>
    %27 = arith.addf %21, %26 : vector<2x128x64xf32>
    %28 = vector.shape_cast %2 : vector<1x64xf32> to vector<1x1x64xf32>
    %29 = vector.broadcast %28 : vector<1x1x64xf32> to vector<2x128x64xf32>
    %30 = arith.addf %27, %29 : vector<2x128x64xf32>
    %cst_5 = arith.constant 0.000000e+00 : f32
    %31 = vector.broadcast %cst_5 : f32 to vector<2x128x64xf32>
    %32 = arith.maximumf %30, %31 : vector<2x128x64xf32>
    %33 = vector.shape_cast %32 : vector<2x128x64xf32> to vector<256x64xf32>
    %34 = arith.truncf %33 : vector<256x64xf32> to vector<256x64xbf16>
    %c0_6 = arith.constant 0 : index
    %c0_7 = arith.constant 0 : index
    %35 = vector.load %arg4[%c0_6, %c0_7] : memref<64x128xbf16, #tpu.memory_space<vmem>>, vector<64x128xbf16>
    %cst_8 = arith.constant dense<0.000000e+00> : vector<256x128xf32>
    %36 = tpu.matmul %34, %35, %cst_8 {dimension_numbers = #tpu.dot_dimension_numbers<[1], [0], [0], [1], [0, 0, 1, 1], [], []>} : vector<256x64xbf16>, vector<64x128xbf16>, vector<256x128xf32> -> vector<256x128xf32>
    %c0_9 = arith.constant 0 : index
    %c0_10 = arith.constant 0 : index
    %37 = vector.load %arg5[%c0_9, %c0_10] : memref<1x128xf32, #tpu.memory_space<vmem>>, vector<1x128xf32>
    %38 = vector.broadcast %37 : vector<1x128xf32> to vector<256x128xf32>
    %39 = arith.addf %36, %38 : vector<256x128xf32>
    %cst_11 = arith.constant 0.000000e+00 : f32
    %40 = vector.broadcast %cst_11 : f32 to vector<256x128xf32>
    %41 = arith.maximumf %39, %40 : vector<256x128xf32>
    %42 = arith.truncf %41 : vector<256x128xf32> to vector<256x128xbf16>
    %c0_12 = arith.constant 0 : index
    %c0_13 = arith.constant 0 : index
    %43 = vector.load %arg6[%c0_12, %c0_13] : memref<128x1024xbf16, #tpu.memory_space<vmem>>, vector<128x1024xbf16>
    %cst_14 = arith.constant dense<0.000000e+00> : vector<256x1024xf32>
    %44 = tpu.matmul %42, %43, %cst_14 {dimension_numbers = #tpu.dot_dimension_numbers<[1], [0], [0], [1], [0, 0, 1, 1], [], []>} : vector<256x128xbf16>, vector<128x1024xbf16>, vector<256x1024xf32> -> vector<256x1024xf32>
    %45 = vector.shape_cast %44 : vector<256x1024xf32> to vector<2x128x1024xf32>
    %cst_15 = arith.constant dense<0xFF800000> : vector<2x1024xf32>
    %46 = vector.multi_reduction <maximumf>, %45, %cst_15 [1] : vector<2x128x1024xf32> to vector<2x1024xf32>
    %47 = arith.maximumf %0, %46 : vector<2x1024xf32>
    %c1_i32 = arith.constant 1 : i32
    %c0_16 = arith.constant 0 : index
    %c0_17 = arith.constant 0 : index
    %48 = vector.load %arg7[%c0_16, %c0_17] : memref<1x1024xf32, #tpu.memory_space<vmem>>, vector<1x1024xf32>
    %49 = vector.broadcast %48 : vector<1x1024xf32> to vector<2x1024xf32>
    %50 = arith.addf %47, %49 : vector<2x1024xf32>
    %cst_18 = arith.constant 0.000000e+00 : f32
    %51 = vector.broadcast %cst_18 : f32 to vector<2x1024xf32>
    %52 = arith.maximumf %50, %51 : vector<2x1024xf32>
    %53 = arith.truncf %52 : vector<2x1024xf32> to vector<2x1024xbf16>
    %c0_19 = arith.constant 0 : index
    %c0_20 = arith.constant 0 : index
    %54 = vector.load %arg8[%c0_19, %c0_20] : memref<1024x512xbf16, #tpu.memory_space<vmem>>, vector<1024x512xbf16>
    %cst_21 = arith.constant dense<0.000000e+00> : vector<2x512xf32>
    %55 = tpu.matmul %53, %54, %cst_21 {dimension_numbers = #tpu.dot_dimension_numbers<[1], [0], [0], [1], [0, 0, 1, 1], [], []>} : vector<2x1024xbf16>, vector<1024x512xbf16>, vector<2x512xf32> -> vector<2x512xf32>
    %c0_22 = arith.constant 0 : index
    %c0_23 = arith.constant 0 : index
    %56 = vector.load %arg9[%c0_22, %c0_23] : memref<1x512xf32, #tpu.memory_space<vmem>>, vector<1x512xf32>
    %57 = vector.broadcast %56 : vector<1x512xf32> to vector<2x512xf32>
    %58 = arith.addf %55, %57 : vector<2x512xf32>
    %cst_24 = arith.constant 0.000000e+00 : f32
    %59 = vector.broadcast %cst_24 : f32 to vector<2x512xf32>
    %60 = arith.maximumf %58, %59 : vector<2x512xf32>
    %61 = arith.truncf %60 : vector<2x512xf32> to vector<2x512xbf16>
    %c0_25 = arith.constant 0 : index
    %c0_26 = arith.constant 0 : index
    %62 = vector.load %arg10[%c0_25, %c0_26] : memref<512x256xbf16, #tpu.memory_space<vmem>>, vector<512x256xbf16>
    %cst_27 = arith.constant dense<0.000000e+00> : vector<2x256xf32>
    %63 = tpu.matmul %61, %62, %cst_27 {dimension_numbers = #tpu.dot_dimension_numbers<[1], [0], [0], [1], [0, 0, 1, 1], [], []>} : vector<2x512xbf16>, vector<512x256xbf16>, vector<2x256xf32> -> vector<2x256xf32>
    %c0_28 = arith.constant 0 : index
    %c0_29 = arith.constant 0 : index
    %64 = vector.load %arg11[%c0_28, %c0_29] : memref<1x256xf32, #tpu.memory_space<vmem>>, vector<1x256xf32>
    %65 = vector.broadcast %64 : vector<1x256xf32> to vector<2x256xf32>
    %66 = arith.addf %63, %65 : vector<2x256xf32>
    %cst_30 = arith.constant 0.000000e+00 : f32
    %67 = vector.broadcast %cst_30 : f32 to vector<2x256xf32>
    %68 = arith.maximumf %66, %67 : vector<2x256xf32>
    %69 = arith.truncf %68 : vector<2x256xf32> to vector<2x256xbf16>
    %c0_31 = arith.constant 0 : index
    %c0_32 = arith.constant 0 : index
    %70 = vector.load %arg12[%c0_31, %c0_32] : memref<256x9xbf16, #tpu.memory_space<vmem>>, vector<256x9xbf16>
    %cst_33 = arith.constant dense<0.000000e+00> : vector<2x9xf32>
    %71 = tpu.matmul %69, %70, %cst_33 {dimension_numbers = #tpu.dot_dimension_numbers<[1], [0], [0], [1], [0, 0, 1, 1], [], []>} : vector<2x256xbf16>, vector<256x9xbf16>, vector<2x9xf32> -> vector<2x9xf32>
    %c0_34 = arith.constant 0 : index
    %c0_35 = arith.constant 0 : index
    %72 = vector.load %arg13[%c0_34, %c0_35] : memref<1x9xf32, #tpu.memory_space<vmem>>, vector<1x9xf32>
    %73 = vector.broadcast %72 : vector<1x9xf32> to vector<2x9xf32>
    %74 = arith.addf %71, %73 : vector<2x9xf32>
    %75 = tpu.iota {dimensions = array<i32: 1>} : vector<2x9xi32>
    %c4_i32 = arith.constant 4 : i32
    %c0_i32_36 = arith.constant 0 : i32
    %76 = arith.cmpi eq, %c4_i32, %c0_i32_36 : i32
    %c1_i32_37 = arith.constant 1 : i32
    %77 = arith.select %76, %c1_i32_37, %c4_i32 : i32
    %78 = vector.broadcast %77 : i32 to vector<2x9xi32>
    %79 = arith.remsi %75, %78 : vector<2x9xi32>
    %c0_i32_38 = arith.constant 0 : i32
    %80 = vector.broadcast %c0_i32_38 : i32 to vector<2x9xi32>
    %81 = arith.cmpi ne, %79, %80 : vector<2x9xi32>
    %c0_i32_39 = arith.constant 0 : i32
    %82 = vector.broadcast %c0_i32_39 : i32 to vector<2x9xi32>
    %83 = arith.cmpi slt, %79, %82 : vector<2x9xi32>
    %c0_i32_40 = arith.constant 0 : i32
    %84 = arith.cmpi slt, %77, %c0_i32_40 : i32
    %85 = vector.broadcast %84 : i1 to vector<2x9xi1>
    %86 = vector.broadcast %85 : vector<2x9xi1> to vector<2x9xi1>
    %87 = arith.xori %83, %86 : vector<2x9xi1>
    %88 = arith.andi %87, %81 : vector<2x9xi1>
    %89 = vector.broadcast %77 : i32 to vector<2x9xi32>
    %90 = arith.addi %79, %89 : vector<2x9xi32>
    %91 = arith.select %88, %90, %79 : vector<2x9xi1>, vector<2x9xi32>
    %c0_i32_41 = arith.constant 0 : i32
    %92 = vector.broadcast %c0_i32_41 : i32 to vector<2x9xi32>
    %93 = arith.cmpi eq, %91, %92 : vector<2x9xi32>
    %cst_42 = arith.constant 1.000000e+00 : f32
    %cst_43 = arith.constant 0.000000e+00 : f32
    %94 = vector.broadcast %cst_42 : f32 to vector<2x9xf32>
    %95 = vector.broadcast %cst_43 : f32 to vector<2x9xf32>
    %96 = arith.select %93, %94, %95 : vector<2x9xi1>, vector<2x9xf32>
    %97 = arith.addf %74, %96 : vector<2x9xf32>
    %c0_44 = arith.constant 0 : index
    %c0_45 = arith.constant 0 : index
    %98 = vector.load %arg14[%c0_44, %c0_45] : memref<3x64xf32, #tpu.memory_space<vmem>>, vector<3x64xf32>
    %c0_46 = arith.constant 0 : index
    %c0_47 = arith.constant 0 : index
    %99 = vector.load %arg15[%c0_46, %c0_47] : memref<1x64xf32, #tpu.memory_space<vmem>>, vector<1x64xf32>
    %100 = vector.extract_strided_slice %97 {offsets = [0, 0], sizes = [2, 1], strides = [1, 1]} : vector<2x9xf32> to vector<2x1xf32>
    %101 = vector.extract_strided_slice %98 {offsets = [0, 0], sizes = [1, 64], strides = [1, 1]} : vector<3x64xf32> to vector<1x64xf32>
    %102 = vector.broadcast %100 : vector<2x1xf32> to vector<2x64xf32>
    %103 = vector.broadcast %101 : vector<1x64xf32> to vector<2x64xf32>
    %104 = arith.mulf %102, %103 : vector<2x64xf32>
    %105 = vector.extract_strided_slice %97 {offsets = [0, 1], sizes = [2, 1], strides = [1, 1]} : vector<2x9xf32> to vector<2x1xf32>
    %106 = vector.extract_strided_slice %98 {offsets = [1, 0], sizes = [1, 64], strides = [1, 1]} : vector<3x64xf32> to vector<1x64xf32>
    %107 = vector.broadcast %105 : vector<2x1xf32> to vector<2x64xf32>
    %108 = vector.broadcast %106 : vector<1x64xf32> to vector<2x64xf32>
    %109 = arith.mulf %107, %108 : vector<2x64xf32>
    %110 = arith.addf %104, %109 : vector<2x64xf32>
    %111 = vector.extract_strided_slice %97 {offsets = [0, 2], sizes = [2, 1], strides = [1, 1]} : vector<2x9xf32> to vector<2x1xf32>
    %112 = vector.extract_strided_slice %98 {offsets = [2, 0], sizes = [1, 64], strides = [1, 1]} : vector<3x64xf32> to vector<1x64xf32>
    %113 = vector.broadcast %111 : vector<2x1xf32> to vector<2x64xf32>
    %114 = vector.broadcast %112 : vector<1x64xf32> to vector<2x64xf32>
    %115 = arith.mulf %113, %114 : vector<2x64xf32>
    %116 = arith.addf %110, %115 : vector<2x64xf32>
    %117 = vector.extract_strided_slice %97 {offsets = [0, 3], sizes = [2, 1], strides = [1, 1]} : vector<2x9xf32> to vector<2x1xf32>
    %118 = vector.extract_strided_slice %98 {offsets = [0, 0], sizes = [1, 64], strides = [1, 1]} : vector<3x64xf32> to vector<1x64xf32>
    %119 = vector.broadcast %117 : vector<2x1xf32> to vector<2x64xf32>
    %120 = vector.broadcast %118 : vector<1x64xf32> to vector<2x64xf32>
    %121 = arith.mulf %119, %120 : vector<2x64xf32>
    %122 = vector.extract_strided_slice %97 {offsets = [0, 4], sizes = [2, 1], strides = [1, 1]} : vector<2x9xf32> to vector<2x1xf32>
    %123 = vector.extract_strided_slice %98 {offsets = [1, 0], sizes = [1, 64], strides = [1, 1]} : vector<3x64xf32> to vector<1x64xf32>
    %124 = vector.broadcast %122 : vector<2x1xf32> to vector<2x64xf32>
    %125 = vector.broadcast %123 : vector<1x64xf32> to vector<2x64xf32>
    %126 = arith.mulf %124, %125 : vector<2x64xf32>
    %127 = arith.addf %121, %126 : vector<2x64xf32>
    %128 = vector.extract_strided_slice %97 {offsets = [0, 5], sizes = [2, 1], strides = [1, 1]} : vector<2x9xf32> to vector<2x1xf32>
    %129 = vector.extract_strided_slice %98 {offsets = [2, 0], sizes = [1, 64], strides = [1, 1]} : vector<3x64xf32> to vector<1x64xf32>
    %130 = vector.broadcast %128 : vector<2x1xf32> to vector<2x64xf32>
    %131 = vector.broadcast %129 : vector<1x64xf32> to vector<2x64xf32>
    %132 = arith.mulf %130, %131 : vector<2x64xf32>
    %133 = arith.addf %127, %132 : vector<2x64xf32>
    %134 = vector.extract_strided_slice %97 {offsets = [0, 6], sizes = [2, 1], strides = [1, 1]} : vector<2x9xf32> to vector<2x1xf32>
    %135 = vector.extract_strided_slice %98 {offsets = [0, 0], sizes = [1, 64], strides = [1, 1]} : vector<3x64xf32> to vector<1x64xf32>
    %136 = vector.broadcast %134 : vector<2x1xf32> to vector<2x64xf32>
    %137 = vector.broadcast %135 : vector<1x64xf32> to vector<2x64xf32>
    %138 = arith.mulf %136, %137 : vector<2x64xf32>
    %139 = vector.extract_strided_slice %97 {offsets = [0, 7], sizes = [2, 1], strides = [1, 1]} : vector<2x9xf32> to vector<2x1xf32>
    %140 = vector.extract_strided_slice %98 {offsets = [1, 0], sizes = [1, 64], strides = [1, 1]} : vector<3x64xf32> to vector<1x64xf32>
    %141 = vector.broadcast %139 : vector<2x1xf32> to vector<2x64xf32>
    %142 = vector.broadcast %140 : vector<1x64xf32> to vector<2x64xf32>
    %143 = arith.mulf %141, %142 : vector<2x64xf32>
    %144 = arith.addf %138, %143 : vector<2x64xf32>
    %145 = vector.extract_strided_slice %97 {offsets = [0, 8], sizes = [2, 1], strides = [1, 1]} : vector<2x9xf32> to vector<2x1xf32>
    %146 = vector.extract_strided_slice %98 {offsets = [2, 0], sizes = [1, 64], strides = [1, 1]} : vector<3x64xf32> to vector<1x64xf32>
    %147 = vector.broadcast %145 : vector<2x1xf32> to vector<2x64xf32>
    %148 = vector.broadcast %146 : vector<1x64xf32> to vector<2x64xf32>
    %149 = arith.mulf %147, %148 : vector<2x64xf32>
    %150 = arith.addf %144, %149 : vector<2x64xf32>
    %c0_i32_48 = arith.constant 0 : i32
    %c128_i32_49 = arith.constant 128 : i32
    %151 = arith.muli %c0_i32_48, %c128_i32_49 : i32
    %152 = tpu.assume_multiple %151, 128 : i32
    %c0_50 = arith.constant 0 : index
    %c0_51 = arith.constant 0 : index
    %153 = arith.index_cast %152 : i32 to index
    %154 = vector.load %arg1[%c0_50, %c0_51, %153] : memref<2x3x128xf32, #tpu.memory_space<vmem>>, vector<2x3x128xf32>
    %155 = tpu.transpose %154, [0, 2, 1] : vector<2x3x128xf32> -> vector<2x128x3xf32>
    %156 = vector.extract_strided_slice %155 {offsets = [0, 0, 0], sizes = [2, 128, 1], strides = [1, 1, 1]} : vector<2x128x3xf32> to vector<2x128x1xf32>
    %157 = vector.shape_cast %116 : vector<2x64xf32> to vector<2x1x64xf32>
    %158 = vector.broadcast %156 : vector<2x128x1xf32> to vector<2x128x64xf32>
    %159 = vector.broadcast %157 : vector<2x1x64xf32> to vector<2x128x64xf32>
    %160 = arith.mulf %158, %159 : vector<2x128x64xf32>
    %161 = vector.extract_strided_slice %155 {offsets = [0, 0, 1], sizes = [2, 128, 1], strides = [1, 1, 1]} : vector<2x128x3xf32> to vector<2x128x1xf32>
    %162 = vector.shape_cast %133 : vector<2x64xf32> to vector<2x1x64xf32>
    %163 = vector.broadcast %161 : vector<2x128x1xf32> to vector<2x128x64xf32>
    %164 = vector.broadcast %162 : vector<2x1x64xf32> to vector<2x128x64xf32>
    %165 = arith.mulf %163, %164 : vector<2x128x64xf32>
    %166 = arith.addf %160, %165 : vector<2x128x64xf32>
    %167 = vector.extract_strided_slice %155 {offsets = [0, 0, 2], sizes = [2, 128, 1], strides = [1, 1, 1]} : vector<2x128x3xf32> to vector<2x128x1xf32>
    %168 = vector.shape_cast %150 : vector<2x64xf32> to vector<2x1x64xf32>
    %169 = vector.broadcast %167 : vector<2x128x1xf32> to vector<2x128x64xf32>
    %170 = vector.broadcast %168 : vector<2x1x64xf32> to vector<2x128x64xf32>
    %171 = arith.mulf %169, %170 : vector<2x128x64xf32>
    %172 = arith.addf %166, %171 : vector<2x128x64xf32>
    %173 = vector.shape_cast %99 : vector<1x64xf32> to vector<1x1x64xf32>
    %174 = vector.broadcast %173 : vector<1x1x64xf32> to vector<2x128x64xf32>
    %175 = arith.addf %172, %174 : vector<2x128x64xf32>
    %cst_52 = arith.constant 0.000000e+00 : f32
    %176 = vector.broadcast %cst_52 : f32 to vector<2x128x64xf32>
    %177 = arith.maximumf %175, %176 : vector<2x128x64xf32>
    %178 = vector.shape_cast %177 : vector<2x128x64xf32> to vector<256x64xf32>
    %179 = arith.truncf %178 : vector<256x64xf32> to vector<256x64xbf16>
    %c0_53 = arith.constant 0 : index
    %c0_54 = arith.constant 0 : index
    %180 = vector.load %arg16[%c0_53, %c0_54] : memref<64x128xbf16, #tpu.memory_space<vmem>>, vector<64x128xbf16>
    %cst_55 = arith.constant dense<0.000000e+00> : vector<256x128xf32>
    %181 = tpu.matmul %179, %180, %cst_55 {dimension_numbers = #tpu.dot_dimension_numbers<[1], [0], [0], [1], [0, 0, 1, 1], [], []>} : vector<256x64xbf16>, vector<64x128xbf16>, vector<256x128xf32> -> vector<256x128xf32>
    %c0_56 = arith.constant 0 : index
    %c0_57 = arith.constant 0 : index
    %182 = vector.load %arg17[%c0_56, %c0_57] : memref<1x128xf32, #tpu.memory_space<vmem>>, vector<1x128xf32>
    %183 = vector.broadcast %182 : vector<1x128xf32> to vector<256x128xf32>
    %184 = arith.addf %181, %183 : vector<256x128xf32>
    %cst_58 = arith.constant 0.000000e+00 : f32
    %185 = vector.broadcast %cst_58 : f32 to vector<256x128xf32>
    %186 = arith.maximumf %184, %185 : vector<256x128xf32>
    %187 = arith.truncf %186 : vector<256x128xf32> to vector<256x128xbf16>
    %c0_59 = arith.constant 0 : index
    %c0_60 = arith.constant 0 : index
    %188 = vector.load %arg18[%c0_59, %c0_60] : memref<128x1024xbf16, #tpu.memory_space<vmem>>, vector<128x1024xbf16>
    %cst_61 = arith.constant dense<0.000000e+00> : vector<256x1024xf32>
    %189 = tpu.matmul %187, %188, %cst_61 {dimension_numbers = #tpu.dot_dimension_numbers<[1], [0], [0], [1], [0, 0, 1, 1], [], []>} : vector<256x128xbf16>, vector<128x1024xbf16>, vector<256x1024xf32> -> vector<256x1024xf32>
    %190 = vector.shape_cast %189 : vector<256x1024xf32> to vector<2x128x1024xf32>
    %cst_62 = arith.constant dense<0xFF800000> : vector<2x1024xf32>
    %191 = vector.multi_reduction <maximumf>, %190, %cst_62 [1] : vector<2x128x1024xf32> to vector<2x1024xf32>
    %192 = arith.maximumf %0, %191 : vector<2x1024xf32>
    %c1_i32_63 = arith.constant 1 : i32
    %c0_64 = arith.constant 0 : index
    %c0_65 = arith.constant 0 : index
    %193 = vector.load %arg19[%c0_64, %c0_65] : memref<1x1024xf32, #tpu.memory_space<vmem>>, vector<1x1024xf32>
    %194 = vector.broadcast %193 : vector<1x1024xf32> to vector<2x1024xf32>
    %195 = arith.addf %192, %194 : vector<2x1024xf32>
    %196 = arith.truncf %195 : vector<2x1024xf32> to vector<2x1024xbf16>
    %c0_66 = arith.constant 0 : index
    %c0_67 = arith.constant 0 : index
    %197 = vector.load %arg20[%c0_66, %c0_67] : memref<1024x512xbf16, #tpu.memory_space<vmem>>, vector<1024x512xbf16>
    %cst_68 = arith.constant dense<0.000000e+00> : vector<2x512xf32>
    %198 = tpu.matmul %196, %197, %cst_68 {dimension_numbers = #tpu.dot_dimension_numbers<[1], [0], [0], [1], [0, 0, 1, 1], [], []>} : vector<2x1024xbf16>, vector<1024x512xbf16>, vector<2x512xf32> -> vector<2x512xf32>
    %c0_69 = arith.constant 0 : index
    %c0_70 = arith.constant 0 : index
    %199 = vector.load %arg21[%c0_69, %c0_70] : memref<1x512xf32, #tpu.memory_space<vmem>>, vector<1x512xf32>
    %200 = vector.broadcast %199 : vector<1x512xf32> to vector<2x512xf32>
    %201 = arith.addf %198, %200 : vector<2x512xf32>
    %cst_71 = arith.constant 0.000000e+00 : f32
    %202 = vector.broadcast %cst_71 : f32 to vector<2x512xf32>
    %203 = arith.maximumf %201, %202 : vector<2x512xf32>
    %204 = arith.truncf %203 : vector<2x512xf32> to vector<2x512xbf16>
    %c0_72 = arith.constant 0 : index
    %c0_73 = arith.constant 0 : index
    %205 = vector.load %arg22[%c0_72, %c0_73] : memref<512x256xbf16, #tpu.memory_space<vmem>>, vector<512x256xbf16>
    %cst_74 = arith.constant dense<0.000000e+00> : vector<2x256xf32>
    %206 = tpu.matmul %204, %205, %cst_74 {dimension_numbers = #tpu.dot_dimension_numbers<[1], [0], [0], [1], [0, 0, 1, 1], [], []>} : vector<2x512xbf16>, vector<512x256xbf16>, vector<2x256xf32> -> vector<2x256xf32>
    %c0_75 = arith.constant 0 : index
    %c0_76 = arith.constant 0 : index
    %207 = vector.load %arg23[%c0_75, %c0_76] : memref<1x256xf32, #tpu.memory_space<vmem>>, vector<1x256xf32>
    %208 = vector.broadcast %207 : vector<1x256xf32> to vector<2x256xf32>
    %209 = arith.addf %206, %208 : vector<2x256xf32>
    %cst_77 = arith.constant 0.000000e+00 : f32
    %210 = vector.broadcast %cst_77 : f32 to vector<2x256xf32>
    %211 = arith.maximumf %209, %210 : vector<2x256xf32>
    %212 = arith.truncf %211 : vector<2x256xf32> to vector<2x256xbf16>
    %c0_78 = arith.constant 0 : index
    %c0_79 = arith.constant 0 : index
    %213 = vector.load %arg24[%c0_78, %c0_79] : memref<256x2xbf16, #tpu.memory_space<vmem>>, vector<256x2xbf16>
    %cst_80 = arith.constant dense<0.000000e+00> : vector<2x2xf32>
    %214 = tpu.matmul %212, %213, %cst_80 {dimension_numbers = #tpu.dot_dimension_numbers<[1], [0], [0], [1], [0, 0, 1, 1], [], []>} : vector<2x256xbf16>, vector<256x2xbf16>, vector<2x2xf32> -> vector<2x2xf32>
    %c0_81 = arith.constant 0 : index
    %c0_82 = arith.constant 0 : index
    %215 = vector.load %arg25[%c0_81, %c0_82] : memref<1x2xf32, #tpu.memory_space<vmem>>, vector<1x2xf32>
    %216 = vector.broadcast %215 : vector<1x2xf32> to vector<2x2xf32>
    %217 = arith.addf %214, %216 : vector<2x2xf32>
    %cst_83 = arith.constant dense<0xFF800000> : vector<2xf32>
    %218 = vector.multi_reduction <maximumf>, %217, %cst_83 [1] : vector<2x2xf32> to vector<2xf32>
    %219 = vector.shape_cast %218 : vector<2xf32> to vector<2x1xf32>
    %220 = vector.broadcast %219 : vector<2x1xf32> to vector<2x2xf32>
    %221 = arith.subf %217, %220 : vector<2x2xf32>
    %222 = math.exp %221 : vector<2x2xf32>
    %cst_84 = arith.constant dense<0.000000e+00> : vector<2xf32>
    %223 = vector.multi_reduction <add>, %222, %cst_84 [1] : vector<2x2xf32> to vector<2xf32>
    %224 = vector.shape_cast %223 : vector<2xf32> to vector<2x1xf32>
    %225 = math.log %224 : vector<2x1xf32>
    %226 = arith.addf %219, %225 : vector<2x1xf32>
    %227 = vector.broadcast %226 : vector<2x1xf32> to vector<2x2xf32>
    %228 = arith.subf %217, %227 : vector<2x2xf32>
    %cst_85 = arith.constant 0.000000e+00 : f32
    %229 = vector.broadcast %cst_85 : f32 to vector<2x117xf32>
    %230 = tpu.concatenate %228, %97, %229 in 1 : vector<2x2xf32>, vector<2x9xf32>, vector<2x117xf32> -> vector<2x128xf32>
    %c0_86 = arith.constant 0 : index
    %c0_87 = arith.constant 0 : index
    %c0_88 = arith.constant 0 : index
    %231 = vector.load %arg26[%c0_86, %c0_87, %c0_88] : memref<1x2x128xf32, #tpu.memory_space<vmem>>, vector<1x2x128xf32>
    %232 = vector.shape_cast %231 : vector<1x2x128xf32> to vector<2x128xf32>
    %233 = vector.shape_cast %230 : vector<2x128xf32> to vector<1x2x128xf32>
    tpu.vector_store %arg26[%c0_86, %c0_87, %c0_88], %233 {strides = array<i32>} : memref<1x2x128xf32, #tpu.memory_space<vmem>>, vector<1x2x128xf32>,
    return
  }
  func.func @transform_0(%arg0: i32) -> (i32, i32, i32) {
    %c0_i32 = arith.constant 0 : i32
    %c0_i32_0 = arith.constant 0 : i32
    %c0_i32_1 = arith.constant 0 : i32
    return %arg0, %c0_i32, %c0_i32_0 : i32, i32, i32
  }
  func.func @transform_1(%arg0: i32) -> (i32, i32) {
    %c0_i32 = arith.constant 0 : i32
    %c0_i32_0 = arith.constant 0 : i32
    %c0_i32_1 = arith.constant 0 : i32
    return %c0_i32, %c0_i32_0 : i32, i32
  }
  func.func @transform_2(%arg0: i32) -> (i32, i32) {
    %c0_i32 = arith.constant 0 : i32
    %c0_i32_0 = arith.constant 0 : i32
    %c0_i32_1 = arith.constant 0 : i32
    return %c0_i32, %c0_i32_0 : i32, i32
  }
  func.func @transform_3(%arg0: i32) -> (i32, i32) {
    %c0_i32 = arith.constant 0 : i32
    %c0_i32_0 = arith.constant 0 : i32
    %c0_i32_1 = arith.constant 0 : i32
    return %c0_i32, %c0_i32_0 : i32, i32
  }
  func.func @transform_4(%arg0: i32) -> (i32, i32) {
    %c0_i32 = arith.constant 0 : i32
    %c0_i32_0 = arith.constant 0 : i32
    %c0_i32_1 = arith.constant 0 : i32
    return %c0_i32, %c0_i32_0 : i32, i32
  }
  func.func @transform_5(%arg0: i32) -> (i32, i32) {
    %c0_i32 = arith.constant 0 : i32
    %c0_i32_0 = arith.constant 0 : i32
    %c0_i32_1 = arith.constant 0 : i32
    return %c0_i32, %c0_i32_0 : i32, i32
  }
  func.func @transform_6(%arg0: i32) -> (i32, i32) {
    %c0_i32 = arith.constant 0 : i32
    %c0_i32_0 = arith.constant 0 : i32
    %c0_i32_1 = arith.constant 0 : i32
    return %c0_i32, %c0_i32_0 : i32, i32
  }
  func.func @transform_7(%arg0: i32) -> (i32, i32) {
    %c0_i32 = arith.constant 0 : i32
    %c0_i32_0 = arith.constant 0 : i32
    %c0_i32_1 = arith.constant 0 : i32
    return %c0_i32, %c0_i32_0 : i32, i32
  }
  func.func @transform_8(%arg0: i32) -> (i32, i32) {
    %c0_i32 = arith.constant 0 : i32
    %c0_i32_0 = arith.constant 0 : i32
    %c0_i32_1 = arith.constant 0 : i32
    return %c0_i32, %c0_i32_0 : i32, i32
  }
  func.func @transform_9(%arg0: i32) -> (i32, i32) {
    %c0_i32 = arith.constant 0 : i32
    %c0_i32_0 = arith.constant 0 : i32
    %c0_i32_1 = arith.constant 0 : i32
    return %c0_i32, %c0_i32_0 : i32, i32
  }
  func.func @transform_10(%arg0: i32) -> (i32, i32) {
    %c0_i32 = arith.constant 0 : i32
    %c0_i32_0 = arith.constant 0 : i32
    %c0_i32_1 = arith.constant 0 : i32
    return %c0_i32, %c0_i32_0 : i32, i32
  }
  func.func @transform_11(%arg0: i32) -> (i32, i32) {
    %c0_i32 = arith.constant 0 : i32
    %c0_i32_0 = arith.constant 0 : i32
    %c0_i32_1 = arith.constant 0 : i32
    return %c0_i32, %c0_i32_0 : i32, i32
  }
  func.func @transform_12(%arg0: i32) -> (i32, i32) {
    %c0_i32 = arith.constant 0 : i32
    %c0_i32_0 = arith.constant 0 : i32
    %c0_i32_1 = arith.constant 0 : i32
    return %c0_i32, %c0_i32_0 : i32, i32
  }
  func.func @transform_13(%arg0: i32) -> (i32, i32) {
    %c0_i32 = arith.constant 0 : i32
    %c0_i32_0 = arith.constant 0 : i32
    %c0_i32_1 = arith.constant 0 : i32
    return %c0_i32, %c0_i32_0 : i32, i32
  }
  func.func @transform_14(%arg0: i32) -> (i32, i32) {
    %c0_i32 = arith.constant 0 : i32
    %c0_i32_0 = arith.constant 0 : i32
    %c0_i32_1 = arith.constant 0 : i32
    return %c0_i32, %c0_i32_0 : i32, i32
  }
  func.func @transform_15(%arg0: i32) -> (i32, i32) {
    %c0_i32 = arith.constant 0 : i32
    %c0_i32_0 = arith.constant 0 : i32
    %c0_i32_1 = arith.constant 0 : i32
    return %c0_i32, %c0_i32_0 : i32, i32
  }
  func.func @transform_16(%arg0: i32) -> (i32, i32) {
    %c0_i32 = arith.constant 0 : i32
    %c0_i32_0 = arith.constant 0 : i32
    %c0_i32_1 = arith.constant 0 : i32
    return %c0_i32, %c0_i32_0 : i32, i32
  }
  func.func @transform_17(%arg0: i32) -> (i32, i32) {
    %c0_i32 = arith.constant 0 : i32
    %c0_i32_0 = arith.constant 0 : i32
    %c0_i32_1 = arith.constant 0 : i32
    return %c0_i32, %c0_i32_0 : i32, i32
  }
  func.func @transform_18(%arg0: i32) -> (i32, i32) {
    %c0_i32 = arith.constant 0 : i32
    %c0_i32_0 = arith.constant 0 : i32
    %c0_i32_1 = arith.constant 0 : i32
    return %c0_i32, %c0_i32_0 : i32, i32
  }
  func.func @transform_19(%arg0: i32) -> (i32, i32) {
    %c0_i32 = arith.constant 0 : i32
    %c0_i32_0 = arith.constant 0 : i32
    %c0_i32_1 = arith.constant 0 : i32
    return %c0_i32, %c0_i32_0 : i32, i32
  }
  func.func @transform_20(%arg0: i32) -> (i32, i32) {
    %c0_i32 = arith.constant 0 : i32
    %c0_i32_0 = arith.constant 0 : i32
    %c0_i32_1 = arith.constant 0 : i32
    return %c0_i32, %c0_i32_0 : i32, i32
  }
  func.func @transform_21(%arg0: i32) -> (i32, i32) {
    %c0_i32 = arith.constant 0 : i32
    %c0_i32_0 = arith.constant 0 : i32
    %c0_i32_1 = arith.constant 0 : i32
    return %c0_i32, %c0_i32_0 : i32, i32
  }
  func.func @transform_22(%arg0: i32) -> (i32, i32) {
    %c0_i32 = arith.constant 0 : i32
    %c0_i32_0 = arith.constant 0 : i32
    %c0_i32_1 = arith.constant 0 : i32
    return %c0_i32, %c0_i32_0 : i32, i32
  }
  func.func @transform_23(%arg0: i32) -> (i32, i32) {
    %c0_i32 = arith.constant 0 : i32
    %c0_i32_0 = arith.constant 0 : i32
    %c0_i32_1 = arith.constant 0 : i32
    return %c0_i32, %c0_i32_0 : i32, i32
  }
  func.func @transform_24(%arg0: i32) -> (i32, i32) {
    %c0_i32 = arith.constant 0 : i32
    %c0_i32_0 = arith.constant 0 : i32
    %c0_i32_1 = arith.constant 0 : i32
    return %c0_i32, %c0_i32_0 : i32, i32
  }
  func.func @transform_25(%arg0: i32) -> (i32, i32, i32) {
    %c0_i32 = arith.constant 0 : i32
    %c0_i32_0 = arith.constant 0 : i32
    %c0_i32_1 = arith.constant 0 : i32
    return %arg0, %c0_i32, %c0_i32_0 : i32, i32, i32
  }
}

</mosaic_0001>

<llo_original>
// kernel: tpu_custom_call.1
$region0: #{tpu_custom_call.1}
  #allocation0 [shape = 'u32[]', space=smem, size = 0x4, offset = 0x4, fixed_abs, tag = 'smem constant byte address 0x4 - core index']
  #allocation1 [shape = 'u32[144,128]{1,0:T(1,128)}', space=vmem, size = 0x12000, scoped, tag = 'internal scratch']
  %s0 = inlined_call_operand.vmem [shape: f32[4,3,128], index: 0, kind: input, shape index: {}]
  %s1 = inlined_call_operand.vmem [shape: f32[3,64], index: 1, kind: input, shape index: {}]
  %s2 = inlined_call_operand.vmem [shape: f32[1,64], index: 2, kind: input, shape index: {}]
  %s3 = inlined_call_operand.vmem [shape: bf16[64,128], index: 3, kind: input, shape index: {}]
  %s4 = inlined_call_operand.vmem [shape: f32[1,128], index: 4, kind: input, shape index: {}]
  %s5 = inlined_call_operand.hbm [shape: bf16[128,1024], index: 5, kind: input, shape index: {}]
  %s6 = inlined_call_operand.vmem [shape: f32[1,1024], index: 6, kind: input, shape index: {}]
  %s7 = inlined_call_operand.hbm [shape: bf16[1024,512], index: 7, kind: input, shape index: {}]
  %s8 = inlined_call_operand.vmem [shape: f32[1,512], index: 8, kind: input, shape index: {}]
  %s9 = inlined_call_operand.hbm [shape: bf16[512,256], index: 9, kind: input, shape index: {}]
  %s10 = inlined_call_operand.vmem [shape: f32[1,256], index: 10, kind: input, shape index: {}]
  %s11 = inlined_call_operand.vmem [shape: bf16[256,9], index: 11, kind: input, shape index: {}]
  %s12 = inlined_call_operand.vmem [shape: f32[1,9], index: 12, kind: input, shape index: {}]
  %s13 = inlined_call_operand.vmem [shape: f32[3,64], index: 13, kind: input, shape index: {}]
  %s14 = inlined_call_operand.vmem [shape: f32[1,64], index: 14, kind: input, shape index: {}]
  %s15 = inlined_call_operand.vmem [shape: bf16[64,128], index: 15, kind: input, shape index: {}]
  %s16 = inlined_call_operand.vmem [shape: f32[1,128], index: 16, kind: input, shape index: {}]
  %s17 = inlined_call_operand.hbm [shape: bf16[128,1024], index: 17, kind: input, shape index: {}]
  %s18 = inlined_call_operand.vmem [shape: f32[1,1024], index: 18, kind: input, shape index: {}]
  %s19 = inlined_call_operand.hbm [shape: bf16[1024,512], index: 19, kind: input, shape index: {}]
  %s20 = inlined_call_operand.vmem [shape: f32[1,512], index: 20, kind: input, shape index: {}]
  %s21 = inlined_call_operand.hbm [shape: bf16[512,256], index: 21, kind: input, shape index: {}]
  %s22 = inlined_call_operand.vmem [shape: f32[1,256], index: 22, kind: input, shape index: {}]
  %s23 = inlined_call_operand.vmem [shape: bf16[256,2], index: 23, kind: input, shape index: {}]
  %s24 = inlined_call_operand.vmem [shape: f32[1,2], index: 24, kind: input, shape index: {}]
  %s25 = inlined_call_operand.hbm [shape: f32[2,2,128], index: 25, kind: output, shape index: {}]
  %s26 = sld [smem:[#allocation0]]
  $region157: #{tpu_custom_call.1} parent=0
    _
  %s28 = ssub.s32 1, %s26
  %s29 = scalar_select 0, %s28, %s26
  $region1: #{tpu_custom_call.1} parent=0
    #allocation2 [shape = 'u8[262144]{0}', space=vmem, size = 0x40000, scoped, tag = 'input window, operand 5, single buffered']
    #allocation3 [shape = 's32[2]{0}', space=sflag, size = 0x8, scoped, tag = 'scoped memory for tpu_custom_call.1']
    #allocation4 [shape = 's32[2]{0}', space=sflag, size = 0x8, scoped, tag = 'scoped memory for tpu_custom_call.1']
    #allocation5 [shape = 'u8[1048576]{0}', space=vmem, size = 0x100000, scoped, tag = 'input window, operand 7, single buffered']
    #allocation6 [shape = 's32[1]{0}', space=sflag, size = 0x4, scoped, tag = 'scoped memory for tpu_custom_call.1']
    #allocation7 [shape = 'u8[262144]{0}', space=vmem, size = 0x40000, scoped, tag = 'input window, operand 9, single buffered']
    #allocation8 [shape = 'u8[262144]{0}', space=vmem, size = 0x40000, scoped, tag = 'input window, operand 17, single buffered']
    #allocation9 [shape = 's32[1]{0}', space=sflag, size = 0x4, scoped, tag = 'scoped memory for tpu_custom_call.1']
    #allocation10 [shape = 'u8[1048576]{0}', space=vmem, size = 0x100000, scoped, tag = 'input window, operand 19, single buffered']
    #allocation11 [shape = 'u8[262144]{0}', space=vmem, size = 0x40000, scoped, tag = 'input window, operand 21, single buffered']
    #allocation12 [shape = 's32[1]{0}', space=sflag, size = 0x4, scoped, tag = 'scoped memory for tpu_custom_call.1']
    #allocation13 [shape = 'u8[2048]{0}', space=vmem, size = 0x800, scoped, tag = 'output window, operand 0']
    %30 = vsyncpa [#allocation3], 0
    %31 = vsyncpa [#allocation6], 0
    %32 = vsyncpa [#allocation9], 0
    %33 = vsyncpa [#allocation12], 0
    %34 = vsyncpa [#allocation4], 0
    %s35 = scalar_lea.sflag [#allocation4], 1
    %36 = vsyncpa %s35, 0
    loop: start=0, step=1, limit=4
    $region2: #{tpu_custom_call.1} parent=1 // loop_pre_header
      _
    $region3: #{tpu_custom_call.1} parent=1 // loop_header
      %s38 = sphi 0, %s42
      %p39 = scmp.ge.s32.totalorder %s38, 4
      %s48 = sphi 0, %s50
      %s51 = sphi 0, %s48
      %s52 = sphi 0, %s51
      %s68 = sphi 0, %s52
      %s72 = sphi 0, %s72
      %s74 = sphi 0, %s72
      %s75 = sphi 0, %s74
      %s89 = sphi 0, %s75
      %s93 = sphi 0, %s93
      %s95 = sphi 0, %s93
      %s96 = sphi 0, %s95
      %s110 = sphi 0, %s96
      %s114 = sphi 0, %s114
      %s116 = sphi 0, %s114
      %s117 = sphi 0, %s116
      %s131 = sphi 0, %s117
      %s135 = sphi 0, %s135
      %s137 = sphi 0, %s135
      %s138 = sphi 0, %s137
      %s152 = sphi 0, %s138
      %s156 = sphi 0, %s156
      %s158 = sphi 0, %s156
      %s159 = sphi 0, %s158
      %s173 = sphi 0, %s159
      %s177 = sphi 0, %s177
      %s179 = sphi 0, %s177
      %s180 = sphi 0, %s179
      %s194 = sphi 0, %s180
      %s198 = sphi 0, %s198
      %s200 = sphi 0, %s198
      %s201 = sphi 0, %s200
      %s215 = sphi 0, %s201
      %s219 = sphi 0, %s219
      %s221 = sphi 0, %s219
      %s222 = sphi 0, %s221
      %s236 = sphi 0, %s222
      %s240 = sphi 0, %s240
      %s242 = sphi 0, %s240
      %s243 = sphi 0, %s242
      %s257 = sphi 0, %s243
      %s261 = sphi 0, %s261
      %s263 = sphi 0, %s261
      %s264 = sphi 0, %s263
      %s278 = sphi 0, %s264
      %s282 = sphi 0, %s282
      %s284 = sphi 0, %s282
      %s285 = sphi 0, %s284
      %s299 = sphi 0, %s285
      %s303 = sphi 0, %s303
      %s305 = sphi 0, %s303
      %s306 = sphi 0, %s305
      %s320 = sphi 0, %s306
      %s324 = sphi 0, %s324
      %s326 = sphi 0, %s324
      %s327 = sphi 0, %s326
      %s341 = sphi 0, %s327
      %s345 = sphi 0, %s345
      %s347 = sphi 0, %s345
      %s348 = sphi 0, %s347
      %s362 = sphi 0, %s348
      %s366 = sphi 0, %s366
      %s368 = sphi 0, %s366
      %s369 = sphi 0, %s368
      %s383 = sphi 0, %s369
      %s387 = sphi 0, %s387
      %s389 = sphi 0, %s387
      %s390 = sphi 0, %s389
      %s404 = sphi 0, %s390
      %s408 = sphi 0, %s408
      %s410 = sphi 0, %s408
      %s411 = sphi 0, %s410
      %s425 = sphi 0, %s411
      %s429 = sphi 0, %s429
      %s431 = sphi 0, %s429
      %s432 = sphi 0, %s431
      %s446 = sphi 0, %s432
      %s450 = sphi 0, %s450
      %s452 = sphi 0, %s450
      %s453 = sphi 0, %s452
      %s467 = sphi 0, %s453
      %s471 = sphi 0, %s471
      %s473 = sphi 0, %s471
      %s474 = sphi 0, %s473
      %s488 = sphi 0, %s474
      %s492 = sphi 0, %s492
      %s494 = sphi 0, %s492
      %s495 = sphi 0, %s494
      %s509 = sphi 0, %s495
      %s513 = sphi 0, %s513
      %s515 = sphi 0, %s513
      %s516 = sphi 0, %s515
      %s530 = sphi 0, %s516
      %s534 = sphi 0, %s534
      %s536 = sphi 0, %s534
      %s537 = sphi 0, %s536
      %s551 = sphi 0, %s537
      %s555 = sphi 0, %s555
      %s557 = sphi 0, %s555
      %s558 = sphi 0, %s557
      %s572 = sphi 0, %s558
      %s578 = sphi 0, %s580
      %s581 = sphi 0, %s578
      %s582 = sphi 0, %s581
      %s598 = sphi 0, %s582
    $region4: #{tpu_custom_call.1} parent=1 // loop_header_branch
      %41 = sbr.rel (%p39) target = $region8
    $region5: #{tpu_custom_call.1} parent=1 // loop_body
      %s43 = ssub.s32 %s38, 1
      %s44 = ssub.s32 %s38, 2
      %s45 = sadd.s32 %s38, 1
      %s46 = ssub.s32 %s38, %s45
      %p47 = scmp.eq.s32.totalorder %s46, 0
      %s49 = sadd.s32 %s48, 1
      %s50 = scalar_select %p47, %s48, %s49
      %p53 = pneg %p47
      %p54 = scmp.eq.s32.totalorder %s38, 1
      %p55 = por %p53, %p54
      %p56 = scmp.ne.s32.totalorder %s48, %s51
      %p57 = scmp.eq.s32.totalorder %s38, 0
      %p58 = por %p56, %p57
      %p59 = scmp.ne.s32.totalorder %s48, %s51
      %p60 = scmp.eq.s32.totalorder %s43, 1
      %p61 = por %p59, %p60
      %p62 = scmp.ne.s32.totalorder %s51, %s52
      %p63 = scmp.eq.s32.totalorder %s43, 0
      %p64 = por %p62, %p63
      %p65 = scmp.ne.s32.totalorder %s51, %s52
      %p66 = scmp.eq.s32.totalorder %s44, 1
      %p67 = por %p65, %p66
      %p69 = scmp.ne.s32.totalorder %s52, %s68
      %p70 = scmp.eq.s32.totalorder %s44, 0
      %p71 = por %p69, %p70
      %s73 = sadd.s32 %s72, 1
      %p76 = scmp.eq.s32.totalorder %s38, 1
      %p77 = scmp.ne.s32.totalorder %s72, %s74
      %p78 = scmp.eq.s32.totalorder %s38, 0
      %p79 = por %p77, %p78
      %p80 = scmp.ne.s32.totalorder %s72, %s74
      %p81 = scmp.eq.s32.totalorder %s43, 1
      %p82 = por %p80, %p81
      %p83 = scmp.ne.s32.totalorder %s74, %s75
      %p84 = scmp.eq.s32.totalorder %s43, 0
      %p85 = por %p83, %p84
      %p86 = scmp.ne.s32.totalorder %s74, %s75
      %p87 = scmp.eq.s32.totalorder %s44, 1
      %p88 = por %p86, %p87
      %p90 = scmp.ne.s32.totalorder %s75, %s89
      %p91 = scmp.eq.s32.totalorder %s44, 0
      %p92 = por %p90, %p91
      %s94 = sadd.s32 %s93, 1
      %p97 = scmp.eq.s32.totalorder %s38, 1
      %p98 = scmp.ne.s32.totalorder %s93, %s95
      %p99 = scmp.eq.s32.totalorder %s38, 0
      %p100 = por %p98, %p99
      %p101 = scmp.ne.s32.totalorder %s93, %s95
      %p102 = scmp.eq.s32.totalorder %s43, 1
      %p103 = por %p101, %p102
      %p104 = scmp.ne.s32.totalorder %s95, %s96
      %p105 = scmp.eq.s32.totalorder %s43, 0
      %p106 = por %p104, %p105
      %p107 = scmp.ne.s32.totalorder %s95, %s96
      %p108 = scmp.eq.s32.totalorder %s44, 1
      %p109 = por %p107, %p108
      %p111 = scmp.ne.s32.totalorder %s96, %s110
      %p112 = scmp.eq.s32.totalorder %s44, 0
      %p113 = por %p111, %p112
      %s115 = sadd.s32 %s114, 1
      %p118 = scmp.eq.s32.totalorder %s38, 1
      %p119 = scmp.ne.s32.totalorder %s114, %s116
      %p120 = scmp.eq.s32.totalorder %s38, 0
      %p121 = por %p119, %p120
      %p122 = scmp.ne.s32.totalorder %s114, %s116
      %p123 = scmp.eq.s32.totalorder %s43, 1
      %p124 = por %p122, %p123
      %p125 = scmp.ne.s32.totalorder %s116, %s117
      %p126 = scmp.eq.s32.totalorder %s43, 0
      %p127 = por %p125, %p126
      %p128 = scmp.ne.s32.totalorder %s116, %s117
      %p129 = scmp.eq.s32.totalorder %s44, 1
      %p130 = por %p128, %p129
      %p132 = scmp.ne.s32.totalorder %s117, %s131
      %p133 = scmp.eq.s32.totalorder %s44, 0
      %p134 = por %p132, %p133
      %s136 = sadd.s32 %s135, 1
      %p139 = scmp.eq.s32.totalorder %s38, 1
      %p140 = scmp.ne.s32.totalorder %s135, %s137
      %p141 = scmp.eq.s32.totalorder %s38, 0
      %p142 = por %p140, %p141
      %p143 = scmp.ne.s32.totalorder %s135, %s137
      %p144 = scmp.eq.s32.totalorder %s43, 1
      %p145 = por %p143, %p144
      %p146 = scmp.ne.s32.totalorder %s137, %s138
      %p147 = scmp.eq.s32.totalorder %s43, 0
      %p148 = por %p146, %p147
      %p149 = scmp.ne.s32.totalorder %s137, %s138
      %p150 = scmp.eq.s32.totalorder %s44, 1
      %p151 = por %p149, %p150
      %p153 = scmp.ne.s32.totalorder %s138, %s152
      %p154 = scmp.eq.s32.totalorder %s44, 0
      %p155 = por %p153, %p154
      %s157 = sadd.s32 %s156, 1
      %p160 = scmp.eq.s32.totalorder %s38, 1
      %p161 = scmp.ne.s32.totalorder %s156, %s158
      %p162 = scmp.eq.s32.totalorder %s38, 0
      %p163 = por %p161, %p162
      %p164 = scmp.ne.s32.totalorder %s156, %s158
      %p165 = scmp.eq.s32.totalorder %s43, 1
      %p166 = por %p164, %p165
      %p167 = scmp.ne.s32.totalorder %s158, %s159
      %p168 = scmp.eq.s32.totalorder %s43, 0
      %p169 = por %p167, %p168
      %p170 = scmp.ne.s32.totalorder %s158, %s159
      %p171 = scmp.eq.s32.totalorder %s44, 1
      %p172 = por %p170, %p171
      %p174 = scmp.ne.s32.totalorder %s159, %s173
      %p175 = scmp.eq.s32.totalorder %s44, 0
      %p176 = por %p174, %p175
      %s178 = sadd.s32 %s177, 1
      %p181 = scmp.eq.s32.totalorder %s38, 1
      %p182 = scmp.ne.s32.totalorder %s177, %s179
      %p183 = scmp.eq.s32.totalorder %s38, 0
      %p184 = por %p182, %p183
      %p185 = scmp.ne.s32.totalorder %s177, %s179
      %p186 = scmp.eq.s32.totalorder %s43, 1
      %p187 = por %p185, %p186
      %p188 = scmp.ne.s32.totalorder %s179, %s180
      %p189 = scmp.eq.s32.totalorder %s43, 0
      %p190 = por %p188, %p189
      %p191 = scmp.ne.s32.totalorder %s179, %s180
      %p192 = scmp.eq.s32.totalorder %s44, 1
      %p193 = por %p191, %p192
      %p195 = scmp.ne.s32.totalorder %s180, %s194
      %p196 = scmp.eq.s32.totalorder %s44, 0
      %p197 = por %p195, %p196
      %s199 = sadd.s32 %s198, 1
      %p202 = scmp.eq.s32.totalorder %s38, 1
      %p203 = scmp.ne.s32.totalorder %s198, %s200
      %p204 = scmp.eq.s32.totalorder %s38, 0
      %p205 = por %p203, %p204
      %p206 = scmp.ne.s32.totalorder %s198, %s200
      %p207 = scmp.eq.s32.totalorder %s43, 1
      %p208 = por %p206, %p207
      %p209 = scmp.ne.s32.totalorder %s200, %s201
      %p210 = scmp.eq.s32.totalorder %s43, 0
      %p211 = por %p209, %p210
      %p212 = scmp.ne.s32.totalorder %s200, %s201
      %p213 = scmp.eq.s32.totalorder %s44, 1
      %p214 = por %p212, %p213
      %p216 = scmp.ne.s32.totalorder %s201, %s215
      %p217 = scmp.eq.s32.totalorder %s44, 0
      %p218 = por %p216, %p217
      %s220 = sadd.s32 %s219, 1
      %p223 = scmp.eq.s32.totalorder %s38, 1
      %p224 = scmp.ne.s32.totalorder %s219, %s221
      %p225 = scmp.eq.s32.totalorder %s38, 0
      %p226 = por %p224, %p225
      %p227 = scmp.ne.s32.totalorder %s219, %s221
      %p228 = scmp.eq.s32.totalorder %s43, 1
      %p229 = por %p227, %p228
      %p230 = scmp.ne.s32.totalorder %s221, %s222
      %p231 = scmp.eq.s32.totalorder %s43, 0
      %p232 = por %p230, %p231
      %p233 = scmp.ne.s32.totalorder %s221, %s222
      %p234 = scmp.eq.s32.totalorder %s44, 1
      %p235 = por %p233, %p234
      %p237 = scmp.ne.s32.totalorder %s222, %s236
      %p238 = scmp.eq.s32.totalorder %s44, 0
      %p239 = por %p237, %p238
      %s241 = sadd.s32 %s240, 1
      %p244 = scmp.eq.s32.totalorder %s38, 1
      %p245 = scmp.ne.s32.totalorder %s240, %s242
      %p246 = scmp.eq.s32.totalorder %s38, 0
      %p247 = por %p245, %p246
      %p248 = scmp.ne.s32.totalorder %s240, %s242
      %p249 = scmp.eq.s32.totalorder %s43, 1
      %p250 = por %p248, %p249
      %p251 = scmp.ne.s32.totalorder %s242, %s243
      %p252 = scmp.eq.s32.totalorder %s43, 0
      %p253 = por %p251, %p252
      %p254 = scmp.ne.s32.totalorder %s242, %s243
      %p255 = scmp.eq.s32.totalorder %s44, 1
      %p256 = por %p254, %p255
      %p258 = scmp.ne.s32.totalorder %s243, %s257
      %p259 = scmp.eq.s32.totalorder %s44, 0
      %p260 = por %p258, %p259
      %s262 = sadd.s32 %s261, 1
      %p265 = scmp.eq.s32.totalorder %s38, 1
      %p266 = scmp.ne.s32.totalorder %s261, %s263
      %p267 = scmp.eq.s32.totalorder %s38, 0
      %p268 = por %p266, %p267
      %p269 = scmp.ne.s32.totalorder %s261, %s263
      %p270 = scmp.eq.s32.totalorder %s43, 1
      %p271 = por %p269, %p270
      %p272 = scmp.ne.s32.totalorder %s263, %s264
      %p273 = scmp.eq.s32.totalorder %s43, 0
      %p274 = por %p272, %p273
      %p275 = scmp.ne.s32.totalorder %s263, %s264
      %p276 = scmp.eq.s32.totalorder %s44, 1
      %p277 = por %p275, %p276
      %p279 = scmp.ne.s32.totalorder %s264, %s278
      %p280 = scmp.eq.s32.totalorder %s44, 0
      %p281 = por %p279, %p280
      %s283 = sadd.s32 %s282, 1
      %p286 = scmp.eq.s32.totalorder %s38, 1
      %p287 = scmp.ne.s32.totalorder %s282, %s284
      %p288 = scmp.eq.s32.totalorder %s38, 0
      %p289 = por %p287, %p288
      %p290 = scmp.ne.s32.totalorder %s282, %s284
      %p291 = scmp.eq.s32.totalorder %s43, 1
      %p292 = por %p290, %p291
      %p293 = scmp.ne.s32.totalorder %s284, %s285
      %p294 = scmp.eq.s32.totalorder %s43, 0
      %p295 = por %p293, %p294
      %p296 = scmp.ne.s32.totalorder %s284, %s285
      %p297 = scmp.eq.s32.totalorder %s44, 1
      %p298 = por %p296, %p297
      %p300 = scmp.ne.s32.totalorder %s285, %s299
      %p301 = scmp.eq.s32.totalorder %s44, 0
      %p302 = por %p300, %p301
      %s304 = sadd.s32 %s303, 1
      %p307 = scmp.eq.s32.totalorder %s38, 1
      %p308 = scmp.ne.s32.totalorder %s303, %s305
      %p309 = scmp.eq.s32.totalorder %s38, 0
      %p310 = por %p308, %p309
      %p311 = scmp.ne.s32.totalorder %s303, %s305
      %p312 = scmp.eq.s32.totalorder %s43, 1
      %p313 = por %p311, %p312
      %p314 = scmp.ne.s32.totalorder %s305, %s306
      %p315 = scmp.eq.s32.totalorder %s43, 0
      %p316 = por %p314, %p315
      %p317 = scmp.ne.s32.totalorder %s305, %s306
      %p318 = scmp.eq.s32.totalorder %s44, 1
      %p319 = por %p317, %p318
      %p321 = scmp.ne.s32.totalorder %s306, %s320
      %p322 = scmp.eq.s32.totalorder %s44, 0
      %p323 = por %p321, %p322
      %s325 = sadd.s32 %s324, 1
      %p328 = scmp.eq.s32.totalorder %s38, 1
      %p329 = scmp.ne.s32.totalorder %s324, %s326
      %p330 = scmp.eq.s32.totalorder %s38, 0
      %p331 = por %p329, %p330
      %p332 = scmp.ne.s32.totalorder %s324, %s326
      %p333 = scmp.eq.s32.totalorder %s43, 1
      %p334 = por %p332, %p333
      %p335 = scmp.ne.s32.totalorder %s326, %s327
      %p336 = scmp.eq.s32.totalorder %s43, 0
      %p337 = por %p335, %p336
      %p338 = scmp.ne.s32.totalorder %s326, %s327
      %p339 = scmp.eq.s32.totalorder %s44, 1
      %p340 = por %p338, %p339
      %p342 = scmp.ne.s32.totalorder %s327, %s341
      %p343 = scmp.eq.s32.totalorder %s44, 0
      %p344 = por %p342, %p343
      %s346 = sadd.s32 %s345, 1
      %p349 = scmp.eq.s32.totalorder %s38, 1
      %p350 = scmp.ne.s32.totalorder %s345, %s347
      %p351 = scmp.eq.s32.totalorder %s38, 0
      %p352 = por %p350, %p351
      %p353 = scmp.ne.s32.totalorder %s345, %s347
      %p354 = scmp.eq.s32.totalorder %s43, 1
      %p355 = por %p353, %p354
      %p356 = scmp.ne.s32.totalorder %s347, %s348
      %p357 = scmp.eq.s32.totalorder %s43, 0
      %p358 = por %p356, %p357
      %p359 = scmp.ne.s32.totalorder %s347, %s348
      %p360 = scmp.eq.s32.totalorder %s44, 1
      %p361 = por %p359, %p360
      %p363 = scmp.ne.s32.totalorder %s348, %s362
      %p364 = scmp.eq.s32.totalorder %s44, 0
      %p365 = por %p363, %p364
      %s367 = sadd.s32 %s366, 1
      %p370 = scmp.eq.s32.totalorder %s38, 1
      %p371 = scmp.ne.s32.totalorder %s366, %s368
      %p372 = scmp.eq.s32.totalorder %s38, 0
      %p373 = por %p371, %p372
      %p374 = scmp.ne.s32.totalorder %s366, %s368
      %p375 = scmp.eq.s32.totalorder %s43, 1
      %p376 = por %p374, %p375
      %p377 = scmp.ne.s32.totalorder %s368, %s369
      %p378 = scmp.eq.s32.totalorder %s43, 0
      %p379 = por %p377, %p378
      %p380 = scmp.ne.s32.totalorder %s368, %s369
      %p381 = scmp.eq.s32.totalorder %s44, 1
      %p382 = por %p380, %p381
      %p384 = scmp.ne.s32.totalorder %s369, %s383
      %p385 = scmp.eq.s32.totalorder %s44, 0
      %p386 = por %p384, %p385
      %s388 = sadd.s32 %s387, 1
      %p391 = scmp.eq.s32.totalorder %s38, 1
      %p392 = scmp.ne.s32.totalorder %s387, %s389
      %p393 = scmp.eq.s32.totalorder %s38, 0
      %p394 = por %p392, %p393
      %p395 = scmp.ne.s32.totalorder %s387, %s389
      %p396 = scmp.eq.s32.totalorder %s43, 1
      %p397 = por %p395, %p396
      %p398 = scmp.ne.s32.totalorder %s389, %s390
      %p399 = scmp.eq.s32.totalorder %s43, 0
      %p400 = por %p398, %p399
      %p401 = scmp.ne.s32.totalorder %s389, %s390
      %p402 = scmp.eq.s32.totalorder %s44, 1
      %p403 = por %p401, %p402
      %p405 = scmp.ne.s32.totalorder %s390, %s404
      %p406 = scmp.eq.s32.totalorder %s44, 0
      %p407 = por %p405, %p406
      %s409 = sadd.s32 %s408, 1
      %p412 = scmp.eq.s32.totalorder %s38, 1
      %p413 = scmp.ne.s32.totalorder %s408, %s410
      %p414 = scmp.eq.s32.totalorder %s38, 0
      %p415 = por %p413, %p414
      %p416 = scmp.ne.s32.totalorder %s408, %s410
      %p417 = scmp.eq.s32.totalorder %s43, 1
      %p418 = por %p416, %p417
      %p419 = scmp.ne.s32.totalorder %s410, %s411
      %p420 = scmp.eq.s32.totalorder %s43, 0
      %p421 = por %p419, %p420
      %p422 = scmp.ne.s32.totalorder %s410, %s411
      %p423 = scmp.eq.s32.totalorder %s44, 1
      %p424 = por %p422, %p423
      %p426 = scmp.ne.s32.totalorder %s411, %s425
      %p427 = scmp.eq.s32.totalorder %s44, 0
      %p428 = por %p426, %p427
      %s430 = sadd.s32 %s429, 1
      %p433 = scmp.eq.s32.totalorder %s38, 1
      %p434 = scmp.ne.s32.totalorder %s429, %s431
      %p435 = scmp.eq.s32.totalorder %s38, 0
      %p436 = por %p434, %p435
      %p437 = scmp.ne.s32.totalorder %s429, %s431
      %p438 = scmp.eq.s32.totalorder %s43, 1
      %p439 = por %p437, %p438
      %p440 = scmp.ne.s32.totalorder %s431, %s432
      %p441 = scmp.eq.s32.totalorder %s43, 0
      %p442 = por %p440, %p441
      %p443 = scmp.ne.s32.totalorder %s431, %s432
      %p444 = scmp.eq.s32.totalorder %s44, 1
      %p445 = por %p443, %p444
      %p447 = scmp.ne.s32.totalorder %s432, %s446
      %p448 = scmp.eq.s32.totalorder %s44, 0
      %p449 = por %p447, %p448
      %s451 = sadd.s32 %s450, 1
      %p454 = scmp.eq.s32.totalorder %s38, 1
      %p455 = scmp.ne.s32.totalorder %s450, %s452
      %p456 = scmp.eq.s32.totalorder %s38, 0
      %p457 = por %p455, %p456
      %p458 = scmp.ne.s32.totalorder %s450, %s452
      %p459 = scmp.eq.s32.totalorder %s43, 1
      %p460 = por %p458, %p459
      %p461 = scmp.ne.s32.totalorder %s452, %s453
      %p462 = scmp.eq.s32.totalorder %s43, 0
      %p463 = por %p461, %p462
      %p464 = scmp.ne.s32.totalorder %s452, %s453
      %p465 = scmp.eq.s32.totalorder %s44, 1
      %p466 = por %p464, %p465
      %p468 = scmp.ne.s32.totalorder %s453, %s467
      %p469 = scmp.eq.s32.totalorder %s44, 0
      %p470 = por %p468, %p469
      %s472 = sadd.s32 %s471, 1
      %p475 = scmp.eq.s32.totalorder %s38, 1
      %p476 = scmp.ne.s32.totalorder %s471, %s473
      %p477 = scmp.eq.s32.totalorder %s38, 0
      %p478 = por %p476, %p477
      %p479 = scmp.ne.s32.totalorder %s471, %s473
      %p480 = scmp.eq.s32.totalorder %s43, 1
      %p481 = por %p479, %p480
      %p482 = scmp.ne.s32.totalorder %s473, %s474
      %p483 = scmp.eq.s32.totalorder %s43, 0
      %p484 = por %p482, %p483
      %p485 = scmp.ne.s32.totalorder %s473, %s474
      %p486 = scmp.eq.s32.totalorder %s44, 1
      %p487 = por %p485, %p486
      %p489 = scmp.ne.s32.totalorder %s474, %s488
      %p490 = scmp.eq.s32.totalorder %s44, 0
      %p491 = por %p489, %p490
      %s493 = sadd.s32 %s492, 1
      %p496 = scmp.eq.s32.totalorder %s38, 1
      %p497 = scmp.ne.s32.totalorder %s492, %s494
      %p498 = scmp.eq.s32.totalorder %s38, 0
      %p499 = por %p497, %p498
      %p500 = scmp.ne.s32.totalorder %s492, %s494
      %p501 = scmp.eq.s32.totalorder %s43, 1
      %p502 = por %p500, %p501
      %p503 = scmp.ne.s32.totalorder %s494, %s495
      %p504 = scmp.eq.s32.totalorder %s43, 0
      %p505 = por %p503, %p504
      %p506 = scmp.ne.s32.totalorder %s494, %s495
      %p507 = scmp.eq.s32.totalorder %s44, 1
      %p508 = por %p506, %p507
      %p510 = scmp.ne.s32.totalorder %s495, %s509
      %p511 = scmp.eq.s32.totalorder %s44, 0
      %p512 = por %p510, %p511
      %s514 = sadd.s32 %s513, 1
      %p517 = scmp.eq.s32.totalorder %s38, 1
      %p518 = scmp.ne.s32.totalorder %s513, %s515
      %p519 = scmp.eq.s32.totalorder %s38, 0
      %p520 = por %p518, %p519
      %p521 = scmp.ne.s32.totalorder %s513, %s515
      %p522 = scmp.eq.s32.totalorder %s43, 1
      %p523 = por %p521, %p522
      %p524 = scmp.ne.s32.totalorder %s515, %s516
      %p525 = scmp.eq.s32.totalorder %s43, 0
      %p526 = por %p524, %p525
      %p527 = scmp.ne.s32.totalorder %s515, %s516
      %p528 = scmp.eq.s32.totalorder %s44, 1
      %p529 = por %p527, %p528
      %p531 = scmp.ne.s32.totalorder %s516, %s530
      %p532 = scmp.eq.s32.totalorder %s44, 0
      %p533 = por %p531, %p532
      %s535 = sadd.s32 %s534, 1
      %p538 = scmp.eq.s32.totalorder %s38, 1
      %p539 = scmp.ne.s32.totalorder %s534, %s536
      %p540 = scmp.eq.s32.totalorder %s38, 0
      %p541 = por %p539, %p540
      %p542 = scmp.ne.s32.totalorder %s534, %s536
      %p543 = scmp.eq.s32.totalorder %s43, 1
      %p544 = por %p542, %p543
      %p545 = scmp.ne.s32.totalorder %s536, %s537
      %p546 = scmp.eq.s32.totalorder %s43, 0
      %p547 = por %p545, %p546
      %p548 = scmp.ne.s32.totalorder %s536, %s537
      %p549 = scmp.eq.s32.totalorder %s44, 1
      %p550 = por %p548, %p549
      %p552 = scmp.ne.s32.totalorder %s537, %s551
      %p553 = scmp.eq.s32.totalorder %s44, 0
      %p554 = por %p552, %p553
      %s556 = sadd.s32 %s555, 1
      %p559 = scmp.eq.s32.totalorder %s38, 1
      %p560 = scmp.ne.s32.totalorder %s555, %s557
      %p561 = scmp.eq.s32.totalorder %s38, 0
      %p562 = por %p560, %p561
      %p563 = scmp.ne.s32.totalorder %s555, %s557
      %p564 = scmp.eq.s32.totalorder %s43, 1
      %p565 = por %p563, %p564
      %p566 = scmp.ne.s32.totalorder %s557, %s558
      %p567 = scmp.eq.s32.totalorder %s43, 0
      %p568 = por %p566, %p567
      %p569 = scmp.ne.s32.totalorder %s557, %s558
      %p570 = scmp.eq.s32.totalorder %s44, 1
      %p571 = por %p569, %p570
      %p573 = scmp.ne.s32.totalorder %s558, %s572
      %p574 = scmp.eq.s32.totalorder %s44, 0
      %p575 = por %p573, %p574
      %s576 = ssub.s32 %s38, %s45
      %p577 = scmp.eq.s32.totalorder %s576, 0
      %s579 = sadd.s32 %s578, 1
      %s580 = scalar_select %p577, %s578, %s579
      %p583 = pneg %p577
      %p584 = scmp.eq.s32.totalorder %s38, 1
      %p585 = por %p583, %p584
      %p586 = scmp.ne.s32.totalorder %s578, %s581
      %p587 = scmp.eq.s32.totalorder %s38, 0
      %p588 = por %p586, %p587
      %p589 = scmp.ne.s32.totalorder %s578, %s581
      %p590 = scmp.eq.s32.totalorder %s43, 1
      %p591 = por %p589, %p590
      %p592 = scmp.ne.s32.totalorder %s581, %s582
      %p593 = scmp.eq.s32.totalorder %s43, 0
      %p594 = por %p592, %p593
      %p595 = scmp.ne.s32.totalorder %s581, %s582
      %p596 = scmp.eq.s32.totalorder %s44, 1
      %p597 = por %p595, %p596
      %p599 = scmp.ne.s32.totalorder %s582, %s598
      %p600 = scmp.eq.s32.totalorder %s44, 0
      %p601 = por %p599, %p600
      %p602 = scmp.le.s32.totalorder 1, %s38
      %p603 = scmp.lt.s32.totalorder %s38, 3
      %p604 = pnand %p602, %p603
      %p605 = pneg %p604
      // Predicated region
      $region9: #{tpu_custom_call.1} parent=5 // pred_check
        _
      $region10: #{tpu_custom_call.1} parent=5 // pred_check_branch
        %607 = sbr.rel (%p604) target = $region12
      $region11: #{tpu_custom_call.1} parent=5 // pred_region
        %s608 = ssub.s32 %s38, 1
        // Predicated region
        $region13: #{tpu_custom_call.1} parent=11 // pred_check
          %p609 = pneg %p85
        $region14: #{tpu_custom_call.1} parent=11 // pred_check_branch
          %611 = sbr.rel (%p609) target = $region16
        $region15: #{tpu_custom_call.1} parent=11 // pred_region
          _
        $region16: #{tpu_custom_call.1} parent=11 // pred_fallthru
          _
        // Predicated region
        $region17: #{tpu_custom_call.1} parent=11 // pred_check
          %p612 = pneg %p106
        $region18: #{tpu_custom_call.1} parent=11 // pred_check_branch
          %614 = sbr.rel (%p612) target = $region20
        $region19: #{tpu_custom_call.1} parent=11 // pred_region
          _
        $region20: #{tpu_custom_call.1} parent=11 // pred_fallthru
          _
        // Predicated region
        $region21: #{tpu_custom_call.1} parent=11 // pred_check
          %p615 = pneg %p127
        $region22: #{tpu_custom_call.1} parent=11 // pred_check_branch
          %617 = sbr.rel (%p615) target = $region24
        $region23: #{tpu_custom_call.1} parent=11 // pred_region
          _
        $region24: #{tpu_custom_call.1} parent=11 // pred_fallthru
          _
        // Predicated region
        $region25: #{tpu_custom_call.1} parent=11 // pred_check
          %p618 = pneg %p148
        $region26: #{tpu_custom_call.1} parent=11 // pred_check_branch
          %620 = sbr.rel (%p618) target = $region28
        $region27: #{tpu_custom_call.1} parent=11 // pred_region
          _
        $region28: #{tpu_custom_call.1} parent=11 // pred_fallthru
          _
        // Predicated region
        $region29: #{tpu_custom_call.1} parent=11 // pred_check
          %p621 = pneg %p169
        $region30: #{tpu_custom_call.1} parent=11 // pred_check_branch
          %623 = sbr.rel (%p621) target = $region32
        $region31: #{tpu_custom_call.1} parent=11 // pred_region
          %s625 = ssub.s32 8192, 8192
          %626 = vsyncadd [#allocation3], %s625
          %s627 = sshll.u32 [#allocation2], 4
          %s628 = int_to_ptr.vmem [resolvable:$true] %s627
          %633 = dma.hbm_to_vmem [thread:$0]  %s5, 8192, %s628, [#allocation3], 512, 512, 32
        $region32: #{tpu_custom_call.1} parent=11 // pred_fallthru
          _
        // Predicated region
        $region33: #{tpu_custom_call.1} parent=11 // pred_check
          %p634 = pneg %p190
        $region34: #{tpu_custom_call.1} parent=11 // pred_check_branch
          %636 = sbr.rel (%p634) target = $region36
        $region35: #{tpu_custom_call.1} parent=11 // pred_region
          _
        $region36: #{tpu_custom_call.1} parent=11 // pred_fallthru
          _
        // Predicated region
        $region37: #{tpu_custom_call.1} parent=11 // pred_check
          %p637 = pneg %p211
        $region38: #{tpu_custom_call.1} parent=11 // pred_check_branch
          %639 = sbr.rel (%p637) target = $region40
        $region39: #{tpu_custom_call.1} parent=11 // pred_region
          %s641 = ssub.s32 32768, 32768
          %642 = vsyncadd [#allocation6], %s641
          %s643 = sshll.u32 [#allocation5], 4
          %s644 = int_to_ptr.vmem [resolvable:$true] %s643
          %649 = dma.hbm_to_vmem [thread:$0]  %s7, 32768, %s644, [#allocation6], 256, 256, 16
        $region40: #{tpu_custom_call.1} parent=11 // pred_fallthru
          _
        // Predicated region
        $region41: #{tpu_custom_call.1} parent=11 // pred_check
          %p650 = pneg %p232
        $region42: #{tpu_custom_call.1} parent=11 // pred_check_branch
          %652 = sbr.rel (%p650) target = $region44
        $region43: #{tpu_custom_call.1} parent=11 // pred_region
          _
        $region44: #{tpu_custom_call.1} parent=11 // pred_fallthru
          _
        // Predicated region
        $region45: #{tpu_custom_call.1} parent=11 // pred_check
          %p653 = pneg %p253
        $region46: #{tpu_custom_call.1} parent=11 // pred_check_branch
          %655 = sbr.rel (%p653) target = $region48
        $region47: #{tpu_custom_call.1} parent=11 // pred_region
          %s657 = ssub.s32 8192, 8192
          %658 = vsyncadd [#allocation6], %s657
          %s659 = sshll.u32 [#allocation7], 4
          %s660 = int_to_ptr.vmem [resolvable:$true] %s659
          %665 = dma.hbm_to_vmem [thread:$0]  %s9, 8192, %s660, [#allocation6], 128, 128, 8
        $region48: #{tpu_custom_call.1} parent=11 // pred_fallthru
          _
        // Predicated region
        $region49: #{tpu_custom_call.1} parent=11 // pred_check
          %p666 = pneg %p274
        $region50: #{tpu_custom_call.1} parent=11 // pred_check_branch
          %668 = sbr.rel (%p666) target = $region52
        $region51: #{tpu_custom_call.1} parent=11 // pred_region
          _
        $region52: #{tpu_custom_call.1} parent=11 // pred_fallthru
          _
        // Predicated region
        $region53: #{tpu_custom_call.1} parent=11 // pred_check
          %p669 = pneg %p295
        $region54: #{tpu_custom_call.1} parent=11 // pred_check_branch
          %671 = sbr.rel (%p669) target = $region56
        $region55: #{tpu_custom_call.1} parent=11 // pred_region
          _
        $region56: #{tpu_custom_call.1} parent=11 // pred_fallthru
          _
        // Predicated region
        $region57: #{tpu_custom_call.1} parent=11 // pred_check
          %p672 = pneg %p316
        $region58: #{tpu_custom_call.1} parent=11 // pred_check_branch
          %674 = sbr.rel (%p672) target = $region60
        $region59: #{tpu_custom_call.1} parent=11 // pred_region
          _
        $region60: #{tpu_custom_call.1} parent=11 // pred_fallthru
          _
        // Predicated region
        $region61: #{tpu_custom_call.1} parent=11 // pred_check
          %p675 = pneg %p337
        $region62: #{tpu_custom_call.1} parent=11 // pred_check_branch
          %677 = sbr.rel (%p675) target = $region64
        $region63: #{tpu_custom_call.1} parent=11 // pred_region
          _
        $region64: #{tpu_custom_call.1} parent=11 // pred_fallthru
          _
        // Predicated region
        $region65: #{tpu_custom_call.1} parent=11 // pred_check
          %p678 = pneg %p358
        $region66: #{tpu_custom_call.1} parent=11 // pred_check_branch
          %680 = sbr.rel (%p678) target = $region68
        $region67: #{tpu_custom_call.1} parent=11 // pred_region
          _
        $region68: #{tpu_custom_call.1} parent=11 // pred_fallthru
          _
        // Predicated region
        $region69: #{tpu_custom_call.1} parent=11 // pred_check
          %p681 = pneg %p379
        $region70: #{tpu_custom_call.1} parent=11 // pred_check_branch
          %683 = sbr.rel (%p681) target = $region72
        $region71: #{tpu_custom_call.1} parent=11 // pred_region
          _
        $region72: #{tpu_custom_call.1} parent=11 // pred_fallthru
          _
        // Predicated region
        $region73: #{tpu_custom_call.1} parent=11 // pred_check
          %p684 = pneg %p400
        $region74: #{tpu_custom_call.1} parent=11 // pred_check_branch
          %686 = sbr.rel (%p684) target = $region76
        $region75: #{tpu_custom_call.1} parent=11 // pred_region
          _
        $region76: #{tpu_custom_call.1} parent=11 // pred_fallthru
          _
        // Predicated region
        $region77: #{tpu_custom_call.1} parent=11 // pred_check
          %p687 = pneg %p421
        $region78: #{tpu_custom_call.1} parent=11 // pred_check_branch
          %689 = sbr.rel (%p687) target = $region80
        $region79: #{tpu_custom_call.1} parent=11 // pred_region
          %s691 = ssub.s32 8192, 8192
          %692 = vsyncadd [#allocation9], %s691
          %s693 = sshll.u32 [#allocation8], 4
          %s694 = int_to_ptr.vmem [resolvable:$true] %s693
          %699 = dma.hbm_to_vmem [thread:$0]  %s17, 8192, %s694, [#allocation9], 512, 512, 32
        $region80: #{tpu_custom_call.1} parent=11 // pred_fallthru
          _
        // Predicated region
        $region81: #{tpu_custom_call.1} parent=11 // pred_check
          %p700 = pneg %p442
        $region82: #{tpu_custom_call.1} parent=11 // pred_check_branch
          %702 = sbr.rel (%p700) target = $region84
        $region83: #{tpu_custom_call.1} parent=11 // pred_region
          _
        $region84: #{tpu_custom_call.1} parent=11 // pred_fallthru
          _
        // Predicated region
        $region85: #{tpu_custom_call.1} parent=11 // pred_check
          %p703 = pneg %p463
        $region86: #{tpu_custom_call.1} parent=11 // pred_check_branch
          %705 = sbr.rel (%p703) target = $region88
        $region87: #{tpu_custom_call.1} parent=11 // pred_region
          %s707 = ssub.s32 32768, 32768
          %708 = vsyncadd [#allocation9], %s707
          %s709 = sshll.u32 [#allocation10], 4
          %s710 = int_to_ptr.vmem [resolvable:$true] %s709
          %715 = dma.hbm_to_vmem [thread:$0]  %s19, 32768, %s710, [#allocation9], 256, 256, 16
        $region88: #{tpu_custom_call.1} parent=11 // pred_fallthru
          _
        // Predicated region
        $region89: #{tpu_custom_call.1} parent=11 // pred_check
          %p716 = pneg %p484
        $region90: #{tpu_custom_call.1} parent=11 // pred_check_branch
          %718 = sbr.rel (%p716) target = $region92
        $region91: #{tpu_custom_call.1} parent=11 // pred_region
          _
        $region92: #{tpu_custom_call.1} parent=11 // pred_fallthru
          _
        // Predicated region
        $region93: #{tpu_custom_call.1} parent=11 // pred_check
          %p719 = pneg %p505
        $region94: #{tpu_custom_call.1} parent=11 // pred_check_branch
          %721 = sbr.rel (%p719) target = $region96
        $region95: #{tpu_custom_call.1} parent=11 // pred_region
          %s723 = ssub.s32 8192, 8192
          %724 = vsyncadd [#allocation12], %s723
          %s725 = sshll.u32 [#allocation11], 4
          %s726 = int_to_ptr.vmem [resolvable:$true] %s725
          %731 = dma.hbm_to_vmem [thread:$0]  %s21, 8192, %s726, [#allocation12], 128, 128, 8
        $region96: #{tpu_custom_call.1} parent=11 // pred_fallthru
          _
        // Predicated region
        $region97: #{tpu_custom_call.1} parent=11 // pred_check
          %p732 = pneg %p526
        $region98: #{tpu_custom_call.1} parent=11 // pred_check_branch
          %734 = sbr.rel (%p732) target = $region100
        $region99: #{tpu_custom_call.1} parent=11 // pred_region
          _
        $region100: #{tpu_custom_call.1} parent=11 // pred_fallthru
          _
        // Predicated region
        $region101: #{tpu_custom_call.1} parent=11 // pred_check
          %p735 = pneg %p547
        $region102: #{tpu_custom_call.1} parent=11 // pred_check_branch
          %737 = sbr.rel (%p735) target = $region104
        $region103: #{tpu_custom_call.1} parent=11 // pred_region
          _
        $region104: #{tpu_custom_call.1} parent=11 // pred_fallthru
          _
        // Predicated region
        $region105: #{tpu_custom_call.1} parent=11 // pred_check
          %p738 = pneg %p568
        $region106: #{tpu_custom_call.1} parent=11 // pred_check_branch
          %740 = sbr.rel (%p738) target = $region108
        $region107: #{tpu_custom_call.1} parent=11 // pred_region
          _
        $region108: #{tpu_custom_call.1} parent=11 // pred_fallthru
          _
      $region12: #{tpu_custom_call.1} parent=5 // pred_fallthru
        _
      %p741 = scmp.lt.s32.totalorder %s38, 2
      // Predicated region
      $region109: #{tpu_custom_call.1} parent=5 // pred_check
        %p742 = pneg %p741
      $region110: #{tpu_custom_call.1} parent=5 // pred_check_branch
        %744 = sbr.rel (%p742) target = $region112
      $region111: #{tpu_custom_call.1} parent=5 // pred_region
        // Predicated region
        $region113: #{tpu_custom_call.1} parent=111 // pred_check
          %p745 = pneg %p58
        $region114: #{tpu_custom_call.1} parent=111 // pred_check_branch
          %747 = sbr.rel (%p745) target = $region116
        $region115: #{tpu_custom_call.1} parent=111 // pred_region
          %s748 = smul.u32 2, %s38
          %p749 = scmp.lt.s32.totalorder %s748, 3
          %s750 = scalar_select %p749, %s748, 3
          %s751 = smul.addr %s750, 4
          %s752 = scalar_lea.vmem %s0, %s751
          %s753 = smul.u32 2, %s38
        $region116: #{tpu_custom_call.1} parent=111 // pred_fallthru
          _
      $region112: #{tpu_custom_call.1} parent=5 // pred_fallthru
        _
      %p754 = scmp.le.s32.totalorder 1, %s38
      %p755 = scmp.lt.s32.totalorder %s38, 3
      %p756 = pnand %p754, %p755
      %p757 = pneg %p756
      // Predicated region
      $region117: #{tpu_custom_call.1} parent=5 // pred_check
        _
      $region118: #{tpu_custom_call.1} parent=5 // pred_check_branch
        %759 = sbr.rel (%p756) target = $region120
      $region119: #{tpu_custom_call.1} parent=5 // pred_region
        %s760 = ssub.s32 %s38, 1
        // Predicated region
        $region121: #{tpu_custom_call.1} parent=119 // pred_check
          %p761 = pneg %p169
        $region122: #{tpu_custom_call.1} parent=119 // pred_check_branch
          %763 = sbr.rel (%p761) target = $region124
        $region123: #{tpu_custom_call.1} parent=119 // pred_region
          %764 = dma.done [#allocation3], 8192
        $region124: #{tpu_custom_call.1} parent=119 // pred_fallthru
          _
        // Predicated region
        $region125: #{tpu_custom_call.1} parent=119 // pred_check
          %p765 = pneg %p211
        $region126: #{tpu_custom_call.1} parent=119 // pred_check_branch
          %767 = sbr.rel (%p765) target = $region128
        $region127: #{tpu_custom_call.1} parent=119 // pred_region
          %768 = dma.done [#allocation6], 32768
        $region128: #{tpu_custom_call.1} parent=119 // pred_fallthru
          _
        // Predicated region
        $region129: #{tpu_custom_call.1} parent=119 // pred_check
          %p769 = pneg %p253
        $region130: #{tpu_custom_call.1} parent=119 // pred_check_branch
          %771 = sbr.rel (%p769) target = $region132
        $region131: #{tpu_custom_call.1} parent=119 // pred_region
          %772 = dma.done [#allocation6], 8192
        $region132: #{tpu_custom_call.1} parent=119 // pred_fallthru
          _
        // Predicated region
        $region133: #{tpu_custom_call.1} parent=119 // pred_check
          %p773 = pneg %p421
        $region134: #{tpu_custom_call.1} parent=119 // pred_check_branch
          %775 = sbr.rel (%p773) target = $region136
        $region135: #{tpu_custom_call.1} parent=119 // pred_region
          %776 = dma.done [#allocation9], 8192
        $region136: #{tpu_custom_call.1} parent=119 // pred_fallthru
          _
        // Predicated region
        $region137: #{tpu_custom_call.1} parent=119 // pred_check
          %p777 = pneg %p463
        $region138: #{tpu_custom_call.1} parent=119 // pred_check_branch
          %779 = sbr.rel (%p777) target = $region140
        $region139: #{tpu_custom_call.1} parent=119 // pred_region
          %780 = dma.done [#allocation9], 32768
        $region140: #{tpu_custom_call.1} parent=119 // pred_fallthru
          _
        // Predicated region
        $region141: #{tpu_custom_call.1} parent=119 // pred_check
          %p781 = pneg %p505
        $region142: #{tpu_custom_call.1} parent=119 // pred_check_branch
          %783 = sbr.rel (%p781) target = $region144
        $region143: #{tpu_custom_call.1} parent=119 // pred_region
          %784 = dma.done [#allocation12], 8192
        $region144: #{tpu_custom_call.1} parent=119 // pred_fallthru
          _
        %s785 = smul.u32 2, %s43
        %p786 = scmp.lt.s32.totalorder %s785, 3
        %s787 = scalar_select %p786, %s785, 3
        %s788 = smul.addr %s787, 4
        %s789 = scalar_lea.vmem %s0, %s788
        %p790 = pneg %p64
        %p791 = pneg %p61
        %p792 = pneg %p85
        %p793 = pneg %p82
        %p794 = pneg %p106
        %p795 = pneg %p103
        %p796 = pneg %p127
        %p797 = pneg %p124
        %p798 = pneg %p148
        %p799 = pneg %p145
        %p800 = pneg %p169
        %p801 = pneg %p166
        %p802 = pneg %p190
        %p803 = pneg %p187
        %p804 = pneg %p211
        %p805 = pneg %p208
        %p806 = pneg %p232
        %p807 = pneg %p229
        %p808 = pneg %p253
        %p809 = pneg %p250
        %p810 = pneg %p274
        %p811 = pneg %p271
        %p812 = pneg %p295
        %p813 = pneg %p292
        %p814 = pneg %p316
        %p815 = pneg %p313
        %p816 = pneg %p337
        %p817 = pneg %p334
        %p818 = pneg %p358
        %p819 = pneg %p355
        %p820 = pneg %p379
        %p821 = pneg %p376
        %p822 = pneg %p400
        %p823 = pneg %p397
        %p824 = pneg %p421
        %p825 = pneg %p418
        %p826 = pneg %p442
        %p827 = pneg %p439
        %p828 = pneg %p463
        %p829 = pneg %p460
        %p830 = pneg %p484
        %p831 = pneg %p481
        %p832 = pneg %p505
        %p833 = pneg %p502
        %p834 = pneg %p526
        %p835 = pneg %p523
        %p836 = pneg %p547
        %p837 = pneg %p544
        %p838 = pneg %p568
        %p839 = pneg %p565
        %p840 = pneg %p594
        %p841 = pneg %p591
        %s842 = sand.u32 %s581, 1
        %s843 = scalar_lea.sflag [#allocation4], %s842
        %s844 = sand.u32 %s581, 1
        %s845 = smul.addr %s844, 2
        %s846 = scalar_lea.vmem [#allocation13], %s845
        %s847 = smul.u32 2, %s43
        %p848 = scmp.lt.s32.totalorder %s847, 3
        %s849 = scalar_select %p848, %s847, 3
        %s850 = smul.addr %s849, 4
        %s851 = scalar_lea.vmem %s0, %s850
        %s852 = smul.u32 2, %s43
        %v854 = vld [vmem:[%s1] sm:$0x7]
        %v855 = vld [vmem:[%s2] sm:$0x1]
        %v856 = vld [vmem:[%s851] sm:$0x7]
        %v857 = vld [vmem:[%s851 + $0x4] sm:$0x7]
        %858 = vxpose.xlu0.b32.start [1/16] %v856, 128
        %859 = vxpose.xlu0.b32.cont [2/16] 0.0, 128
        %860 = vxpose.xlu0.b32.cont [3/16] 0.0, 128
        %861 = vxpose.xlu0.b32.cont [4/16] 0.0, 128
        %862 = vxpose.xlu0.b32.cont [5/16] 0.0, 128
        %863 = vxpose.xlu0.b32.cont [6/16] 0.0, 128
        %864 = vxpose.xlu0.b32.cont [7/16] 0.0, 128
        %865 = vxpose.xlu0.b32.cont [8/16] 0.0, 128
        %866 = vxpose.xlu0.b32.cont [9/16] 0.0, 128
        %867 = vxpose.xlu0.b32.cont [10/16] 0.0, 128
        %868 = vxpose.xlu0.b32.cont [11/16] 0.0, 128
        %869 = vxpose.xlu0.b32.cont [12/16] 0.0, 128
        %870 = vxpose.xlu0.b32.cont [13/16] 0.0, 128
        %871 = vxpose.xlu0.b32.cont [14/16] 0.0, 128
        %872 = vxpose.xlu0.b32.cont [15/16] 0.0, 128
        %873 = vxpose.xlu0.b32.end [16/16] 0.0, 128
        %v874 = vpop.trf.xlu0
        %v875 = vpop.trf.xlu0
        %v876 = vpop.trf.xlu0
        %v877 = vpop.trf.xlu0
        %v878 = vpop.trf.xlu0
        %v879 = vpop.trf.xlu0
        %v880 = vpop.trf.xlu0
        %v881 = vpop.trf.xlu0
        %v882 = vpop.trf.xlu0
        %v883 = vpop.trf.xlu0
        %v884 = vpop.trf.xlu0
        %v885 = vpop.trf.xlu0
        %v886 = vpop.trf.xlu0
        %v887 = vpop.trf.xlu0
        %v888 = vpop.trf.xlu0
        %v889 = vpop.trf.xlu0
        %890 = vxpose.xlu0.b32.start [1/16] %v857, 128
        %891 = vxpose.xlu0.b32.cont [2/16] 0.0, 128
        %892 = vxpose.xlu0.b32.cont [3/16] 0.0, 128
        %893 = vxpose.xlu0.b32.cont [4/16] 0.0, 128
        %894 = vxpose.xlu0.b32.cont [5/16] 0.0, 128
        %895 = vxpose.xlu0.b32.cont [6/16] 0.0, 128
        %896 = vxpose.xlu0.b32.cont [7/16] 0.0, 128
        %897 = vxpose.xlu0.b32.cont [8/16] 0.0, 128
        %898 = vxpose.xlu0.b32.cont [9/16] 0.0, 128
        %899 = vxpose.xlu0.b32.cont [10/16] 0.0, 128
        %900 = vxpose.xlu0.b32.cont [11/16] 0.0, 128
        %901 = vxpose.xlu0.b32.cont [12/16] 0.0, 128
        %902 = vxpose.xlu0.b32.cont [13/16] 0.0, 128
        %903 = vxpose.xlu0.b32.cont [14/16] 0.0, 128
        %904 = vxpose.xlu0.b32.cont [15/16] 0.0, 128
        %905 = vxpose.xlu0.b32.end [16/16] 0.0, 128
        %v906 = vpop.trf.xlu0
        %v907 = vpop.trf.xlu0
        %v908 = vpop.trf.xlu0
        %v909 = vpop.trf.xlu0
        %v910 = vpop.trf.xlu0
        %v911 = vpop.trf.xlu0
        %v912 = vpop.trf.xlu0
        %v913 = vpop.trf.xlu0
        %v914 = vpop.trf.xlu0
        %v915 = vpop.trf.xlu0
        %v916 = vpop.trf.xlu0
        %v917 = vpop.trf.xlu0
        %v918 = vpop.trf.xlu0
        %v919 = vpop.trf.xlu0
        %v920 = vpop.trf.xlu0
        %v921 = vpop.trf.xlu0
        %923 = vset.pattern.permute.xlu0 0
        %924 = vperm.xlu0 %923, %v874
        %v925 = vpop.permute.xlu0 %924
        %928 = vset.pattern.permute.xlu0 0
        %929 = vperm.xlu0 %928, %v875
        %v930 = vpop.permute.xlu0 %929
        %933 = vset.pattern.permute.xlu0 0
        %934 = vperm.xlu0 %933, %v876
        %v935 = vpop.permute.xlu0 %934
        %938 = vset.pattern.permute.xlu0 0
        %939 = vperm.xlu0 %938, %v877
        %v940 = vpop.permute.xlu0 %939
        %943 = vset.pattern.permute.xlu0 0
        %944 = vperm.xlu0 %943, %v878
        %v945 = vpop.permute.xlu0 %944
        %948 = vset.pattern.permute.xlu0 0
        %949 = vperm.xlu0 %948, %v879
        %v950 = vpop.permute.xlu0 %949
        %953 = vset.pattern.permute.xlu0 0
        %954 = vperm.xlu0 %953, %v880
        %v955 = vpop.permute.xlu0 %954
        %958 = vset.pattern.permute.xlu0 0
        %959 = vperm.xlu0 %958, %v881
        %v960 = vpop.permute.xlu0 %959
        %963 = vset.pattern.permute.xlu0 0
        %964 = vperm.xlu0 %963, %v882
        %v965 = vpop.permute.xlu0 %964
        %968 = vset.pattern.permute.xlu0 0
        %969 = vperm.xlu0 %968, %v883
        %v970 = vpop.permute.xlu0 %969
        %973 = vset.pattern.permute.xlu0 0
        %974 = vperm.xlu0 %973, %v884
        %v975 = vpop.permute.xlu0 %974
        %978 = vset.pattern.permute.xlu0 0
        %979 = vperm.xlu0 %978, %v885
        %v980 = vpop.permute.xlu0 %979
        %983 = vset.pattern.permute.xlu0 0
        %984 = vperm.xlu0 %983, %v886
        %v985 = vpop.permute.xlu0 %984
        %988 = vset.pattern.permute.xlu0 0
        %989 = vperm.xlu0 %988, %v887
        %v990 = vpop.permute.xlu0 %989
        %993 = vset.pattern.permute.xlu0 0
        %994 = vperm.xlu0 %993, %v888
        %v995 = vpop.permute.xlu0 %994
        %998 = vset.pattern.permute.xlu0 0
        %999 = vperm.xlu0 %998, %v889
        %v1000 = vpop.permute.xlu0 %999
        %1003 = vset.pattern.permute.xlu0 0
        %1004 = vperm.xlu0 %1003, %v906
        %v1005 = vpop.permute.xlu0 %1004
        %1008 = vset.pattern.permute.xlu0 0
        %1009 = vperm.xlu0 %1008, %v907
        %v1010 = vpop.permute.xlu0 %1009
        %1013 = vset.pattern.permute.xlu0 0
        %1014 = vperm.xlu0 %1013, %v908
        %v1015 = vpop.permute.xlu0 %1014
        %1018 = vset.pattern.permute.xlu0 0
        %1019 = vperm.xlu0 %1018, %v909
        %v1020 = vpop.permute.xlu0 %1019
        %1023 = vset.pattern.permute.xlu0 0
        %1024 = vperm.xlu0 %1023, %v910
        %v1025 = vpop.permute.xlu0 %1024
        %1028 = vset.pattern.permute.xlu0 0
        %1029 = vperm.xlu0 %1028, %v911
        %v1030 = vpop.permute.xlu0 %1029
        %1033 = vset.pattern.permute.xlu0 0
        %1034 = vperm.xlu0 %1033, %v912
        %v1035 = vpop.permute.xlu0 %1034
        %1038 = vset.pattern.permute.xlu0 0
        %1039 = vperm.xlu0 %1038, %v913
        %v1040 = vpop.permute.xlu0 %1039
        %1043 = vset.pattern.permute.xlu0 0
        %1044 = vperm.xlu0 %1043, %v914
        %v1045 = vpop.permute.xlu0 %1044
        %1048 = vset.pattern.permute.xlu0 0
        %1049 = vperm.xlu0 %1048, %v915
        %v1050 = vpop.permute.xlu0 %1049
        %1053 = vset.pattern.permute.xlu0 0
        %1054 = vperm.xlu0 %1053, %v916
        %v1055 = vpop.permute.xlu0 %1054
        %1058 = vset.pattern.permute.xlu0 0
        %1059 = vperm.xlu0 %1058, %v917
        %v1060 = vpop.permute.xlu0 %1059
        %1063 = vset.pattern.permute.xlu0 0
        %1064 = vperm.xlu0 %1063, %v918
        %v1065 = vpop.permute.xlu0 %1064
        %1068 = vset.pattern.permute.xlu0 0
        %1069 = vperm.xlu0 %1068, %v919
        %v1070 = vpop.permute.xlu0 %1069
        %1073 = vset.pattern.permute.xlu0 0
        %1074 = vperm.xlu0 %1073, %v920
        %v1075 = vpop.permute.xlu0 %1074
        %1078 = vset.pattern.permute.xlu0 0
        %1079 = vperm.xlu0 %1078, %v921
        %v1080 = vpop.permute.xlu0 %1079
        %v1082 = vlaneseq
        %v1083 = vshrl.u32 %v1082, 7
        %v1084 = vsub.s32 0, %v1083
        %v1085 = vrot.slane %v854, %v1084
        %v1086 = vmul.f32 %v925, %v1085
        %v1087 = vmul.f32 %v930, %v1085
        %v1088 = vmul.f32 %v935, %v1085
        %v1089 = vmul.f32 %v940, %v1085
        %v1090 = vmul.f32 %v945, %v1085
        %v1091 = vmul.f32 %v950, %v1085
        %v1092 = vmul.f32 %v955, %v1085
        %v1093 = vmul.f32 %v960, %v1085
        %v1094 = vmul.f32 %v965, %v1085
        %v1095 = vmul.f32 %v970, %v1085
        %v1096 = vmul.f32 %v975, %v1085
        %v1097 = vmul.f32 %v980, %v1085
        %v1098 = vmul.f32 %v985, %v1085
        %v1099 = vmul.f32 %v990, %v1085
        %v1100 = vmul.f32 %v995, %v1085
        %v1101 = vmul.f32 %v1000, %v1085
        %v1102 = vmul.f32 %v1005, %v1085
        %v1103 = vmul.f32 %v1010, %v1085
        %v1104 = vmul.f32 %v1015, %v1085
        %v1105 = vmul.f32 %v1020, %v1085
        %v1106 = vmul.f32 %v1025, %v1085
        %v1107 = vmul.f32 %v1030, %v1085
        %v1108 = vmul.f32 %v1035, %v1085
        %v1109 = vmul.f32 %v1040, %v1085
        %v1110 = vmul.f32 %v1045, %v1085
        %v1111 = vmul.f32 %v1050, %v1085
        %v1112 = vmul.f32 %v1055, %v1085
        %v1113 = vmul.f32 %v1060, %v1085
        %v1114 = vmul.f32 %v1065, %v1085
        %v1115 = vmul.f32 %v1070, %v1085
        %v1116 = vmul.f32 %v1075, %v1085
        %v1117 = vmul.f32 %v1080, %v1085
        %1118 = vset.pattern.permute.xlu0 1
        %1119 = vperm.xlu0 %1118, %v874
        %v1120 = vpop.permute.xlu0 %1119
        %1122 = vset.pattern.permute.xlu0 1
        %1123 = vperm.xlu0 %1122, %v875
        %v1124 = vpop.permute.xlu0 %1123
        %1126 = vset.pattern.permute.xlu0 1
        %1127 = vperm.xlu0 %1126, %v876
        %v1128 = vpop.permute.xlu0 %1127
        %1130 = vset.pattern.permute.xlu0 1
        %1131 = vperm.xlu0 %1130, %v877
        %v1132 = vpop.permute.xlu0 %1131
        %1134 = vset.pattern.permute.xlu0 1
        %1135 = vperm.xlu0 %1134, %v878
        %v1136 = vpop.permute.xlu0 %1135
        %1138 = vset.pattern.permute.xlu0 1
        %1139 = vperm.xlu0 %1138, %v879
        %v1140 = vpop.permute.xlu0 %1139
        %1142 = vset.pattern.permute.xlu0 1
        %1143 = vperm.xlu0 %1142, %v880
        %v1144 = vpop.permute.xlu0 %1143
        %1146 = vset.pattern.permute.xlu0 1
        %1147 = vperm.xlu0 %1146, %v881
        %v1148 = vpop.permute.xlu0 %1147
        %1150 = vset.pattern.permute.xlu0 1
        %1151 = vperm.xlu0 %1150, %v882
        %v1152 = vpop.permute.xlu0 %1151
        %1154 = vset.pattern.permute.xlu0 1
        %1155 = vperm.xlu0 %1154, %v883
        %v1156 = vpop.permute.xlu0 %1155
        %1158 = vset.pattern.permute.xlu0 1
        %1159 = vperm.xlu0 %1158, %v884
        %v1160 = vpop.permute.xlu0 %1159
        %1162 = vset.pattern.permute.xlu0 1
        %1163 = vperm.xlu0 %1162, %v885
        %v1164 = vpop.permute.xlu0 %1163
        %1166 = vset.pattern.permute.xlu0 1
        %1167 = vperm.xlu0 %1166, %v886
        %v1168 = vpop.permute.xlu0 %1167
        %1170 = vset.pattern.permute.xlu0 1
        %1171 = vperm.xlu0 %1170, %v887
        %v1172 = vpop.permute.xlu0 %1171
        %1174 = vset.pattern.permute.xlu0 1
        %1175 = vperm.xlu0 %1174, %v888
        %v1176 = vpop.permute.xlu0 %1175
        %1178 = vset.pattern.permute.xlu0 1
        %1179 = vperm.xlu0 %1178, %v889
        %v1180 = vpop.permute.xlu0 %1179
        %1182 = vset.pattern.permute.xlu0 1
        %1183 = vperm.xlu0 %1182, %v906
        %v1184 = vpop.permute.xlu0 %1183
        %1186 = vset.pattern.permute.xlu0 1
        %1187 = vperm.xlu0 %1186, %v907
        %v1188 = vpop.permute.xlu0 %1187
        %1190 = vset.pattern.permute.xlu0 1
        %1191 = vperm.xlu0 %1190, %v908
        %v1192 = vpop.permute.xlu0 %1191
        %1194 = vset.pattern.permute.xlu0 1
        %1195 = vperm.xlu0 %1194, %v909
        %v1196 = vpop.permute.xlu0 %1195
        %1198 = vset.pattern.permute.xlu0 1
        %1199 = vperm.xlu0 %1198, %v910
        %v1200 = vpop.permute.xlu0 %1199
        %1202 = vset.pattern.permute.xlu0 1
        %1203 = vperm.xlu0 %1202, %v911
        %v1204 = vpop.permute.xlu0 %1203
        %1206 = vset.pattern.permute.xlu0 1
        %1207 = vperm.xlu0 %1206, %v912
        %v1208 = vpop.permute.xlu0 %1207
        %1210 = vset.pattern.permute.xlu0 1
        %1211 = vperm.xlu0 %1210, %v913
        %v1212 = vpop.permute.xlu0 %1211
        %1214 = vset.pattern.permute.xlu0 1
        %1215 = vperm.xlu0 %1214, %v914
        %v1216 = vpop.permute.xlu0 %1215
        %1218 = vset.pattern.permute.xlu0 1
        %1219 = vperm.xlu0 %1218, %v915
        %v1220 = vpop.permute.xlu0 %1219
        %1222 = vset.pattern.permute.xlu0 1
        %1223 = vperm.xlu0 %1222, %v916
        %v1224 = vpop.permute.xlu0 %1223
        %1226 = vset.pattern.permute.xlu0 1
        %1227 = vperm.xlu0 %1226, %v917
        %v1228 = vpop.permute.xlu0 %1227
        %1230 = vset.pattern.permute.xlu0 1
        %1231 = vperm.xlu0 %1230, %v918
        %v1232 = vpop.permute.xlu0 %1231
        %1234 = vset.pattern.permute.xlu0 1
        %1235 = vperm.xlu0 %1234, %v919
        %v1236 = vpop.permute.xlu0 %1235
        %1238 = vset.pattern.permute.xlu0 1
        %1239 = vperm.xlu0 %1238, %v920
        %v1240 = vpop.permute.xlu0 %1239
        %1242 = vset.pattern.permute.xlu0 1
        %1243 = vperm.xlu0 %1242, %v921
        %v1244 = vpop.permute.xlu0 %1243
        %v1246 = vlaneseq
        %v1247 = vshrl.u32 %v1246, 7
        %v1248 = vsub.s32 1, %v1247
        %v1249 = vrot.slane %v854, %v1248
        %v1250 = vmul.f32 %v1120, %v1249
        %v1251 = vmul.f32 %v1124, %v1249
        %v1252 = vmul.f32 %v1128, %v1249
        %v1253 = vmul.f32 %v1132, %v1249
        %v1254 = vmul.f32 %v1136, %v1249
        %v1255 = vmul.f32 %v1140, %v1249
        %v1256 = vmul.f32 %v1144, %v1249
        %v1257 = vmul.f32 %v1148, %v1249
        %v1258 = vmul.f32 %v1152, %v1249
        %v1259 = vmul.f32 %v1156, %v1249
        %v1260 = vmul.f32 %v1160, %v1249
        %v1261 = vmul.f32 %v1164, %v1249
        %v1262 = vmul.f32 %v1168, %v1249
        %v1263 = vmul.f32 %v1172, %v1249
        %v1264 = vmul.f32 %v1176, %v1249
        %v1265 = vmul.f32 %v1180, %v1249
        %v1266 = vmul.f32 %v1184, %v1249
        %v1267 = vmul.f32 %v1188, %v1249
        %v1268 = vmul.f32 %v1192, %v1249
        %v1269 = vmul.f32 %v1196, %v1249
        %v1270 = vmul.f32 %v1200, %v1249
        %v1271 = vmul.f32 %v1204, %v1249
        %v1272 = vmul.f32 %v1208, %v1249
        %v1273 = vmul.f32 %v1212, %v1249
        %v1274 = vmul.f32 %v1216, %v1249
        %v1275 = vmul.f32 %v1220, %v1249
        %v1276 = vmul.f32 %v1224, %v1249
        %v1277 = vmul.f32 %v1228, %v1249
        %v1278 = vmul.f32 %v1232, %v1249
        %v1279 = vmul.f32 %v1236, %v1249
        %v1280 = vmul.f32 %v1240, %v1249
        %v1281 = vmul.f32 %v1244, %v1249
        %v1282 = vadd.f32 %v1086, %v1250
        %v1283 = vadd.f32 %v1087, %v1251
        %v1284 = vadd.f32 %v1088, %v1252
        %v1285 = vadd.f32 %v1089, %v1253
        %v1286 = vadd.f32 %v1090, %v1254
        %v1287 = vadd.f32 %v1091, %v1255
        %v1288 = vadd.f32 %v1092, %v1256
        %v1289 = vadd.f32 %v1093, %v1257
        %v1290 = vadd.f32 %v1094, %v1258
        %v1291 = vadd.f32 %v1095, %v1259
        %v1292 = vadd.f32 %v1096, %v1260
        %v1293 = vadd.f32 %v1097, %v1261
        %v1294 = vadd.f32 %v1098, %v1262
        %v1295 = vadd.f32 %v1099, %v1263
        %v1296 = vadd.f32 %v1100, %v1264
        %v1297 = vadd.f32 %v1101, %v1265
        %v1298 = vadd.f32 %v1102, %v1266
        %v1299 = vadd.f32 %v1103, %v1267
        %v1300 = vadd.f32 %v1104, %v1268
        %v1301 = vadd.f32 %v1105, %v1269
        %v1302 = vadd.f32 %v1106, %v1270
        %v1303 = vadd.f32 %v1107, %v1271
        %v1304 = vadd.f32 %v1108, %v1272
        %v1305 = vadd.f32 %v1109, %v1273
        %v1306 = vadd.f32 %v1110, %v1274
        %v1307 = vadd.f32 %v1111, %v1275
        %v1308 = vadd.f32 %v1112, %v1276
        %v1309 = vadd.f32 %v1113, %v1277
        %v1310 = vadd.f32 %v1114, %v1278
        %v1311 = vadd.f32 %v1115, %v1279
        %v1312 = vadd.f32 %v1116, %v1280
        %v1313 = vadd.f32 %v1117, %v1281
        %1314 = vset.pattern.permute.xlu0 2
        %1315 = vperm.xlu0 %1314, %v874
        %v1316 = vpop.permute.xlu0 %1315
        %1318 = vset.pattern.permute.xlu0 2
        %1319 = vperm.xlu0 %1318, %v875
        %v1320 = vpop.permute.xlu0 %1319
        %1322 = vset.pattern.permute.xlu0 2
        %1323 = vperm.xlu0 %1322, %v876
        %v1324 = vpop.permute.xlu0 %1323
        %1326 = vset.pattern.permute.xlu0 2
        %1327 = vperm.xlu0 %1326, %v877
        %v1328 = vpop.permute.xlu0 %1327
        %1330 = vset.pattern.permute.xlu0 2
        %1331 = vperm.xlu0 %1330, %v878
        %v1332 = vpop.permute.xlu0 %1331
        %1334 = vset.pattern.permute.xlu0 2
        %1335 = vperm.xlu0 %1334, %v879
        %v1336 = vpop.permute.xlu0 %1335
        %1338 = vset.pattern.permute.xlu0 2
        %1339 = vperm.xlu0 %1338, %v880
        %v1340 = vpop.permute.xlu0 %1339
        %1342 = vset.pattern.permute.xlu0 2
        %1343 = vperm.xlu0 %1342, %v881
        %v1344 = vpop.permute.xlu0 %1343
        %1346 = vset.pattern.permute.xlu0 2
        %1347 = vperm.xlu0 %1346, %v882
        %v1348 = vpop.permute.xlu0 %1347
        %1350 = vset.pattern.permute.xlu0 2
        %1351 = vperm.xlu0 %1350, %v883
        %v1352 = vpop.permute.xlu0 %1351
        %1354 = vset.pattern.permute.xlu0 2
        %1355 = vperm.xlu0 %1354, %v884
        %v1356 = vpop.permute.xlu0 %1355
        %1358 = vset.pattern.permute.xlu0 2
        %1359 = vperm.xlu0 %1358, %v885
        %v1360 = vpop.permute.xlu0 %1359
        %1362 = vset.pattern.permute.xlu0 2
        %1363 = vperm.xlu0 %1362, %v886
        %v1364 = vpop.permute.xlu0 %1363
        %1366 = vset.pattern.permute.xlu0 2
        %1367 = vperm.xlu0 %1366, %v887
        %v1368 = vpop.permute.xlu0 %1367
        %1370 = vset.pattern.permute.xlu0 2
        %1371 = vperm.xlu0 %1370, %v888
        %v1372 = vpop.permute.xlu0 %1371
        %1374 = vset.pattern.permute.xlu0 2
        %1375 = vperm.xlu0 %1374, %v889
        %v1376 = vpop.permute.xlu0 %1375
        %1378 = vset.pattern.permute.xlu0 2
        %1379 = vperm.xlu0 %1378, %v906
        %v1380 = vpop.permute.xlu0 %1379
        %1382 = vset.pattern.permute.xlu0 2
        %1383 = vperm.xlu0 %1382, %v907
        %v1384 = vpop.permute.xlu0 %1383
        %1386 = vset.pattern.permute.xlu0 2
        %1387 = vperm.xlu0 %1386, %v908
        %v1388 = vpop.permute.xlu0 %1387
        %1390 = vset.pattern.permute.xlu0 2
        %1391 = vperm.xlu0 %1390, %v909
        %v1392 = vpop.permute.xlu0 %1391
        %1394 = vset.pattern.permute.xlu0 2
        %1395 = vperm.xlu0 %1394, %v910
        %v1396 = vpop.permute.xlu0 %1395
        %1398 = vset.pattern.permute.xlu0 2
        %1399 = vperm.xlu0 %1398, %v911
        %v1400 = vpop.permute.xlu0 %1399
        %1402 = vset.pattern.permute.xlu0 2
        %1403 = vperm.xlu0 %1402, %v912
        %v1404 = vpop.permute.xlu0 %1403
        %1406 = vset.pattern.permute.xlu0 2
        %1407 = vperm.xlu0 %1406, %v913
        %v1408 = vpop.permute.xlu0 %1407
        %1410 = vset.pattern.permute.xlu0 2
        %1411 = vperm.xlu0 %1410, %v914
        %v1412 = vpop.permute.xlu0 %1411
        %1414 = vset.pattern.permute.xlu0 2
        %1415 = vperm.xlu0 %1414, %v915
        %v1416 = vpop.permute.xlu0 %1415
        %1418 = vset.pattern.permute.xlu0 2
        %1419 = vperm.xlu0 %1418, %v916
        %v1420 = vpop.permute.xlu0 %1419
        %1422 = vset.pattern.permute.xlu0 2
        %1423 = vperm.xlu0 %1422, %v917
        %v1424 = vpop.permute.xlu0 %1423
        %1426 = vset.pattern.permute.xlu0 2
        %1427 = vperm.xlu0 %1426, %v918
        %v1428 = vpop.permute.xlu0 %1427
        %1430 = vset.pattern.permute.xlu0 2
        %1431 = vperm.xlu0 %1430, %v919
        %v1432 = vpop.permute.xlu0 %1431
        %1434 = vset.pattern.permute.xlu0 2
        %1435 = vperm.xlu0 %1434, %v920
        %v1436 = vpop.permute.xlu0 %1435
        %1438 = vset.pattern.permute.xlu0 2
        %1439 = vperm.xlu0 %1438, %v921
        %v1440 = vpop.permute.xlu0 %1439
        %v1442 = vlaneseq
        %v1443 = vshrl.u32 %v1442, 7
        %v1444 = vsub.s32 2, %v1443
        %v1445 = vrot.slane %v854, %v1444
        %v1446 = vmul.f32 %v1316, %v1445
        %v1447 = vmul.f32 %v1320, %v1445
        %v1448 = vmul.f32 %v1324, %v1445
        %v1449 = vmul.f32 %v1328, %v1445
        %v1450 = vmul.f32 %v1332, %v1445
        %v1451 = vmul.f32 %v1336, %v1445
        %v1452 = vmul.f32 %v1340, %v1445
        %v1453 = vmul.f32 %v1344, %v1445
        %v1454 = vmul.f32 %v1348, %v1445
        %v1455 = vmul.f32 %v1352, %v1445
        %v1456 = vmul.f32 %v1356, %v1445
        %v1457 = vmul.f32 %v1360, %v1445
        %v1458 = vmul.f32 %v1364, %v1445
        %v1459 = vmul.f32 %v1368, %v1445
        %v1460 = vmul.f32 %v1372, %v1445
        %v1461 = vmul.f32 %v1376, %v1445
        %v1462 = vmul.f32 %v1380, %v1445
        %v1463 = vmul.f32 %v1384, %v1445
        %v1464 = vmul.f32 %v1388, %v1445
        %v1465 = vmul.f32 %v1392, %v1445
        %v1466 = vmul.f32 %v1396, %v1445
        %v1467 = vmul.f32 %v1400, %v1445
        %v1468 = vmul.f32 %v1404, %v1445
        %v1469 = vmul.f32 %v1408, %v1445
        %v1470 = vmul.f32 %v1412, %v1445
        %v1471 = vmul.f32 %v1416, %v1445
        %v1472 = vmul.f32 %v1420, %v1445
        %v1473 = vmul.f32 %v1424, %v1445
        %v1474 = vmul.f32 %v1428, %v1445
        %v1475 = vmul.f32 %v1432, %v1445
        %v1476 = vmul.f32 %v1436, %v1445
        %v1477 = vmul.f32 %v1440, %v1445
        %v1478 = vadd.f32 %v1282, %v1446
        %v1479 = vadd.f32 %v1283, %v1447
        %v1480 = vadd.f32 %v1284, %v1448
        %v1481 = vadd.f32 %v1285, %v1449
        %v1482 = vadd.f32 %v1286, %v1450
        %v1483 = vadd.f32 %v1287, %v1451
        %v1484 = vadd.f32 %v1288, %v1452
        %v1485 = vadd.f32 %v1289, %v1453
        %v1486 = vadd.f32 %v1290, %v1454
        %v1487 = vadd.f32 %v1291, %v1455
        %v1488 = vadd.f32 %v1292, %v1456
        %v1489 = vadd.f32 %v1293, %v1457
        %v1490 = vadd.f32 %v1294, %v1458
        %v1491 = vadd.f32 %v1295, %v1459
        %v1492 = vadd.f32 %v1296, %v1460
        %v1493 = vadd.f32 %v1297, %v1461
        %v1494 = vadd.f32 %v1298, %v1462
        %v1495 = vadd.f32 %v1299, %v1463
        %v1496 = vadd.f32 %v1300, %v1464
        %v1497 = vadd.f32 %v1301, %v1465
        %v1498 = vadd.f32 %v1302, %v1466
        %v1499 = vadd.f32 %v1303, %v1467
        %v1500 = vadd.f32 %v1304, %v1468
        %v1501 = vadd.f32 %v1305, %v1469
        %v1502 = vadd.f32 %v1306, %v1470
        %v1503 = vadd.f32 %v1307, %v1471
        %v1504 = vadd.f32 %v1308, %v1472
        %v1505 = vadd.f32 %v1309, %v1473
        %v1506 = vadd.f32 %v1310, %v1474
        %v1507 = vadd.f32 %v1311, %v1475
        %v1508 = vadd.f32 %v1312, %v1476
        %v1509 = vadd.f32 %v1313, %v1477
        %v1511 = vlaneseq
        %v1512 = vshrl.u32 %v1511, 7
        %v1513 = vsub.s32 0, %v1512
        %v1514 = vrot.slane %v855, %v1513
        %v1516 = vadd.f32 %v1478, %v1514
        %v1517 = vadd.f32 %v1479, %v1514
        %v1518 = vadd.f32 %v1480, %v1514
        %v1519 = vadd.f32 %v1481, %v1514
        %v1520 = vadd.f32 %v1482, %v1514
        %v1521 = vadd.f32 %v1483, %v1514
        %v1522 = vadd.f32 %v1484, %v1514
        %v1523 = vadd.f32 %v1485, %v1514
        %v1524 = vadd.f32 %v1486, %v1514
        %v1525 = vadd.f32 %v1487, %v1514
        %v1526 = vadd.f32 %v1488, %v1514
        %v1527 = vadd.f32 %v1489, %v1514
        %v1528 = vadd.f32 %v1490, %v1514
        %v1529 = vadd.f32 %v1491, %v1514
        %v1530 = vadd.f32 %v1492, %v1514
        %v1531 = vadd.f32 %v1493, %v1514
        %v1532 = vadd.f32 %v1494, %v1514
        %v1533 = vadd.f32 %v1495, %v1514
        %v1534 = vadd.f32 %v1496, %v1514
        %v1535 = vadd.f32 %v1497, %v1514
        %v1536 = vadd.f32 %v1498, %v1514
        %v1537 = vadd.f32 %v1499, %v1514
        %v1538 = vadd.f32 %v1500, %v1514
        %v1539 = vadd.f32 %v1501, %v1514
        %v1540 = vadd.f32 %v1502, %v1514
        %v1541 = vadd.f32 %v1503, %v1514
        %v1542 = vadd.f32 %v1504, %v1514
        %v1543 = vadd.f32 %v1505, %v1514
        %v1544 = vadd.f32 %v1506, %v1514
        %v1545 = vadd.f32 %v1507, %v1514
        %v1546 = vadd.f32 %v1508, %v1514
        %v1547 = vadd.f32 %v1509, %v1514
        %v1548 = vmax.f32 %v1516, 0.0
        %v1549 = vmax.f32 %v1517, 0.0
        %v1550 = vmax.f32 %v1518, 0.0
        %v1551 = vmax.f32 %v1519, 0.0
        %v1552 = vmax.f32 %v1520, 0.0
        %v1553 = vmax.f32 %v1521, 0.0
        %v1554 = vmax.f32 %v1522, 0.0
        %v1555 = vmax.f32 %v1523, 0.0
        %v1556 = vmax.f32 %v1524, 0.0
        %v1557 = vmax.f32 %v1525, 0.0
        %v1558 = vmax.f32 %v1526, 0.0
        %v1559 = vmax.f32 %v1527, 0.0
        %v1560 = vmax.f32 %v1528, 0.0
        %v1561 = vmax.f32 %v1529, 0.0
        %v1562 = vmax.f32 %v1530, 0.0
        %v1563 = vmax.f32 %v1531, 0.0
        %v1564 = vmax.f32 %v1532, 0.0
        %v1565 = vmax.f32 %v1533, 0.0
        %v1566 = vmax.f32 %v1534, 0.0
        %v1567 = vmax.f32 %v1535, 0.0
        %v1568 = vmax.f32 %v1536, 0.0
        %v1569 = vmax.f32 %v1537, 0.0
        %v1570 = vmax.f32 %v1538, 0.0
        %v1571 = vmax.f32 %v1539, 0.0
        %v1572 = vmax.f32 %v1540, 0.0
        %v1573 = vmax.f32 %v1541, 0.0
        %v1574 = vmax.f32 %v1542, 0.0
        %v1575 = vmax.f32 %v1543, 0.0
        %v1576 = vmax.f32 %v1544, 0.0
        %v1577 = vmax.f32 %v1545, 0.0
        %v1578 = vmax.f32 %v1546, 0.0
        %v1579 = vmax.f32 %v1547, 0.0
        %v1580 = vpack.c.bf16 %v1549, %v1548
        %v1581 = vpack.c.bf16 %v1551, %v1550
        %v1582 = vpack.c.bf16 %v1553, %v1552
        %v1583 = vpack.c.bf16 %v1555, %v1554
        %v1584 = vpack.c.bf16 %v1557, %v1556
        %v1585 = vpack.c.bf16 %v1559, %v1558
        %v1586 = vpack.c.bf16 %v1561, %v1560
        %v1587 = vpack.c.bf16 %v1563, %v1562
        %v1588 = vpack.c.bf16 %v1565, %v1564
        %v1589 = vpack.c.bf16 %v1567, %v1566
        %v1590 = vpack.c.bf16 %v1569, %v1568
        %v1591 = vpack.c.bf16 %v1571, %v1570
        %v1592 = vpack.c.bf16 %v1573, %v1572
        %v1593 = vpack.c.bf16 %v1575, %v1574
        %v1594 = vpack.c.bf16 %v1577, %v1576
        %v1595 = vpack.c.bf16 %v1579, %v1578
        %v1596 = vld [vmem:[%s3] sm:$0xf]
        %v1597 = vld [vmem:[%s3 + $0x4] sm:$0xf]
        %v1598 = vld [vmem:[%s3 + $0x8] sm:$0xf]
        %v1599 = vld [vmem:[%s3 + $0xc] sm:$0xf]
        %v1600 = vld [vmem:[%s3 + $0x10] sm:$0xf]
        %v1601 = vld [vmem:[%s3 + $0x14] sm:$0xf]
        %v1602 = vld [vmem:[%s3 + $0x18] sm:$0xf]
        %v1603 = vld [vmem:[%s3 + $0x1c] sm:$0xf]
        %v1604 = vld [vmem:[%s4] sm:$0x1]
        %v1606 = vlaneseq
        %v1607 = vshrl.u32 %v1606, 7
        %v1608 = vsub.s32 0, %v1607
        %v1609 = vrot.slane %v1604, %v1608
        %v1619 = vunpack.c.l.b16 %v1596
        %v1620 = vunpack.c.l.b16 %v1597
        %v1621 = vunpack.c.l.b16 %v1598
        %v1622 = vunpack.c.l.b16 %v1599
        %v1623 = vunpack.c.l.b16 %v1600
        %v1624 = vunpack.c.l.b16 %v1601
        %v1625 = vunpack.c.l.b16 %v1602
        %v1626 = vunpack.c.l.b16 %v1603
        %v1627 = vpack.c.b16 %v1620, %v1619
        %v1628 = vpack.c.b16 %v1622, %v1621
        %v1629 = vpack.c.b16 %v1624, %v1623
        %v1630 = vpack.c.b16 %v1626, %v1625
        %vm1635 = vcmask 523264
        %v1637 = vsel %vm1635, %v1580, 0
        %v1640 = vsel %vm1635, %v1581, 0
        %v1643 = vsel %vm1635, %v1582, 0
        %v1646 = vsel %vm1635, %v1583, 0
        %v1649 = vsel %vm1635, %v1584, 0
        %v1652 = vsel %vm1635, %v1585, 0
        %v1655 = vsel %vm1635, %v1586, 0
        %v1658 = vsel %vm1635, %v1587, 0
        %v1661 = vsel %vm1635, %v1588, 0
        %v1664 = vsel %vm1635, %v1589, 0
        %v1667 = vsel %vm1635, %v1590, 0
        %v1670 = vsel %vm1635, %v1591, 0
        %v1673 = vsel %vm1635, %v1592, 0
        %v1676 = vsel %vm1635, %v1593, 0
        %v1679 = vsel %vm1635, %v1594, 0
        %v1682 = vsel %vm1635, %v1595, 0
        %1684 = vmatprep.subr.bf16.mxu0 0
        %1685 = vmatpush1.bf16.msra.mxu0 %v1627
        %1686 = vmatprep.subr.bf16.mxu0 0
        %1687 = vmatpush1.bf16.msra.mxu0 %v1628
        %1688 = vmatprep.subr.bf16.mxu0 0
        %1689 = vmatpush1.bf16.msra.mxu0 %v1629
        %1690 = vmatprep.subr.bf16.mxu0 0
        %1691 = vmatpush1.bf16.msra.mxu0 %v1630
        %1692 = vmatprep.subr.bf16.mxu0 0
        %1693 = vmatpush1.bf16.msra.mxu0 0
        %1694 = vmatprep.subr.bf16.mxu0 0
        %1695 = vmatpush1.bf16.msra.mxu0 0
        %1696 = vmatprep.subr.bf16.mxu0 0
        %1697 = vmatpush1.bf16.msra.mxu0 0
        %1698 = vmatprep.subr.bf16.mxu0 0
        %1699 = vmatpush1.bf16.msra.mxu0 0
        %1700 = vmatprep.subr.bf16.mxu0 0
        %1701 = vmatpush1.bf16.msra.mxu0 0
        %1702 = vmatprep.subr.bf16.mxu0 0
        %1703 = vmatpush1.bf16.msra.mxu0 0
        %1704 = vmatprep.subr.bf16.mxu0 0
        %1705 = vmatpush1.bf16.msra.mxu0 0
        %1706 = vmatprep.subr.bf16.mxu0 0
        %1707 = vmatpush1.bf16.msra.mxu0 0
        %1708 = vmatprep.subr.bf16.mxu0 0
        %1709 = vmatpush1.bf16.msra.mxu0 0
        %1710 = vmatprep.subr.bf16.mxu0 0
        %1711 = vmatpush1.bf16.msra.mxu0 0
        %1712 = vmatprep.subr.bf16.mxu0 0
        %1713 = vmatpush1.bf16.msra.mxu0 0
        %1714 = vmatprep.subr.bf16.mxu0 0
        %1715 = vmatpush1.bf16.msra.mxu0 0
        %1716 = vmatprep.mubr.bf16.mxu0 0
        %1717 = vmatmul.mubr.bf16.gmra.mrb[0].mxu0 %v1637
        %v1718 = vpop.f32.mrb[0].mxu0
        %v1719 = vadd.f32 %v1609, %v1718
        %v1720 = vpop.f32.mrb[0].mxu0
        %v1721 = vpop.f32.mrb[0].mxu0
        %v1722 = vadd.f32 %v1609, %v1721
        %v1723 = vpop.f32.mrb[0].mxu0
        %1724 = vmatprep.mubr.bf16.mxu0 0
        %1725 = vmatmul.mubr.bf16.gmra.mrb[0].mxu0 %v1640
        %v1726 = vpop.f32.mrb[0].mxu0
        %v1727 = vadd.f32 %v1609, %v1726
        %v1728 = vpop.f32.mrb[0].mxu0
        %v1729 = vpop.f32.mrb[0].mxu0
        %v1730 = vadd.f32 %v1609, %v1729
        %v1731 = vpop.f32.mrb[0].mxu0
        %1732 = vmatprep.mubr.bf16.mxu0 0
        %1733 = vmatmul.mubr.bf16.gmra.mrb[0].mxu0 %v1643
        %v1734 = vpop.f32.mrb[0].mxu0
        %v1735 = vadd.f32 %v1609, %v1734
        %v1736 = vpop.f32.mrb[0].mxu0
        %v1737 = vpop.f32.mrb[0].mxu0
        %v1738 = vadd.f32 %v1609, %v1737
        %v1739 = vpop.f32.mrb[0].mxu0
        %1740 = vmatprep.mubr.bf16.mxu0 0
        %1741 = vmatmul.mubr.bf16.gmra.mrb[0].mxu0 %v1646
        %v1742 = vpop.f32.mrb[0].mxu0
        %v1743 = vadd.f32 %v1609, %v1742
        %v1744 = vpop.f32.mrb[0].mxu0
        %v1745 = vpop.f32.mrb[0].mxu0
        %v1746 = vadd.f32 %v1609, %v1745
        %v1747 = vpop.f32.mrb[0].mxu0
        %1748 = vmatprep.mubr.bf16.mxu0 0
        %1749 = vmatmul.mubr.bf16.gmra.mrb[0].mxu0 %v1649
        %v1750 = vpop.f32.mrb[0].mxu0
        %v1751 = vadd.f32 %v1609, %v1750
        %v1752 = vpop.f32.mrb[0].mxu0
        %v1753 = vpop.f32.mrb[0].mxu0
        %v1754 = vadd.f32 %v1609, %v1753
        %v1755 = vpop.f32.mrb[0].mxu0
        %1756 = vmatprep.mubr.bf16.mxu0 0
        %1757 = vmatmul.mubr.bf16.gmra.mrb[0].mxu0 %v1652
        %v1758 = vpop.f32.mrb[0].mxu0
        %v1759 = vadd.f32 %v1609, %v1758
        %v1760 = vpop.f32.mrb[0].mxu0
        %v1761 = vpop.f32.mrb[0].mxu0
        %v1762 = vadd.f32 %v1609, %v1761
        %v1763 = vpop.f32.mrb[0].mxu0
        %1764 = vmatprep.mubr.bf16.mxu0 0
        %1765 = vmatmul.mubr.bf16.gmra.mrb[0].mxu0 %v1655
        %v1766 = vpop.f32.mrb[0].mxu0
        %v1767 = vadd.f32 %v1609, %v1766
        %v1768 = vpop.f32.mrb[0].mxu0
        %v1769 = vpop.f32.mrb[0].mxu0
        %v1770 = vadd.f32 %v1609, %v1769
        %v1771 = vpop.f32.mrb[0].mxu0
        %1772 = vmatprep.mubr.bf16.mxu0 0
        %1773 = vmatmul.mubr.bf16.gmra.mrb[0].mxu0 %v1658
        %v1774 = vpop.f32.mrb[0].mxu0
        %v1775 = vadd.f32 %v1609, %v1774
        %v1776 = vpop.f32.mrb[0].mxu0
        %v1777 = vpop.f32.mrb[0].mxu0
        %v1778 = vadd.f32 %v1609, %v1777
        %v1779 = vpop.f32.mrb[0].mxu0
        %1780 = vmatprep.mubr.bf16.mxu0 0
        %1781 = vmatmul.mubr.bf16.gmra.mrb[0].mxu0 %v1661
        %v1782 = vpop.f32.mrb[0].mxu0
        %v1783 = vadd.f32 %v1609, %v1782
        %v1784 = vpop.f32.mrb[0].mxu0
        %v1785 = vpop.f32.mrb[0].mxu0
        %v1786 = vadd.f32 %v1609, %v1785
        %v1787 = vpop.f32.mrb[0].mxu0
        %1788 = vmatprep.mubr.bf16.mxu0 0
        %1789 = vmatmul.mubr.bf16.gmra.mrb[0].mxu0 %v1664
        %v1790 = vpop.f32.mrb[0].mxu0
        %v1791 = vadd.f32 %v1609, %v1790
        %v1792 = vpop.f32.mrb[0].mxu0
        %v1793 = vpop.f32.mrb[0].mxu0
        %v1794 = vadd.f32 %v1609, %v1793
        %v1795 = vpop.f32.mrb[0].mxu0
        %1796 = vmatprep.mubr.bf16.mxu0 0
        %1797 = vmatmul.mubr.bf16.gmra.mrb[0].mxu0 %v1667
        %v1798 = vpop.f32.mrb[0].mxu0
        %v1799 = vadd.f32 %v1609, %v1798
        %v1800 = vpop.f32.mrb[0].mxu0
        %v1801 = vpop.f32.mrb[0].mxu0
        %v1802 = vadd.f32 %v1609, %v1801
        %v1803 = vpop.f32.mrb[0].mxu0
        %1804 = vmatprep.mubr.bf16.mxu0 0
        %1805 = vmatmul.mubr.bf16.gmra.mrb[0].mxu0 %v1670
        %v1806 = vpop.f32.mrb[0].mxu0
        %v1807 = vadd.f32 %v1609, %v1806
        %v1808 = vpop.f32.mrb[0].mxu0
        %v1809 = vpop.f32.mrb[0].mxu0
        %v1810 = vadd.f32 %v1609, %v1809
        %v1811 = vpop.f32.mrb[0].mxu0
        %1812 = vmatprep.mubr.bf16.mxu0 0
        %1813 = vmatmul.mubr.bf16.gmra.mrb[0].mxu0 %v1673
        %v1814 = vpop.f32.mrb[0].mxu0
        %v1815 = vadd.f32 %v1609, %v1814
        %v1816 = vpop.f32.mrb[0].mxu0
        %v1817 = vpop.f32.mrb[0].mxu0
        %v1818 = vadd.f32 %v1609, %v1817
        %v1819 = vpop.f32.mrb[0].mxu0
        %1820 = vmatprep.mubr.bf16.mxu0 0
        %1821 = vmatmul.mubr.bf16.gmra.mrb[0].mxu0 %v1676
        %v1822 = vpop.f32.mrb[0].mxu0
        %v1823 = vadd.f32 %v1609, %v1822
        %v1824 = vpop.f32.mrb[0].mxu0
        %v1825 = vpop.f32.mrb[0].mxu0
        %v1826 = vadd.f32 %v1609, %v1825
        %v1827 = vpop.f32.mrb[0].mxu0
        %1828 = vmatprep.mubr.bf16.mxu0 0
        %1829 = vmatmul.mubr.bf16.gmra.mrb[0].mxu0 %v1679
        %v1830 = vpop.f32.mrb[0].mxu0
        %v1831 = vadd.f32 %v1609, %v1830
        %v1832 = vpop.f32.mrb[0].mxu0
        %v1833 = vpop.f32.mrb[0].mxu0
        %v1834 = vadd.f32 %v1609, %v1833
        %v1835 = vpop.f32.mrb[0].mxu0
        %1836 = vmatprep.mubr.bf16.mxu0 0
        %1837 = vmatmul.mubr.bf16.gmra.mrb[0].mxu0 %v1682
        %v1838 = vpop.f32.mrb[0].mxu0
        %v1839 = vadd.f32 %v1609, %v1838
        %v1840 = vpop.f32.mrb[0].mxu0
        %v1841 = vpop.f32.mrb[0].mxu0
        %v1842 = vadd.f32 %v1609, %v1841
        %v1843 = vpop.f32.mrb[0].mxu0
        %1844 = vdwg.mxu0
        %v1845 = vmax.f32 %v1719, 0.0
        %v1846 = vmax.f32 %v1722, 0.0
        %v1847 = vmax.f32 %v1727, 0.0
        %v1848 = vmax.f32 %v1730, 0.0
        %v1849 = vmax.f32 %v1735, 0.0
        %v1850 = vmax.f32 %v1738, 0.0
        %v1851 = vmax.f32 %v1743, 0.0
        %v1852 = vmax.f32 %v1746, 0.0
        %v1853 = vmax.f32 %v1751, 0.0
        %v1854 = vmax.f32 %v1754, 0.0
        %v1855 = vmax.f32 %v1759, 0.0
        %v1856 = vmax.f32 %v1762, 0.0
        %v1857 = vmax.f32 %v1767, 0.0
        %v1858 = vmax.f32 %v1770, 0.0
        %v1859 = vmax.f32 %v1775, 0.0
        %v1860 = vmax.f32 %v1778, 0.0
        %v1861 = vmax.f32 %v1783, 0.0
        %v1862 = vmax.f32 %v1786, 0.0
        %v1863 = vmax.f32 %v1791, 0.0
        %v1864 = vmax.f32 %v1794, 0.0
        %v1865 = vmax.f32 %v1799, 0.0
        %v1866 = vmax.f32 %v1802, 0.0
        %v1867 = vmax.f32 %v1807, 0.0
        %v1868 = vmax.f32 %v1810, 0.0
        %v1869 = vmax.f32 %v1815, 0.0
        %v1870 = vmax.f32 %v1818, 0.0
        %v1871 = vmax.f32 %v1823, 0.0
        %v1872 = vmax.f32 %v1826, 0.0
        %v1873 = vmax.f32 %v1831, 0.0
        %v1874 = vmax.f32 %v1834, 0.0
        %v1875 = vmax.f32 %v1839, 0.0
        %v1876 = vmax.f32 %v1842, 0.0
        %v1877 = vpack.c.bf16 %v1846, %v1845
        %v1878 = vpack.c.bf16 %v1848, %v1847
        %v1879 = vpack.c.bf16 %v1850, %v1849
        %v1880 = vpack.c.bf16 %v1852, %v1851
        %v1881 = vpack.c.bf16 %v1854, %v1853
        %v1882 = vpack.c.bf16 %v1856, %v1855
        %v1883 = vpack.c.bf16 %v1858, %v1857
        %v1884 = vpack.c.bf16 %v1860, %v1859
        %v1885 = vpack.c.bf16 %v1862, %v1861
        %v1886 = vpack.c.bf16 %v1864, %v1863
        %v1887 = vpack.c.bf16 %v1866, %v1865
        %v1888 = vpack.c.bf16 %v1868, %v1867
        %v1889 = vpack.c.bf16 %v1870, %v1869
        %v1890 = vpack.c.bf16 %v1872, %v1871
        %v1891 = vpack.c.bf16 %v1874, %v1873
        %v1892 = vpack.c.bf16 %v1876, %v1875
        %v1893 = vld [vmem:[#allocation2] sm:$0xff]
        %v1894 = vld [vmem:[#allocation2 + $0x8] sm:$0xff]
        %v1895 = vld [vmem:[#allocation2 + $0x10] sm:$0xff]
        %v1896 = vld [vmem:[#allocation2 + $0x18] sm:$0xff]
        %v1897 = vld [vmem:[#allocation2 + $0x20] sm:$0xff]
        %v1898 = vld [vmem:[#allocation2 + $0x28] sm:$0xff]
        %v1899 = vld [vmem:[#allocation2 + $0x30] sm:$0xff]
        %v1900 = vld [vmem:[#allocation2 + $0x38] sm:$0xff]
        %v1901 = vld [vmem:[#allocation2 + $0x40] sm:$0xff]
        %v1902 = vld [vmem:[#allocation2 + $0x48] sm:$0xff]
        %v1903 = vld [vmem:[#allocation2 + $0x50] sm:$0xff]
        %v1904 = vld [vmem:[#allocation2 + $0x58] sm:$0xff]
        %v1905 = vld [vmem:[#allocation2 + $0x60] sm:$0xff]
        %v1906 = vld [vmem:[#allocation2 + $0x68] sm:$0xff]
        %v1907 = vld [vmem:[#allocation2 + $0x70] sm:$0xff]
        %v1908 = vld [vmem:[#allocation2 + $0x78] sm:$0xff]
        %v1909 = vld [vmem:[#allocation2 + $0x80] sm:$0xff]
        %v1910 = vld [vmem:[#allocation2 + $0x88] sm:$0xff]
        %v1911 = vld [vmem:[#allocation2 + $0x90] sm:$0xff]
        %v1912 = vld [vmem:[#allocation2 + $0x98] sm:$0xff]
        %v1913 = vld [vmem:[#allocation2 + $0xa0] sm:$0xff]
        %v1914 = vld [vmem:[#allocation2 + $0xa8] sm:$0xff]
        %v1915 = vld [vmem:[#allocation2 + $0xb0] sm:$0xff]
        %v1916 = vld [vmem:[#allocation2 + $0xb8] sm:$0xff]
        %v1917 = vld [vmem:[#allocation2 + $0xc0] sm:$0xff]
        %v1918 = vld [vmem:[#allocation2 + $0xc8] sm:$0xff]
        %v1919 = vld [vmem:[#allocation2 + $0xd0] sm:$0xff]
        %v1920 = vld [vmem:[#allocation2 + $0xd8] sm:$0xff]
        %v1921 = vld [vmem:[#allocation2 + $0xe0] sm:$0xff]
        %v1922 = vld [vmem:[#allocation2 + $0xe8] sm:$0xff]
        %v1923 = vld [vmem:[#allocation2 + $0xf0] sm:$0xff]
        %v1924 = vld [vmem:[#allocation2 + $0xf8] sm:$0xff]
        %v1925 = vld [vmem:[#allocation2 + $0x100] sm:$0xff]
        %v1926 = vld [vmem:[#allocation2 + $0x108] sm:$0xff]
        %v1927 = vld [vmem:[#allocation2 + $0x110] sm:$0xff]
        %v1928 = vld [vmem:[#allocation2 + $0x118] sm:$0xff]
        %v1929 = vld [vmem:[#allocation2 + $0x120] sm:$0xff]
        %v1930 = vld [vmem:[#allocation2 + $0x128] sm:$0xff]
        %v1931 = vld [vmem:[#allocation2 + $0x130] sm:$0xff]
        %v1932 = vld [vmem:[#allocation2 + $0x138] sm:$0xff]
        %v1933 = vld [vmem:[#allocation2 + $0x140] sm:$0xff]
        %v1934 = vld [vmem:[#allocation2 + $0x148] sm:$0xff]
        %v1935 = vld [vmem:[#allocation2 + $0x150] sm:$0xff]
        %v1936 = vld [vmem:[#allocation2 + $0x158] sm:$0xff]
        %v1937 = vld [vmem:[#allocation2 + $0x160] sm:$0xff]
        %v1938 = vld [vmem:[#allocation2 + $0x168] sm:$0xff]
        %v1939 = vld [vmem:[#allocation2 + $0x170] sm:$0xff]
        %v1940 = vld [vmem:[#allocation2 + $0x178] sm:$0xff]
        %v1941 = vld [vmem:[#allocation2 + $0x180] sm:$0xff]
        %v1942 = vld [vmem:[#allocation2 + $0x188] sm:$0xff]
        %v1943 = vld [vmem:[#allocation2 + $0x190] sm:$0xff]
        %v1944 = vld [vmem:[#allocation2 + $0x198] sm:$0xff]
        %v1945 = vld [vmem:[#allocation2 + $0x1a0] sm:$0xff]
        %v1946 = vld [vmem:[#allocation2 + $0x1a8] sm:$0xff]
        %v1947 = vld [vmem:[#allocation2 + $0x1b0] sm:$0xff]
        %v1948 = vld [vmem:[#allocation2 + $0x1b8] sm:$0xff]
        %v1949 = vld [vmem:[#allocation2 + $0x1c0] sm:$0xff]
        %v1950 = vld [vmem:[#allocation2 + $0x1c8] sm:$0xff]
        %v1951 = vld [vmem:[#allocation2 + $0x1d0] sm:$0xff]
        %v1952 = vld [vmem:[#allocation2 + $0x1d8] sm:$0xff]
        %v1953 = vld [vmem:[#allocation2 + $0x1e0] sm:$0xff]
        %v1954 = vld [vmem:[#allocation2 + $0x1e8] sm:$0xff]
        %v1955 = vld [vmem:[#allocation2 + $0x1f0] sm:$0xff]
        %v1956 = vld [vmem:[#allocation2 + $0x1f8] sm:$0xff]
        %v2021 = vunpack.c.l.b16 %v1893
        %v2022 = vunpack.c.h.b16 %v1893
        %v2023 = vunpack.c.l.b16 %v1894
        %v2024 = vunpack.c.h.b16 %v1894
        %v2025 = vunpack.c.l.b16 %v1895
        %v2026 = vunpack.c.h.b16 %v1895
        %v2027 = vunpack.c.l.b16 %v1896
        %v2028 = vunpack.c.h.b16 %v1896
        %v2029 = vunpack.c.l.b16 %v1897
        %v2030 = vunpack.c.h.b16 %v1897
        %v2031 = vunpack.c.l.b16 %v1898
        %v2032 = vunpack.c.h.b16 %v1898
        %v2033 = vunpack.c.l.b16 %v1899
        %v2034 = vunpack.c.h.b16 %v1899
        %v2035 = vunpack.c.l.b16 %v1900
        %v2036 = vunpack.c.h.b16 %v1900
        %v2037 = vunpack.c.l.b16 %v1901
        %v2038 = vunpack.c.h.b16 %v1901
        %v2039 = vunpack.c.l.b16 %v1902
        %v2040 = vunpack.c.h.b16 %v1902
        %v2041 = vunpack.c.l.b16 %v1903
        %v2042 = vunpack.c.h.b16 %v1903
        %v2043 = vunpack.c.l.b16 %v1904
        %v2044 = vunpack.c.h.b16 %v1904
        %v2045 = vunpack.c.l.b16 %v1905
        %v2046 = vunpack.c.h.b16 %v1905
        %v2047 = vunpack.c.l.b16 %v1906
        %v2048 = vunpack.c.h.b16 %v1906
        %v2049 = vunpack.c.l.b16 %v1907
        %v2050 = vunpack.c.h.b16 %v1907
        %v2051 = vunpack.c.l.b16 %v1908
        %v2052 = vunpack.c.h.b16 %v1908
        %v2053 = vunpack.c.l.b16 %v1909
        %v2054 = vunpack.c.h.b16 %v1909
        %v2055 = vunpack.c.l.b16 %v1910
        %v2056 = vunpack.c.h.b16 %v1910
        %v2057 = vunpack.c.l.b16 %v1911
        %v2058 = vunpack.c.h.b16 %v1911
        %v2059 = vunpack.c.l.b16 %v1912
        %v2060 = vunpack.c.h.b16 %v1912
        %v2061 = vunpack.c.l.b16 %v1913
        %v2062 = vunpack.c.h.b16 %v1913
        %v2063 = vunpack.c.l.b16 %v1914
        %v2064 = vunpack.c.h.b16 %v1914
        %v2065 = vunpack.c.l.b16 %v1915
        %v2066 = vunpack.c.h.b16 %v1915
        %v2067 = vunpack.c.l.b16 %v1916
        %v2068 = vunpack.c.h.b16 %v1916
        %v2069 = vunpack.c.l.b16 %v1917
        %v2070 = vunpack.c.h.b16 %v1917
        %v2071 = vunpack.c.l.b16 %v1918
        %v2072 = vunpack.c.h.b16 %v1918
        %v2073 = vunpack.c.l.b16 %v1919
        %v2074 = vunpack.c.h.b16 %v1919
        %v2075 = vunpack.c.l.b16 %v1920
        %v2076 = vunpack.c.h.b16 %v1920
        %v2077 = vunpack.c.l.b16 %v1921
        %v2078 = vunpack.c.h.b16 %v1921
        %v2079 = vunpack.c.l.b16 %v1922
        %v2080 = vunpack.c.h.b16 %v1922
        %v2081 = vunpack.c.l.b16 %v1923
        %v2082 = vunpack.c.h.b16 %v1923
        %v2083 = vunpack.c.l.b16 %v1924
        %v2084 = vunpack.c.h.b16 %v1924
        %v2085 = vunpack.c.l.b16 %v1925
        %v2086 = vunpack.c.h.b16 %v1925
        %v2087 = vunpack.c.l.b16 %v1926
        %v2088 = vunpack.c.h.b16 %v1926
        %v2089 = vunpack.c.l.b16 %v1927
        %v2090 = vunpack.c.h.b16 %v1927
        %v2091 = vunpack.c.l.b16 %v1928
        %v2092 = vunpack.c.h.b16 %v1928
        %v2093 = vunpack.c.l.b16 %v1929
        %v2094 = vunpack.c.h.b16 %v1929
        %v2095 = vunpack.c.l.b16 %v1930
        %v2096 = vunpack.c.h.b16 %v1930
        %v2097 = vunpack.c.l.b16 %v1931
        %v2098 = vunpack.c.h.b16 %v1931
        %v2099 = vunpack.c.l.b16 %v1932
        %v2100 = vunpack.c.h.b16 %v1932
        %v2101 = vunpack.c.l.b16 %v1933
        %v2102 = vunpack.c.h.b16 %v1933
        %v2103 = vunpack.c.l.b16 %v1934
        %v2104 = vunpack.c.h.b16 %v1934
        %v2105 = vunpack.c.l.b16 %v1935
        %v2106 = vunpack.c.h.b16 %v1935
        %v2107 = vunpack.c.l.b16 %v1936
        %v2108 = vunpack.c.h.b16 %v1936
        %v2109 = vunpack.c.l.b16 %v1937
        %v2110 = vunpack.c.h.b16 %v1937
        %v2111 = vunpack.c.l.b16 %v1938
        %v2112 = vunpack.c.h.b16 %v1938
        %v2113 = vunpack.c.l.b16 %v1939
        %v2114 = vunpack.c.h.b16 %v1939
        %v2115 = vunpack.c.l.b16 %v1940
        %v2116 = vunpack.c.h.b16 %v1940
        %v2117 = vunpack.c.l.b16 %v1941
        %v2118 = vunpack.c.h.b16 %v1941
        %v2119 = vunpack.c.l.b16 %v1942
        %v2120 = vunpack.c.h.b16 %v1942
        %v2121 = vunpack.c.l.b16 %v1943
        %v2122 = vunpack.c.h.b16 %v1943
        %v2123 = vunpack.c.l.b16 %v1944
        %v2124 = vunpack.c.h.b16 %v1944
        %v2125 = vunpack.c.l.b16 %v1945
        %v2126 = vunpack.c.h.b16 %v1945
        %v2127 = vunpack.c.l.b16 %v1946
        %v2128 = vunpack.c.h.b16 %v1946
        %v2129 = vunpack.c.l.b16 %v1947
        %v2130 = vunpack.c.h.b16 %v1947
        %v2131 = vunpack.c.l.b16 %v1948
        %v2132 = vunpack.c.h.b16 %v1948
        %v2133 = vunpack.c.l.b16 %v1949
        %v2134 = vunpack.c.h.b16 %v1949
        %v2135 = vunpack.c.l.b16 %v1950
        %v2136 = vunpack.c.h.b16 %v1950
        %v2137 = vunpack.c.l.b16 %v1951
        %v2138 = vunpack.c.h.b16 %v1951
        %v2139 = vunpack.c.l.b16 %v1952
        %v2140 = vunpack.c.h.b16 %v1952
        %v2141 = vunpack.c.l.b16 %v1953
        %v2142 = vunpack.c.h.b16 %v1953
        %v2143 = vunpack.c.l.b16 %v1954
        %v2144 = vunpack.c.h.b16 %v1954
        %v2145 = vunpack.c.l.b16 %v1955
        %v2146 = vunpack.c.h.b16 %v1955
        %v2147 = vunpack.c.l.b16 %v1956
        %v2148 = vunpack.c.h.b16 %v1956
        %v2149 = vpack.c.b16 %v2029, %v2021
        %v2150 = vpack.c.b16 %v2030, %v2022
        %v2151 = vpack.c.b16 %v2031, %v2023
        %v2152 = vpack.c.b16 %v2032, %v2024
        %v2153 = vpack.c.b16 %v2033, %v2025
        %v2154 = vpack.c.b16 %v2034, %v2026
        %v2155 = vpack.c.b16 %v2035, %v2027
        %v2156 = vpack.c.b16 %v2036, %v2028
        %v2157 = vpack.c.b16 %v2045, %v2037
        %v2158 = vpack.c.b16 %v2046, %v2038
        %v2159 = vpack.c.b16 %v2047, %v2039
        %v2160 = vpack.c.b16 %v2048, %v2040
        %v2161 = vpack.c.b16 %v2049, %v2041
        %v2162 = vpack.c.b16 %v2050, %v2042
        %v2163 = vpack.c.b16 %v2051, %v2043
        %v2164 = vpack.c.b16 %v2052, %v2044
        %v2165 = vpack.c.b16 %v2061, %v2053
        %v2166 = vpack.c.b16 %v2062, %v2054
        %v2167 = vpack.c.b16 %v2063, %v2055
        %v2168 = vpack.c.b16 %v2064, %v2056
        %v2169 = vpack.c.b16 %v2065, %v2057
        %v2170 = vpack.c.b16 %v2066, %v2058
        %v2171 = vpack.c.b16 %v2067, %v2059
        %v2172 = vpack.c.b16 %v2068, %v2060
        %v2173 = vpack.c.b16 %v2077, %v2069
        %v2174 = vpack.c.b16 %v2078, %v2070
        %v2175 = vpack.c.b16 %v2079, %v2071
        %v2176 = vpack.c.b16 %v2080, %v2072
        %v2177 = vpack.c.b16 %v2081, %v2073
        %v2178 = vpack.c.b16 %v2082, %v2074
        %v2179 = vpack.c.b16 %v2083, %v2075
        %v2180 = vpack.c.b16 %v2084, %v2076
        %v2181 = vpack.c.b16 %v2093, %v2085
        %v2182 = vpack.c.b16 %v2094, %v2086
        %v2183 = vpack.c.b16 %v2095, %v2087
        %v2184 = vpack.c.b16 %v2096, %v2088
        %v2185 = vpack.c.b16 %v2097, %v2089
        %v2186 = vpack.c.b16 %v2098, %v2090
        %v2187 = vpack.c.b16 %v2099, %v2091
        %v2188 = vpack.c.b16 %v2100, %v2092
        %v2189 = vpack.c.b16 %v2109, %v2101
        %v2190 = vpack.c.b16 %v2110, %v2102
        %v2191 = vpack.c.b16 %v2111, %v2103
        %v2192 = vpack.c.b16 %v2112, %v2104
        %v2193 = vpack.c.b16 %v2113, %v2105
        %v2194 = vpack.c.b16 %v2114, %v2106
        %v2195 = vpack.c.b16 %v2115, %v2107
        %v2196 = vpack.c.b16 %v2116, %v2108
        %v2197 = vpack.c.b16 %v2125, %v2117
        %v2198 = vpack.c.b16 %v2126, %v2118
        %v2199 = vpack.c.b16 %v2127, %v2119
        %v2200 = vpack.c.b16 %v2128, %v2120
        %v2201 = vpack.c.b16 %v2129, %v2121
        %v2202 = vpack.c.b16 %v2130, %v2122
        %v2203 = vpack.c.b16 %v2131, %v2123
        %v2204 = vpack.c.b16 %v2132, %v2124
        %v2205 = vpack.c.b16 %v2141, %v2133
        %v2206 = vpack.c.b16 %v2142, %v2134
        %v2207 = vpack.c.b16 %v2143, %v2135
        %v2208 = vpack.c.b16 %v2144, %v2136
        %v2209 = vpack.c.b16 %v2145, %v2137
        %v2210 = vpack.c.b16 %v2146, %v2138
        %v2211 = vpack.c.b16 %v2147, %v2139
        %v2212 = vpack.c.b16 %v2148, %v2140
        %2277 = vmatprep.subr.bf16.mxu0 %v2150
        %2278 = vmatpush1.bf16.msra.mxu0 %v2149
        %2279 = vmatprep.subr.bf16.mxu0 %v2158
        %2280 = vmatpush1.bf16.msra.mxu0 %v2157
        %2281 = vmatprep.subr.bf16.mxu0 %v2166
        %2282 = vmatpush1.bf16.msra.mxu0 %v2165
        %2283 = vmatprep.subr.bf16.mxu0 %v2174
        %2284 = vmatpush1.bf16.msra.mxu0 %v2173
        %2285 = vmatprep.subr.bf16.mxu0 %v2182
        %2286 = vmatpush1.bf16.msra.mxu0 %v2181
        %2287 = vmatprep.subr.bf16.mxu0 %v2190
        %2288 = vmatpush1.bf16.msra.mxu0 %v2189
        %2289 = vmatprep.subr.bf16.mxu0 %v2198
        %2290 = vmatpush1.bf16.msra.mxu0 %v2197
        %2291 = vmatprep.subr.bf16.mxu0 %v2206
        %2292 = vmatpush1.bf16.msra.mxu0 %v2205
        %2293 = vmatprep.subr.bf16.mxu0 0
        %2294 = vmatpush1.bf16.msra.mxu0 0
        %2295 = vmatprep.subr.bf16.mxu0 0
        %2296 = vmatpush1.bf16.msra.mxu0 0
        %2297 = vmatprep.subr.bf16.mxu0 0
        %2298 = vmatpush1.bf16.msra.mxu0 0
        %2299 = vmatprep.subr.bf16.mxu0 0
        %2300 = vmatpush1.bf16.msra.mxu0 0
        %2301 = vmatprep.subr.bf16.mxu0 0
        %2302 = vmatpush1.bf16.msra.mxu0 0
        %2303 = vmatprep.subr.bf16.mxu0 0
        %2304 = vmatpush1.bf16.msra.mxu0 0
        %2305 = vmatprep.subr.bf16.mxu0 0
        %2306 = vmatpush1.bf16.msra.mxu0 0
        %2307 = vmatprep.subr.bf16.mxu0 0
        %2308 = vmatpush1.bf16.msra.mxu0 0
        %2309 = vmatprep.mubr.bf16.mxu0 0
        %2310 = vmatmul.mubr.bf16.gmra.mrb[0].mxu0 %v1877
        %v2311 = vpop.f32.mrb[0].mxu0
        %v2312 = vadd.f32 0.0, %v2311
        %v2313 = vpop.f32.mrb[0].mxu0
        %v2314 = vadd.f32 0.0, %v2313
        %v2315 = vpop.f32.mrb[0].mxu0
        %v2316 = vadd.f32 0.0, %v2315
        %v2317 = vpop.f32.mrb[0].mxu0
        %v2318 = vadd.f32 0.0, %v2317
        %2319 = vmatprep.mubr.bf16.mxu0 0
        %2320 = vmatmul.mubr.bf16.gmra.mrb[0].mxu0 %v1878
        %v2321 = vpop.f32.mrb[0].mxu0
        %v2322 = vadd.f32 0.0, %v2321
        %v2323 = vpop.f32.mrb[0].mxu0
        %v2324 = vadd.f32 0.0, %v2323
        %v2325 = vpop.f32.mrb[0].mxu0
        %v2326 = vadd.f32 0.0, %v2325
        %v2327 = vpop.f32.mrb[0].mxu0
        %v2328 = vadd.f32 0.0, %v2327
        %2329 = vmatprep.mubr.bf16.mxu0 0
        %2330 = vmatmul.mubr.bf16.gmra.mrb[0].mxu0 %v1879
        %v2331 = vpop.f32.mrb[0].mxu0
        %v2332 = vadd.f32 0.0, %v2331
        %v2333 = vpop.f32.mrb[0].mxu0
        %v2334 = vadd.f32 0.0, %v2333
        %v2335 = vpop.f32.mrb[0].mxu0
        %v2336 = vadd.f32 0.0, %v2335
        %v2337 = vpop.f32.mrb[0].mxu0
        %v2338 = vadd.f32 0.0, %v2337
        %2339 = vmatprep.mubr.bf16.mxu0 0
        %2340 = vmatmul.mubr.bf16.gmra.mrb[0].mxu0 %v1880
        %v2341 = vpop.f32.mrb[0].mxu0
        %v2342 = vadd.f32 0.0, %v2341
        %v2343 = vpop.f32.mrb[0].mxu0
        %v2344 = vadd.f32 0.0, %v2343
        %v2345 = vpop.f32.mrb[0].mxu0
        %v2346 = vadd.f32 0.0, %v2345
        %v2347 = vpop.f32.mrb[0].mxu0
        %v2348 = vadd.f32 0.0, %v2347
        %2349 = vmatprep.mubr.bf16.mxu0 0
        %2350 = vmatmul.mubr.bf16.gmra.mrb[0].mxu0 %v1881
        %v2351 = vpop.f32.mrb[0].mxu0
        %v2352 = vadd.f32 0.0, %v2351
        %v2353 = vpop.f32.mrb[0].mxu0
        %v2354 = vadd.f32 0.0, %v2353
        %v2355 = vpop.f32.mrb[0].mxu0
        %v2356 = vadd.f32 0.0, %v2355
        %v2357 = vpop.f32.mrb[0].mxu0
        %v2358 = vadd.f32 0.0, %v2357
        %2359 = vmatprep.mubr.bf16.mxu0 0
        %2360 = vmatmul.mubr.bf16.gmra.mrb[0].mxu0 %v1882
        %v2361 = vpop.f32.mrb[0].mxu0
        %v2362 = vadd.f32 0.0, %v2361
        %v2363 = vpop.f32.mrb[0].mxu0
        %v2364 = vadd.f32 0.0, %v2363
        %v2365 = vpop.f32.mrb[0].mxu0
        %v2366 = vadd.f32 0.0, %v2365
        %v2367 = vpop.f32.mrb[0].mxu0
        %v2368 = vadd.f32 0.0, %v2367
        %2369 = vmatprep.mubr.bf16.mxu0 0
        %2370 = vmatmul.mubr.bf16.gmra.mrb[0].mxu0 %v1883
        %v2371 = vpop.f32.mrb[0].mxu0
        %v2372 = vadd.f32 0.0, %v2371
        %v2373 = vpop.f32.mrb[0].mxu0
        %v2374 = vadd.f32 0.0, %v2373
        %v2375 = vpop.f32.mrb[0].mxu0
        %v2376 = vadd.f32 0.0, %v2375
        %v2377 = vpop.f32.mrb[0].mxu0
        %v2378 = vadd.f32 0.0, %v2377
        %2379 = vmatprep.mubr.bf16.mxu0 0
        %2380 = vmatmul.mubr.bf16.gmra.mrb[0].mxu0 %v1884
        %v2381 = vpop.f32.mrb[0].mxu0
        %v2382 = vadd.f32 0.0, %v2381
        %v2383 = vpop.f32.mrb[0].mxu0
        %v2384 = vadd.f32 0.0, %v2383
        %v2385 = vpop.f32.mrb[0].mxu0
        %v2386 = vadd.f32 0.0, %v2385
        %v2387 = vpop.f32.mrb[0].mxu0
        %v2388 = vadd.f32 0.0, %v2387
        %2389 = vmatprep.mubr.bf16.mxu0 0
        %2390 = vmatmul.mubr.bf16.gmra.mrb[0].mxu0 %v1885
        %v2391 = vpop.f32.mrb[0].mxu0
        %v2392 = vadd.f32 0.0, %v2391
        %v2393 = vpop.f32.mrb[0].mxu0
        %v2394 = vadd.f32 0.0, %v2393
        %v2395 = vpop.f32.mrb[0].mxu0
        %v2396 = vadd.f32 0.0, %v2395
        %v2397 = vpop.f32.mrb[0].mxu0
        %v2398 = vadd.f32 0.0, %v2397
        %2399 = vmatprep.mubr.bf16.mxu0 0
        %2400 = vmatmul.mubr.bf16.gmra.mrb[0].mxu0 %v1886
        %v2401 = vpop.f32.mrb[0].mxu0
        %v2402 = vadd.f32 0.0, %v2401
        %v2403 = vpop.f32.mrb[0].mxu0
        %v2404 = vadd.f32 0.0, %v2403
        %v2405 = vpop.f32.mrb[0].mxu0
        %v2406 = vadd.f32 0.0, %v2405
        %v2407 = vpop.f32.mrb[0].mxu0
        %v2408 = vadd.f32 0.0, %v2407
        %2409 = vmatprep.mubr.bf16.mxu0 0
        %2410 = vmatmul.mubr.bf16.gmra.mrb[0].mxu0 %v1887
        %v2411 = vpop.f32.mrb[0].mxu0
        %v2412 = vadd.f32 0.0, %v2411
        %v2413 = vpop.f32.mrb[0].mxu0
        %v2414 = vadd.f32 0.0, %v2413
        %v2415 = vpop.f32.mrb[0].mxu0
        %v2416 = vadd.f32 0.0, %v2415
        %v2417 = vpop.f32.mrb[0].mxu0
        %v2418 = vadd.f32 0.0, %v2417
        %2419 = vmatprep.mubr.bf16.mxu0 0
        %2420 = vmatmul.mubr.bf16.gmra.mrb[0].mxu0 %v1888
        %v2421 = vpop.f32.mrb[0].mxu0
        %v2422 = vadd.f32 0.0, %v2421
        %v2423 = vpop.f32.mrb[0].mxu0
        %v2424 = vadd.f32 0.0, %v2423
        %v2425 = vpop.f32.mrb[0].mxu0
        %v2426 = vadd.f32 0.0, %v2425
        %v2427 = vpop.f32.mrb[0].mxu0
        %v2428 = vadd.f32 0.0, %v2427
        %2429 = vmatprep.mubr.bf16.mxu0 0
        %2430 = vmatmul.mubr.bf16.gmra.mrb[0].mxu0 %v1889
        %v2431 = vpop.f32.mrb[0].mxu0
        %v2432 = vadd.f32 0.0, %v2431
        %v2433 = vpop.f32.mrb[0].mxu0
        %v2434 = vadd.f32 0.0, %v2433
        %v2435 = vpop.f32.mrb[0].mxu0
        %v2436 = vadd.f32 0.0, %v2435
        %v2437 = vpop.f32.mrb[0].mxu0
        %v2438 = vadd.f32 0.0, %v2437
        %2439 = vmatprep.mubr.bf16.mxu0 0
        %2440 = vmatmul.mubr.bf16.gmra.mrb[0].mxu0 %v1890
        %v2441 = vpop.f32.mrb[0].mxu0
        %v2442 = vadd.f32 0.0, %v2441
        %v2443 = vpop.f32.mrb[0].mxu0
        %v2444 = vadd.f32 0.0, %v2443
        %v2445 = vpop.f32.mrb[0].mxu0
        %v2446 = vadd.f32 0.0, %v2445
        %v2447 = vpop.f32.mrb[0].mxu0
        %v2448 = vadd.f32 0.0, %v2447
        %2449 = vmatprep.mubr.bf16.mxu0 0
        %2450 = vmatmul.mubr.bf16.gmra.mrb[0].mxu0 %v1891
        %v2451 = vpop.f32.mrb[0].mxu0
        %v2452 = vadd.f32 0.0, %v2451
        %v2453 = vpop.f32.mrb[0].mxu0
        %v2454 = vadd.f32 0.0, %v2453
        %v2455 = vpop.f32.mrb[0].mxu0
        %v2456 = vadd.f32 0.0, %v2455
        %v2457 = vpop.f32.mrb[0].mxu0
        %v2458 = vadd.f32 0.0, %v2457
        %2459 = vmatprep.mubr.bf16.mxu0 0
        %2460 = vmatmul.mubr.bf16.gmra.mrb[0].mxu0 %v1892
        %v2461 = vpop.f32.mrb[0].mxu0
        %v2462 = vadd.f32 0.0, %v2461
        %v2463 = vpop.f32.mrb[0].mxu0
        %v2464 = vadd.f32 0.0, %v2463
        %v2465 = vpop.f32.mrb[0].mxu0
        %v2466 = vadd.f32 0.0, %v2465
        %v2467 = vpop.f32.mrb[0].mxu0
        %v2468 = vadd.f32 0.0, %v2467
        %2469 = vdwg.mxu0
        %2470 = vmatprep.subr.bf16.mxu0 %v2152
        %2471 = vmatpush1.bf16.msra.mxu0 %v2151
        %2472 = vmatprep.subr.bf16.mxu0 %v2160
        %2473 = vmatpush1.bf16.msra.mxu0 %v2159
        %2474 = vmatprep.subr.bf16.mxu0 %v2168
        %2475 = vmatpush1.bf16.msra.mxu0 %v2167
        %2476 = vmatprep.subr.bf16.mxu0 %v2176
        %2477 = vmatpush1.bf16.msra.mxu0 %v2175
        %2478 = vmatprep.subr.bf16.mxu0 %v2184
        %2479 = vmatpush1.bf16.msra.mxu0 %v2183
        %2480 = vmatprep.subr.bf16.mxu0 %v2192
        %2481 = vmatpush1.bf16.msra.mxu0 %v2191
        %2482 = vmatprep.subr.bf16.mxu0 %v2200
        %2483 = vmatpush1.bf16.msra.mxu0 %v2199
        %2484 = vmatprep.subr.bf16.mxu0 %v2208
        %2485 = vmatpush1.bf16.msra.mxu0 %v2207
        %2486 = vmatprep.subr.bf16.mxu0 0
        %2487 = vmatpush1.bf16.msra.mxu0 0
        %2488 = vmatprep.subr.bf16.mxu0 0
        %2489 = vmatpush1.bf16.msra.mxu0 0
        %2490 = vmatprep.subr.bf16.mxu0 0
        %2491 = vmatpush1.bf16.msra.mxu0 0
        %2492 = vmatprep.subr.bf16.mxu0 0
        %2493 = vmatpush1.bf16.msra.mxu0 0
        %2494 = vmatprep.subr.bf16.mxu0 0
        %2495 = vmatpush1.bf16.msra.mxu0 0
        %2496 = vmatprep.subr.bf16.mxu0 0
        %2497 = vmatpush1.bf16.msra.mxu0 0
        %2498 = vmatprep.subr.bf16.mxu0 0
        %2499 = vmatpush1.bf16.msra.mxu0 0
        %2500 = vmatprep.subr.bf16.mxu0 0
        %2501 = vmatpush1.bf16.msra.mxu0 0
        %2502 = vmatprep.mubr.bf16.mxu0 0
        %2503 = vmatmul.mubr.bf16.gmra.mrb[0].mxu0 %v1877
        %v2504 = vpop.f32.mrb[0].mxu0
        %v2505 = vadd.f32 0.0, %v2504
        %v2506 = vpop.f32.mrb[0].mxu0
        %v2507 = vadd.f32 0.0, %v2506
        %v2508 = vpop.f32.mrb[0].mxu0
        %v2509 = vadd.f32 0.0, %v2508
        %v2510 = vpop.f32.mrb[0].mxu0
        %v2511 = vadd.f32 0.0, %v2510
        %2512 = vmatprep.mubr.bf16.mxu0 0
        %2513 = vmatmul.mubr.bf16.gmra.mrb[0].mxu0 %v1878
        %v2514 = vpop.f32.mrb[0].mxu0
        %v2515 = vadd.f32 0.0, %v2514
        %v2516 = vpop.f32.mrb[0].mxu0
        %v2517 = vadd.f32 0.0, %v2516
        %v2518 = vpop.f32.mrb[0].mxu0
        %v2519 = vadd.f32 0.0, %v2518
        %v2520 = vpop.f32.mrb[0].mxu0
        %v2521 = vadd.f32 0.0, %v2520
        %2522 = vmatprep.mubr.bf16.mxu0 0
        %2523 = vmatmul.mubr.bf16.gmra.mrb[0].mxu0 %v1879
        %v2524 = vpop.f32.mrb[0].mxu0
        %v2525 = vadd.f32 0.0, %v2524
        %v2526 = vpop.f32.mrb[0].mxu0
        %v2527 = vadd.f32 0.0, %v2526
        %v2528 = vpop.f32.mrb[0].mxu0
        %v2529 = vadd.f32 0.0, %v2528
        %v2530 = vpop.f32.mrb[0].mxu0
        %v2531 = vadd.f32 0.0, %v2530
        %2532 = vmatprep.mubr.bf16.mxu0 0
        %2533 = vmatmul.mubr.bf16.gmra.mrb[0].mxu0 %v1880
        %v2534 = vpop.f32.mrb[0].mxu0
        %v2535 = vadd.f32 0.0, %v2534
        %v2536 = vpop.f32.mrb[0].mxu0
        %v2537 = vadd.f32 0.0, %v2536
        %v2538 = vpop.f32.mrb[0].mxu0
        %v2539 = vadd.f32 0.0, %v2538
        %v2540 = vpop.f32.mrb[0].mxu0
        %v2541 = vadd.f32 0.0, %v2540
        %2542 = vmatprep.mubr.bf16.mxu0 0
        %2543 = vmatmul.mubr.bf16.gmra.mrb[0].mxu0 %v1881
        %v2544 = vpop.f32.mrb[0].mxu0
        %v2545 = vadd.f32 0.0, %v2544
        %v2546 = vpop.f32.mrb[0].mxu0
        %v2547 = vadd.f32 0.0, %v2546
        %v2548 = vpop.f32.mrb[0].mxu0
        %v2549 = vadd.f32 0.0, %v2548
        %v2550 = vpop.f32.mrb[0].mxu0
        %v2551 = vadd.f32 0.0, %v2550
        %2552 = vmatprep.mubr.bf16.mxu0 0
        %2553 = vmatmul.mubr.bf16.gmra.mrb[0].mxu0 %v1882
        %v2554 = vpop.f32.mrb[0].mxu0
        %v2555 = vadd.f32 0.0, %v2554
        %v2556 = vpop.f32.mrb[0].mxu0
        %v2557 = vadd.f32 0.0, %v2556
        %v2558 = vpop.f32.mrb[0].mxu0
        %v2559 = vadd.f32 0.0, %v2558
        %v2560 = vpop.f32.mrb[0].mxu0
        %v2561 = vadd.f32 0.0, %v2560
        %2562 = vmatprep.mubr.bf16.mxu0 0
        %2563 = vmatmul.mubr.bf16.gmra.mrb[0].mxu0 %v1883
        %v2564 = vpop.f32.mrb[0].mxu0
        %v2565 = vadd.f32 0.0, %v2564
        %v2566 = vpop.f32.mrb[0].mxu0
        %v2567 = vadd.f32 0.0, %v2566
        %v2568 = vpop.f32.mrb[0].mxu0
        %v2569 = vadd.f32 0.0, %v2568
        %v2570 = vpop.f32.mrb[0].mxu0
        %v2571 = vadd.f32 0.0, %v2570
        %2572 = vmatprep.mubr.bf16.mxu0 0
        %2573 = vmatmul.mubr.bf16.gmra.mrb[0].mxu0 %v1884
        %v2574 = vpop.f32.mrb[0].mxu0
        %v2575 = vadd.f32 0.0, %v2574
        %v2576 = vpop.f32.mrb[0].mxu0
        %v2577 = vadd.f32 0.0, %v2576
        %v2578 = vpop.f32.mrb[0].mxu0
        %v2579 = vadd.f32 0.0, %v2578
        %v2580 = vpop.f32.mrb[0].mxu0
        %v2581 = vadd.f32 0.0, %v2580
        %2582 = vmatprep.mubr.bf16.mxu0 0
        %2583 = vmatmul.mubr.bf16.gmra.mrb[0].mxu0 %v1885
        %v2584 = vpop.f32.mrb[0].mxu0
        %v2585 = vadd.f32 0.0, %v2584
        %v2586 = vpop.f32.mrb[0].mxu0
        %v2587 = vadd.f32 0.0, %v2586
        %v2588 = vpop.f32.mrb[0].mxu0
        %v2589 = vadd.f32 0.0, %v2588
        %v2590 = vpop.f32.mrb[0].mxu0
        %v2591 = vadd.f32 0.0, %v2590
        %2592 = vmatprep.mubr.bf16.mxu0 0
        %2593 = vmatmul.mubr.bf16.gmra.mrb[0].mxu0 %v1886
        %v2594 = vpop.f32.mrb[0].mxu0
        %v2595 = vadd.f32 0.0, %v2594
        %v2596 = vpop.f32.mrb[0].mxu0
        %v2597 = vadd.f32 0.0, %v2596
        %v2598 = vpop.f32.mrb[0].mxu0
        %v2599 = vadd.f32 0.0, %v2598
        %v2600 = vpop.f32.mrb[0].mxu0
        %v2601 = vadd.f32 0.0, %v2600
        %2602 = vmatprep.mubr.bf16.mxu0 0
        %2603 = vmatmul.mubr.bf16.gmra.mrb[0].mxu0 %v1887
        %v2604 = vpop.f32.mrb[0].mxu0
        %v2605 = vadd.f32 0.0, %v2604
        %v2606 = vpop.f32.mrb[0].mxu0
        %v2607 = vadd.f32 0.0, %v2606
        %v2608 = vpop.f32.mrb[0].mxu0
        %v2609 = vadd.f32 0.0, %v2608
        %v2610 = vpop.f32.mrb[0].mxu0
        %v2611 = vadd.f32 0.0, %v2610
        %2612 = vmatprep.mubr.bf16.mxu0 0
        %2613 = vmatmul.mubr.bf16.gmra.mrb[0].mxu0 %v1888
        %v2614 = vpop.f32.mrb[0].mxu0
        %v2615 = vadd.f32 0.0, %v2614
        %v2616 = vpop.f32.mrb[0].mxu0
        %v2617 = vadd.f32 0.0, %v2616
        %v2618 = vpop.f32.mrb[0].mxu0
        %v2619 = vadd.f32 0.0, %v2618
        %v2620 = vpop.f32.mrb[0].mxu0
        %v2621 = vadd.f32 0.0, %v2620
        %2622 = vmatprep.mubr.bf16.mxu0 0
        %2623 = vmatmul.mubr.bf16.gmra.mrb[0].mxu0 %v1889
        %v2624 = vpop.f32.mrb[0].mxu0
        %v2625 = vadd.f32 0.0, %v2624
        %v2626 = vpop.f32.mrb[0].mxu0
        %v2627 = vadd.f32 0.0, %v2626
        %v2628 = vpop.f32.mrb[0].mxu0
        %v2629 = vadd.f32 0.0, %v2628
        %v2630 = vpop.f32.mrb[0].mxu0
        %v2631 = vadd.f32 0.0, %v2630
        %2632 = vmatprep.mubr.bf16.mxu0 0
        %2633 = vmatmul.mubr.bf16.gmra.mrb[0].mxu0 %v1890
        %v2634 = vpop.f32.mrb[0].mxu0
        %v2635 = vadd.f32 0.0, %v2634
        %v2636 = vpop.f32.mrb[0].mxu0
        %v2637 = vadd.f32 0.0, %v2636
        %v2638 = vpop.f32.mrb[0].mxu0
        %v2639 = vadd.f32 0.0, %v2638
        %v2640 = vpop.f32.mrb[0].mxu0
        %v2641 = vadd.f32 0.0, %v2640
        %2642 = vmatprep.mubr.bf16.mxu0 0
        %2643 = vmatmul.mubr.bf16.gmra.mrb[0].mxu0 %v1891
        %v2644 = vpop.f32.mrb[0].mxu0
        %v2645 = vadd.f32 0.0, %v2644
        %v2646 = vpop.f32.mrb[0].mxu0
        %v2647 = vadd.f32 0.0, %v2646
        %v2648 = vpop.f32.mrb[0].mxu0
        %v2649 = vadd.f32 0.0, %v2648
        %v2650 = vpop.f32.mrb[0].mxu0
        %v2651 = vadd.f32 0.0, %v2650
        %2652 = vmatprep.mubr.bf16.mxu0 0
        %2653 = vmatmul.mubr.bf16.gmra.mrb[0].mxu0 %v1892
        %v2654 = vpop.f32.mrb[0].mxu0
        %v2655 = vadd.f32 0.0, %v2654
        %v2656 = vpop.f32.mrb[0].mxu0
        %v2657 = vadd.f32 0.0, %v2656
        %v2658 = vpop.f32.mrb[0].mxu0
        %v2659 = vadd.f32 0.0, %v2658
        %v2660 = vpop.f32.mrb[0].mxu0
        %v2661 = vadd.f32 0.0, %v2660
        %2662 = vdwg.mxu0
        %2663 = vmatprep.subr.bf16.mxu0 %v2154
        %2664 = vmatpush1.bf16.msra.mxu0 %v2153
        %2665 = vmatprep.subr.bf16.mxu0 %v2162
        %2666 = vmatpush1.bf16.msra.mxu0 %v2161
        %2667 = vmatprep.subr.bf16.mxu0 %v2170
        %2668 = vmatpush1.bf16.msra.mxu0 %v2169
        %2669 = vmatprep.subr.bf16.mxu0 %v2178
        %2670 = vmatpush1.bf16.msra.mxu0 %v2177
        %2671 = vmatprep.subr.bf16.mxu0 %v2186
        %2672 = vmatpush1.bf16.msra.mxu0 %v2185
        %2673 = vmatprep.subr.bf16.mxu0 %v2194
        %2674 = vmatpush1.bf16.msra.mxu0 %v2193
        %2675 = vmatprep.subr.bf16.mxu0 %v2202
        %2676 = vmatpush1.bf16.msra.mxu0 %v2201
        %2677 = vmatprep.subr.bf16.mxu0 %v2210
        %2678 = vmatpush1.bf16.msra.mxu0 %v2209
        %2679 = vmatprep.subr.bf16.mxu0 0
        %2680 = vmatpush1.bf16.msra.mxu0 0
        %2681 = vmatprep.subr.bf16.mxu0 0
        %2682 = vmatpush1.bf16.msra.mxu0 0
        %2683 = vmatprep.subr.bf16.mxu0 0
        %2684 = vmatpush1.bf16.msra.mxu0 0
        %2685 = vmatprep.subr.bf16.mxu0 0
        %2686 = vmatpush1.bf16.msra.mxu0 0
        %2687 = vmatprep.subr.bf16.mxu0 0
        %2688 = vmatpush1.bf16.msra.mxu0 0
        %2689 = vmatprep.subr.bf16.mxu0 0
        %2690 = vmatpush1.bf16.msra.mxu0 0
        %2691 = vmatprep.subr.bf16.mxu0 0
        %2692 = vmatpush1.bf16.msra.mxu0 0
        %2693 = vmatprep.subr.bf16.mxu0 0
        %2694 = vmatpush1.bf16.msra.mxu0 0
        %2695 = vmatprep.mubr.bf16.mxu0 0
        %2696 = vmatmul.mubr.bf16.gmra.mrb[0].mxu0 %v1877
        %v2697 = vpop.f32.mrb[0].mxu0
        %v2698 = vadd.f32 0.0, %v2697
        %v2699 = vpop.f32.mrb[0].mxu0
        %v2700 = vadd.f32 0.0, %v2699
        %v2701 = vpop.f32.mrb[0].mxu0
        %v2702 = vadd.f32 0.0, %v2701
        %v2703 = vpop.f32.mrb[0].mxu0
        %v2704 = vadd.f32 0.0, %v2703
        %2705 = vmatprep.mubr.bf16.mxu0 0
        %2706 = vmatmul.mubr.bf16.gmra.mrb[0].mxu0 %v1878
        %v2707 = vpop.f32.mrb[0].mxu0
        %v2708 = vadd.f32 0.0, %v2707
        %v2709 = vpop.f32.mrb[0].mxu0
        %v2710 = vadd.f32 0.0, %v2709
        %v2711 = vpop.f32.mrb[0].mxu0
        %v2712 = vadd.f32 0.0, %v2711
        %v2713 = vpop.f32.mrb[0].mxu0
        %v2714 = vadd.f32 0.0, %v2713
        %2715 = vmatprep.mubr.bf16.mxu0 0
        %2716 = vmatmul.mubr.bf16.gmra.mrb[0].mxu0 %v1879
        %v2717 = vpop.f32.mrb[0].mxu0
        %v2718 = vadd.f32 0.0, %v2717
        %v2719 = vpop.f32.mrb[0].mxu0
        %v2720 = vadd.f32 0.0, %v2719
        %v2721 = vpop.f32.mrb[0].mxu0
        %v2722 = vadd.f32 0.0, %v2721
        %v2723 = vpop.f32.mrb[0].mxu0
        %v2724 = vadd.f32 0.0, %v2723
        %2725 = vmatprep.mubr.bf16.mxu0 0
        %2726 = vmatmul.mubr.bf16.gmra.mrb[0].mxu0 %v1880
        %v2727 = vpop.f32.mrb[0].mxu0
        %v2728 = vadd.f32 0.0, %v2727
        %v2729 = vpop.f32.mrb[0].mxu0
        %v2730 = vadd.f32 0.0, %v2729
        %v2731 = vpop.f32.mrb[0].mxu0
        %v2732 = vadd.f32 0.0, %v2731
        %v2733 = vpop.f32.mrb[0].mxu0
        %v2734 = vadd.f32 0.0, %v2733
        %2735 = vmatprep.mubr.bf16.mxu0 0
        %2736 = vmatmul.mubr.bf16.gmra.mrb[0].mxu0 %v1881
        %v2737 = vpop.f32.mrb[0].mxu0
        %v2738 = vadd.f32 0.0, %v2737
        %v2739 = vpop.f32.mrb[0].mxu0
        %v2740 = vadd.f32 0.0, %v2739
        %v2741 = vpop.f32.mrb[0].mxu0
        %v2742 = vadd.f32 0.0, %v2741
        %v2743 = vpop.f32.mrb[0].mxu0
        %v2744 = vadd.f32 0.0, %v2743
        %2745 = vmatprep.mubr.bf16.mxu0 0
        %2746 = vmatmul.mubr.bf16.gmra.mrb[0].mxu0 %v1882
        %v2747 = vpop.f32.mrb[0].mxu0
        %v2748 = vadd.f32 0.0, %v2747
        %v2749 = vpop.f32.mrb[0].mxu0
        %v2750 = vadd.f32 0.0, %v2749
        %v2751 = vpop.f32.mrb[0].mxu0
        %v2752 = vadd.f32 0.0, %v2751
        %v2753 = vpop.f32.mrb[0].mxu0
        %v2754 = vadd.f32 0.0, %v2753
        %2755 = vmatprep.mubr.bf16.mxu0 0
        %2756 = vmatmul.mubr.bf16.gmra.mrb[0].mxu0 %v1883
        %v2757 = vpop.f32.mrb[0].mxu0
        %v2758 = vadd.f32 0.0, %v2757
        %v2759 = vpop.f32.mrb[0].mxu0
        %v2760 = vadd.f32 0.0, %v2759
        %v2761 = vpop.f32.mrb[0].mxu0
        %v2762 = vadd.f32 0.0, %v2761
        %v2763 = vpop.f32.mrb[0].mxu0
        %v2764 = vadd.f32 0.0, %v2763
        %2765 = vmatprep.mubr.bf16.mxu0 0
        %2766 = vmatmul.mubr.bf16.gmra.mrb[0].mxu0 %v1884
        %v2767 = vpop.f32.mrb[0].mxu0
        %v2768 = vadd.f32 0.0, %v2767
        %v2769 = vpop.f32.mrb[0].mxu0
        %v2770 = vadd.f32 0.0, %v2769
        %v2771 = vpop.f32.mrb[0].mxu0
        %v2772 = vadd.f32 0.0, %v2771
        %v2773 = vpop.f32.mrb[0].mxu0
        %v2774 = vadd.f32 0.0, %v2773
        %2775 = vmatprep.mubr.bf16.mxu0 0
        %2776 = vmatmul.mubr.bf16.gmra.mrb[0].mxu0 %v1885
        %v2777 = vpop.f32.mrb[0].mxu0
        %v2778 = vadd.f32 0.0, %v2777
        %v2779 = vpop.f32.mrb[0].mxu0
        %v2780 = vadd.f32 0.0, %v2779
        %v2781 = vpop.f32.mrb[0].mxu0
        %v2782 = vadd.f32 0.0, %v2781
        %v2783 = vpop.f32.mrb[0].mxu0
        %v2784 = vadd.f32 0.0, %v2783
        %2785 = vmatprep.mubr.bf16.mxu0 0
        %2786 = vmatmul.mubr.bf16.gmra.mrb[0].mxu0 %v1886
        %v2787 = vpop.f32.mrb[0].mxu0
        %v2788 = vadd.f32 0.0, %v2787
        %v2789 = vpop.f32.mrb[0].mxu0
        %v2790 = vadd.f32 0.0, %v2789
        %v2791 = vpop.f32.mrb[0].mxu0
        %v2792 = vadd.f32 0.0, %v2791
        %v2793 = vpop.f32.mrb[0].mxu0
        %v2794 = vadd.f32 0.0, %v2793
        %2795 = vmatprep.mubr.bf16.mxu0 0
        %2796 = vmatmul.mubr.bf16.gmra.mrb[0].mxu0 %v1887
        %v2797 = vpop.f32.mrb[0].mxu0
        %v2798 = vadd.f32 0.0, %v2797
        %v2799 = vpop.f32.mrb[0].mxu0
        %v2800 = vadd.f32 0.0, %v2799
        %v2801 = vpop.f32.mrb[0].mxu0
        %v2802 = vadd.f32 0.0, %v2801
        %v2803 = vpop.f32.mrb[0].mxu0
        %v2804 = vadd.f32 0.0, %v2803
        %2805 = vmatprep.mubr.bf16.mxu0 0
        %2806 = vmatmul.mubr.bf16.gmra.mrb[0].mxu0 %v1888
        %v2807 = vpop.f32.mrb[0].mxu0
        %v2808 = vadd.f32 0.0, %v2807
        %v2809 = vpop.f32.mrb[0].mxu0
        %v2810 = vadd.f32 0.0, %v2809
        %v2811 = vpop.f32.mrb[0].mxu0
        %v2812 = vadd.f32 0.0, %v2811
        %v2813 = vpop.f32.mrb[0].mxu0
        %v2814 = vadd.f32 0.0, %v2813
        %2815 = vmatprep.mubr.bf16.mxu0 0
        %2816 = vmatmul.mubr.bf16.gmra.mrb[0].mxu0 %v1889
        %v2817 = vpop.f32.mrb[0].mxu0
        %v2818 = vadd.f32 0.0, %v2817
        %v2819 = vpop.f32.mrb[0].mxu0
        %v2820 = vadd.f32 0.0, %v2819
        %v2821 = vpop.f32.mrb[0].mxu0
        %v2822 = vadd.f32 0.0, %v2821
        %v2823 = vpop.f32.mrb[0].mxu0
        %v2824 = vadd.f32 0.0, %v2823
        %2825 = vmatprep.mubr.bf16.mxu0 0
        %2826 = vmatmul.mubr.bf16.gmra.mrb[0].mxu0 %v1890
        %v2827 = vpop.f32.mrb[0].mxu0
        %v2828 = vadd.f32 0.0, %v2827
        %v2829 = vpop.f32.mrb[0].mxu0
        %v2830 = vadd.f32 0.0, %v2829
        %v2831 = vpop.f32.mrb[0].mxu0
        %v2832 = vadd.f32 0.0, %v2831
        %v2833 = vpop.f32.mrb[0].mxu0
        %v2834 = vadd.f32 0.0, %v2833
        %2835 = vmatprep.mubr.bf16.mxu0 0
        %2836 = vmatmul.mubr.bf16.gmra.mrb[0].mxu0 %v1891
        %v2837 = vpop.f32.mrb[0].mxu0
        %v2838 = vadd.f32 0.0, %v2837
        %v2839 = vpop.f32.mrb[0].mxu0
        %v2840 = vadd.f32 0.0, %v2839
        %v2841 = vpop.f32.mrb[0].mxu0
        %v2842 = vadd.f32 0.0, %v2841
        %v2843 = vpop.f32.mrb[0].mxu0
        %v2844 = vadd.f32 0.0, %v2843
        %2845 = vmatprep.mubr.bf16.mxu0 0
        %2846 = vmatmul.mubr.bf16.gmra.mrb[0].mxu0 %v1892
        %v2847 = vpop.f32.mrb[0].mxu0
        %v2848 = vadd.f32 0.0, %v2847
        %v2849 = vpop.f32.mrb[0].mxu0
        %v2850 = vadd.f32 0.0, %v2849
        %v2851 = vpop.f32.mrb[0].mxu0
        %v2852 = vadd.f32 0.0, %v2851
        %v2853 = vpop.f32.mrb[0].mxu0
        %v2854 = vadd.f32 0.0, %v2853
        %2855 = vdwg.mxu0
        %2856 = vmatprep.subr.bf16.mxu0 %v2156
        %2857 = vmatpush1.bf16.msra.mxu0 %v2155
        %2858 = vmatprep.subr.bf16.mxu0 %v2164
        %2859 = vmatpush1.bf16.msra.mxu0 %v2163
        %2860 = vmatprep.subr.bf16.mxu0 %v2172
        %2861 = vmatpush1.bf16.msra.mxu0 %v2171
        %2862 = vmatprep.subr.bf16.mxu0 %v2180
        %2863 = vmatpush1.bf16.msra.mxu0 %v2179
        %2864 = vmatprep.subr.bf16.mxu0 %v2188
        %2865 = vmatpush1.bf16.msra.mxu0 %v2187
        %2866 = vmatprep.subr.bf16.mxu0 %v2196
        %2867 = vmatpush1.bf16.msra.mxu0 %v2195
        %2868 = vmatprep.subr.bf16.mxu0 %v2204
        %2869 = vmatpush1.bf16.msra.mxu0 %v2203
        %2870 = vmatprep.subr.bf16.mxu0 %v2212
        %2871 = vmatpush1.bf16.msra.mxu0 %v2211
        %2872 = vmatprep.subr.bf16.mxu0 0
        %2873 = vmatpush1.bf16.msra.mxu0 0
        %2874 = vmatprep.subr.bf16.mxu0 0
        %2875 = vmatpush1.bf16.msra.mxu0 0
        %2876 = vmatprep.subr.bf16.mxu0 0
        %2877 = vmatpush1.bf16.msra.mxu0 0
        %2878 = vmatprep.subr.bf16.mxu0 0
        %2879 = vmatpush1.bf16.msra.mxu0 0
        %2880 = vmatprep.subr.bf16.mxu0 0
        %2881 = vmatpush1.bf16.msra.mxu0 0
        %2882 = vmatprep.subr.bf16.mxu0 0
        %2883 = vmatpush1.bf16.msra.mxu0 0
        %2884 = vmatprep.subr.bf16.mxu0 0
        %2885 = vmatpush1.bf16.msra.mxu0 0
        %2886 = vmatprep.subr.bf16.mxu0 0
        %2887 = vmatpush1.bf16.msra.mxu0 0
        %2888 = vmatprep.mubr.bf16.mxu0 0
        %2889 = vmatmul.mubr.bf16.gmra.mrb[0].mxu0 %v1877
        %v2890 = vpop.f32.mrb[0].mxu0
        %v2891 = vadd.f32 0.0, %v2890
        %v2892 = vpop.f32.mrb[0].mxu0
        %v2893 = vadd.f32 0.0, %v2892
        %v2894 = vpop.f32.mrb[0].mxu0
        %v2895 = vadd.f32 0.0, %v2894
        %v2896 = vpop.f32.mrb[0].mxu0
        %v2897 = vadd.f32 0.0, %v2896
        %2898 = vmatprep.mubr.bf16.mxu0 0
        %2899 = vmatmul.mubr.bf16.gmra.mrb[0].mxu0 %v1878
        %v2900 = vpop.f32.mrb[0].mxu0
        %v2901 = vadd.f32 0.0, %v2900
        %v2902 = vpop.f32.mrb[0].mxu0
        %v2903 = vadd.f32 0.0, %v2902
        %v2904 = vpop.f32.mrb[0].mxu0
        %v2905 = vadd.f32 0.0, %v2904
        %v2906 = vpop.f32.mrb[0].mxu0
        %v2907 = vadd.f32 0.0, %v2906
        %2908 = vmatprep.mubr.bf16.mxu0 0
        %2909 = vmatmul.mubr.bf16.gmra.mrb[0].mxu0 %v1879
        %v2910 = vpop.f32.mrb[0].mxu0
        %v2911 = vadd.f32 0.0, %v2910
        %v2912 = vpop.f32.mrb[0].mxu0
        %v2913 = vadd.f32 0.0, %v2912
        %v2914 = vpop.f32.mrb[0].mxu0
        %v2915 = vadd.f32 0.0, %v2914
        %v2916 = vpop.f32.mrb[0].mxu0
        %v2917 = vadd.f32 0.0, %v2916
        %2918 = vmatprep.mubr.bf16.mxu0 0
        %2919 = vmatmul.mubr.bf16.gmra.mrb[0].mxu0 %v1880
        %v2920 = vpop.f32.mrb[0].mxu0
        %v2921 = vadd.f32 0.0, %v2920
        %v2922 = vpop.f32.mrb[0].mxu0
        %v2923 = vadd.f32 0.0, %v2922
        %v2924 = vpop.f32.mrb[0].mxu0
        %v2925 = vadd.f32 0.0, %v2924
        %v2926 = vpop.f32.mrb[0].mxu0
        %v2927 = vadd.f32 0.0, %v2926
        %2928 = vmatprep.mubr.bf16.mxu0 0
        %2929 = vmatmul.mubr.bf16.gmra.mrb[0].mxu0 %v1881
        %v2930 = vpop.f32.mrb[0].mxu0
        %v2931 = vadd.f32 0.0, %v2930
        %v2932 = vpop.f32.mrb[0].mxu0
        %v2933 = vadd.f32 0.0, %v2932
        %v2934 = vpop.f32.mrb[0].mxu0
        %v2935 = vadd.f32 0.0, %v2934
        %v2936 = vpop.f32.mrb[0].mxu0
        %v2937 = vadd.f32 0.0, %v2936
        %2938 = vmatprep.mubr.bf16.mxu0 0
        %2939 = vmatmul.mubr.bf16.gmra.mrb[0].mxu0 %v1882
        %v2940 = vpop.f32.mrb[0].mxu0
        %v2941 = vadd.f32 0.0, %v2940
        %v2942 = vpop.f32.mrb[0].mxu0
        %v2943 = vadd.f32 0.0, %v2942
        %v2944 = vpop.f32.mrb[0].mxu0
        %v2945 = vadd.f32 0.0, %v2944
        %v2946 = vpop.f32.mrb[0].mxu0
        %v2947 = vadd.f32 0.0, %v2946
        %2948 = vmatprep.mubr.bf16.mxu0 0
        %2949 = vmatmul.mubr.bf16.gmra.mrb[0].mxu0 %v1883
        %v2950 = vpop.f32.mrb[0].mxu0
        %v2951 = vadd.f32 0.0, %v2950
        %v2952 = vpop.f32.mrb[0].mxu0
        %v2953 = vadd.f32 0.0, %v2952
        %v2954 = vpop.f32.mrb[0].mxu0
        %v2955 = vadd.f32 0.0, %v2954
        %v2956 = vpop.f32.mrb[0].mxu0
        %v2957 = vadd.f32 0.0, %v2956
        %2958 = vmatprep.mubr.bf16.mxu0 0
        %2959 = vmatmul.mubr.bf16.gmra.mrb[0].mxu0 %v1884
        %v2960 = vpop.f32.mrb[0].mxu0
        %v2961 = vadd.f32 0.0, %v2960
        %v2962 = vpop.f32.mrb[0].mxu0
        %v2963 = vadd.f32 0.0, %v2962
        %v2964 = vpop.f32.mrb[0].mxu0
        %v2965 = vadd.f32 0.0, %v2964
        %v2966 = vpop.f32.mrb[0].mxu0
        %v2967 = vadd.f32 0.0, %v2966
        %2968 = vmatprep.mubr.bf16.mxu0 0
        %2969 = vmatmul.mubr.bf16.gmra.mrb[0].mxu0 %v1885
        %v2970 = vpop.f32.mrb[0].mxu0
        %v2971 = vadd.f32 0.0, %v2970
        %v2972 = vpop.f32.mrb[0].mxu0
        %v2973 = vadd.f32 0.0, %v2972
        %v2974 = vpop.f32.mrb[0].mxu0
        %v2975 = vadd.f32 0.0, %v2974
        %v2976 = vpop.f32.mrb[0].mxu0
        %v2977 = vadd.f32 0.0, %v2976
        %2978 = vmatprep.mubr.bf16.mxu0 0
        %2979 = vmatmul.mubr.bf16.gmra.mrb[0].mxu0 %v1886
        %v2980 = vpop.f32.mrb[0].mxu0
        %v2981 = vadd.f32 0.0, %v2980
        %v2982 = vpop.f32.mrb[0].mxu0
        %v2983 = vadd.f32 0.0, %v2982
        %v2984 = vpop.f32.mrb[0].mxu0
        %v2985 = vadd.f32 0.0, %v2984
        %v2986 = vpop.f32.mrb[0].mxu0
        %v2987 = vadd.f32 0.0, %v2986
        %2988 = vmatprep.mubr.bf16.mxu0 0
        %2989 = vmatmul.mubr.bf16.gmra.mrb[0].mxu0 %v1887
        %v2990 = vpop.f32.mrb[0].mxu0
        %v2991 = vadd.f32 0.0, %v2990
        %v2992 = vpop.f32.mrb[0].mxu0
        %v2993 = vadd.f32 0.0, %v2992
        %v2994 = vpop.f32.mrb[0].mxu0
        %v2995 = vadd.f32 0.0, %v2994
        %v2996 = vpop.f32.mrb[0].mxu0
        %v2997 = vadd.f32 0.0, %v2996
        %2998 = vmatprep.mubr.bf16.mxu0 0
        %2999 = vmatmul.mubr.bf16.gmra.mrb[0].mxu0 %v1888
        %v3000 = vpop.f32.mrb[0].mxu0
        %v3001 = vadd.f32 0.0, %v3000
        %v3002 = vpop.f32.mrb[0].mxu0
        %v3003 = vadd.f32 0.0, %v3002
        %v3004 = vpop.f32.mrb[0].mxu0
        %v3005 = vadd.f32 0.0, %v3004
        %v3006 = vpop.f32.mrb[0].mxu0
        %v3007 = vadd.f32 0.0, %v3006
        %3008 = vmatprep.mubr.bf16.mxu0 0
        %3009 = vmatmul.mubr.bf16.gmra.mrb[0].mxu0 %v1889
        %v3010 = vpop.f32.mrb[0].mxu0
        %v3011 = vadd.f32 0.0, %v3010
        %v3012 = vpop.f32.mrb[0].mxu0
        %v3013 = vadd.f32 0.0, %v3012
        %v3014 = vpop.f32.mrb[0].mxu0
        %v3015 = vadd.f32 0.0, %v3014
        %v3016 = vpop.f32.mrb[0].mxu0
        %v3017 = vadd.f32 0.0, %v3016
        %3018 = vmatprep.mubr.bf16.mxu0 0
        %3019 = vmatmul.mubr.bf16.gmra.mrb[0].mxu0 %v1890
        %v3020 = vpop.f32.mrb[0].mxu0
        %v3021 = vadd.f32 0.0, %v3020
        %v3022 = vpop.f32.mrb[0].mxu0
        %v3023 = vadd.f32 0.0, %v3022
        %v3024 = vpop.f32.mrb[0].mxu0
        %v3025 = vadd.f32 0.0, %v3024
        %v3026 = vpop.f32.mrb[0].mxu0
        %v3027 = vadd.f32 0.0, %v3026
        %3028 = vmatprep.mubr.bf16.mxu0 0
        %3029 = vmatmul.mubr.bf16.gmra.mrb[0].mxu0 %v1891
        %v3030 = vpop.f32.mrb[0].mxu0
        %v3031 = vadd.f32 0.0, %v3030
        %v3032 = vpop.f32.mrb[0].mxu0
        %v3033 = vadd.f32 0.0, %v3032
        %v3034 = vpop.f32.mrb[0].mxu0
        %v3035 = vadd.f32 0.0, %v3034
        %v3036 = vpop.f32.mrb[0].mxu0
        %v3037 = vadd.f32 0.0, %v3036
        %3038 = vmatprep.mubr.bf16.mxu0 0
        %3039 = vmatmul.mubr.bf16.gmra.mrb[0].mxu0 %v1892
        %v3040 = vpop.f32.mrb[0].mxu0
        %v3041 = vadd.f32 0.0, %v3040
        %v3042 = vpop.f32.mrb[0].mxu0
        %v3043 = vadd.f32 0.0, %v3042
        %v3044 = vpop.f32.mrb[0].mxu0
        %v3045 = vadd.f32 0.0, %v3044
        %v3046 = vpop.f32.mrb[0].mxu0
        %v3047 = vadd.f32 0.0, %v3046
        %3048 = vdwg.mxu0
        %v3049 = vmax.f32 %v2312, %v2316
        %v3050 = vmax.f32 %v3049, %v2322
        %v3051 = vmax.f32 %v3050, %v2326
        %v3052 = vmax.f32 %v3051, %v2332
        %v3053 = vmax.f32 %v3052, %v2336
        %v3054 = vmax.f32 %v3053, %v2342
        %v3055 = vmax.f32 %v3054, %v2346
        %v3056 = vmax.f32 %v3055, %v2352
        %v3057 = vmax.f32 %v3056, %v2356
        %v3058 = vmax.f32 %v3057, %v2362
        %v3059 = vmax.f32 %v3058, %v2366
        %v3060 = vmax.f32 %v3059, %v2372
        %v3061 = vmax.f32 %v3060, %v2376
        %v3062 = vmax.f32 %v3061, %v2382
        %v3063 = vmax.f32 %v3062, %v2386
        %v3064 = vrot.slane %v3063, 4
        %v3065 = vmax.f32 %v3063, %v3064
        %v3066 = vrot.slane %v3065, 2
        %v3067 = vmax.f32 %v3065, %v3066
        %v3068 = vrot.slane %v3067, 1
        %v3069 = vmax.f32 %v3067, %v3068
        %v3070 = vmax.f32 %v2314, %v2318
        %v3071 = vmax.f32 %v3070, %v2324
        %v3072 = vmax.f32 %v3071, %v2328
        %v3073 = vmax.f32 %v3072, %v2334
        %v3074 = vmax.f32 %v3073, %v2338
        %v3075 = vmax.f32 %v3074, %v2344
        %v3076 = vmax.f32 %v3075, %v2348
        %v3077 = vmax.f32 %v3076, %v2354
        %v3078 = vmax.f32 %v3077, %v2358
        %v3079 = vmax.f32 %v3078, %v2364
        %v3080 = vmax.f32 %v3079, %v2368
        %v3081 = vmax.f32 %v3080, %v2374
        %v3082 = vmax.f32 %v3081, %v2378
        %v3083 = vmax.f32 %v3082, %v2384
        %v3084 = vmax.f32 %v3083, %v2388
        %v3085 = vrot.slane %v3084, 4
        %v3086 = vmax.f32 %v3084, %v3085
        %v3087 = vrot.slane %v3086, 2
        %v3088 = vmax.f32 %v3086, %v3087
        %v3089 = vrot.slane %v3088, 1
        %v3090 = vmax.f32 %v3088, %v3089
        %v3091 = vmax.f32 %v2505, %v2509
        %v3092 = vmax.f32 %v3091, %v2515
        %v3093 = vmax.f32 %v3092, %v2519
        %v3094 = vmax.f32 %v3093, %v2525
        %v3095 = vmax.f32 %v3094, %v2529
        %v3096 = vmax.f32 %v3095, %v2535
        %v3097 = vmax.f32 %v3096, %v2539
        %v3098 = vmax.f32 %v3097, %v2545
        %v3099 = vmax.f32 %v3098, %v2549
        %v3100 = vmax.f32 %v3099, %v2555
        %v3101 = vmax.f32 %v3100, %v2559
        %v3102 = vmax.f32 %v3101, %v2565
        %v3103 = vmax.f32 %v3102, %v2569
        %v3104 = vmax.f32 %v3103, %v2575
        %v3105 = vmax.f32 %v3104, %v2579
        %v3106 = vrot.slane %v3105, 4
        %v3107 = vmax.f32 %v3105, %v3106
        %v3108 = vrot.slane %v3107, 2
        %v3109 = vmax.f32 %v3107, %v3108
        %v3110 = vrot.slane %v3109, 1
        %v3111 = vmax.f32 %v3109, %v3110
        %v3112 = vmax.f32 %v2507, %v2511
        %v3113 = vmax.f32 %v3112, %v2517
        %v3114 = vmax.f32 %v3113, %v2521
        %v3115 = vmax.f32 %v3114, %v2527
        %v3116 = vmax.f32 %v3115, %v2531
        %v3117 = vmax.f32 %v3116, %v2537
        %v3118 = vmax.f32 %v3117, %v2541
        %v3119 = vmax.f32 %v3118, %v2547
        %v3120 = vmax.f32 %v3119, %v2551
        %v3121 = vmax.f32 %v3120, %v2557
        %v3122 = vmax.f32 %v3121, %v2561
        %v3123 = vmax.f32 %v3122, %v2567
        %v3124 = vmax.f32 %v3123, %v2571
        %v3125 = vmax.f32 %v3124, %v2577
        %v3126 = vmax.f32 %v3125, %v2581
        %v3127 = vrot.slane %v3126, 4
        %v3128 = vmax.f32 %v3126, %v3127
        %v3129 = vrot.slane %v3128, 2
        %v3130 = vmax.f32 %v3128, %v3129
        %v3131 = vrot.slane %v3130, 1
        %v3132 = vmax.f32 %v3130, %v3131
        %v3133 = vmax.f32 %v2698, %v2702
        %v3134 = vmax.f32 %v3133, %v2708
        %v3135 = vmax.f32 %v3134, %v2712
        %v3136 = vmax.f32 %v3135, %v2718
        %v3137 = vmax.f32 %v3136, %v2722
        %v3138 = vmax.f32 %v3137, %v2728
        %v3139 = vmax.f32 %v3138, %v2732
        %v3140 = vmax.f32 %v3139, %v2738
        %v3141 = vmax.f32 %v3140, %v2742
        %v3142 = vmax.f32 %v3141, %v2748
        %v3143 = vmax.f32 %v3142, %v2752
        %v3144 = vmax.f32 %v3143, %v2758
        %v3145 = vmax.f32 %v3144, %v2762
        %v3146 = vmax.f32 %v3145, %v2768
        %v3147 = vmax.f32 %v3146, %v2772
        %v3148 = vrot.slane %v3147, 4
        %v3149 = vmax.f32 %v3147, %v3148
        %v3150 = vrot.slane %v3149, 2
        %v3151 = vmax.f32 %v3149, %v3150
        %v3152 = vrot.slane %v3151, 1
        %v3153 = vmax.f32 %v3151, %v3152
        %v3154 = vmax.f32 %v2700, %v2704
        %v3155 = vmax.f32 %v3154, %v2710
        %v3156 = vmax.f32 %v3155, %v2714
        %v3157 = vmax.f32 %v3156, %v2720
        %v3158 = vmax.f32 %v3157, %v2724
        %v3159 = vmax.f32 %v3158, %v2730
        %v3160 = vmax.f32 %v3159, %v2734
        %v3161 = vmax.f32 %v3160, %v2740
        %v3162 = vmax.f32 %v3161, %v2744
        %v3163 = vmax.f32 %v3162, %v2750
        %v3164 = vmax.f32 %v3163, %v2754
        %v3165 = vmax.f32 %v3164, %v2760
        %v3166 = vmax.f32 %v3165, %v2764
        %v3167 = vmax.f32 %v3166, %v2770
        %v3168 = vmax.f32 %v3167, %v2774
        %v3169 = vrot.slane %v3168, 4
        %v3170 = vmax.f32 %v3168, %v3169
        %v3171 = vrot.slane %v3170, 2
        %v3172 = vmax.f32 %v3170, %v3171
        %v3173 = vrot.slane %v3172, 1
        %v3174 = vmax.f32 %v3172, %v3173
        %v3175 = vmax.f32 %v2891, %v2895
        %v3176 = vmax.f32 %v3175, %v2901
        %v3177 = vmax.f32 %v3176, %v2905
        %v3178 = vmax.f32 %v3177, %v2911
        %v3179 = vmax.f32 %v3178, %v2915
        %v3180 = vmax.f32 %v3179, %v2921
        %v3181 = vmax.f32 %v3180, %v2925
        %v3182 = vmax.f32 %v3181, %v2931
        %v3183 = vmax.f32 %v3182, %v2935
        %v3184 = vmax.f32 %v3183, %v2941
        %v3185 = vmax.f32 %v3184, %v2945
        %v3186 = vmax.f32 %v3185, %v2951
        %v3187 = vmax.f32 %v3186, %v2955
        %v3188 = vmax.f32 %v3187, %v2961
        %v3189 = vmax.f32 %v3188, %v2965
        %v3190 = vrot.slane %v3189, 4
        %v3191 = vmax.f32 %v3189, %v3190
        %v3192 = vrot.slane %v3191, 2
        %v3193 = vmax.f32 %v3191, %v3192
        %v3194 = vrot.slane %v3193, 1
        %v3195 = vmax.f32 %v3193, %v3194
        %v3196 = vmax.f32 %v2893, %v2897
        %v3197 = vmax.f32 %v3196, %v2903
        %v3198 = vmax.f32 %v3197, %v2907
        %v3199 = vmax.f32 %v3198, %v2913
        %v3200 = vmax.f32 %v3199, %v2917
        %v3201 = vmax.f32 %v3200, %v2923
        %v3202 = vmax.f32 %v3201, %v2927
        %v3203 = vmax.f32 %v3202, %v2933
        %v3204 = vmax.f32 %v3203, %v2937
        %v3205 = vmax.f32 %v3204, %v2943
        %v3206 = vmax.f32 %v3205, %v2947
        %v3207 = vmax.f32 %v3206, %v2953
        %v3208 = vmax.f32 %v3207, %v2957
        %v3209 = vmax.f32 %v3208, %v2963
        %v3210 = vmax.f32 %v3209, %v2967
        %v3211 = vrot.slane %v3210, 4
        %v3212 = vmax.f32 %v3210, %v3211
        %v3213 = vrot.slane %v3212, 2
        %v3214 = vmax.f32 %v3212, %v3213
        %v3215 = vrot.slane %v3214, 1
        %v3216 = vmax.f32 %v3214, %v3215
        %v3217 = vmax.f32 %v2392, %v2396
        %v3218 = vmax.f32 %v3217, %v2402
        %v3219 = vmax.f32 %v3218, %v2406
        %v3220 = vmax.f32 %v3219, %v2412
        %v3221 = vmax.f32 %v3220, %v2416
        %v3222 = vmax.f32 %v3221, %v2422
        %v3223 = vmax.f32 %v3222, %v2426
        %v3224 = vmax.f32 %v3223, %v2432
        %v3225 = vmax.f32 %v3224, %v2436
        %v3226 = vmax.f32 %v3225, %v2442
        %v3227 = vmax.f32 %v3226, %v2446
        %v3228 = vmax.f32 %v3227, %v2452
        %v3229 = vmax.f32 %v3228, %v2456
        %v3230 = vmax.f32 %v3229, %v2462
        %v3231 = vmax.f32 %v3230, %v2466
        %v3232 = vrot.slane %v3231, 4
        %v3233 = vmax.f32 %v3231, %v3232
        %v3234 = vrot.slane %v3233, 2
        %v3235 = vmax.f32 %v3233, %v3234
        %v3236 = vrot.slane %v3235, 1
        %v3237 = vmax.f32 %v3235, %v3236
        %v3238 = vmax.f32 %v2394, %v2398
        %v3239 = vmax.f32 %v3238, %v2404
        %v3240 = vmax.f32 %v3239, %v2408
        %v3241 = vmax.f32 %v3240, %v2414
        %v3242 = vmax.f32 %v3241, %v2418
        %v3243 = vmax.f32 %v3242, %v2424
        %v3244 = vmax.f32 %v3243, %v2428
        %v3245 = vmax.f32 %v3244, %v2434
        %v3246 = vmax.f32 %v3245, %v2438
        %v3247 = vmax.f32 %v3246, %v2444
        %v3248 = vmax.f32 %v3247, %v2448
        %v3249 = vmax.f32 %v3248, %v2454
        %v3250 = vmax.f32 %v3249, %v2458
        %v3251 = vmax.f32 %v3250, %v2464
        %v3252 = vmax.f32 %v3251, %v2468
        %v3253 = vrot.slane %v3252, 4
        %v3254 = vmax.f32 %v3252, %v3253
        %v3255 = vrot.slane %v3254, 2
        %v3256 = vmax.f32 %v3254, %v3255
        %v3257 = vrot.slane %v3256, 1
        %v3258 = vmax.f32 %v3256, %v3257
        %v3259 = vmax.f32 %v2585, %v2589
        %v3260 = vmax.f32 %v3259, %v2595
        %v3261 = vmax.f32 %v3260, %v2599
        %v3262 = vmax.f32 %v3261, %v2605
        %v3263 = vmax.f32 %v3262, %v2609
        %v3264 = vmax.f32 %v3263, %v2615
        %v3265 = vmax.f32 %v3264, %v2619
        %v3266 = vmax.f32 %v3265, %v2625
        %v3267 = vmax.f32 %v3266, %v2629
        %v3268 = vmax.f32 %v3267, %v2635
        %v3269 = vmax.f32 %v3268, %v2639
        %v3270 = vmax.f32 %v3269, %v2645
        %v3271 = vmax.f32 %v3270, %v2649
        %v3272 = vmax.f32 %v3271, %v2655
        %v3273 = vmax.f32 %v3272, %v2659
        %v3274 = vrot.slane %v3273, 4
        %v3275 = vmax.f32 %v3273, %v3274
        %v3276 = vrot.slane %v3275, 2
        %v3277 = vmax.f32 %v3275, %v3276
        %v3278 = vrot.slane %v3277, 1
        %v3279 = vmax.f32 %v3277, %v3278
        %v3280 = vmax.f32 %v2587, %v2591
        %v3281 = vmax.f32 %v3280, %v2597
        %v3282 = vmax.f32 %v3281, %v2601
        %v3283 = vmax.f32 %v3282, %v2607
        %v3284 = vmax.f32 %v3283, %v2611
        %v3285 = vmax.f32 %v3284, %v2617
        %v3286 = vmax.f32 %v3285, %v2621
        %v3287 = vmax.f32 %v3286, %v2627
        %v3288 = vmax.f32 %v3287, %v2631
        %v3289 = vmax.f32 %v3288, %v2637
        %v3290 = vmax.f32 %v3289, %v2641
        %v3291 = vmax.f32 %v3290, %v2647
        %v3292 = vmax.f32 %v3291, %v2651
        %v3293 = vmax.f32 %v3292, %v2657
        %v3294 = vmax.f32 %v3293, %v2661
        %v3295 = vrot.slane %v3294, 4
        %v3296 = vmax.f32 %v3294, %v3295
        %v3297 = vrot.slane %v3296, 2
        %v3298 = vmax.f32 %v3296, %v3297
        %v3299 = vrot.slane %v3298, 1
        %v3300 = vmax.f32 %v3298, %v3299
        %v3301 = vmax.f32 %v2778, %v2782
        %v3302 = vmax.f32 %v3301, %v2788
        %v3303 = vmax.f32 %v3302, %v2792
        %v3304 = vmax.f32 %v3303, %v2798
        %v3305 = vmax.f32 %v3304, %v2802
        %v3306 = vmax.f32 %v3305, %v2808
        %v3307 = vmax.f32 %v3306, %v2812
        %v3308 = vmax.f32 %v3307, %v2818
        %v3309 = vmax.f32 %v3308, %v2822
        %v3310 = vmax.f32 %v3309, %v2828
        %v3311 = vmax.f32 %v3310, %v2832
        %v3312 = vmax.f32 %v3311, %v2838
        %v3313 = vmax.f32 %v3312, %v2842
        %v3314 = vmax.f32 %v3313, %v2848
        %v3315 = vmax.f32 %v3314, %v2852
        %v3316 = vrot.slane %v3315, 4
        %v3317 = vmax.f32 %v3315, %v3316
        %v3318 = vrot.slane %v3317, 2
        %v3319 = vmax.f32 %v3317, %v3318
        %v3320 = vrot.slane %v3319, 1
        %v3321 = vmax.f32 %v3319, %v3320
        %v3322 = vmax.f32 %v2780, %v2784
        %v3323 = vmax.f32 %v3322, %v2790
        %v3324 = vmax.f32 %v3323, %v2794
        %v3325 = vmax.f32 %v3324, %v2800
        %v3326 = vmax.f32 %v3325, %v2804
        %v3327 = vmax.f32 %v3326, %v2810
        %v3328 = vmax.f32 %v3327, %v2814
        %v3329 = vmax.f32 %v3328, %v2820
        %v3330 = vmax.f32 %v3329, %v2824
        %v3331 = vmax.f32 %v3330, %v2830
        %v3332 = vmax.f32 %v3331, %v2834
        %v3333 = vmax.f32 %v3332, %v2840
        %v3334 = vmax.f32 %v3333, %v2844
        %v3335 = vmax.f32 %v3334, %v2850
        %v3336 = vmax.f32 %v3335, %v2854
        %v3337 = vrot.slane %v3336, 4
        %v3338 = vmax.f32 %v3336, %v3337
        %v3339 = vrot.slane %v3338, 2
        %v3340 = vmax.f32 %v3338, %v3339
        %v3341 = vrot.slane %v3340, 1
        %v3342 = vmax.f32 %v3340, %v3341
        %v3343 = vmax.f32 %v2971, %v2975
        %v3344 = vmax.f32 %v3343, %v2981
        %v3345 = vmax.f32 %v3344, %v2985
        %v3346 = vmax.f32 %v3345, %v2991
        %v3347 = vmax.f32 %v3346, %v2995
        %v3348 = vmax.f32 %v3347, %v3001
        %v3349 = vmax.f32 %v3348, %v3005
        %v3350 = vmax.f32 %v3349, %v3011
        %v3351 = vmax.f32 %v3350, %v3015
        %v3352 = vmax.f32 %v3351, %v3021
        %v3353 = vmax.f32 %v3352, %v3025
        %v3354 = vmax.f32 %v3353, %v3031
        %v3355 = vmax.f32 %v3354, %v3035
        %v3356 = vmax.f32 %v3355, %v3041
        %v3357 = vmax.f32 %v3356, %v3045
        %v3358 = vrot.slane %v3357, 4
        %v3359 = vmax.f32 %v3357, %v3358
        %v3360 = vrot.slane %v3359, 2
        %v3361 = vmax.f32 %v3359, %v3360
        %v3362 = vrot.slane %v3361, 1
        %v3363 = vmax.f32 %v3361, %v3362
        %v3364 = vmax.f32 %v2973, %v2977
        %v3365 = vmax.f32 %v3364, %v2983
        %v3366 = vmax.f32 %v3365, %v2987
        %v3367 = vmax.f32 %v3366, %v2993
        %v3368 = vmax.f32 %v3367, %v2997
        %v3369 = vmax.f32 %v3368, %v3003
        %v3370 = vmax.f32 %v3369, %v3007
        %v3371 = vmax.f32 %v3370, %v3013
        %v3372 = vmax.f32 %v3371, %v3017
        %v3373 = vmax.f32 %v3372, %v3023
        %v3374 = vmax.f32 %v3373, %v3027
        %v3375 = vmax.f32 %v3374, %v3033
        %v3376 = vmax.f32 %v3375, %v3037
        %v3377 = vmax.f32 %v3376, %v3043
        %v3378 = vmax.f32 %v3377, %v3047
        %v3379 = vrot.slane %v3378, 4
        %v3380 = vmax.f32 %v3378, %v3379
        %v3381 = vrot.slane %v3380, 2
        %v3382 = vmax.f32 %v3380, %v3381
        %v3383 = vrot.slane %v3382, 1
        %v3384 = vmax.f32 %v3382, %v3383
        %v3385 = vld [vmem:[%s6] sm:$0xff]
        %v3387 = vlaneseq
        %v3388 = vshrl.u32 %v3387, 7
        %v3389 = vsub.s32 0, %v3388
        %v3390 = vrot.slane %v3385, %v3389
        %v3391 = vlaneseq
        %v3392 = vshrl.u32 %v3391, 7
        %v3393 = vsub.s32 1, %v3392
        %v3394 = vrot.slane %v3385, %v3393
        %v3395 = vlaneseq
        %v3396 = vshrl.u32 %v3395, 7
        %v3397 = vsub.s32 2, %v3396
        %v3398 = vrot.slane %v3385, %v3397
        %v3399 = vlaneseq
        %v3400 = vshrl.u32 %v3399, 7
        %v3401 = vsub.s32 3, %v3400
        %v3402 = vrot.slane %v3385, %v3401
        %v3403 = vlaneseq
        %v3404 = vshrl.u32 %v3403, 7
        %v3405 = vsub.s32 4, %v3404
        %v3406 = vrot.slane %v3385, %v3405
        %v3407 = vlaneseq
        %v3408 = vshrl.u32 %v3407, 7
        %v3409 = vsub.s32 5, %v3408
        %v3410 = vrot.slane %v3385, %v3409
        %v3411 = vlaneseq
        %v3412 = vshrl.u32 %v3411, 7
        %v3413 = vsub.s32 6, %v3412
        %v3414 = vrot.slane %v3385, %v3413
        %v3415 = vlaneseq
        %v3416 = vshrl.u32 %v3415, 7
        %v3417 = vsub.s32 7, %v3416
        %v3418 = vrot.slane %v3385, %v3417
        %v3427 = vadd.f32 %v3069, %v3390
        %v3428 = vadd.f32 %v3090, %v3394
        %v3429 = vadd.f32 %v3111, %v3398
        %v3430 = vadd.f32 %v3132, %v3402
        %v3431 = vadd.f32 %v3153, %v3406
        %v3432 = vadd.f32 %v3174, %v3410
        %v3433 = vadd.f32 %v3195, %v3414
        %v3434 = vadd.f32 %v3216, %v3418
        %v3435 = vadd.f32 %v3237, %v3390
        %v3436 = vadd.f32 %v3258, %v3394
        %v3437 = vadd.f32 %v3279, %v3398
        %v3438 = vadd.f32 %v3300, %v3402
        %v3439 = vadd.f32 %v3321, %v3406
        %v3440 = vadd.f32 %v3342, %v3410
        %v3441 = vadd.f32 %v3363, %v3414
        %v3442 = vadd.f32 %v3384, %v3418
        %v3443 = vmax.f32 %v3427, 0.0
        %v3444 = vmax.f32 %v3428, 0.0
        %v3445 = vmax.f32 %v3429, 0.0
        %v3446 = vmax.f32 %v3430, 0.0
        %v3447 = vmax.f32 %v3431, 0.0
        %v3448 = vmax.f32 %v3432, 0.0
        %v3449 = vmax.f32 %v3433, 0.0
        %v3450 = vmax.f32 %v3434, 0.0
        %v3451 = vmax.f32 %v3435, 0.0
        %v3452 = vmax.f32 %v3436, 0.0
        %v3453 = vmax.f32 %v3437, 0.0
        %v3454 = vmax.f32 %v3438, 0.0
        %v3455 = vmax.f32 %v3439, 0.0
        %v3456 = vmax.f32 %v3440, 0.0
        %v3457 = vmax.f32 %v3441, 0.0
        %v3458 = vmax.f32 %v3442, 0.0
        %v3459 = vpack.c.bf16 %v3443, %v3443
        %v3460 = vpack.c.bf16 %v3444, %v3444
        %v3461 = vpack.c.bf16 %v3445, %v3445
        %v3462 = vpack.c.bf16 %v3446, %v3446
        %v3463 = vpack.c.bf16 %v3447, %v3447
        %v3464 = vpack.c.bf16 %v3448, %v3448
        %v3465 = vpack.c.bf16 %v3449, %v3449
        %v3466 = vpack.c.bf16 %v3450, %v3450
        %v3467 = vpack.c.bf16 %v3451, %v3451
        %v3468 = vpack.c.bf16 %v3452, %v3452
        %v3469 = vpack.c.bf16 %v3453, %v3453
        %v3470 = vpack.c.bf16 %v3454, %v3454
        %v3471 = vpack.c.bf16 %v3455, %v3455
        %v3472 = vpack.c.bf16 %v3456, %v3456
        %v3473 = vpack.c.bf16 %v3457, %v3457
        %v3474 = vpack.c.bf16 %v3458, %v3458
        %v3475 = vld [vmem:[#allocation5] sm:$0xff]
        %v3476 = vld [vmem:[#allocation5 + $0x8] sm:$0xff]
        %v3477 = vld [vmem:[#allocation5 + $0x10] sm:$0xff]
        %v3478 = vld [vmem:[#allocation5 + $0x18] sm:$0xff]
        %v3479 = vld [vmem:[#allocation5 + $0x20] sm:$0xff]
        %v3480 = vld [vmem:[#allocation5 + $0x28] sm:$0xff]
        %v3481 = vld [vmem:[#allocation5 + $0x30] sm:$0xff]
        %v3482 = vld [vmem:[#allocation5 + $0x38] sm:$0xff]
        %v3483 = vld [vmem:[#allocation5 + $0x40] sm:$0xff]
        %v3484 = vld [vmem:[#allocation5 + $0x48] sm:$0xff]
        %v3485 = vld [vmem:[#allocation5 + $0x50] sm:$0xff]
        %v3486 = vld [vmem:[#allocation5 + $0x58] sm:$0xff]
        %v3487 = vld [vmem:[#allocation5 + $0x60] sm:$0xff]
        %v3488 = vld [vmem:[#allocation5 + $0x68] sm:$0xff]
        %v3489 = vld [vmem:[#allocation5 + $0x70] sm:$0xff]
        %v3490 = vld [vmem:[#allocation5 + $0x78] sm:$0xff]
        %v3491 = vld [vmem:[#allocation5 + $0x80] sm:$0xff]
        %v3492 = vld [vmem:[#allocation5 + $0x88] sm:$0xff]
        %v3493 = vld [vmem:[#allocation5 + $0x90] sm:$0xff]
        %v3494 = vld [vmem:[#allocation5 + $0x98] sm:$0xff]
        %v3495 = vld [vmem:[#allocation5 + $0xa0] sm:$0xff]
        %v3496 = vld [vmem:[#allocation5 + $0xa8] sm:$0xff]
        %v3497 = vld [vmem:[#allocation5 + $0xb0] sm:$0xff]
        %v3498 = vld [vmem:[#allocation5 + $0xb8] sm:$0xff]
        %v3499 = vld [vmem:[#allocation5 + $0xc0] sm:$0xff]
        %v3500 = vld [vmem:[#allocation5 + $0xc8] sm:$0xff]
        %v3501 = vld [vmem:[#allocation5 + $0xd0] sm:$0xff]
        %v3502 = vld [vmem:[#allocation5 + $0xd8] sm:$0xff]
        %v3503 = vld [vmem:[#allocation5 + $0xe0] sm:$0xff]
        %v3504 = vld [vmem:[#allocation5 + $0xe8] sm:$0xff]
        %v3505 = vld [vmem:[#allocation5 + $0xf0] sm:$0xff]
        %v3506 = vld [vmem:[#allocation5 + $0xf8] sm:$0xff]
        %v3507 = vld [vmem:[#allocation5 + $0x100] sm:$0xff]
        %v3508 = vld [vmem:[#allocation5 + $0x108] sm:$0xff]
        %v3509 = vld [vmem:[#allocation5 + $0x110] sm:$0xff]
        %v3510 = vld [vmem:[#allocation5 + $0x118] sm:$0xff]
        %v3511 = vld [vmem:[#allocation5 + $0x120] sm:$0xff]
        %v3512 = vld [vmem:[#allocation5 + $0x128] sm:$0xff]
        %v3513 = vld [vmem:[#allocation5 + $0x130] sm:$0xff]
        %v3514 = vld [vmem:[#allocation5 + $0x138] sm:$0xff]
        %v3515 = vld [vmem:[#allocation5 + $0x140] sm:$0xff]
        %v3516 = vld [vmem:[#allocation5 + $0x148] sm:$0xff]
        %v3517 = vld [vmem:[#allocation5 + $0x150] sm:$0xff]
        %v3518 = vld [vmem:[#allocation5 + $0x158] sm:$0xff]
        %v3519 = vld [vmem:[#allocation5 + $0x160] sm:$0xff]
        %v3520 = vld [vmem:[#allocation5 + $0x168] sm:$0xff]
        %v3521 = vld [vmem:[#allocation5 + $0x170] sm:$0xff]
        %v3522 = vld [vmem:[#allocation5 + $0x178] sm:$0xff]
        %v3523 = vld [vmem:[#allocation5 + $0x180] sm:$0xff]
        %v3524 = vld [vmem:[#allocation5 + $0x188] sm:$0xff]
        %v3525 = vld [vmem:[#allocation5 + $0x190] sm:$0xff]
        %v3526 = vld [vmem:[#allocation5 + $0x198] sm:$0xff]
        %v3527 = vld [vmem:[#allocation5 + $0x1a0] sm:$0xff]
        %v3528 = vld [vmem:[#allocation5 + $0x1a8] sm:$0xff]
        %v3529 = vld [vmem:[#allocation5 + $0x1b0] sm:$0xff]
        %v3530 = vld [vmem:[#allocation5 + $0x1b8] sm:$0xff]
        %v3531 = vld [vmem:[#allocation5 + $0x1c0] sm:$0xff]
        %v3532 = vld [vmem:[#allocation5 + $0x1c8] sm:$0xff]
        %v3533 = vld [vmem:[#allocation5 + $0x1d0] sm:$0xff]
        %v3534 = vld [vmem:[#allocation5 + $0x1d8] sm:$0xff]
        %v3535 = vld [vmem:[#allocation5 + $0x1e0] sm:$0xff]
        %v3536 = vld [vmem:[#allocation5 + $0x1e8] sm:$0xff]
        %v3537 = vld [vmem:[#allocation5 + $0x1f0] sm:$0xff]
        %v3538 = vld [vmem:[#allocation5 + $0x1f8] sm:$0xff]
        %v3539 = vld [vmem:[#allocation5 + $0x200] sm:$0xff]
        %v3540 = vld [vmem:[#allocation5 + $0x208] sm:$0xff]
        %v3541 = vld [vmem:[#allocation5 + $0x210] sm:$0xff]
        %v3542 = vld [vmem:[#allocation5 + $0x218] sm:$0xff]
        %v3543 = vld [vmem:[#allocation5 + $0x220] sm:$0xff]
        %v3544 = vld [vmem:[#allocation5 + $0x228] sm:$0xff]
        %v3545 = vld [vmem:[#allocation5 + $0x230] sm:$0xff]
        %v3546 = vld [vmem:[#allocation5 + $0x238] sm:$0xff]
        %v3547 = vld [vmem:[#allocation5 + $0x240] sm:$0xff]
        %v3548 = vld [vmem:[#allocation5 + $0x248] sm:$0xff]
        %v3549 = vld [vmem:[#allocation5 + $0x250] sm:$0xff]
        %v3550 = vld [vmem:[#allocation5 + $0x258] sm:$0xff]
        %v3551 = vld [vmem:[#allocation5 + $0x260] sm:$0xff]
        %v3552 = vld [vmem:[#allocation5 + $0x268] sm:$0xff]
        %v3553 = vld [vmem:[#allocation5 + $0x270] sm:$0xff]
        %v3554 = vld [vmem:[#allocation5 + $0x278] sm:$0xff]
        %v3555 = vld [vmem:[#allocation5 + $0x280] sm:$0xff]
        %v3556 = vld [vmem:[#allocation5 + $0x288] sm:$0xff]
        %v3557 = vld [vmem:[#allocation5 + $0x290] sm:$0xff]
        %v3558 = vld [vmem:[#allocation5 + $0x298] sm:$0xff]
        %v3559 = vld [vmem:[#allocation5 + $0x2a0] sm:$0xff]
        %v3560 = vld [vmem:[#allocation5 + $0x2a8] sm:$0xff]
        %v3561 = vld [vmem:[#allocation5 + $0x2b0] sm:$0xff]
        %v3562 = vld [vmem:[#allocation5 + $0x2b8] sm:$0xff]
        %v3563 = vld [vmem:[#allocation5 + $0x2c0] sm:$0xff]
        %v3564 = vld [vmem:[#allocation5 + $0x2c8] sm:$0xff]
        %v3565 = vld [vmem:[#allocation5 + $0x2d0] sm:$0xff]
        %v3566 = vld [vmem:[#allocation5 + $0x2d8] sm:$0xff]
        %v3567 = vld [vmem:[#allocation5 + $0x2e0] sm:$0xff]
        %v3568 = vld [vmem:[#allocation5 + $0x2e8] sm:$0xff]
        %v3569 = vld [vmem:[#allocation5 + $0x2f0] sm:$0xff]
        %v3570 = vld [vmem:[#allocation5 + $0x2f8] sm:$0xff]
        %v3571 = vld [vmem:[#allocation5 + $0x300] sm:$0xff]
        %v3572 = vld [vmem:[#allocation5 + $0x308] sm:$0xff]
        %v3573 = vld [vmem:[#allocation5 + $0x310] sm:$0xff]
        %v3574 = vld [vmem:[#allocation5 + $0x318] sm:$0xff]
        %v3575 = vld [vmem:[#allocation5 + $0x320] sm:$0xff]
        %v3576 = vld [vmem:[#allocation5 + $0x328] sm:$0xff]
        %v3577 = vld [vmem:[#allocation5 + $0x330] sm:$0xff]
        %v3578 = vld [vmem:[#allocation5 + $0x338] sm:$0xff]
        %v3579 = vld [vmem:[#allocation5 + $0x340] sm:$0xff]
        %v3580 = vld [vmem:[#allocation5 + $0x348] sm:$0xff]
        %v3581 = vld [vmem:[#allocation5 + $0x350] sm:$0xff]
        %v3582 = vld [vmem:[#allocation5 + $0x358] sm:$0xff]
        %v3583 = vld [vmem:[#allocation5 + $0x360] sm:$0xff]
        %v3584 = vld [vmem:[#allocation5 + $0x368] sm:$0xff]
        %v3585 = vld [vmem:[#allocation5 + $0x370] sm:$0xff]
        %v3586 = vld [vmem:[#allocation5 + $0x378] sm:$0xff]
        %v3587 = vld [vmem:[#allocation5 + $0x380] sm:$0xff]
        %v3588 = vld [vmem:[#allocation5 + $0x388] sm:$0xff]
        %v3589 = vld [vmem:[#allocation5 + $0x390] sm:$0xff]
        %v3590 = vld [vmem:[#allocation5 + $0x398] sm:$0xff]
        %v3591 = vld [vmem:[#allocation5 + $0x3a0] sm:$0xff]
        %v3592 = vld [vmem:[#allocation5 + $0x3a8] sm:$0xff]
        %v3593 = vld [vmem:[#allocation5 + $0x3b0] sm:$0xff]
        %v3594 = vld [vmem:[#allocation5 + $0x3b8] sm:$0xff]
        %v3595 = vld [vmem:[#allocation5 + $0x3c0] sm:$0xff]
        %v3596 = vld [vmem:[#allocation5 + $0x3c8] sm:$0xff]
        %v3597 = vld [vmem:[#allocation5 + $0x3d0] sm:$0xff]
        %v3598 = vld [vmem:[#allocation5 + $0x3d8] sm:$0xff]
        %v3599 = vld [vmem:[#allocation5 + $0x3e0] sm:$0xff]
        %v3600 = vld [vmem:[#allocation5 + $0x3e8] sm:$0xff]
        %v3601 = vld [vmem:[#allocation5 + $0x3f0] sm:$0xff]
        %v3602 = vld [vmem:[#allocation5 + $0x3f8] sm:$0xff]
        %v3603 = vld [vmem:[#allocation5 + $0x400] sm:$0xff]
        %v3604 = vld [vmem:[#allocation5 + $0x408] sm:$0xff]
        %v3605 = vld [vmem:[#allocation5 + $0x410] sm:$0xff]
        %v3606 = vld [vmem:[#allocation5 + $0x418] sm:$0xff]
        %v3607 = vld [vmem:[#allocation5 + $0x420] sm:$0xff]
        %v3608 = vld [vmem:[#allocation5 + $0x428] sm:$0xff]
        %v3609 = vld [vmem:[#allocation5 + $0x430] sm:$0xff]
        %v3610 = vld [vmem:[#allocation5 + $0x438] sm:$0xff]
        %v3611 = vld [vmem:[#allocation5 + $0x440] sm:$0xff]
        %v3612 = vld [vmem:[#allocation5 + $0x448] sm:$0xff]
        %v3613 = vld [vmem:[#allocation5 + $0x450] sm:$0xff]
        %v3614 = vld [vmem:[#allocation5 + $0x458] sm:$0xff]
        %v3615 = vld [vmem:[#allocation5 + $0x460] sm:$0xff]
        %v3616 = vld [vmem:[#allocation5 + $0x468] sm:$0xff]
        %v3617 = vld [vmem:[#allocation5 + $0x470] sm:$0xff]
        %v3618 = vld [vmem:[#allocation5 + $0x478] sm:$0xff]
        %v3619 = vld [vmem:[#allocation5 + $0x480] sm:$0xff]
        %v3620 = vld [vmem:[#allocation5 + $0x488] sm:$0xff]
        %v3621 = vld [vmem:[#allocation5 + $0x490] sm:$0xff]
        %v3622 = vld [vmem:[#allocation5 + $0x498] sm:$0xff]
        %v3623 = vld [vmem:[#allocation5 + $0x4a0] sm:$0xff]
        %v3624 = vld [vmem:[#allocation5 + $0x4a8] sm:$0xff]
        %v3625 = vld [vmem:[#allocation5 + $0x4b0] sm:$0xff]
        %v3626 = vld [vmem:[#allocation5 + $0x4b8] sm:$0xff]
        %v3627 = vld [vmem:[#allocation5 + $0x4c0] sm:$0xff]
        %v3628 = vld [vmem:[#allocation5 + $0x4c8] sm:$0xff]
        %v3629 = vld [vmem:[#allocation5 + $0x4d0] sm:$0xff]
        %v3630 = vld [vmem:[#allocation5 + $0x4d8] sm:$0xff]
        %v3631 = vld [vmem:[#allocation5 + $0x4e0] sm:$0xff]
        %v3632 = vld [vmem:[#allocation5 + $0x4e8] sm:$0xff]
        %v3633 = vld [vmem:[#allocation5 + $0x4f0] sm:$0xff]
        %v3634 = vld [vmem:[#allocation5 + $0x4f8] sm:$0xff]
        %v3635 = vld [vmem:[#allocation5 + $0x500] sm:$0xff]
        %v3636 = vld [vmem:[#allocation5 + $0x508] sm:$0xff]
        %v3637 = vld [vmem:[#allocation5 + $0x510] sm:$0xff]
        %v3638 = vld [vmem:[#allocation5 + $0x518] sm:$0xff]
        %v3639 = vld [vmem:[#allocation5 + $0x520] sm:$0xff]
        %v3640 = vld [vmem:[#allocation5 + $0x528] sm:$0xff]
        %v3641 = vld [vmem:[#allocation5 + $0x530] sm:$0xff]
        %v3642 = vld [vmem:[#allocation5 + $0x538] sm:$0xff]
        %v3643 = vld [vmem:[#allocation5 + $0x540] sm:$0xff]
        %v3644 = vld [vmem:[#allocation5 + $0x548] sm:$0xff]
        %v3645 = vld [vmem:[#allocation5 + $0x550] sm:$0xff]
        %v3646 = vld [vmem:[#allocation5 + $0x558] sm:$0xff]
        %v3647 = vld [vmem:[#allocation5 + $0x560] sm:$0xff]
        %v3648 = vld [vmem:[#allocation5 + $0x568] sm:$0xff]
        %v3649 = vld [vmem:[#allocation5 + $0x570] sm:$0xff]
        %v3650 = vld [vmem:[#allocation5 + $0x578] sm:$0xff]
        %v3651 = vld [vmem:[#allocation5 + $0x580] sm:$0xff]
        %v3652 = vld [vmem:[#allocation5 + $0x588] sm:$0xff]
        %v3653 = vld [vmem:[#allocation5 + $0x590] sm:$0xff]
        %v3654 = vld [vmem:[#allocation5 + $0x598] sm:$0xff]
        %v3655 = vld [vmem:[#allocation5 + $0x5a0] sm:$0xff]
        %v3656 = vld [vmem:[#allocation5 + $0x5a8] sm:$0xff]
        %v3657 = vld [vmem:[#allocation5 + $0x5b0] sm:$0xff]
        %v3658 = vld [vmem:[#allocation5 + $0x5b8] sm:$0xff]
        %v3659 = vld [vmem:[#allocation5 + $0x5c0] sm:$0xff]
        %v3660 = vld [vmem:[#allocation5 + $0x5c8] sm:$0xff]
        %v3661 = vld [vmem:[#allocation5 + $0x5d0] sm:$0xff]
        %v3662 = vld [vmem:[#allocation5 + $0x5d8] sm:$0xff]
        %v3663 = vld [vmem:[#allocation5 + $0x5e0] sm:$0xff]
        %v3664 = vld [vmem:[#allocation5 + $0x5e8] sm:$0xff]
        %v3665 = vld [vmem:[#allocation5 + $0x5f0] sm:$0xff]
        %v3666 = vld [vmem:[#allocation5 + $0x5f8] sm:$0xff]
        %v3667 = vld [vmem:[#allocation5 + $0x600] sm:$0xff]
        %v3668 = vld [vmem:[#allocation5 + $0x608] sm:$0xff]
        %v3669 = vld [vmem:[#allocation5 + $0x610] sm:$0xff]
        %v3670 = vld [vmem:[#allocation5 + $0x618] sm:$0xff]
        %v3671 = vld [vmem:[#allocation5 + $0x620] sm:$0xff]
        %v3672 = vld [vmem:[#allocation5 + $0x628] sm:$0xff]
        %v3673 = vld [vmem:[#allocation5 + $0x630] sm:$0xff]
        %v3674 = vld [vmem:[#allocation5 + $0x638] sm:$0xff]
        %v3675 = vld [vmem:[#allocation5 + $0x640] sm:$0xff]
        %v3676 = vld [vmem:[#allocation5 + $0x648] sm:$0xff]
        %v3677 = vld [vmem:[#allocation5 + $0x650] sm:$0xff]
        %v3678 = vld [vmem:[#allocation5 + $0x658] sm:$0xff]
        %v3679 = vld [vmem:[#allocation5 + $0x660] sm:$0xff]
        %v3680 = vld [vmem:[#allocation5 + $0x668] sm:$0xff]
        %v3681 = vld [vmem:[#allocation5 + $0x670] sm:$0xff]
        %v3682 = vld [vmem:[#allocation5 + $0x678] sm:$0xff]
        %v3683 = vld [vmem:[#allocation5 + $0x680] sm:$0xff]
        %v3684 = vld [vmem:[#allocation5 + $0x688] sm:$0xff]
        %v3685 = vld [vmem:[#allocation5 + $0x690] sm:$0xff]
        %v3686 = vld [vmem:[#allocation5 + $0x698] sm:$0xff]
        %v3687 = vld [vmem:[#allocation5 + $0x6a0] sm:$0xff]
        %v3688 = vld [vmem:[#allocation5 + $0x6a8] sm:$0xff]
        %v3689 = vld [vmem:[#allocation5 + $0x6b0] sm:$0xff]
        %v3690 = vld [vmem:[#allocation5 + $0x6b8] sm:$0xff]
        %v3691 = vld [vmem:[#allocation5 + $0x6c0] sm:$0xff]
        %v3692 = vld [vmem:[#allocation5 + $0x6c8] sm:$0xff]
        %v3693 = vld [vmem:[#allocation5 + $0x6d0] sm:$0xff]
        %v3694 = vld [vmem:[#allocation5 + $0x6d8] sm:$0xff]
        %v3695 = vld [vmem:[#allocation5 + $0x6e0] sm:$0xff]
        %v3696 = vld [vmem:[#allocation5 + $0x6e8] sm:$0xff]
        %v3697 = vld [vmem:[#allocation5 + $0x6f0] sm:$0xff]
        %v3698 = vld [vmem:[#allocation5 + $0x6f8] sm:$0xff]
        %v3699 = vld [vmem:[#allocation5 + $0x700] sm:$0xff]
        %v3700 = vld [vmem:[#allocation5 + $0x708] sm:$0xff]
        %v3701 = vld [vmem:[#allocation5 + $0x710] sm:$0xff]
        %v3702 = vld [vmem:[#allocation5 + $0x718] sm:$0xff]
        %v3703 = vld [vmem:[#allocation5 + $0x720] sm:$0xff]
        %v3704 = vld [vmem:[#allocation5 + $0x728] sm:$0xff]
        %v3705 = vld [vmem:[#allocation5 + $0x730] sm:$0xff]
        %v3706 = vld [vmem:[#allocation5 + $0x738] sm:$0xff]
        %v3707 = vld [vmem:[#allocation5 + $0x740] sm:$0xff]
        %v3708 = vld [vmem:[#allocation5 + $0x748] sm:$0xff]
        %v3709 = vld [vmem:[#allocation5 + $0x750] sm:$0xff]
        %v3710 = vld [vmem:[#allocation5 + $0x758] sm:$0xff]
        %v3711 = vld [vmem:[#allocation5 + $0x760] sm:$0xff]
        %v3712 = vld [vmem:[#allocation5 + $0x768] sm:$0xff]
        %v3713 = vld [vmem:[#allocation5 + $0x770] sm:$0xff]
        %v3714 = vld [vmem:[#allocation5 + $0x778] sm:$0xff]
        %v3715 = vld [vmem:[#allocation5 + $0x780] sm:$0xff]
        %v3716 = vld [vmem:[#allocation5 + $0x788] sm:$0xff]
        %v3717 = vld [vmem:[#allocation5 + $0x790] sm:$0xff]
        %v3718 = vld [vmem:[#allocation5 + $0x798] sm:$0xff]
        %v3719 = vld [vmem:[#allocation5 + $0x7a0] sm:$0xff]
        %v3720 = vld [vmem:[#allocation5 + $0x7a8] sm:$0xff]
        %v3721 = vld [vmem:[#allocation5 + $0x7b0] sm:$0xff]
        %v3722 = vld [vmem:[#allocation5 + $0x7b8] sm:$0xff]
        %v3723 = vld [vmem:[#allocation5 + $0x7c0] sm:$0xff]
        %v3724 = vld [vmem:[#allocation5 + $0x7c8] sm:$0xff]
        %v3725 = vld [vmem:[#allocation5 + $0x7d0] sm:$0xff]
        %v3726 = vld [vmem:[#allocation5 + $0x7d8] sm:$0xff]
        %v3727 = vld [vmem:[#allocation5 + $0x7e0] sm:$0xff]
        %v3728 = vld [vmem:[#allocation5 + $0x7e8] sm:$0xff]
        %v3729 = vld [vmem:[#allocation5 + $0x7f0] sm:$0xff]
        %v3730 = vld [vmem:[#allocation5 + $0x7f8] sm:$0xff]
        %v3731 = vld [vmem:[%s8] sm:$0xf]
        %v3733 = vlaneseq
        %v3734 = vshrl.u32 %v3733, 7
        %v3735 = vsub.s32 0, %v3734
        %v3736 = vrot.slane %v3731, %v3735
        %v3737 = vlaneseq
        %v3738 = vshrl.u32 %v3737, 7
        %v3739 = vsub.s32 1, %v3738
        %v3740 = vrot.slane %v3731, %v3739
        %v3741 = vlaneseq
        %v3742 = vshrl.u32 %v3741, 7
        %v3743 = vsub.s32 2, %v3742
        %v3744 = vrot.slane %v3731, %v3743
        %v3745 = vlaneseq
        %v3746 = vshrl.u32 %v3745, 7
        %v3747 = vsub.s32 3, %v3746
        %v3748 = vrot.slane %v3731, %v3747
        %v3769 = vunpack.c.l.b16 %v3459
        %v3770 = vunpack.c.l.b16 %v3460
        %v3771 = vunpack.c.l.b16 %v3461
        %v3772 = vunpack.c.l.b16 %v3462
        %v3773 = vunpack.c.l.b16 %v3463
        %v3774 = vunpack.c.l.b16 %v3464
        %v3775 = vunpack.c.l.b16 %v3465
        %v3776 = vunpack.c.l.b16 %v3466
        %v3777 = vunpack.c.l.b16 %v3467
        %v3778 = vunpack.c.l.b16 %v3468
        %v3779 = vunpack.c.l.b16 %v3469
        %v3780 = vunpack.c.l.b16 %v3470
        %v3781 = vunpack.c.l.b16 %v3471
        %v3782 = vunpack.c.l.b16 %v3472
        %v3783 = vunpack.c.l.b16 %v3473
        %v3784 = vunpack.c.l.b16 %v3474
        %v3785 = vrot.slane %v3777, 7
        %vm3786 = vcmask 1041409
        %v3787 = vsel %vm3786, %v3785, %v3769
        %v3788 = vrot.slane %v3778, 7
        %v3789 = vsel %vm3786, %v3788, %v3770
        %v3790 = vrot.slane %v3779, 7
        %v3791 = vsel %vm3786, %v3790, %v3771
        %v3792 = vrot.slane %v3780, 7
        %v3793 = vsel %vm3786, %v3792, %v3772
        %v3794 = vrot.slane %v3781, 7
        %v3795 = vsel %vm3786, %v3794, %v3773
        %v3796 = vrot.slane %v3782, 7
        %v3797 = vsel %vm3786, %v3796, %v3774
        %v3798 = vrot.slane %v3783, 7
        %v3799 = vsel %vm3786, %v3798, %v3775
        %v3800 = vrot.slane %v3784, 7
        %v3801 = vsel %vm3786, %v3800, %v3776
        %v3802 = vpack.c.b16 %v3787, %v3787
        %v3803 = vpack.c.b16 %v3789, %v3789
        %v3804 = vpack.c.b16 %v3791, %v3791
        %v3805 = vpack.c.b16 %v3793, %v3793
        %v3806 = vpack.c.b16 %v3795, %v3795
        %v3807 = vpack.c.b16 %v3797, %v3797
        %v3808 = vpack.c.b16 %v3799, %v3799
        %v3809 = vpack.c.b16 %v3801, %v3801
        %v4074 = vunpack.c.l.b16 %v3475
        %v4075 = vunpack.c.h.b16 %v3475
        %v4076 = vunpack.c.l.b16 %v3476
        %v4077 = vunpack.c.h.b16 %v3476
        %v4078 = vunpack.c.l.b16 %v3477
        %v4079 = vunpack.c.h.b16 %v3477
        %v4080 = vunpack.c.l.b16 %v3478
        %v4081 = vunpack.c.h.b16 %v3478
        %v4082 = vunpack.c.l.b16 %v3479
        %v4083 = vunpack.c.h.b16 %v3479
        %v4084 = vunpack.c.l.b16 %v3480
        %v4085 = vunpack.c.h.b16 %v3480
        %v4086 = vunpack.c.l.b16 %v3481
        %v4087 = vunpack.c.h.b16 %v3481
        %v4088 = vunpack.c.l.b16 %v3482
        %v4089 = vunpack.c.h.b16 %v3482
        %v4090 = vunpack.c.l.b16 %v3483
        %v4091 = vunpack.c.h.b16 %v3483
        %v4092 = vunpack.c.l.b16 %v3484
        %v4093 = vunpack.c.h.b16 %v3484
        %v4094 = vunpack.c.l.b16 %v3485
        %v4095 = vunpack.c.h.b16 %v3485
        %v4096 = vunpack.c.l.b16 %v3486
        %v4097 = vunpack.c.h.b16 %v3486
        %v4098 = vunpack.c.l.b16 %v3487
        %v4099 = vunpack.c.h.b16 %v3487
        %v4100 = vunpack.c.l.b16 %v3488
        %v4101 = vunpack.c.h.b16 %v3488
        %v4102 = vunpack.c.l.b16 %v3489
        %v4103 = vunpack.c.h.b16 %v3489
        %v4104 = vunpack.c.l.b16 %v3490
        %v4105 = vunpack.c.h.b16 %v3490
        %v4106 = vunpack.c.l.b16 %v3491
        %v4107 = vunpack.c.h.b16 %v3491
        %v4108 = vunpack.c.l.b16 %v3492
        %v4109 = vunpack.c.h.b16 %v3492
        %v4110 = vunpack.c.l.b16 %v3493
        %v4111 = vunpack.c.h.b16 %v3493
        %v4112 = vunpack.c.l.b16 %v3494
        %v4113 = vunpack.c.h.b16 %v3494
        %v4114 = vunpack.c.l.b16 %v3495
        %v4115 = vunpack.c.h.b16 %v3495
        %v4116 = vunpack.c.l.b16 %v3496
        %v4117 = vunpack.c.h.b16 %v3496
        %v4118 = vunpack.c.l.b16 %v3497
        %v4119 = vunpack.c.h.b16 %v3497
        %v4120 = vunpack.c.l.b16 %v3498
        %v4121 = vunpack.c.h.b16 %v3498
        %v4122 = vunpack.c.l.b16 %v3499
        %v4123 = vunpack.c.h.b16 %v3499
        %v4124 = vunpack.c.l.b16 %v3500
        %v4125 = vunpack.c.h.b16 %v3500
        %v4126 = vunpack.c.l.b16 %v3501
        %v4127 = vunpack.c.h.b16 %v3501
        %v4128 = vunpack.c.l.b16 %v3502
        %v4129 = vunpack.c.h.b16 %v3502
        %v4130 = vunpack.c.l.b16 %v3503
        %v4131 = vunpack.c.h.b16 %v3503
        %v4132 = vunpack.c.l.b16 %v3504
        %v4133 = vunpack.c.h.b16 %v3504
        %v4134 = vunpack.c.l.b16 %v3505
        %v4135 = vunpack.c.h.b16 %v3505
        %v4136 = vunpack.c.l.b16 %v3506
        %v4137 = vunpack.c.h.b16 %v3506
        %v4138 = vunpack.c.l.b16 %v3507
        %v4139 = vunpack.c.h.b16 %v3507
        %v4140 = vunpack.c.l.b16 %v3508
        %v4141 = vunpack.c.h.b16 %v3508
        %v4142 = vunpack.c.l.b16 %v3509
        %v4143 = vunpack.c.h.b16 %v3509
        %v4144 = vunpack.c.l.b16 %v3510
        %v4145 = vunpack.c.h.b16 %v3510
        %v4146 = vunpack.c.l.b16 %v3511
        %v4147 = vunpack.c.h.b16 %v3511
        %v4148 = vunpack.c.l.b16 %v3512
        %v4149 = vunpack.c.h.b16 %v3512
        %v4150 = vunpack.c.l.b16 %v3513
        %v4151 = vunpack.c.h.b16 %v3513
        %v4152 = vunpack.c.l.b16 %v3514
        %v4153 = vunpack.c.h.b16 %v3514
        %v4154 = vunpack.c.l.b16 %v3515
        %v4155 = vunpack.c.h.b16 %v3515
        %v4156 = vunpack.c.l.b16 %v3516
        %v4157 = vunpack.c.h.b16 %v3516
        %v4158 = vunpack.c.l.b16 %v3517
        %v4159 = vunpack.c.h.b16 %v3517
        %v4160 = vunpack.c.l.b16 %v3518
        %v4161 = vunpack.c.h.b16 %v3518
        %v4162 = vunpack.c.l.b16 %v3519
        %v4163 = vunpack.c.h.b16 %v3519
        %v4164 = vunpack.c.l.b16 %v3520
        %v4165 = vunpack.c.h.b16 %v3520
        %v4166 = vunpack.c.l.b16 %v3521
        %v4167 = vunpack.c.h.b16 %v3521
        %v4168 = vunpack.c.l.b16 %v3522
        %v4169 = vunpack.c.h.b16 %v3522
        %v4170 = vunpack.c.l.b16 %v3523
        %v4171 = vunpack.c.h.b16 %v3523
        %v4172 = vunpack.c.l.b16 %v3524
        %v4173 = vunpack.c.h.b16 %v3524
        %v4174 = vunpack.c.l.b16 %v3525
        %v4175 = vunpack.c.h.b16 %v3525
        %v4176 = vunpack.c.l.b16 %v3526
        %v4177 = vunpack.c.h.b16 %v3526
        %v4178 = vunpack.c.l.b16 %v3527
        %v4179 = vunpack.c.h.b16 %v3527
        %v4180 = vunpack.c.l.b16 %v3528
        %v4181 = vunpack.c.h.b16 %v3528
        %v4182 = vunpack.c.l.b16 %v3529
        %v4183 = vunpack.c.h.b16 %v3529
        %v4184 = vunpack.c.l.b16 %v3530
        %v4185 = vunpack.c.h.b16 %v3530
        %v4186 = vunpack.c.l.b16 %v3531
        %v4187 = vunpack.c.h.b16 %v3531
        %v4188 = vunpack.c.l.b16 %v3532
        %v4189 = vunpack.c.h.b16 %v3532
        %v4190 = vunpack.c.l.b16 %v3533
        %v4191 = vunpack.c.h.b16 %v3533
        %v4192 = vunpack.c.l.b16 %v3534
        %v4193 = vunpack.c.h.b16 %v3534
        %v4194 = vunpack.c.l.b16 %v3535
        %v4195 = vunpack.c.h.b16 %v3535
        %v4196 = vunpack.c.l.b16 %v3536
        %v4197 = vunpack.c.h.b16 %v3536
        %v4198 = vunpack.c.l.b16 %v3537
        %v4199 = vunpack.c.h.b16 %v3537
        %v4200 = vunpack.c.l.b16 %v3538
        %v4201 = vunpack.c.h.b16 %v3538
        %v4202 = vunpack.c.l.b16 %v3539
        %v4203 = vunpack.c.h.b16 %v3539
        %v4204 = vunpack.c.l.b16 %v3540
        %v4205 = vunpack.c.h.b16 %v3540
        %v4206 = vunpack.c.l.b16 %v3541
        %v4207 = vunpack.c.h.b16 %v3541
        %v4208 = vunpack.c.l.b16 %v3542
        %v4209 = vunpack.c.h.b16 %v3542
        %v4210 = vunpack.c.l.b16 %v3543
        %v4211 = vunpack.c.h.b16 %v3543
        %v4212 = vunpack.c.l.b16 %v3544
        %v4213 = vunpack.c.h.b16 %v3544
        %v4214 = vunpack.c.l.b16 %v3545
        %v4215 = vunpack.c.h.b16 %v3545
        %v4216 = vunpack.c.l.b16 %v3546
        %v4217 = vunpack.c.h.b16 %v3546
        %v4218 = vunpack.c.l.b16 %v3547
        %v4219 = vunpack.c.h.b16 %v3547
        %v4220 = vunpack.c.l.b16 %v3548
        %v4221 = vunpack.c.h.b16 %v3548
        %v4222 = vunpack.c.l.b16 %v3549
        %v4223 = vunpack.c.h.b16 %v3549
        %v4224 = vunpack.c.l.b16 %v3550
        %v4225 = vunpack.c.h.b16 %v3550
        %v4226 = vunpack.c.l.b16 %v3551
        %v4227 = vunpack.c.h.b16 %v3551
        %v4228 = vunpack.c.l.b16 %v3552
        %v4229 = vunpack.c.h.b16 %v3552
        %v4230 = vunpack.c.l.b16 %v3553
        %v4231 = vunpack.c.h.b16 %v3553
        %v4232 = vunpack.c.l.b16 %v3554
        %v4233 = vunpack.c.h.b16 %v3554
        %v4234 = vunpack.c.l.b16 %v3555
        %v4235 = vunpack.c.h.b16 %v3555
        %v4236 = vunpack.c.l.b16 %v3556
        %v4237 = vunpack.c.h.b16 %v3556
        %v4238 = vunpack.c.l.b16 %v3557
        %v4239 = vunpack.c.h.b16 %v3557
        %v4240 = vunpack.c.l.b16 %v3558
        %v4241 = vunpack.c.h.b16 %v3558
        %v4242 = vunpack.c.l.b16 %v3559
        %v4243 = vunpack.c.h.b16 %v3559
        %v4244 = vunpack.c.l.b16 %v3560
        %v4245 = vunpack.c.h.b16 %v3560
        %v4246 = vunpack.c.l.b16 %v3561
        %v4247 = vunpack.c.h.b16 %v3561
        %v4248 = vunpack.c.l.b16 %v3562
        %v4249 = vunpack.c.h.b16 %v3562
        %v4250 = vunpack.c.l.b16 %v3563
        %v4251 = vunpack.c.h.b16 %v3563
        %v4252 = vunpack.c.l.b16 %v3564
        %v4253 = vunpack.c.h.b16 %v3564
        %v4254 = vunpack.c.l.b16 %v3565
        %v4255 = vunpack.c.h.b16 %v3565
        %v4256 = vunpack.c.l.b16 %v3566
        %v4257 = vunpack.c.h.b16 %v3566
        %v4258 = vunpack.c.l.b16 %v3567
        %v4259 = vunpack.c.h.b16 %v3567
        %v4260 = vunpack.c.l.b16 %v3568
        %v4261 = vunpack.c.h.b16 %v3568
        %v4262 = vunpack.c.l.b16 %v3569
        %v4263 = vunpack.c.h.b16 %v3569
        %v4264 = vunpack.c.l.b16 %v3570
        %v4265 = vunpack.c.h.b16 %v3570
        %v4266 = vunpack.c.l.b16 %v3571
        %v4267 = vunpack.c.h.b16 %v3571
        %v4268 = vunpack.c.l.b16 %v3572
        %v4269 = vunpack.c.h.b16 %v3572
        %v4270 = vunpack.c.l.b16 %v3573
        %v4271 = vunpack.c.h.b16 %v3573
        %v4272 = vunpack.c.l.b16 %v3574
        %v4273 = vunpack.c.h.b16 %v3574
        %v4274 = vunpack.c.l.b16 %v3575
        %v4275 = vunpack.c.h.b16 %v3575
        %v4276 = vunpack.c.l.b16 %v3576
        %v4277 = vunpack.c.h.b16 %v3576
        %v4278 = vunpack.c.l.b16 %v3577
        %v4279 = vunpack.c.h.b16 %v3577
        %v4280 = vunpack.c.l.b16 %v3578
        %v4281 = vunpack.c.h.b16 %v3578
        %v4282 = vunpack.c.l.b16 %v3579
        %v4283 = vunpack.c.h.b16 %v3579
        %v4284 = vunpack.c.l.b16 %v3580
        %v4285 = vunpack.c.h.b16 %v3580
        %v4286 = vunpack.c.l.b16 %v3581
        %v4287 = vunpack.c.h.b16 %v3581
        %v4288 = vunpack.c.l.b16 %v3582
        %v4289 = vunpack.c.h.b16 %v3582
        %v4290 = vunpack.c.l.b16 %v3583
        %v4291 = vunpack.c.h.b16 %v3583
        %v4292 = vunpack.c.l.b16 %v3584
        %v4293 = vunpack.c.h.b16 %v3584
        %v4294 = vunpack.c.l.b16 %v3585
        %v4295 = vunpack.c.h.b16 %v3585
        %v4296 = vunpack.c.l.b16 %v3586
        %v4297 = vunpack.c.h.b16 %v3586
        %v4298 = vunpack.c.l.b16 %v3587
        %v4299 = vunpack.c.h.b16 %v3587
        %v4300 = vunpack.c.l.b16 %v3588
        %v4301 = vunpack.c.h.b16 %v3588
        %v4302 = vunpack.c.l.b16 %v3589
        %v4303 = vunpack.c.h.b16 %v3589
        %v4304 = vunpack.c.l.b16 %v3590
        %v4305 = vunpack.c.h.b16 %v3590
        %v4306 = vunpack.c.l.b16 %v3591
        %v4307 = vunpack.c.h.b16 %v3591
        %v4308 = vunpack.c.l.b16 %v3592
        %v4309 = vunpack.c.h.b16 %v3592
        %v4310 = vunpack.c.l.b16 %v3593
        %v4311 = vunpack.c.h.b16 %v3593
        %v4312 = vunpack.c.l.b16 %v3594
        %v4313 = vunpack.c.h.b16 %v3594
        %v4314 = vunpack.c.l.b16 %v3595
        %v4315 = vunpack.c.h.b16 %v3595
        %v4316 = vunpack.c.l.b16 %v3596
        %v4317 = vunpack.c.h.b16 %v3596
        %v4318 = vunpack.c.l.b16 %v3597
        %v4319 = vunpack.c.h.b16 %v3597
        %v4320 = vunpack.c.l.b16 %v3598
        %v4321 = vunpack.c.h.b16 %v3598
        %v4322 = vunpack.c.l.b16 %v3599
        %v4323 = vunpack.c.h.b16 %v3599
        %v4324 = vunpack.c.l.b16 %v3600
        %v4325 = vunpack.c.h.b16 %v3600
        %v4326 = vunpack.c.l.b16 %v3601
        %v4327 = vunpack.c.h.b16 %v3601
        %v4328 = vunpack.c.l.b16 %v3602
        %v4329 = vunpack.c.h.b16 %v3602
        %v4330 = vunpack.c.l.b16 %v3603
        %v4331 = vunpack.c.h.b16 %v3603
        %v4332 = vunpack.c.l.b16 %v3604
        %v4333 = vunpack.c.h.b16 %v3604
        %v4334 = vunpack.c.l.b16 %v3605
        %v4335 = vunpack.c.h.b16 %v3605
        %v4336 = vunpack.c.l.b16 %v3606
        %v4337 = vunpack.c.h.b16 %v3606
        %v4338 = vunpack.c.l.b16 %v3607
        %v4339 = vunpack.c.h.b16 %v3607
        %v4340 = vunpack.c.l.b16 %v3608
        %v4341 = vunpack.c.h.b16 %v3608
        %v4342 = vunpack.c.l.b16 %v3609
        %v4343 = vunpack.c.h.b16 %v3609
        %v4344 = vunpack.c.l.b16 %v3610
        %v4345 = vunpack.c.h.b16 %v3610
        %v4346 = vunpack.c.l.b16 %v3611
        %v4347 = vunpack.c.h.b16 %v3611
        %v4348 = vunpack.c.l.b16 %v3612
        %v4349 = vunpack.c.h.b16 %v3612
        %v4350 = vunpack.c.l.b16 %v3613
        %v4351 = vunpack.c.h.b16 %v3613
        %v4352 = vunpack.c.l.b16 %v3614
        %v4353 = vunpack.c.h.b16 %v3614
        %v4354 = vunpack.c.l.b16 %v3615
        %v4355 = vunpack.c.h.b16 %v3615
        %v4356 = vunpack.c.l.b16 %v3616
        %v4357 = vunpack.c.h.b16 %v3616
        %v4358 = vunpack.c.l.b16 %v3617
        %v4359 = vunpack.c.h.b16 %v3617
        %v4360 = vunpack.c.l.b16 %v3618
        %v4361 = vunpack.c.h.b16 %v3618
        %v4362 = vunpack.c.l.b16 %v3619
        %v4363 = vunpack.c.h.b16 %v3619
        %v4364 = vunpack.c.l.b16 %v3620
        %v4365 = vunpack.c.h.b16 %v3620
        %v4366 = vunpack.c.l.b16 %v3621
        %v4367 = vunpack.c.h.b16 %v3621
        %v4368 = vunpack.c.l.b16 %v3622
        %v4369 = vunpack.c.h.b16 %v3622
        %v4370 = vunpack.c.l.b16 %v3623
        %v4371 = vunpack.c.h.b16 %v3623
        %v4372 = vunpack.c.l.b16 %v3624
        %v4373 = vunpack.c.h.b16 %v3624
        %v4374 = vunpack.c.l.b16 %v3625
        %v4375 = vunpack.c.h.b16 %v3625
        %v4376 = vunpack.c.l.b16 %v3626
        %v4377 = vunpack.c.h.b16 %v3626
        %v4378 = vunpack.c.l.b16 %v3627
        %v4379 = vunpack.c.h.b16 %v3627
        %v4380 = vunpack.c.l.b16 %v3628
        %v4381 = vunpack.c.h.b16 %v3628
        %v4382 = vunpack.c.l.b16 %v3629
        %v4383 = vunpack.c.h.b16 %v3629
        %v4384 = vunpack.c.l.b16 %v3630
        %v4385 = vunpack.c.h.b16 %v3630
        %v4386 = vunpack.c.l.b16 %v3631
        %v4387 = vunpack.c.h.b16 %v3631
        %v4388 = vunpack.c.l.b16 %v3632
        %v4389 = vunpack.c.h.b16 %v3632
        %v4390 = vunpack.c.l.b16 %v3633
        %v4391 = vunpack.c.h.b16 %v3633
        %v4392 = vunpack.c.l.b16 %v3634
        %v4393 = vunpack.c.h.b16 %v3634
        %v4394 = vunpack.c.l.b16 %v3635
        %v4395 = vunpack.c.h.b16 %v3635
        %v4396 = vunpack.c.l.b16 %v3636
        %v4397 = vunpack.c.h.b16 %v3636
        %v4398 = vunpack.c.l.b16 %v3637
        %v4399 = vunpack.c.h.b16 %v3637
        %v4400 = vunpack.c.l.b16 %v3638
        %v4401 = vunpack.c.h.b16 %v3638
        %v4402 = vunpack.c.l.b16 %v3639
        %v4403 = vunpack.c.h.b16 %v3639
        %v4404 = vunpack.c.l.b16 %v3640
        %v4405 = vunpack.c.h.b16 %v3640
        %v4406 = vunpack.c.l.b16 %v3641
        %v4407 = vunpack.c.h.b16 %v3641
        %v4408 = vunpack.c.l.b16 %v3642
        %v4409 = vunpack.c.h.b16 %v3642
        %v4410 = vunpack.c.l.b16 %v3643
        %v4411 = vunpack.c.h.b16 %v3643
        %v4412 = vunpack.c.l.b16 %v3644
        %v4413 = vunpack.c.h.b16 %v3644
        %v4414 = vunpack.c.l.b16 %v3645
        %v4415 = vunpack.c.h.b16 %v3645
        %v4416 = vunpack.c.l.b16 %v3646
        %v4417 = vunpack.c.h.b16 %v3646
        %v4418 = vunpack.c.l.b16 %v3647
        %v4419 = vunpack.c.h.b16 %v3647
        %v4420 = vunpack.c.l.b16 %v3648
        %v4421 = vunpack.c.h.b16 %v3648
        %v4422 = vunpack.c.l.b16 %v3649
        %v4423 = vunpack.c.h.b16 %v3649
        %v4424 = vunpack.c.l.b16 %v3650
        %v4425 = vunpack.c.h.b16 %v3650
        %v4426 = vunpack.c.l.b16 %v3651
        %v4427 = vunpack.c.h.b16 %v3651
        %v4428 = vunpack.c.l.b16 %v3652
        %v4429 = vunpack.c.h.b16 %v3652
        %v4430 = vunpack.c.l.b16 %v3653
        %v4431 = vunpack.c.h.b16 %v3653
        %v4432 = vunpack.c.l.b16 %v3654
        %v4433 = vunpack.c.h.b16 %v3654
        %v4434 = vunpack.c.l.b16 %v3655
        %v4435 = vunpack.c.h.b16 %v3655
        %v4436 = vunpack.c.l.b16 %v3656
        %v4437 = vunpack.c.h.b16 %v3656
        %v4438 = vunpack.c.l.b16 %v3657
        %v4439 = vunpack.c.h.b16 %v3657
        %v4440 = vunpack.c.l.b16 %v3658
        %v4441 = vunpack.c.h.b16 %v3658
        %v4442 = vunpack.c.l.b16 %v3659
        %v4443 = vunpack.c.h.b16 %v3659
        %v4444 = vunpack.c.l.b16 %v3660
        %v4445 = vunpack.c.h.b16 %v3660
        %v4446 = vunpack.c.l.b16 %v3661
        %v4447 = vunpack.c.h.b16 %v3661
        %v4448 = vunpack.c.l.b16 %v3662
        %v4449 = vunpack.c.h.b16 %v3662
        %v4450 = vunpack.c.l.b16 %v3663
        %v4451 = vunpack.c.h.b16 %v3663
        %v4452 = vunpack.c.l.b16 %v3664
        %v4453 = vunpack.c.h.b16 %v3664
        %v4454 = vunpack.c.l.b16 %v3665
        %v4455 = vunpack.c.h.b16 %v3665
        %v4456 = vunpack.c.l.b16 %v3666
        %v4457 = vunpack.c.h.b16 %v3666
        %v4458 = vunpack.c.l.b16 %v3667
        %v4459 = vunpack.c.h.b16 %v3667
        %v4460 = vunpack.c.l.b16 %v3668
        %v4461 = vunpack.c.h.b16 %v3668
        %v4462 = vunpack.c.l.b16 %v3669
        %v4463 = vunpack.c.h.b16 %v3669
        %v4464 = vunpack.c.l.b16 %v3670
        %v4465 = vunpack.c.h.b16 %v3670
        %v4466 = vunpack.c.l.b16 %v3671
        %v4467 = vunpack.c.h.b16 %v3671
        %v4468 = vunpack.c.l.b16 %v3672
        %v4469 = vunpack.c.h.b16 %v3672
        %v4470 = vunpack.c.l.b16 %v3673
        %v4471 = vunpack.c.h.b16 %v3673
        %v4472 = vunpack.c.l.b16 %v3674
        %v4473 = vunpack.c.h.b16 %v3674
        %v4474 = vunpack.c.l.b16 %v3675
        %v4475 = vunpack.c.h.b16 %v3675
        %v4476 = vunpack.c.l.b16 %v3676
        %v4477 = vunpack.c.h.b16 %v3676
        %v4478 = vunpack.c.l.b16 %v3677
        %v4479 = vunpack.c.h.b16 %v3677
        %v4480 = vunpack.c.l.b16 %v3678
        %v4481 = vunpack.c.h.b16 %v3678
        %v4482 = vunpack.c.l.b16 %v3679
        %v4483 = vunpack.c.h.b16 %v3679
        %v4484 = vunpack.c.l.b16 %v3680
        %v4485 = vunpack.c.h.b16 %v3680
        %v4486 = vunpack.c.l.b16 %v3681
        %v4487 = vunpack.c.h.b16 %v3681
        %v4488 = vunpack.c.l.b16 %v3682
        %v4489 = vunpack.c.h.b16 %v3682
        %v4490 = vunpack.c.l.b16 %v3683
        %v4491 = vunpack.c.h.b16 %v3683
        %v4492 = vunpack.c.l.b16 %v3684
        %v4493 = vunpack.c.h.b16 %v3684
        %v4494 = vunpack.c.l.b16 %v3685
        %v4495 = vunpack.c.h.b16 %v3685
        %v4496 = vunpack.c.l.b16 %v3686
        %v4497 = vunpack.c.h.b16 %v3686
        %v4498 = vunpack.c.l.b16 %v3687
        %v4499 = vunpack.c.h.b16 %v3687
        %v4500 = vunpack.c.l.b16 %v3688
        %v4501 = vunpack.c.h.b16 %v3688
        %v4502 = vunpack.c.l.b16 %v3689
        %v4503 = vunpack.c.h.b16 %v3689
        %v4504 = vunpack.c.l.b16 %v3690
        %v4505 = vunpack.c.h.b16 %v3690
        %v4506 = vunpack.c.l.b16 %v3691
        %v4507 = vunpack.c.h.b16 %v3691
        %v4508 = vunpack.c.l.b16 %v3692
        %v4509 = vunpack.c.h.b16 %v3692
        %v4510 = vunpack.c.l.b16 %v3693
        %v4511 = vunpack.c.h.b16 %v3693
        %v4512 = vunpack.c.l.b16 %v3694
        %v4513 = vunpack.c.h.b16 %v3694
        %v4514 = vunpack.c.l.b16 %v3695
        %v4515 = vunpack.c.h.b16 %v3695
        %v4516 = vunpack.c.l.b16 %v3696
        %v4517 = vunpack.c.h.b16 %v3696
        %v4518 = vunpack.c.l.b16 %v3697
        %v4519 = vunpack.c.h.b16 %v3697
        %v4520 = vunpack.c.l.b16 %v3698
        %v4521 = vunpack.c.h.b16 %v3698
        %v4522 = vunpack.c.l.b16 %v3699
        %v4523 = vunpack.c.h.b16 %v3699
        %v4524 = vunpack.c.l.b16 %v3700
        %v4525 = vunpack.c.h.b16 %v3700
        %v4526 = vunpack.c.l.b16 %v3701
        %v4527 = vunpack.c.h.b16 %v3701
        %v4528 = vunpack.c.l.b16 %v3702
        %v4529 = vunpack.c.h.b16 %v3702
        %v4530 = vunpack.c.l.b16 %v3703
        %v4531 = vunpack.c.h.b16 %v3703
        %v4532 = vunpack.c.l.b16 %v3704
        %v4533 = vunpack.c.h.b16 %v3704
        %v4534 = vunpack.c.l.b16 %v3705
        %v4535 = vunpack.c.h.b16 %v3705
        %v4536 = vunpack.c.l.b16 %v3706
        %v4537 = vunpack.c.h.b16 %v3706
        %v4538 = vunpack.c.l.b16 %v3707
        %v4539 = vunpack.c.h.b16 %v3707
        %v4540 = vunpack.c.l.b16 %v3708
        %v4541 = vunpack.c.h.b16 %v3708
        %v4542 = vunpack.c.l.b16 %v3709
        %v4543 = vunpack.c.h.b16 %v3709
        %v4544 = vunpack.c.l.b16 %v3710
        %v4545 = vunpack.c.h.b16 %v3710
        %v4546 = vunpack.c.l.b16 %v3711
        %v4547 = vunpack.c.h.b16 %v3711
        %v4548 = vunpack.c.l.b16 %v3712
        %v4549 = vunpack.c.h.b16 %v3712
        %v4550 = vunpack.c.l.b16 %v3713
        %v4551 = vunpack.c.h.b16 %v3713
        %v4552 = vunpack.c.l.b16 %v3714
        %v4553 = vunpack.c.h.b16 %v3714
        %v4554 = vunpack.c.l.b16 %v3715
        %v4555 = vunpack.c.h.b16 %v3715
        %v4556 = vunpack.c.l.b16 %v3716
        %v4557 = vunpack.c.h.b16 %v3716
        %v4558 = vunpack.c.l.b16 %v3717
        %v4559 = vunpack.c.h.b16 %v3717
        %v4560 = vunpack.c.l.b16 %v3718
        %v4561 = vunpack.c.h.b16 %v3718
        %v4562 = vunpack.c.l.b16 %v3719
        %v4563 = vunpack.c.h.b16 %v3719
        %v4564 = vunpack.c.l.b16 %v3720
        %v4565 = vunpack.c.h.b16 %v3720
        %v4566 = vunpack.c.l.b16 %v3721
        %v4567 = vunpack.c.h.b16 %v3721
        %v4568 = vunpack.c.l.b16 %v3722
        %v4569 = vunpack.c.h.b16 %v3722
        %v4570 = vunpack.c.l.b16 %v3723
        %v4571 = vunpack.c.h.b16 %v3723
        %v4572 = vunpack.c.l.b16 %v3724
        %v4573 = vunpack.c.h.b16 %v3724
        %v4574 = vunpack.c.l.b16 %v3725
        %v4575 = vunpack.c.h.b16 %v3725
        %v4576 = vunpack.c.l.b16 %v3726
        %v4577 = vunpack.c.h.b16 %v3726
        %v4578 = vunpack.c.l.b16 %v3727
        %v4579 = vunpack.c.h.b16 %v3727
        %v4580 = vunpack.c.l.b16 %v3728
        %v4581 = vunpack.c.h.b16 %v3728
        %v4582 = vunpack.c.l.b16 %v3729
        %v4583 = vunpack.c.h.b16 %v3729
        %v4584 = vunpack.c.l.b16 %v3730
        %v4585 = vunpack.c.h.b16 %v3730
        %v4586 = vpack.c.b16 %v4078, %v4074
        %v4587 = vpack.c.b16 %v4079, %v4075
        %v4588 = vpack.c.b16 %v4080, %v4076
        %v4589 = vpack.c.b16 %v4081, %v4077
        %v4590 = vpack.c.b16 %v4086, %v4082
        %v4591 = vpack.c.b16 %v4087, %v4083
        %v4592 = vpack.c.b16 %v4088, %v4084
        %v4593 = vpack.c.b16 %v4089, %v4085
        %v4594 = vpack.c.b16 %v4094, %v4090
        %v4595 = vpack.c.b16 %v4095, %v4091
        %v4596 = vpack.c.b16 %v4096, %v4092
        %v4597 = vpack.c.b16 %v4097, %v4093
        %v4598 = vpack.c.b16 %v4102, %v4098
        %v4599 = vpack.c.b16 %v4103, %v4099
        %v4600 = vpack.c.b16 %v4104, %v4100
        %v4601 = vpack.c.b16 %v4105, %v4101
        %v4602 = vpack.c.b16 %v4110, %v4106
        %v4603 = vpack.c.b16 %v4111, %v4107
        %v4604 = vpack.c.b16 %v4112, %v4108
        %v4605 = vpack.c.b16 %v4113, %v4109
        %v4606 = vpack.c.b16 %v4118, %v4114
        %v4607 = vpack.c.b16 %v4119, %v4115
        %v4608 = vpack.c.b16 %v4120, %v4116
        %v4609 = vpack.c.b16 %v4121, %v4117
        %v4610 = vpack.c.b16 %v4126, %v4122
        %v4611 = vpack.c.b16 %v4127, %v4123
        %v4612 = vpack.c.b16 %v4128, %v4124
        %v4613 = vpack.c.b16 %v4129, %v4125
        %v4614 = vpack.c.b16 %v4134, %v4130
        %v4615 = vpack.c.b16 %v4135, %v4131
        %v4616 = vpack.c.b16 %v4136, %v4132
        %v4617 = vpack.c.b16 %v4137, %v4133
        %v4618 = vpack.c.b16 %v4142, %v4138
        %v4619 = vpack.c.b16 %v4143, %v4139
        %v4620 = vpack.c.b16 %v4144, %v4140
        %v4621 = vpack.c.b16 %v4145, %v4141
        %v4622 = vpack.c.b16 %v4150, %v4146
        %v4623 = vpack.c.b16 %v4151, %v4147
        %v4624 = vpack.c.b16 %v4152, %v4148
        %v4625 = vpack.c.b16 %v4153, %v4149
        %v4626 = vpack.c.b16 %v4158, %v4154
        %v4627 = vpack.c.b16 %v4159, %v4155
        %v4628 = vpack.c.b16 %v4160, %v4156
        %v4629 = vpack.c.b16 %v4161, %v4157
        %v4630 = vpack.c.b16 %v4166, %v4162
        %v4631 = vpack.c.b16 %v4167, %v4163
        %v4632 = vpack.c.b16 %v4168, %v4164
        %v4633 = vpack.c.b16 %v4169, %v4165
        %v4634 = vpack.c.b16 %v4174, %v4170
        %v4635 = vpack.c.b16 %v4175, %v4171
        %v4636 = vpack.c.b16 %v4176, %v4172
        %v4637 = vpack.c.b16 %v4177, %v4173
        %v4638 = vpack.c.b16 %v4182, %v4178
        %v4639 = vpack.c.b16 %v4183, %v4179
        %v4640 = vpack.c.b16 %v4184, %v4180
        %v4641 = vpack.c.b16 %v4185, %v4181
        %v4642 = vpack.c.b16 %v4190, %v4186
        %v4643 = vpack.c.b16 %v4191, %v4187
        %v4644 = vpack.c.b16 %v4192, %v4188
        %v4645 = vpack.c.b16 %v4193, %v4189
        %v4646 = vpack.c.b16 %v4198, %v4194
        %v4647 = vpack.c.b16 %v4199, %v4195
        %v4648 = vpack.c.b16 %v4200, %v4196
        %v4649 = vpack.c.b16 %v4201, %v4197
        %v4650 = vpack.c.b16 %v4206, %v4202
        %v4651 = vpack.c.b16 %v4207, %v4203
        %v4652 = vpack.c.b16 %v4208, %v4204
        %v4653 = vpack.c.b16 %v4209, %v4205
        %v4654 = vpack.c.b16 %v4214, %v4210
        %v4655 = vpack.c.b16 %v4215, %v4211
        %v4656 = vpack.c.b16 %v4216, %v4212
        %v4657 = vpack.c.b16 %v4217, %v4213
        %v4658 = vpack.c.b16 %v4222, %v4218
        %v4659 = vpack.c.b16 %v4223, %v4219
        %v4660 = vpack.c.b16 %v4224, %v4220
        %v4661 = vpack.c.b16 %v4225, %v4221
        %v4662 = vpack.c.b16 %v4230, %v4226
        %v4663 = vpack.c.b16 %v4231, %v4227
        %v4664 = vpack.c.b16 %v4232, %v4228
        %v4665 = vpack.c.b16 %v4233, %v4229
        %v4666 = vpack.c.b16 %v4238, %v4234
        %v4667 = vpack.c.b16 %v4239, %v4235
        %v4668 = vpack.c.b16 %v4240, %v4236
        %v4669 = vpack.c.b16 %v4241, %v4237
        %v4670 = vpack.c.b16 %v4246, %v4242
        %v4671 = vpack.c.b16 %v4247, %v4243
        %v4672 = vpack.c.b16 %v4248, %v4244
        %v4673 = vpack.c.b16 %v4249, %v4245
        %v4674 = vpack.c.b16 %v4254, %v4250
        %v4675 = vpack.c.b16 %v4255, %v4251
        %v4676 = vpack.c.b16 %v4256, %v4252
        %v4677 = vpack.c.b16 %v4257, %v4253
        %v4678 = vpack.c.b16 %v4262, %v4258
        %v4679 = vpack.c.b16 %v4263, %v4259
        %v4680 = vpack.c.b16 %v4264, %v4260
        %v4681 = vpack.c.b16 %v4265, %v4261
        %v4682 = vpack.c.b16 %v4270, %v4266
        %v4683 = vpack.c.b16 %v4271, %v4267
        %v4684 = vpack.c.b16 %v4272, %v4268
        %v4685 = vpack.c.b16 %v4273, %v4269
        %v4686 = vpack.c.b16 %v4278, %v4274
        %v4687 = vpack.c.b16 %v4279, %v4275
        %v4688 = vpack.c.b16 %v4280, %v4276
        %v4689 = vpack.c.b16 %v4281, %v4277
        %v4690 = vpack.c.b16 %v4286, %v4282
        %v4691 = vpack.c.b16 %v4287, %v4283
        %v4692 = vpack.c.b16 %v4288, %v4284
        %v4693 = vpack.c.b16 %v4289, %v4285
        %v4694 = vpack.c.b16 %v4294, %v4290
        %v4695 = vpack.c.b16 %v4295, %v4291
        %v4696 = vpack.c.b16 %v4296, %v4292
        %v4697 = vpack.c.b16 %v4297, %v4293
        %v4698 = vpack.c.b16 %v4302, %v4298
        %v4699 = vpack.c.b16 %v4303, %v4299
        %v4700 = vpack.c.b16 %v4304, %v4300
        %v4701 = vpack.c.b16 %v4305, %v4301
        %v4702 = vpack.c.b16 %v4310, %v4306
        %v4703 = vpack.c.b16 %v4311, %v4307
        %v4704 = vpack.c.b16 %v4312, %v4308
        %v4705 = vpack.c.b16 %v4313, %v4309
        %v4706 = vpack.c.b16 %v4318, %v4314
        %v4707 = vpack.c.b16 %v4319, %v4315
        %v4708 = vpack.c.b16 %v4320, %v4316
        %v4709 = vpack.c.b16 %v4321, %v4317
        %v4710 = vpack.c.b16 %v4326, %v4322
        %v4711 = vpack.c.b16 %v4327, %v4323
        %v4712 = vpack.c.b16 %v4328, %v4324
        %v4713 = vpack.c.b16 %v4329, %v4325
        %v4714 = vpack.c.b16 %v4334, %v4330
        %v4715 = vpack.c.b16 %v4335, %v4331
        %v4716 = vpack.c.b16 %v4336, %v4332
        %v4717 = vpack.c.b16 %v4337, %v4333
        %v4718 = vpack.c.b16 %v4342, %v4338
        %v4719 = vpack.c.b16 %v4343, %v4339
        %v4720 = vpack.c.b16 %v4344, %v4340
        %v4721 = vpack.c.b16 %v4345, %v4341
        %v4722 = vpack.c.b16 %v4350, %v4346
        %v4723 = vpack.c.b16 %v4351, %v4347
        %v4724 = vpack.c.b16 %v4352, %v4348
        %v4725 = vpack.c.b16 %v4353, %v4349
        %v4726 = vpack.c.b16 %v4358, %v4354
        %v4727 = vpack.c.b16 %v4359, %v4355
        %v4728 = vpack.c.b16 %v4360, %v4356
        %v4729 = vpack.c.b16 %v4361, %v4357
        %v4730 = vpack.c.b16 %v4366, %v4362
        %v4731 = vpack.c.b16 %v4367, %v4363
        %v4732 = vpack.c.b16 %v4368, %v4364
        %v4733 = vpack.c.b16 %v4369, %v4365
        %v4734 = vpack.c.b16 %v4374, %v4370
        %v4735 = vpack.c.b16 %v4375, %v4371
        %v4736 = vpack.c.b16 %v4376, %v4372
        %v4737 = vpack.c.b16 %v4377, %v4373
        %v4738 = vpack.c.b16 %v4382, %v4378
        %v4739 = vpack.c.b16 %v4383, %v4379
        %v4740 = vpack.c.b16 %v4384, %v4380
        %v4741 = vpack.c.b16 %v4385, %v4381
        %v4742 = vpack.c.b16 %v4390, %v4386
        %v4743 = vpack.c.b16 %v4391, %v4387
        %v4744 = vpack.c.b16 %v4392, %v4388
        %v4745 = vpack.c.b16 %v4393, %v4389
        %v4746 = vpack.c.b16 %v4398, %v4394
        %v4747 = vpack.c.b16 %v4399, %v4395
        %v4748 = vpack.c.b16 %v4400, %v4396
        %v4749 = vpack.c.b16 %v4401, %v4397
        %v4750 = vpack.c.b16 %v4406, %v4402
        %v4751 = vpack.c.b16 %v4407, %v4403
        %v4752 = vpack.c.b16 %v4408, %v4404
        %v4753 = vpack.c.b16 %v4409, %v4405
        %v4754 = vpack.c.b16 %v4414, %v4410
        %v4755 = vpack.c.b16 %v4415, %v4411
        %v4756 = vpack.c.b16 %v4416, %v4412
        %v4757 = vpack.c.b16 %v4417, %v4413
        %v4758 = vpack.c.b16 %v4422, %v4418
        %v4759 = vpack.c.b16 %v4423, %v4419
        %v4760 = vpack.c.b16 %v4424, %v4420
        %v4761 = vpack.c.b16 %v4425, %v4421
        %v4762 = vpack.c.b16 %v4430, %v4426
        %v4763 = vpack.c.b16 %v4431, %v4427
        %v4764 = vpack.c.b16 %v4432, %v4428
        %v4765 = vpack.c.b16 %v4433, %v4429
        %v4766 = vpack.c.b16 %v4438, %v4434
        %v4767 = vpack.c.b16 %v4439, %v4435
        %v4768 = vpack.c.b16 %v4440, %v4436
        %v4769 = vpack.c.b16 %v4441, %v4437
        %v4770 = vpack.c.b16 %v4446, %v4442
        %v4771 = vpack.c.b16 %v4447, %v4443
        %v4772 = vpack.c.b16 %v4448, %v4444
        %v4773 = vpack.c.b16 %v4449, %v4445
        %v4774 = vpack.c.b16 %v4454, %v4450
        %v4775 = vpack.c.b16 %v4455, %v4451
        %v4776 = vpack.c.b16 %v4456, %v4452
        %v4777 = vpack.c.b16 %v4457, %v4453
        %v4778 = vpack.c.b16 %v4462, %v4458
        %v4779 = vpack.c.b16 %v4463, %v4459
        %v4780 = vpack.c.b16 %v4464, %v4460
        %v4781 = vpack.c.b16 %v4465, %v4461
        %v4782 = vpack.c.b16 %v4470, %v4466
        %v4783 = vpack.c.b16 %v4471, %v4467
        %v4784 = vpack.c.b16 %v4472, %v4468
        %v4785 = vpack.c.b16 %v4473, %v4469
        %v4786 = vpack.c.b16 %v4478, %v4474
        %v4787 = vpack.c.b16 %v4479, %v4475
        %v4788 = vpack.c.b16 %v4480, %v4476
        %v4789 = vpack.c.b16 %v4481, %v4477
        %v4790 = vpack.c.b16 %v4486, %v4482
        %v4791 = vpack.c.b16 %v4487, %v4483
        %v4792 = vpack.c.b16 %v4488, %v4484
        %v4793 = vpack.c.b16 %v4489, %v4485
        %v4794 = vpack.c.b16 %v4494, %v4490
        %v4795 = vpack.c.b16 %v4495, %v4491
        %v4796 = vpack.c.b16 %v4496, %v4492
        %v4797 = vpack.c.b16 %v4497, %v4493
        %v4798 = vpack.c.b16 %v4502, %v4498
        %v4799 = vpack.c.b16 %v4503, %v4499
        %v4800 = vpack.c.b16 %v4504, %v4500
        %v4801 = vpack.c.b16 %v4505, %v4501
        %v4802 = vpack.c.b16 %v4510, %v4506
        %v4803 = vpack.c.b16 %v4511, %v4507
        %v4804 = vpack.c.b16 %v4512, %v4508
        %v4805 = vpack.c.b16 %v4513, %v4509
        %v4806 = vpack.c.b16 %v4518, %v4514
        %v4807 = vpack.c.b16 %v4519, %v4515
        %v4808 = vpack.c.b16 %v4520, %v4516
        %v4809 = vpack.c.b16 %v4521, %v4517
        %v4810 = vpack.c.b16 %v4526, %v4522
        %v4811 = vpack.c.b16 %v4527, %v4523
        %v4812 = vpack.c.b16 %v4528, %v4524
        %v4813 = vpack.c.b16 %v4529, %v4525
        %v4814 = vpack.c.b16 %v4534, %v4530
        %v4815 = vpack.c.b16 %v4535, %v4531
        %v4816 = vpack.c.b16 %v4536, %v4532
        %v4817 = vpack.c.b16 %v4537, %v4533
        %v4818 = vpack.c.b16 %v4542, %v4538
        %v4819 = vpack.c.b16 %v4543, %v4539
        %v4820 = vpack.c.b16 %v4544, %v4540
        %v4821 = vpack.c.b16 %v4545, %v4541
        %v4822 = vpack.c.b16 %v4550, %v4546
        %v4823 = vpack.c.b16 %v4551, %v4547
        %v4824 = vpack.c.b16 %v4552, %v4548
        %v4825 = vpack.c.b16 %v4553, %v4549
        %v4826 = vpack.c.b16 %v4558, %v4554
        %v4827 = vpack.c.b16 %v4559, %v4555
        %v4828 = vpack.c.b16 %v4560, %v4556
        %v4829 = vpack.c.b16 %v4561, %v4557
        %v4830 = vpack.c.b16 %v4566, %v4562
        %v4831 = vpack.c.b16 %v4567, %v4563
        %v4832 = vpack.c.b16 %v4568, %v4564
        %v4833 = vpack.c.b16 %v4569, %v4565
        %v4834 = vpack.c.b16 %v4574, %v4570
        %v4835 = vpack.c.b16 %v4575, %v4571
        %v4836 = vpack.c.b16 %v4576, %v4572
        %v4837 = vpack.c.b16 %v4577, %v4573
        %v4838 = vpack.c.b16 %v4582, %v4578
        %v4839 = vpack.c.b16 %v4583, %v4579
        %v4840 = vpack.c.b16 %v4584, %v4580
        %v4841 = vpack.c.b16 %v4585, %v4581
        %5098 = vmatprep.subr.bf16.mxu0 %v4587
        %5099 = vmatpush1.bf16.msra.mxu0 %v4586
        %5100 = vmatprep.subr.bf16.mxu0 %v4591
        %5101 = vmatpush1.bf16.msra.mxu0 %v4590
        %5102 = vmatprep.subr.bf16.mxu0 %v4595
        %5103 = vmatpush1.bf16.msra.mxu0 %v4594
        %5104 = vmatprep.subr.bf16.mxu0 %v4599
        %5105 = vmatpush1.bf16.msra.mxu0 %v4598
        %5106 = vmatprep.subr.bf16.mxu0 %v4603
        %5107 = vmatpush1.bf16.msra.mxu0 %v4602
        %5108 = vmatprep.subr.bf16.mxu0 %v4607
        %5109 = vmatpush1.bf16.msra.mxu0 %v4606
        %5110 = vmatprep.subr.bf16.mxu0 %v4611
        %5111 = vmatpush1.bf16.msra.mxu0 %v4610
        %5112 = vmatprep.subr.bf16.mxu0 %v4615
        %5113 = vmatpush1.bf16.msra.mxu0 %v4614
        %5114 = vmatprep.subr.bf16.mxu0 %v4619
        %5115 = vmatpush1.bf16.msra.mxu0 %v4618
        %5116 = vmatprep.subr.bf16.mxu0 %v4623
        %5117 = vmatpush1.bf16.msra.mxu0 %v4622
        %5118 = vmatprep.subr.bf16.mxu0 %v4627
        %5119 = vmatpush1.bf16.msra.mxu0 %v4626
        %5120 = vmatprep.subr.bf16.mxu0 %v4631
        %5121 = vmatpush1.bf16.msra.mxu0 %v4630
        %5122 = vmatprep.subr.bf16.mxu0 %v4635
        %5123 = vmatpush1.bf16.msra.mxu0 %v4634
        %5124 = vmatprep.subr.bf16.mxu0 %v4639
        %5125 = vmatpush1.bf16.msra.mxu0 %v4638
        %5126 = vmatprep.subr.bf16.mxu0 %v4643
        %5127 = vmatpush1.bf16.msra.mxu0 %v4642
        %5128 = vmatprep.subr.bf16.mxu0 %v4647
        %5129 = vmatpush1.bf16.msra.mxu0 %v4646
        %5130 = vmatprep.mubr.bf16.mxu0 %v3803
        %5131 = vmatmul.mubr.bf16.gmra.mrb[0].mxu0 %v3802
        %v5132 = vpop.f32.mrb[0].mxu0
        %v5133 = vadd.f32 %v3736, %v5132
        %v5134 = vpop.f32.mrb[0].mxu0
        %v5135 = vadd.f32 %v3740, %v5134
        %v5136 = vpop.f32.mrb[0].mxu0
        %v5137 = vpop.f32.mrb[0].mxu0
        %5138 = vdwg.mxu0
        %5139 = vmatprep.subr.bf16.mxu0 %v4651
        %5140 = vmatpush1.bf16.msra.mxu0 %v4650
        %5141 = vmatprep.subr.bf16.mxu0 %v4655
        %5142 = vmatpush1.bf16.msra.mxu0 %v4654
        %5143 = vmatprep.subr.bf16.mxu0 %v4659
        %5144 = vmatpush1.bf16.msra.mxu0 %v4658
        %5145 = vmatprep.subr.bf16.mxu0 %v4663
        %5146 = vmatpush1.bf16.msra.mxu0 %v4662
        %5147 = vmatprep.subr.bf16.mxu0 %v4667
        %5148 = vmatpush1.bf16.msra.mxu0 %v4666
        %5149 = vmatprep.subr.bf16.mxu0 %v4671
        %5150 = vmatpush1.bf16.msra.mxu0 %v4670
        %5151 = vmatprep.subr.bf16.mxu0 %v4675
        %5152 = vmatpush1.bf16.msra.mxu0 %v4674
        %5153 = vmatprep.subr.bf16.mxu0 %v4679
        %5154 = vmatpush1.bf16.msra.mxu0 %v4678
        %5155 = vmatprep.subr.bf16.mxu0 %v4683
        %5156 = vmatpush1.bf16.msra.mxu0 %v4682
        %5157 = vmatprep.subr.bf16.mxu0 %v4687
        %5158 = vmatpush1.bf16.msra.mxu0 %v4686
        %5159 = vmatprep.subr.bf16.mxu0 %v4691
        %5160 = vmatpush1.bf16.msra.mxu0 %v4690
        %5161 = vmatprep.subr.bf16.mxu0 %v4695
        %5162 = vmatpush1.bf16.msra.mxu0 %v4694
        %5163 = vmatprep.subr.bf16.mxu0 %v4699
        %5164 = vmatpush1.bf16.msra.mxu0 %v4698
        %5165 = vmatprep.subr.bf16.mxu0 %v4703
        %5166 = vmatpush1.bf16.msra.mxu0 %v4702
        %5167 = vmatprep.subr.bf16.mxu0 %v4707
        %5168 = vmatpush1.bf16.msra.mxu0 %v4706
        %5169 = vmatprep.subr.bf16.mxu0 %v4711
        %5170 = vmatpush1.bf16.msra.mxu0 %v4710
        %5171 = vmatprep.mubr.bf16.mxu0 %v3805
        %5172 = vmatmul.mubr.bf16.gmra.mrb[0].mxu0 %v3804
        %v5173 = vpop.f32.mrb[0].mxu0
        %v5174 = vadd.f32 %v5133, %v5173
        %v5175 = vpop.f32.mrb[0].mxu0
        %v5176 = vadd.f32 %v5135, %v5175
        %v5177 = vpop.f32.mrb[0].mxu0
        %v5178 = vpop.f32.mrb[0].mxu0
        %5179 = vdwg.mxu0
        %5180 = vmatprep.subr.bf16.mxu0 %v4715
        %5181 = vmatpush1.bf16.msra.mxu0 %v4714
        %5182 = vmatprep.subr.bf16.mxu0 %v4719
        %5183 = vmatpush1.bf16.msra.mxu0 %v4718
        %5184 = vmatprep.subr.bf16.mxu0 %v4723
        %5185 = vmatpush1.bf16.msra.mxu0 %v4722
        %5186 = vmatprep.subr.bf16.mxu0 %v4727
        %5187 = vmatpush1.bf16.msra.mxu0 %v4726
        %5188 = vmatprep.subr.bf16.mxu0 %v4731
        %5189 = vmatpush1.bf16.msra.mxu0 %v4730
        %5190 = vmatprep.subr.bf16.mxu0 %v4735
        %5191 = vmatpush1.bf16.msra.mxu0 %v4734
        %5192 = vmatprep.subr.bf16.mxu0 %v4739
        %5193 = vmatpush1.bf16.msra.mxu0 %v4738
        %5194 = vmatprep.subr.bf16.mxu0 %v4743
        %5195 = vmatpush1.bf16.msra.mxu0 %v4742
        %5196 = vmatprep.subr.bf16.mxu0 %v4747
        %5197 = vmatpush1.bf16.msra.mxu0 %v4746
        %5198 = vmatprep.subr.bf16.mxu0 %v4751
        %5199 = vmatpush1.bf16.msra.mxu0 %v4750
        %5200 = vmatprep.subr.bf16.mxu0 %v4755
        %5201 = vmatpush1.bf16.msra.mxu0 %v4754
        %5202 = vmatprep.subr.bf16.mxu0 %v4759
        %5203 = vmatpush1.bf16.msra.mxu0 %v4758
        %5204 = vmatprep.subr.bf16.mxu0 %v4763
        %5205 = vmatpush1.bf16.msra.mxu0 %v4762
        %5206 = vmatprep.subr.bf16.mxu0 %v4767
        %5207 = vmatpush1.bf16.msra.mxu0 %v4766
        %5208 = vmatprep.subr.bf16.mxu0 %v4771
        %5209 = vmatpush1.bf16.msra.mxu0 %v4770
        %5210 = vmatprep.subr.bf16.mxu0 %v4775
        %5211 = vmatpush1.bf16.msra.mxu0 %v4774
        %5212 = vmatprep.mubr.bf16.mxu0 %v3807
        %5213 = vmatmul.mubr.bf16.gmra.mrb[0].mxu0 %v3806
        %v5214 = vpop.f32.mrb[0].mxu0
        %v5215 = vadd.f32 %v5174, %v5214
        %v5216 = vpop.f32.mrb[0].mxu0
        %v5217 = vadd.f32 %v5176, %v5216
        %v5218 = vpop.f32.mrb[0].mxu0
        %v5219 = vpop.f32.mrb[0].mxu0
        %5220 = vdwg.mxu0
        %5221 = vmatprep.subr.bf16.mxu0 %v4779
        %5222 = vmatpush1.bf16.msra.mxu0 %v4778
        %5223 = vmatprep.subr.bf16.mxu0 %v4783
        %5224 = vmatpush1.bf16.msra.mxu0 %v4782
        %5225 = vmatprep.subr.bf16.mxu0 %v4787
        %5226 = vmatpush1.bf16.msra.mxu0 %v4786
        %5227 = vmatprep.subr.bf16.mxu0 %v4791
        %5228 = vmatpush1.bf16.msra.mxu0 %v4790
        %5229 = vmatprep.subr.bf16.mxu0 %v4795
        %5230 = vmatpush1.bf16.msra.mxu0 %v4794
        %5231 = vmatprep.subr.bf16.mxu0 %v4799
        %5232 = vmatpush1.bf16.msra.mxu0 %v4798
        %5233 = vmatprep.subr.bf16.mxu0 %v4803
        %5234 = vmatpush1.bf16.msra.mxu0 %v4802
        %5235 = vmatprep.subr.bf16.mxu0 %v4807
        %5236 = vmatpush1.bf16.msra.mxu0 %v4806
        %5237 = vmatprep.subr.bf16.mxu0 %v4811
        %5238 = vmatpush1.bf16.msra.mxu0 %v4810
        %5239 = vmatprep.subr.bf16.mxu0 %v4815
        %5240 = vmatpush1.bf16.msra.mxu0 %v4814
        %5241 = vmatprep.subr.bf16.mxu0 %v4819
        %5242 = vmatpush1.bf16.msra.mxu0 %v4818
        %5243 = vmatprep.subr.bf16.mxu0 %v4823
        %5244 = vmatpush1.bf16.msra.mxu0 %v4822
        %5245 = vmatprep.subr.bf16.mxu0 %v4827
        %5246 = vmatpush1.bf16.msra.mxu0 %v4826
        %5247 = vmatprep.subr.bf16.mxu0 %v4831
        %5248 = vmatpush1.bf16.msra.mxu0 %v4830
        %5249 = vmatprep.subr.bf16.mxu0 %v4835
        %5250 = vmatpush1.bf16.msra.mxu0 %v4834
        %5251 = vmatprep.subr.bf16.mxu0 %v4839
        %5252 = vmatpush1.bf16.msra.mxu0 %v4838
        %5253 = vmatprep.mubr.bf16.mxu0 %v3809
        %5254 = vmatmul.mubr.bf16.gmra.mrb[0].mxu0 %v3808
        %v5255 = vpop.f32.mrb[0].mxu0
        %v5256 = vadd.f32 %v5215, %v5255
        %v5257 = vpop.f32.mrb[0].mxu0
        %v5258 = vadd.f32 %v5217, %v5257
        %v5259 = vpop.f32.mrb[0].mxu0
        %v5260 = vpop.f32.mrb[0].mxu0
        %5261 = vdwg.mxu0
        %5262 = vmatprep.subr.bf16.mxu0 %v4589
        %5263 = vmatpush1.bf16.msra.mxu0 %v4588
        %5264 = vmatprep.subr.bf16.mxu0 %v4593
        %5265 = vmatpush1.bf16.msra.mxu0 %v4592
        %5266 = vmatprep.subr.bf16.mxu0 %v4597
        %5267 = vmatpush1.bf16.msra.mxu0 %v4596
        %5268 = vmatprep.subr.bf16.mxu0 %v4601
        %5269 = vmatpush1.bf16.msra.mxu0 %v4600
        %5270 = vmatprep.subr.bf16.mxu0 %v4605
        %5271 = vmatpush1.bf16.msra.mxu0 %v4604
        %5272 = vmatprep.subr.bf16.mxu0 %v4609
        %5273 = vmatpush1.bf16.msra.mxu0 %v4608
        %5274 = vmatprep.subr.bf16.mxu0 %v4613
        %5275 = vmatpush1.bf16.msra.mxu0 %v4612
        %5276 = vmatprep.subr.bf16.mxu0 %v4617
        %5277 = vmatpush1.bf16.msra.mxu0 %v4616
        %5278 = vmatprep.subr.bf16.mxu0 %v4621
        %5279 = vmatpush1.bf16.msra.mxu0 %v4620
        %5280 = vmatprep.subr.bf16.mxu0 %v4625
        %5281 = vmatpush1.bf16.msra.mxu0 %v4624
        %5282 = vmatprep.subr.bf16.mxu0 %v4629
        %5283 = vmatpush1.bf16.msra.mxu0 %v4628
        %5284 = vmatprep.subr.bf16.mxu0 %v4633
        %5285 = vmatpush1.bf16.msra.mxu0 %v4632
        %5286 = vmatprep.subr.bf16.mxu0 %v4637
        %5287 = vmatpush1.bf16.msra.mxu0 %v4636
        %5288 = vmatprep.subr.bf16.mxu0 %v4641
        %5289 = vmatpush1.bf16.msra.mxu0 %v4640
        %5290 = vmatprep.subr.bf16.mxu0 %v4645
        %5291 = vmatpush1.bf16.msra.mxu0 %v4644
        %5292 = vmatprep.subr.bf16.mxu0 %v4649
        %5293 = vmatpush1.bf16.msra.mxu0 %v4648
        %5294 = vmatprep.mubr.bf16.mxu0 %v3803
        %5295 = vmatmul.mubr.bf16.gmra.mrb[0].mxu0 %v3802
        %v5296 = vpop.f32.mrb[0].mxu0
        %v5297 = vadd.f32 %v3744, %v5296
        %v5298 = vpop.f32.mrb[0].mxu0
        %v5299 = vadd.f32 %v3748, %v5298
        %v5300 = vpop.f32.mrb[0].mxu0
        %v5301 = vpop.f32.mrb[0].mxu0
        %5302 = vdwg.mxu0
        %5303 = vmatprep.subr.bf16.mxu0 %v4653
        %5304 = vmatpush1.bf16.msra.mxu0 %v4652
        %5305 = vmatprep.subr.bf16.mxu0 %v4657
        %5306 = vmatpush1.bf16.msra.mxu0 %v4656
        %5307 = vmatprep.subr.bf16.mxu0 %v4661
        %5308 = vmatpush1.bf16.msra.mxu0 %v4660
        %5309 = vmatprep.subr.bf16.mxu0 %v4665
        %5310 = vmatpush1.bf16.msra.mxu0 %v4664
        %5311 = vmatprep.subr.bf16.mxu0 %v4669
        %5312 = vmatpush1.bf16.msra.mxu0 %v4668
        %5313 = vmatprep.subr.bf16.mxu0 %v4673
        %5314 = vmatpush1.bf16.msra.mxu0 %v4672
        %5315 = vmatprep.subr.bf16.mxu0 %v4677
        %5316 = vmatpush1.bf16.msra.mxu0 %v4676
        %5317 = vmatprep.subr.bf16.mxu0 %v4681
        %5318 = vmatpush1.bf16.msra.mxu0 %v4680
        %5319 = vmatprep.subr.bf16.mxu0 %v4685
        %5320 = vmatpush1.bf16.msra.mxu0 %v4684
        %5321 = vmatprep.subr.bf16.mxu0 %v4689
        %5322 = vmatpush1.bf16.msra.mxu0 %v4688
        %5323 = vmatprep.subr.bf16.mxu0 %v4693
        %5324 = vmatpush1.bf16.msra.mxu0 %v4692
        %5325 = vmatprep.subr.bf16.mxu0 %v4697
        %5326 = vmatpush1.bf16.msra.mxu0 %v4696
        %5327 = vmatprep.subr.bf16.mxu0 %v4701
        %5328 = vmatpush1.bf16.msra.mxu0 %v4700
        %5329 = vmatprep.subr.bf16.mxu0 %v4705
        %5330 = vmatpush1.bf16.msra.mxu0 %v4704
        %5331 = vmatprep.subr.bf16.mxu0 %v4709
        %5332 = vmatpush1.bf16.msra.mxu0 %v4708
        %5333 = vmatprep.subr.bf16.mxu0 %v4713
        %5334 = vmatpush1.bf16.msra.mxu0 %v4712
        %5335 = vmatprep.mubr.bf16.mxu0 %v3805
        %5336 = vmatmul.mubr.bf16.gmra.mrb[0].mxu0 %v3804
        %v5337 = vpop.f32.mrb[0].mxu0
        %v5338 = vadd.f32 %v5297, %v5337
        %v5339 = vpop.f32.mrb[0].mxu0
        %v5340 = vadd.f32 %v5299, %v5339
        %v5341 = vpop.f32.mrb[0].mxu0
        %v5342 = vpop.f32.mrb[0].mxu0
        %5343 = vdwg.mxu0
        %5344 = vmatprep.subr.bf16.mxu0 %v4717
        %5345 = vmatpush1.bf16.msra.mxu0 %v4716
        %5346 = vmatprep.subr.bf16.mxu0 %v4721
        %5347 = vmatpush1.bf16.msra.mxu0 %v4720
        %5348 = vmatprep.subr.bf16.mxu0 %v4725
        %5349 = vmatpush1.bf16.msra.mxu0 %v4724
        %5350 = vmatprep.subr.bf16.mxu0 %v4729
        %5351 = vmatpush1.bf16.msra.mxu0 %v4728
        %5352 = vmatprep.subr.bf16.mxu0 %v4733
        %5353 = vmatpush1.bf16.msra.mxu0 %v4732
        %5354 = vmatprep.subr.bf16.mxu0 %v4737
        %5355 = vmatpush1.bf16.msra.mxu0 %v4736
        %5356 = vmatprep.subr.bf16.mxu0 %v4741
        %5357 = vmatpush1.bf16.msra.mxu0 %v4740
        %5358 = vmatprep.subr.bf16.mxu0 %v4745
        %5359 = vmatpush1.bf16.msra.mxu0 %v4744
        %5360 = vmatprep.subr.bf16.mxu0 %v4749
        %5361 = vmatpush1.bf16.msra.mxu0 %v4748
        %5362 = vmatprep.subr.bf16.mxu0 %v4753
        %5363 = vmatpush1.bf16.msra.mxu0 %v4752
        %5364 = vmatprep.subr.bf16.mxu0 %v4757
        %5365 = vmatpush1.bf16.msra.mxu0 %v4756
        %5366 = vmatprep.subr.bf16.mxu0 %v4761
        %5367 = vmatpush1.bf16.msra.mxu0 %v4760
        %5368 = vmatprep.subr.bf16.mxu0 %v4765
        %5369 = vmatpush1.bf16.msra.mxu0 %v4764
        %5370 = vmatprep.subr.bf16.mxu0 %v4769
        %5371 = vmatpush1.bf16.msra.mxu0 %v4768
        %5372 = vmatprep.subr.bf16.mxu0 %v4773
        %5373 = vmatpush1.bf16.msra.mxu0 %v4772
        %5374 = vmatprep.subr.bf16.mxu0 %v4777
        %5375 = vmatpush1.bf16.msra.mxu0 %v4776
        %5376 = vmatprep.mubr.bf16.mxu0 %v3807
        %5377 = vmatmul.mubr.bf16.gmra.mrb[0].mxu0 %v3806
        %v5378 = vpop.f32.mrb[0].mxu0
        %v5379 = vadd.f32 %v5338, %v5378
        %v5380 = vpop.f32.mrb[0].mxu0
        %v5381 = vadd.f32 %v5340, %v5380
        %v5382 = vpop.f32.mrb[0].mxu0
        %v5383 = vpop.f32.mrb[0].mxu0
        %5384 = vdwg.mxu0
        %5385 = vmatprep.subr.bf16.mxu0 %v4781
        %5386 = vmatpush1.bf16.msra.mxu0 %v4780
        %5387 = vmatprep.subr.bf16.mxu0 %v4785
        %5388 = vmatpush1.bf16.msra.mxu0 %v4784
        %5389 = vmatprep.subr.bf16.mxu0 %v4789
        %5390 = vmatpush1.bf16.msra.mxu0 %v4788
        %5391 = vmatprep.subr.bf16.mxu0 %v4793
        %5392 = vmatpush1.bf16.msra.mxu0 %v4792
        %5393 = vmatprep.subr.bf16.mxu0 %v4797
        %5394 = vmatpush1.bf16.msra.mxu0 %v4796
        %5395 = vmatprep.subr.bf16.mxu0 %v4801
        %5396 = vmatpush1.bf16.msra.mxu0 %v4800
        %5397 = vmatprep.subr.bf16.mxu0 %v4805
        %5398 = vmatpush1.bf16.msra.mxu0 %v4804
        %5399 = vmatprep.subr.bf16.mxu0 %v4809
        %5400 = vmatpush1.bf16.msra.mxu0 %v4808
        %5401 = vmatprep.subr.bf16.mxu0 %v4813
        %5402 = vmatpush1.bf16.msra.mxu0 %v4812
        %5403 = vmatprep.subr.bf16.mxu0 %v4817
        %5404 = vmatpush1.bf16.msra.mxu0 %v4816
        %5405 = vmatprep.subr.bf16.mxu0 %v4821
        %5406 = vmatpush1.bf16.msra.mxu0 %v4820
        %5407 = vmatprep.subr.bf16.mxu0 %v4825
        %5408 = vmatpush1.bf16.msra.mxu0 %v4824
        %5409 = vmatprep.subr.bf16.mxu0 %v4829
        %5410 = vmatpush1.bf16.msra.mxu0 %v4828
        %5411 = vmatprep.subr.bf16.mxu0 %v4833
        %5412 = vmatpush1.bf16.msra.mxu0 %v4832
        %5413 = vmatprep.subr.bf16.mxu0 %v4837
        %5414 = vmatpush1.bf16.msra.mxu0 %v4836
        %5415 = vmatprep.subr.bf16.mxu0 %v4841
        %5416 = vmatpush1.bf16.msra.mxu0 %v4840
        %5417 = vmatprep.mubr.bf16.mxu0 %v3809
        %5418 = vmatmul.mubr.bf16.gmra.mrb[0].mxu0 %v3808
        %v5419 = vpop.f32.mrb[0].mxu0
        %v5420 = vadd.f32 %v5379, %v5419
        %v5421 = vpop.f32.mrb[0].mxu0
        %v5422 = vadd.f32 %v5381, %v5421
        %v5423 = vpop.f32.mrb[0].mxu0
        %v5424 = vpop.f32.mrb[0].mxu0
        %5425 = vdwg.mxu0
        %v5426 = vmax.f32 %v5256, 0.0
        %v5427 = vmax.f32 %v5258, 0.0
        %v5428 = vmax.f32 %v5420, 0.0
        %v5429 = vmax.f32 %v5422, 0.0
        %v5430 = vpack.c.bf16 %v5426, %v5426
        %v5431 = vpack.c.bf16 %v5427, %v5427
        %v5432 = vpack.c.bf16 %v5428, %v5428
        %v5433 = vpack.c.bf16 %v5429, %v5429
        %v5434 = vld [vmem:[#allocation7] sm:$0xff]
        %v5435 = vld [vmem:[#allocation7 + $0x8] sm:$0xff]
        %v5436 = vld [vmem:[#allocation7 + $0x10] sm:$0xff]
        %v5437 = vld [vmem:[#allocation7 + $0x18] sm:$0xff]
        %v5438 = vld [vmem:[#allocation7 + $0x20] sm:$0xff]
        %v5439 = vld [vmem:[#allocation7 + $0x28] sm:$0xff]
        %v5440 = vld [vmem:[#allocation7 + $0x30] sm:$0xff]
        %v5441 = vld [vmem:[#allocation7 + $0x38] sm:$0xff]
        %v5442 = vld [vmem:[#allocation7 + $0x40] sm:$0xff]
        %v5443 = vld [vmem:[#allocation7 + $0x48] sm:$0xff]
        %v5444 = vld [vmem:[#allocation7 + $0x50] sm:$0xff]
        %v5445 = vld [vmem:[#allocation7 + $0x58] sm:$0xff]
        %v5446 = vld [vmem:[#allocation7 + $0x60] sm:$0xff]
        %v5447 = vld [vmem:[#allocation7 + $0x68] sm:$0xff]
        %v5448 = vld [vmem:[#allocation7 + $0x70] sm:$0xff]
        %v5449 = vld [vmem:[#allocation7 + $0x78] sm:$0xff]
        %v5450 = vld [vmem:[#allocation7 + $0x80] sm:$0xff]
        %v5451 = vld [vmem:[#allocation7 + $0x88] sm:$0xff]
        %v5452 = vld [vmem:[#allocation7 + $0x90] sm:$0xff]
        %v5453 = vld [vmem:[#allocation7 + $0x98] sm:$0xff]
        %v5454 = vld [vmem:[#allocation7 + $0xa0] sm:$0xff]
        %v5455 = vld [vmem:[#allocation7 + $0xa8] sm:$0xff]
        %v5456 = vld [vmem:[#allocation7 + $0xb0] sm:$0xff]
        %v5457 = vld [vmem:[#allocation7 + $0xb8] sm:$0xff]
        %v5458 = vld [vmem:[#allocation7 + $0xc0] sm:$0xff]
        %v5459 = vld [vmem:[#allocation7 + $0xc8] sm:$0xff]
        %v5460 = vld [vmem:[#allocation7 + $0xd0] sm:$0xff]
        %v5461 = vld [vmem:[#allocation7 + $0xd8] sm:$0xff]
        %v5462 = vld [vmem:[#allocation7 + $0xe0] sm:$0xff]
        %v5463 = vld [vmem:[#allocation7 + $0xe8] sm:$0xff]
        %v5464 = vld [vmem:[#allocation7 + $0xf0] sm:$0xff]
        %v5465 = vld [vmem:[#allocation7 + $0xf8] sm:$0xff]
        %v5466 = vld [vmem:[#allocation7 + $0x100] sm:$0xff]
        %v5467 = vld [vmem:[#allocation7 + $0x108] sm:$0xff]
        %v5468 = vld [vmem:[#allocation7 + $0x110] sm:$0xff]
        %v5469 = vld [vmem:[#allocation7 + $0x118] sm:$0xff]
        %v5470 = vld [vmem:[#allocation7 + $0x120] sm:$0xff]
        %v5471 = vld [vmem:[#allocation7 + $0x128] sm:$0xff]
        %v5472 = vld [vmem:[#allocation7 + $0x130] sm:$0xff]
        %v5473 = vld [vmem:[#allocation7 + $0x138] sm:$0xff]
        %v5474 = vld [vmem:[#allocation7 + $0x140] sm:$0xff]
        %v5475 = vld [vmem:[#allocation7 + $0x148] sm:$0xff]
        %v5476 = vld [vmem:[#allocation7 + $0x150] sm:$0xff]
        %v5477 = vld [vmem:[#allocation7 + $0x158] sm:$0xff]
        %v5478 = vld [vmem:[#allocation7 + $0x160] sm:$0xff]
        %v5479 = vld [vmem:[#allocation7 + $0x168] sm:$0xff]
        %v5480 = vld [vmem:[#allocation7 + $0x170] sm:$0xff]
        %v5481 = vld [vmem:[#allocation7 + $0x178] sm:$0xff]
        %v5482 = vld [vmem:[#allocation7 + $0x180] sm:$0xff]
        %v5483 = vld [vmem:[#allocation7 + $0x188] sm:$0xff]
        %v5484 = vld [vmem:[#allocation7 + $0x190] sm:$0xff]
        %v5485 = vld [vmem:[#allocation7 + $0x198] sm:$0xff]
        %v5486 = vld [vmem:[#allocation7 + $0x1a0] sm:$0xff]
        %v5487 = vld [vmem:[#allocation7 + $0x1a8] sm:$0xff]
        %v5488 = vld [vmem:[#allocation7 + $0x1b0] sm:$0xff]
        %v5489 = vld [vmem:[#allocation7 + $0x1b8] sm:$0xff]
        %v5490 = vld [vmem:[#allocation7 + $0x1c0] sm:$0xff]
        %v5491 = vld [vmem:[#allocation7 + $0x1c8] sm:$0xff]
        %v5492 = vld [vmem:[#allocation7 + $0x1d0] sm:$0xff]
        %v5493 = vld [vmem:[#allocation7 + $0x1d8] sm:$0xff]
        %v5494 = vld [vmem:[#allocation7 + $0x1e0] sm:$0xff]
        %v5495 = vld [vmem:[#allocation7 + $0x1e8] sm:$0xff]
        %v5496 = vld [vmem:[#allocation7 + $0x1f0] sm:$0xff]
        %v5497 = vld [vmem:[#allocation7 + $0x1f8] sm:$0xff]
        %v5498 = vld [vmem:[%s10] sm:$0x3]
        %v5500 = vlaneseq
        %v5501 = vshrl.u32 %v5500, 7
        %v5502 = vsub.s32 0, %v5501
        %v5503 = vrot.slane %v5498, %v5502
        %v5504 = vlaneseq
        %v5505 = vshrl.u32 %v5504, 7
        %v5506 = vsub.s32 1, %v5505
        %v5507 = vrot.slane %v5498, %v5506
        %v5574 = vunpack.c.l.b16 %v5434
        %v5575 = vunpack.c.h.b16 %v5434
        %v5576 = vunpack.c.l.b16 %v5435
        %v5577 = vunpack.c.h.b16 %v5435
        %v5578 = vunpack.c.l.b16 %v5436
        %v5579 = vunpack.c.h.b16 %v5436
        %v5580 = vunpack.c.l.b16 %v5437
        %v5581 = vunpack.c.h.b16 %v5437
        %v5582 = vunpack.c.l.b16 %v5438
        %v5583 = vunpack.c.h.b16 %v5438
        %v5584 = vunpack.c.l.b16 %v5439
        %v5585 = vunpack.c.h.b16 %v5439
        %v5586 = vunpack.c.l.b16 %v5440
        %v5587 = vunpack.c.h.b16 %v5440
        %v5588 = vunpack.c.l.b16 %v5441
        %v5589 = vunpack.c.h.b16 %v5441
        %v5590 = vunpack.c.l.b16 %v5442
        %v5591 = vunpack.c.h.b16 %v5442
        %v5592 = vunpack.c.l.b16 %v5443
        %v5593 = vunpack.c.h.b16 %v5443
        %v5594 = vunpack.c.l.b16 %v5444
        %v5595 = vunpack.c.h.b16 %v5444
        %v5596 = vunpack.c.l.b16 %v5445
        %v5597 = vunpack.c.h.b16 %v5445
        %v5598 = vunpack.c.l.b16 %v5446
        %v5599 = vunpack.c.h.b16 %v5446
        %v5600 = vunpack.c.l.b16 %v5447
        %v5601 = vunpack.c.h.b16 %v5447
        %v5602 = vunpack.c.l.b16 %v5448
        %v5603 = vunpack.c.h.b16 %v5448
        %v5604 = vunpack.c.l.b16 %v5449
        %v5605 = vunpack.c.h.b16 %v5449
        %v5606 = vunpack.c.l.b16 %v5450
        %v5607 = vunpack.c.h.b16 %v5450
        %v5608 = vunpack.c.l.b16 %v5451
        %v5609 = vunpack.c.h.b16 %v5451
        %v5610 = vunpack.c.l.b16 %v5452
        %v5611 = vunpack.c.h.b16 %v5452
        %v5612 = vunpack.c.l.b16 %v5453
        %v5613 = vunpack.c.h.b16 %v5453
        %v5614 = vunpack.c.l.b16 %v5454
        %v5615 = vunpack.c.h.b16 %v5454
        %v5616 = vunpack.c.l.b16 %v5455
        %v5617 = vunpack.c.h.b16 %v5455
        %v5618 = vunpack.c.l.b16 %v5456
        %v5619 = vunpack.c.h.b16 %v5456
        %v5620 = vunpack.c.l.b16 %v5457
        %v5621 = vunpack.c.h.b16 %v5457
        %v5622 = vunpack.c.l.b16 %v5458
        %v5623 = vunpack.c.h.b16 %v5458
        %v5624 = vunpack.c.l.b16 %v5459
        %v5625 = vunpack.c.h.b16 %v5459
        %v5626 = vunpack.c.l.b16 %v5460
        %v5627 = vunpack.c.h.b16 %v5460
        %v5628 = vunpack.c.l.b16 %v5461
        %v5629 = vunpack.c.h.b16 %v5461
        %v5630 = vunpack.c.l.b16 %v5462
        %v5631 = vunpack.c.h.b16 %v5462
        %v5632 = vunpack.c.l.b16 %v5463
        %v5633 = vunpack.c.h.b16 %v5463
        %v5634 = vunpack.c.l.b16 %v5464
        %v5635 = vunpack.c.h.b16 %v5464
        %v5636 = vunpack.c.l.b16 %v5465
        %v5637 = vunpack.c.h.b16 %v5465
        %v5638 = vunpack.c.l.b16 %v5466
        %v5639 = vunpack.c.h.b16 %v5466
        %v5640 = vunpack.c.l.b16 %v5467
        %v5641 = vunpack.c.h.b16 %v5467
        %v5642 = vunpack.c.l.b16 %v5468
        %v5643 = vunpack.c.h.b16 %v5468
        %v5644 = vunpack.c.l.b16 %v5469
        %v5645 = vunpack.c.h.b16 %v5469
        %v5646 = vunpack.c.l.b16 %v5470
        %v5647 = vunpack.c.h.b16 %v5470
        %v5648 = vunpack.c.l.b16 %v5471
        %v5649 = vunpack.c.h.b16 %v5471
        %v5650 = vunpack.c.l.b16 %v5472
        %v5651 = vunpack.c.h.b16 %v5472
        %v5652 = vunpack.c.l.b16 %v5473
        %v5653 = vunpack.c.h.b16 %v5473
        %v5654 = vunpack.c.l.b16 %v5474
        %v5655 = vunpack.c.h.b16 %v5474
        %v5656 = vunpack.c.l.b16 %v5475
        %v5657 = vunpack.c.h.b16 %v5475
        %v5658 = vunpack.c.l.b16 %v5476
        %v5659 = vunpack.c.h.b16 %v5476
        %v5660 = vunpack.c.l.b16 %v5477
        %v5661 = vunpack.c.h.b16 %v5477
        %v5662 = vunpack.c.l.b16 %v5478
        %v5663 = vunpack.c.h.b16 %v5478
        %v5664 = vunpack.c.l.b16 %v5479
        %v5665 = vunpack.c.h.b16 %v5479
        %v5666 = vunpack.c.l.b16 %v5480
        %v5667 = vunpack.c.h.b16 %v5480
        %v5668 = vunpack.c.l.b16 %v5481
        %v5669 = vunpack.c.h.b16 %v5481
        %v5670 = vunpack.c.l.b16 %v5482
        %v5671 = vunpack.c.h.b16 %v5482
        %v5672 = vunpack.c.l.b16 %v5483
        %v5673 = vunpack.c.h.b16 %v5483
        %v5674 = vunpack.c.l.b16 %v5484
        %v5675 = vunpack.c.h.b16 %v5484
        %v5676 = vunpack.c.l.b16 %v5485
        %v5677 = vunpack.c.h.b16 %v5485
        %v5678 = vunpack.c.l.b16 %v5486
        %v5679 = vunpack.c.h.b16 %v5486
        %v5680 = vunpack.c.l.b16 %v5487
        %v5681 = vunpack.c.h.b16 %v5487
        %v5682 = vunpack.c.l.b16 %v5488
        %v5683 = vunpack.c.h.b16 %v5488
        %v5684 = vunpack.c.l.b16 %v5489
        %v5685 = vunpack.c.h.b16 %v5489
        %v5686 = vunpack.c.l.b16 %v5490
        %v5687 = vunpack.c.h.b16 %v5490
        %v5688 = vunpack.c.l.b16 %v5491
        %v5689 = vunpack.c.h.b16 %v5491
        %v5690 = vunpack.c.l.b16 %v5492
        %v5691 = vunpack.c.h.b16 %v5492
        %v5692 = vunpack.c.l.b16 %v5493
        %v5693 = vunpack.c.h.b16 %v5493
        %v5694 = vunpack.c.l.b16 %v5494
        %v5695 = vunpack.c.h.b16 %v5494
        %v5696 = vunpack.c.l.b16 %v5495
        %v5697 = vunpack.c.h.b16 %v5495
        %v5698 = vunpack.c.l.b16 %v5496
        %v5699 = vunpack.c.h.b16 %v5496
        %v5700 = vunpack.c.l.b16 %v5497
        %v5701 = vunpack.c.h.b16 %v5497
        %v5702 = vpack.c.b16 %v5576, %v5574
        %v5703 = vpack.c.b16 %v5577, %v5575
        %v5704 = vpack.c.b16 %v5580, %v5578
        %v5705 = vpack.c.b16 %v5581, %v5579
        %v5706 = vpack.c.b16 %v5584, %v5582
        %v5707 = vpack.c.b16 %v5585, %v5583
        %v5708 = vpack.c.b16 %v5588, %v5586
        %v5709 = vpack.c.b16 %v5589, %v5587
        %v5710 = vpack.c.b16 %v5592, %v5590
        %v5711 = vpack.c.b16 %v5593, %v5591
        %v5712 = vpack.c.b16 %v5596, %v5594
        %v5713 = vpack.c.b16 %v5597, %v5595
        %v5714 = vpack.c.b16 %v5600, %v5598
        %v5715 = vpack.c.b16 %v5601, %v5599
        %v5716 = vpack.c.b16 %v5604, %v5602
        %v5717 = vpack.c.b16 %v5605, %v5603
        %v5718 = vpack.c.b16 %v5608, %v5606
        %v5719 = vpack.c.b16 %v5609, %v5607
        %v5720 = vpack.c.b16 %v5612, %v5610
        %v5721 = vpack.c.b16 %v5613, %v5611
        %v5722 = vpack.c.b16 %v5616, %v5614
        %v5723 = vpack.c.b16 %v5617, %v5615
        %v5724 = vpack.c.b16 %v5620, %v5618
        %v5725 = vpack.c.b16 %v5621, %v5619
        %v5726 = vpack.c.b16 %v5624, %v5622
        %v5727 = vpack.c.b16 %v5625, %v5623
        %v5728 = vpack.c.b16 %v5628, %v5626
        %v5729 = vpack.c.b16 %v5629, %v5627
        %v5730 = vpack.c.b16 %v5632, %v5630
        %v5731 = vpack.c.b16 %v5633, %v5631
        %v5732 = vpack.c.b16 %v5636, %v5634
        %v5733 = vpack.c.b16 %v5637, %v5635
        %v5734 = vpack.c.b16 %v5640, %v5638
        %v5735 = vpack.c.b16 %v5641, %v5639
        %v5736 = vpack.c.b16 %v5644, %v5642
        %v5737 = vpack.c.b16 %v5645, %v5643
        %v5738 = vpack.c.b16 %v5648, %v5646
        %v5739 = vpack.c.b16 %v5649, %v5647
        %v5740 = vpack.c.b16 %v5652, %v5650
        %v5741 = vpack.c.b16 %v5653, %v5651
        %v5742 = vpack.c.b16 %v5656, %v5654
        %v5743 = vpack.c.b16 %v5657, %v5655
        %v5744 = vpack.c.b16 %v5660, %v5658
        %v5745 = vpack.c.b16 %v5661, %v5659
        %v5746 = vpack.c.b16 %v5664, %v5662
        %v5747 = vpack.c.b16 %v5665, %v5663
        %v5748 = vpack.c.b16 %v5668, %v5666
        %v5749 = vpack.c.b16 %v5669, %v5667
        %v5750 = vpack.c.b16 %v5672, %v5670
        %v5751 = vpack.c.b16 %v5673, %v5671
        %v5752 = vpack.c.b16 %v5676, %v5674
        %v5753 = vpack.c.b16 %v5677, %v5675
        %v5754 = vpack.c.b16 %v5680, %v5678
        %v5755 = vpack.c.b16 %v5681, %v5679
        %v5756 = vpack.c.b16 %v5684, %v5682
        %v5757 = vpack.c.b16 %v5685, %v5683
        %v5758 = vpack.c.b16 %v5688, %v5686
        %v5759 = vpack.c.b16 %v5689, %v5687
        %v5760 = vpack.c.b16 %v5692, %v5690
        %v5761 = vpack.c.b16 %v5693, %v5691
        %v5762 = vpack.c.b16 %v5696, %v5694
        %v5763 = vpack.c.b16 %v5697, %v5695
        %v5764 = vpack.c.b16 %v5700, %v5698
        %v5765 = vpack.c.b16 %v5701, %v5699
        %5830 = vmatprep.subr.bf16.mxu0 %v5703
        %5831 = vmatpush1.bf16.msra.mxu0 %v5702
        %5832 = vmatprep.subr.bf16.mxu0 %v5705
        %5833 = vmatpush1.bf16.msra.mxu0 %v5704
        %5834 = vmatprep.subr.bf16.mxu0 %v5707
        %5835 = vmatpush1.bf16.msra.mxu0 %v5706
        %5836 = vmatprep.subr.bf16.mxu0 %v5709
        %5837 = vmatpush1.bf16.msra.mxu0 %v5708
        %5838 = vmatprep.subr.bf16.mxu0 %v5711
        %5839 = vmatpush1.bf16.msra.mxu0 %v5710
        %5840 = vmatprep.subr.bf16.mxu0 %v5713
        %5841 = vmatpush1.bf16.msra.mxu0 %v5712
        %5842 = vmatprep.subr.bf16.mxu0 %v5715
        %5843 = vmatpush1.bf16.msra.mxu0 %v5714
        %5844 = vmatprep.subr.bf16.mxu0 %v5717
        %5845 = vmatpush1.bf16.msra.mxu0 %v5716
        %5846 = vmatprep.subr.bf16.mxu0 %v5719
        %5847 = vmatpush1.bf16.msra.mxu0 %v5718
        %5848 = vmatprep.subr.bf16.mxu0 %v5721
        %5849 = vmatpush1.bf16.msra.mxu0 %v5720
        %5850 = vmatprep.subr.bf16.mxu0 %v5723
        %5851 = vmatpush1.bf16.msra.mxu0 %v5722
        %5852 = vmatprep.subr.bf16.mxu0 %v5725
        %5853 = vmatpush1.bf16.msra.mxu0 %v5724
        %5854 = vmatprep.subr.bf16.mxu0 %v5727
        %5855 = vmatpush1.bf16.msra.mxu0 %v5726
        %5856 = vmatprep.subr.bf16.mxu0 %v5729
        %5857 = vmatpush1.bf16.msra.mxu0 %v5728
        %5858 = vmatprep.subr.bf16.mxu0 %v5731
        %5859 = vmatpush1.bf16.msra.mxu0 %v5730
        %5860 = vmatprep.subr.bf16.mxu0 %v5733
        %5861 = vmatpush1.bf16.msra.mxu0 %v5732
        %5862 = vmatprep.mubr.bf16.mxu0 %v5431
        %5863 = vmatmul.mubr.bf16.gmra.mrb[0].mxu0 %v5430
        %v5864 = vpop.f32.mrb[0].mxu0
        %v5865 = vadd.f32 %v5503, %v5864
        %v5866 = vpop.f32.mrb[0].mxu0
        %v5867 = vadd.f32 %v5507, %v5866
        %v5868 = vpop.f32.mrb[0].mxu0
        %v5869 = vpop.f32.mrb[0].mxu0
        %5870 = vdwg.mxu0
        %5871 = vmatprep.subr.bf16.mxu0 %v5735
        %5872 = vmatpush1.bf16.msra.mxu0 %v5734
        %5873 = vmatprep.subr.bf16.mxu0 %v5737
        %5874 = vmatpush1.bf16.msra.mxu0 %v5736
        %5875 = vmatprep.subr.bf16.mxu0 %v5739
        %5876 = vmatpush1.bf16.msra.mxu0 %v5738
        %5877 = vmatprep.subr.bf16.mxu0 %v5741
        %5878 = vmatpush1.bf16.msra.mxu0 %v5740
        %5879 = vmatprep.subr.bf16.mxu0 %v5743
        %5880 = vmatpush1.bf16.msra.mxu0 %v5742
        %5881 = vmatprep.subr.bf16.mxu0 %v5745
        %5882 = vmatpush1.bf16.msra.mxu0 %v5744
        %5883 = vmatprep.subr.bf16.mxu0 %v5747
        %5884 = vmatpush1.bf16.msra.mxu0 %v5746
        %5885 = vmatprep.subr.bf16.mxu0 %v5749
        %5886 = vmatpush1.bf16.msra.mxu0 %v5748
        %5887 = vmatprep.subr.bf16.mxu0 %v5751
        %5888 = vmatpush1.bf16.msra.mxu0 %v5750
        %5889 = vmatprep.subr.bf16.mxu0 %v5753
        %5890 = vmatpush1.bf16.msra.mxu0 %v5752
        %5891 = vmatprep.subr.bf16.mxu0 %v5755
        %5892 = vmatpush1.bf16.msra.mxu0 %v5754
        %5893 = vmatprep.subr.bf16.mxu0 %v5757
        %5894 = vmatpush1.bf16.msra.mxu0 %v5756
        %5895 = vmatprep.subr.bf16.mxu0 %v5759
        %5896 = vmatpush1.bf16.msra.mxu0 %v5758
        %5897 = vmatprep.subr.bf16.mxu0 %v5761
        %5898 = vmatpush1.bf16.msra.mxu0 %v5760
        %5899 = vmatprep.subr.bf16.mxu0 %v5763
        %5900 = vmatpush1.bf16.msra.mxu0 %v5762
        %5901 = vmatprep.subr.bf16.mxu0 %v5765
        %5902 = vmatpush1.bf16.msra.mxu0 %v5764
        %5903 = vmatprep.mubr.bf16.mxu0 %v5433
        %5904 = vmatmul.mubr.bf16.gmra.mrb[0].mxu0 %v5432
        %v5905 = vpop.f32.mrb[0].mxu0
        %v5906 = vadd.f32 %v5865, %v5905
        %v5907 = vpop.f32.mrb[0].mxu0
        %v5908 = vadd.f32 %v5867, %v5907
        %v5909 = vpop.f32.mrb[0].mxu0
        %v5910 = vpop.f32.mrb[0].mxu0
        %5911 = vdwg.mxu0
        %v5912 = vmax.f32 %v5906, 0.0
        %v5913 = vmax.f32 %v5908, 0.0
        %v5914 = vpack.c.bf16 %v5912, %v5912
        %v5915 = vpack.c.bf16 %v5913, %v5913
        %v5916 = vld [vmem:[%s11] sm:$0xf]
        %v5917 = vld [vmem:[%s11 + $0x4] sm:$0xf]
        %v5918 = vld [vmem:[%s11 + $0x8] sm:$0xf]
        %v5919 = vld [vmem:[%s11 + $0xc] sm:$0xf]
        %v5920 = vld [vmem:[%s11 + $0x10] sm:$0xf]
        %v5921 = vld [vmem:[%s11 + $0x14] sm:$0xf]
        %v5922 = vld [vmem:[%s11 + $0x18] sm:$0xf]
        %v5923 = vld [vmem:[%s11 + $0x1c] sm:$0xf]
        %v5924 = vld [vmem:[%s11 + $0x20] sm:$0xf]
        %v5925 = vld [vmem:[%s11 + $0x24] sm:$0xf]
        %v5926 = vld [vmem:[%s11 + $0x28] sm:$0xf]
        %v5927 = vld [vmem:[%s11 + $0x2c] sm:$0xf]
        %v5928 = vld [vmem:[%s11 + $0x30] sm:$0xf]
        %v5929 = vld [vmem:[%s11 + $0x34] sm:$0xf]
        %v5930 = vld [vmem:[%s11 + $0x38] sm:$0xf]
        %v5931 = vld [vmem:[%s11 + $0x3c] sm:$0xf]
        %v5932 = vld [vmem:[%s11 + $0x40] sm:$0xf]
        %v5933 = vld [vmem:[%s11 + $0x44] sm:$0xf]
        %v5934 = vld [vmem:[%s11 + $0x48] sm:$0xf]
        %v5935 = vld [vmem:[%s11 + $0x4c] sm:$0xf]
        %v5936 = vld [vmem:[%s11 + $0x50] sm:$0xf]
        %v5937 = vld [vmem:[%s11 + $0x54] sm:$0xf]
        %v5938 = vld [vmem:[%s11 + $0x58] sm:$0xf]
        %v5939 = vld [vmem:[%s11 + $0x5c] sm:$0xf]
        %v5940 = vld [vmem:[%s11 + $0x60] sm:$0xf]
        %v5941 = vld [vmem:[%s11 + $0x64] sm:$0xf]
        %v5942 = vld [vmem:[%s11 + $0x68] sm:$0xf]
        %v5943 = vld [vmem:[%s11 + $0x6c] sm:$0xf]
        %v5944 = vld [vmem:[%s11 + $0x70] sm:$0xf]
        %v5945 = vld [vmem:[%s11 + $0x74] sm:$0xf]
        %v5946 = vld [vmem:[%s11 + $0x78] sm:$0xf]
        %v5947 = vld [vmem:[%s11 + $0x7c] sm:$0xf]
        %v5948 = vld [vmem:[%s12] sm:$0x1]
        %v5950 = vlaneseq
        %v5951 = vshrl.u32 %v5950, 7
        %v5952 = vsub.s32 0, %v5951
        %v5953 = vrot.slane %v5948, %v5952
        %v5987 = vunpack.c.l.b16 %v5916
        %v5988 = vunpack.c.l.b16 %v5917
        %v5989 = vunpack.c.l.b16 %v5918
        %v5990 = vunpack.c.l.b16 %v5919
        %v5991 = vunpack.c.l.b16 %v5920
        %v5992 = vunpack.c.l.b16 %v5921
        %v5993 = vunpack.c.l.b16 %v5922
        %v5994 = vunpack.c.l.b16 %v5923
        %v5995 = vunpack.c.l.b16 %v5924
        %v5996 = vunpack.c.l.b16 %v5925
        %v5997 = vunpack.c.l.b16 %v5926
        %v5998 = vunpack.c.l.b16 %v5927
        %v5999 = vunpack.c.l.b16 %v5928
        %v6000 = vunpack.c.l.b16 %v5929
        %v6001 = vunpack.c.l.b16 %v5930
        %v6002 = vunpack.c.l.b16 %v5931
        %v6003 = vunpack.c.l.b16 %v5932
        %v6004 = vunpack.c.l.b16 %v5933
        %v6005 = vunpack.c.l.b16 %v5934
        %v6006 = vunpack.c.l.b16 %v5935
        %v6007 = vunpack.c.l.b16 %v5936
        %v6008 = vunpack.c.l.b16 %v5937
        %v6009 = vunpack.c.l.b16 %v5938
        %v6010 = vunpack.c.l.b16 %v5939
        %v6011 = vunpack.c.l.b16 %v5940
        %v6012 = vunpack.c.l.b16 %v5941
        %v6013 = vunpack.c.l.b16 %v5942
        %v6014 = vunpack.c.l.b16 %v5943
        %v6015 = vunpack.c.l.b16 %v5944
        %v6016 = vunpack.c.l.b16 %v5945
        %v6017 = vunpack.c.l.b16 %v5946
        %v6018 = vunpack.c.l.b16 %v5947
        %v6019 = vpack.c.b16 %v5988, %v5987
        %v6020 = vpack.c.b16 %v5990, %v5989
        %v6021 = vpack.c.b16 %v5992, %v5991
        %v6022 = vpack.c.b16 %v5994, %v5993
        %v6023 = vpack.c.b16 %v5996, %v5995
        %v6024 = vpack.c.b16 %v5998, %v5997
        %v6025 = vpack.c.b16 %v6000, %v5999
        %v6026 = vpack.c.b16 %v6002, %v6001
        %v6027 = vpack.c.b16 %v6004, %v6003
        %v6028 = vpack.c.b16 %v6006, %v6005
        %v6029 = vpack.c.b16 %v6008, %v6007
        %v6030 = vpack.c.b16 %v6010, %v6009
        %v6031 = vpack.c.b16 %v6012, %v6011
        %v6032 = vpack.c.b16 %v6014, %v6013
        %v6033 = vpack.c.b16 %v6016, %v6015
        %v6034 = vpack.c.b16 %v6018, %v6017
        %6051 = vmatprep.subr.bf16.mxu0 0
        %6052 = vmatpush1.bf16.msra.mxu0 %v6019
        %6053 = vmatprep.subr.bf16.mxu0 0
        %6054 = vmatpush1.bf16.msra.mxu0 %v6020
        %6055 = vmatprep.subr.bf16.mxu0 0
        %6056 = vmatpush1.bf16.msra.mxu0 %v6021
        %6057 = vmatprep.subr.bf16.mxu0 0
        %6058 = vmatpush1.bf16.msra.mxu0 %v6022
        %6059 = vmatprep.subr.bf16.mxu0 0
        %6060 = vmatpush1.bf16.msra.mxu0 %v6023
        %6061 = vmatprep.subr.bf16.mxu0 0
        %6062 = vmatpush1.bf16.msra.mxu0 %v6024
        %6063 = vmatprep.subr.bf16.mxu0 0
        %6064 = vmatpush1.bf16.msra.mxu0 %v6025
        %6065 = vmatprep.subr.bf16.mxu0 0
        %6066 = vmatpush1.bf16.msra.mxu0 %v6026
        %6067 = vmatprep.subr.bf16.mxu0 0
        %6068 = vmatpush1.bf16.msra.mxu0 %v6027
        %6069 = vmatprep.subr.bf16.mxu0 0
        %6070 = vmatpush1.bf16.msra.mxu0 %v6028
        %6071 = vmatprep.subr.bf16.mxu0 0
        %6072 = vmatpush1.bf16.msra.mxu0 %v6029
        %6073 = vmatprep.subr.bf16.mxu0 0
        %6074 = vmatpush1.bf16.msra.mxu0 %v6030
        %6075 = vmatprep.subr.bf16.mxu0 0
        %6076 = vmatpush1.bf16.msra.mxu0 %v6031
        %6077 = vmatprep.subr.bf16.mxu0 0
        %6078 = vmatpush1.bf16.msra.mxu0 %v6032
        %6079 = vmatprep.subr.bf16.mxu0 0
        %6080 = vmatpush1.bf16.msra.mxu0 %v6033
        %6081 = vmatprep.subr.bf16.mxu0 0
        %6082 = vmatpush1.bf16.msra.mxu0 %v6034
        %6083 = vmatprep.mubr.bf16.mxu0 %v5915
        %6084 = vmatmul.mubr.bf16.gmra.mrb[0].mxu0 %v5914
        %v6085 = vpop.f32.mrb[0].mxu0
        %v6086 = vadd.f32 %v5953, %v6085
        %v6087 = vpop.f32.mrb[0].mxu0
        %v6088 = vpop.f32.mrb[0].mxu0
        %v6089 = vpop.f32.mrb[0].mxu0
        %6090 = vdwg.mxu0
        %v6091 = vlaneseq
        %v6092 = vand.u32 %v6091, 127
        %vm6093 = vcmp.lt.s32.totalorder %v6092, 0
        %v6094 = vsub.s32 0, %v6092
        %v6095 = vsel %vm6093, %v6094, %v6092
        %v6096 = vshrl.u32 %v6095, 2
        %v6097 = vand.u32 %v6095, 3
        %v6098 = vsub.s32 0, %v6097
        %v6099 = vsel %vm6093, %v6098, %v6097
        %vm6100 = vcmp.ne.s32.totalorder %v6099, 0
        %vm6101 = vcmp.lt.s32.totalorder %v6099, 0
        %vm6102 = vmand %vm6101, %vm6100
        %v6103 = vadd.s32 %v6099, 4
        %v6104 = vsel %vm6102, %v6103, %v6099
        %vm6105 = vcmp.eq.s32.totalorder %v6104, 0
        %v6106 = vsel %vm6105, 1.0, 0.0
        %v6107 = vadd.f32 %v6086, %v6106
        %v6108 = vld [vmem:[%s13] sm:$0x7]
        %v6109 = vld [vmem:[%s14] sm:$0x1]
        %6111 = vset.pattern.permute.xlu0 0
        %6112 = vperm.xlu0 %6111, %v6107
        %v6113 = vpop.permute.xlu0 %6112
        %v6115 = vlaneseq
        %v6116 = vshrl.u32 %v6115, 7
        %v6117 = vsub.s32 0, %v6116
        %v6118 = vrot.slane %v6108, %v6117
        %v6119 = vmul.f32 %v6113, %v6118
        %6120 = vset.pattern.permute.xlu0 1
        %6121 = vperm.xlu0 %6120, %v6107
        %v6122 = vpop.permute.xlu0 %6121
        %v6124 = vlaneseq
        %v6125 = vshrl.u32 %v6124, 7
        %v6126 = vsub.s32 1, %v6125
        %v6127 = vrot.slane %v6108, %v6126
        %v6128 = vmul.f32 %v6122, %v6127
        %v6129 = vadd.f32 %v6119, %v6128
        %6130 = vset.pattern.permute.xlu0 2
        %6131 = vperm.xlu0 %6130, %v6107
        %v6132 = vpop.permute.xlu0 %6131
        %v6134 = vlaneseq
        %v6135 = vshrl.u32 %v6134, 7
        %v6136 = vsub.s32 2, %v6135
        %v6137 = vrot.slane %v6108, %v6136
        %v6138 = vmul.f32 %v6132, %v6137
        %v6139 = vadd.f32 %v6129, %v6138
        %6140 = vset.pattern.permute.xlu0 3
        %6141 = vperm.xlu0 %6140, %v6107
        %v6142 = vpop.permute.xlu0 %6141
        %v6144 = vmul.f32 %v6142, %v6118
        %6145 = vset.pattern.permute.xlu0 4
        %6146 = vperm.xlu0 %6145, %v6107
        %v6147 = vpop.permute.xlu0 %6146
        %v6149 = vmul.f32 %v6147, %v6127
        %v6150 = vadd.f32 %v6144, %v6149
        %6151 = vset.pattern.permute.xlu0 5
        %6152 = vperm.xlu0 %6151, %v6107
        %v6153 = vpop.permute.xlu0 %6152
        %v6155 = vmul.f32 %v6153, %v6137
        %v6156 = vadd.f32 %v6150, %v6155
        %6157 = vset.pattern.permute.xlu0 6
        %6158 = vperm.xlu0 %6157, %v6107
        %v6159 = vpop.permute.xlu0 %6158
        %v6161 = vmul.f32 %v6159, %v6118
        %6162 = vset.pattern.permute.xlu0 7
        %6163 = vperm.xlu0 %6162, %v6107
        %v6164 = vpop.permute.xlu0 %6163
        %v6166 = vmul.f32 %v6164, %v6127
        %v6167 = vadd.f32 %v6161, %v6166
        %6168 = vset.pattern.permute.xlu0 8
        %6169 = vperm.xlu0 %6168, %v6107
        %v6170 = vpop.permute.xlu0 %6169
        %v6172 = vmul.f32 %v6170, %v6137
        %v6173 = vadd.f32 %v6167, %v6172
        %v6176 = vunpack.c.l.s4 1966171168
        %v6177 = vunpack.c.0.s8 %v6176
        %v6178 = vlaneseq
        %v6179 = vshrl.u32 %v6178, 7
        %v6180 = vsub.s32 %v6177, %v6179
        %v6181 = vrot.slane %v6139, %v6180
        %v6182 = vcombine.high %v6181, %v6181
        %v6184 = vunpack.c.l.s4 1966171168
        %v6185 = vunpack.c.0.s8 %v6184
        %v6186 = vlaneseq
        %v6187 = vshrl.u32 %v6186, 7
        %v6188 = vsub.s32 %v6185, %v6187
        %v6189 = vrot.slane %v6181, %v6188
        %v6191 = vunpack.c.l.s4 1966171168
        %v6192 = vunpack.c.0.s8 %v6191
        %v6193 = vlaneseq
        %v6194 = vshrl.u32 %v6193, 7
        %v6195 = vsub.s32 %v6192, %v6194
        %v6196 = vrot.slane %v6182, %v6195
        %v6197 = vlaneseq
        %v6198 = vshrl.u32 %v6197, 7
        %v6199 = vsub.s32 0, %v6198
        %v6200 = vrot.slane %v6189, %v6199
        %v6201 = vlaneseq
        %v6202 = vshrl.u32 %v6201, 7
        %v6203 = vsub.s32 0, %v6202
        %v6204 = vrot.slane %v6196, %v6203
        %v6207 = vmul.f32 %v925, %v6200
        %v6208 = vmul.f32 %v930, %v6200
        %v6209 = vmul.f32 %v935, %v6200
        %v6210 = vmul.f32 %v940, %v6200
        %v6211 = vmul.f32 %v945, %v6200
        %v6212 = vmul.f32 %v950, %v6200
        %v6213 = vmul.f32 %v955, %v6200
        %v6214 = vmul.f32 %v960, %v6200
        %v6215 = vmul.f32 %v965, %v6200
        %v6216 = vmul.f32 %v970, %v6200
        %v6217 = vmul.f32 %v975, %v6200
        %v6218 = vmul.f32 %v980, %v6200
        %v6219 = vmul.f32 %v985, %v6200
        %v6220 = vmul.f32 %v990, %v6200
        %v6221 = vmul.f32 %v995, %v6200
        %v6222 = vmul.f32 %v1000, %v6200
        %v6223 = vmul.f32 %v1005, %v6204
        %v6224 = vmul.f32 %v1010, %v6204
        %v6225 = vmul.f32 %v1015, %v6204
        %v6226 = vmul.f32 %v1020, %v6204
        %v6227 = vmul.f32 %v1025, %v6204
        %v6228 = vmul.f32 %v1030, %v6204
        %v6229 = vmul.f32 %v1035, %v6204
        %v6230 = vmul.f32 %v1040, %v6204
        %v6231 = vmul.f32 %v1045, %v6204
        %v6232 = vmul.f32 %v1050, %v6204
        %v6233 = vmul.f32 %v1055, %v6204
        %v6234 = vmul.f32 %v1060, %v6204
        %v6235 = vmul.f32 %v1065, %v6204
        %v6236 = vmul.f32 %v1070, %v6204
        %v6237 = vmul.f32 %v1075, %v6204
        %v6238 = vmul.f32 %v1080, %v6204
        %v6241 = vunpack.c.l.s4 1966171168
        %v6242 = vunpack.c.0.s8 %v6241
        %v6243 = vlaneseq
        %v6244 = vshrl.u32 %v6243, 7
        %v6245 = vsub.s32 %v6242, %v6244
        %v6246 = vrot.slane %v6156, %v6245
        %v6247 = vcombine.high %v6246, %v6246
        %v6249 = vunpack.c.l.s4 1966171168
        %v6250 = vunpack.c.0.s8 %v6249
        %v6251 = vlaneseq
        %v6252 = vshrl.u32 %v6251, 7
        %v6253 = vsub.s32 %v6250, %v6252
        %v6254 = vrot.slane %v6246, %v6253
        %v6256 = vunpack.c.l.s4 1966171168
        %v6257 = vunpack.c.0.s8 %v6256
        %v6258 = vlaneseq
        %v6259 = vshrl.u32 %v6258, 7
        %v6260 = vsub.s32 %v6257, %v6259
        %v6261 = vrot.slane %v6247, %v6260
        %v6262 = vlaneseq
        %v6263 = vshrl.u32 %v6262, 7
        %v6264 = vsub.s32 0, %v6263
        %v6265 = vrot.slane %v6254, %v6264
        %v6266 = vlaneseq
        %v6267 = vshrl.u32 %v6266, 7
        %v6268 = vsub.s32 0, %v6267
        %v6269 = vrot.slane %v6261, %v6268
        %v6272 = vmul.f32 %v1120, %v6265
        %v6273 = vmul.f32 %v1124, %v6265
        %v6274 = vmul.f32 %v1128, %v6265
        %v6275 = vmul.f32 %v1132, %v6265
        %v6276 = vmul.f32 %v1136, %v6265
        %v6277 = vmul.f32 %v1140, %v6265
        %v6278 = vmul.f32 %v1144, %v6265
        %v6279 = vmul.f32 %v1148, %v6265
        %v6280 = vmul.f32 %v1152, %v6265
        %v6281 = vmul.f32 %v1156, %v6265
        %v6282 = vmul.f32 %v1160, %v6265
        %v6283 = vmul.f32 %v1164, %v6265
        %v6284 = vmul.f32 %v1168, %v6265
        %v6285 = vmul.f32 %v1172, %v6265
        %v6286 = vmul.f32 %v1176, %v6265
        %v6287 = vmul.f32 %v1180, %v6265
        %v6288 = vmul.f32 %v1184, %v6269
        %v6289 = vmul.f32 %v1188, %v6269
        %v6290 = vmul.f32 %v1192, %v6269
        %v6291 = vmul.f32 %v1196, %v6269
        %v6292 = vmul.f32 %v1200, %v6269
        %v6293 = vmul.f32 %v1204, %v6269
        %v6294 = vmul.f32 %v1208, %v6269
        %v6295 = vmul.f32 %v1212, %v6269
        %v6296 = vmul.f32 %v1216, %v6269
        %v6297 = vmul.f32 %v1220, %v6269
        %v6298 = vmul.f32 %v1224, %v6269
        %v6299 = vmul.f32 %v1228, %v6269
        %v6300 = vmul.f32 %v1232, %v6269
        %v6301 = vmul.f32 %v1236, %v6269
        %v6302 = vmul.f32 %v1240, %v6269
        %v6303 = vmul.f32 %v1244, %v6269
        %v6304 = vadd.f32 %v6207, %v6272
        %v6305 = vadd.f32 %v6208, %v6273
        %v6306 = vadd.f32 %v6209, %v6274
        %v6307 = vadd.f32 %v6210, %v6275
        %v6308 = vadd.f32 %v6211, %v6276
        %v6309 = vadd.f32 %v6212, %v6277
        %v6310 = vadd.f32 %v6213, %v6278
        %v6311 = vadd.f32 %v6214, %v6279
        %v6312 = vadd.f32 %v6215, %v6280
        %v6313 = vadd.f32 %v6216, %v6281
        %v6314 = vadd.f32 %v6217, %v6282
        %v6315 = vadd.f32 %v6218, %v6283
        %v6316 = vadd.f32 %v6219, %v6284
        %v6317 = vadd.f32 %v6220, %v6285
        %v6318 = vadd.f32 %v6221, %v6286
        %v6319 = vadd.f32 %v6222, %v6287
        %v6320 = vadd.f32 %v6223, %v6288
        %v6321 = vadd.f32 %v6224, %v6289
        %v6322 = vadd.f32 %v6225, %v6290
        %v6323 = vadd.f32 %v6226, %v6291
        %v6324 = vadd.f32 %v6227, %v6292
        %v6325 = vadd.f32 %v6228, %v6293
        %v6326 = vadd.f32 %v6229, %v6294
        %v6327 = vadd.f32 %v6230, %v6295
        %v6328 = vadd.f32 %v6231, %v6296
        %v6329 = vadd.f32 %v6232, %v6297
        %v6330 = vadd.f32 %v6233, %v6298
        %v6331 = vadd.f32 %v6234, %v6299
        %v6332 = vadd.f32 %v6235, %v6300
        %v6333 = vadd.f32 %v6236, %v6301
        %v6334 = vadd.f32 %v6237, %v6302
        %v6335 = vadd.f32 %v6238, %v6303
        %v6338 = vunpack.c.l.s4 1966171168
        %v6339 = vunpack.c.0.s8 %v6338
        %v6340 = vlaneseq
        %v6341 = vshrl.u32 %v6340, 7
        %v6342 = vsub.s32 %v6339, %v6341
        %v6343 = vrot.slane %v6173, %v6342
        %v6344 = vcombine.high %v6343, %v6343
        %v6346 = vunpack.c.l.s4 1966171168
        %v6347 = vunpack.c.0.s8 %v6346
        %v6348 = vlaneseq
        %v6349 = vshrl.u32 %v6348, 7
        %v6350 = vsub.s32 %v6347, %v6349
        %v6351 = vrot.slane %v6343, %v6350
        %v6353 = vunpack.c.l.s4 1966171168
        %v6354 = vunpack.c.0.s8 %v6353
        %v6355 = vlaneseq
        %v6356 = vshrl.u32 %v6355, 7
        %v6357 = vsub.s32 %v6354, %v6356
        %v6358 = vrot.slane %v6344, %v6357
        %v6359 = vlaneseq
        %v6360 = vshrl.u32 %v6359, 7
        %v6361 = vsub.s32 0, %v6360
        %v6362 = vrot.slane %v6351, %v6361
        %v6363 = vlaneseq
        %v6364 = vshrl.u32 %v6363, 7
        %v6365 = vsub.s32 0, %v6364
        %v6366 = vrot.slane %v6358, %v6365
        %v6369 = vmul.f32 %v1316, %v6362
        %v6370 = vmul.f32 %v1320, %v6362
        %v6371 = vmul.f32 %v1324, %v6362
        %v6372 = vmul.f32 %v1328, %v6362
        %v6373 = vmul.f32 %v1332, %v6362
        %v6374 = vmul.f32 %v1336, %v6362
        %v6375 = vmul.f32 %v1340, %v6362
        %v6376 = vmul.f32 %v1344, %v6362
        %v6377 = vmul.f32 %v1348, %v6362
        %v6378 = vmul.f32 %v1352, %v6362
        %v6379 = vmul.f32 %v1356, %v6362
        %v6380 = vmul.f32 %v1360, %v6362
        %v6381 = vmul.f32 %v1364, %v6362
        %v6382 = vmul.f32 %v1368, %v6362
        %v6383 = vmul.f32 %v1372, %v6362
        %v6384 = vmul.f32 %v1376, %v6362
        %v6385 = vmul.f32 %v1380, %v6366
        %v6386 = vmul.f32 %v1384, %v6366
        %v6387 = vmul.f32 %v1388, %v6366
        %v6388 = vmul.f32 %v1392, %v6366
        %v6389 = vmul.f32 %v1396, %v6366
        %v6390 = vmul.f32 %v1400, %v6366
        %v6391 = vmul.f32 %v1404, %v6366
        %v6392 = vmul.f32 %v1408, %v6366
        %v6393 = vmul.f32 %v1412, %v6366
        %v6394 = vmul.f32 %v1416, %v6366
        %v6395 = vmul.f32 %v1420, %v6366
        %v6396 = vmul.f32 %v1424, %v6366
        %v6397 = vmul.f32 %v1428, %v6366
        %v6398 = vmul.f32 %v1432, %v6366
        %v6399 = vmul.f32 %v1436, %v6366
        %v6400 = vmul.f32 %v1440, %v6366
        %v6401 = vadd.f32 %v6304, %v6369
        %v6402 = vadd.f32 %v6305, %v6370
        %v6403 = vadd.f32 %v6306, %v6371
        %v6404 = vadd.f32 %v6307, %v6372
        %v6405 = vadd.f32 %v6308, %v6373
        %v6406 = vadd.f32 %v6309, %v6374
        %v6407 = vadd.f32 %v6310, %v6375
        %v6408 = vadd.f32 %v6311, %v6376
        %v6409 = vadd.f32 %v6312, %v6377
        %v6410 = vadd.f32 %v6313, %v6378
        %v6411 = vadd.f32 %v6314, %v6379
        %v6412 = vadd.f32 %v6315, %v6380
        %v6413 = vadd.f32 %v6316, %v6381
        %v6414 = vadd.f32 %v6317, %v6382
        %v6415 = vadd.f32 %v6318, %v6383
        %v6416 = vadd.f32 %v6319, %v6384
        %v6417 = vadd.f32 %v6320, %v6385
        %v6418 = vadd.f32 %v6321, %v6386
        %v6419 = vadd.f32 %v6322, %v6387
        %v6420 = vadd.f32 %v6323, %v6388
        %v6421 = vadd.f32 %v6324, %v6389
        %v6422 = vadd.f32 %v6325, %v6390
        %v6423 = vadd.f32 %v6326, %v6391
        %v6424 = vadd.f32 %v6327, %v6392
        %v6425 = vadd.f32 %v6328, %v6393
        %v6426 = vadd.f32 %v6329, %v6394
        %v6427 = vadd.f32 %v6330, %v6395
        %v6428 = vadd.f32 %v6331, %v6396
        %v6429 = vadd.f32 %v6332, %v6397
        %v6430 = vadd.f32 %v6333, %v6398
        %v6431 = vadd.f32 %v6334, %v6399
        %v6432 = vadd.f32 %v6335, %v6400
        %v6434 = vlaneseq
        %v6435 = vshrl.u32 %v6434, 7
        %v6436 = vsub.s32 0, %v6435
        %v6437 = vrot.slane %v6109, %v6436
        %v6439 = vadd.f32 %v6401, %v6437
        %v6440 = vadd.f32 %v6402, %v6437
        %v6441 = vadd.f32 %v6403, %v6437
        %v6442 = vadd.f32 %v6404, %v6437
        %v6443 = vadd.f32 %v6405, %v6437
        %v6444 = vadd.f32 %v6406, %v6437
        %v6445 = vadd.f32 %v6407, %v6437
        %v6446 = vadd.f32 %v6408, %v6437
        %v6447 = vadd.f32 %v6409, %v6437
        %v6448 = vadd.f32 %v6410, %v6437
        %v6449 = vadd.f32 %v6411, %v6437
        %v6450 = vadd.f32 %v6412, %v6437
        %v6451 = vadd.f32 %v6413, %v6437
        %v6452 = vadd.f32 %v6414, %v6437
        %v6453 = vadd.f32 %v6415, %v6437
        %v6454 = vadd.f32 %v6416, %v6437
        %v6455 = vadd.f32 %v6417, %v6437
        %v6456 = vadd.f32 %v6418, %v6437
        %v6457 = vadd.f32 %v6419, %v6437
        %v6458 = vadd.f32 %v6420, %v6437
        %v6459 = vadd.f32 %v6421, %v6437
        %v6460 = vadd.f32 %v6422, %v6437
        %v6461 = vadd.f32 %v6423, %v6437
        %v6462 = vadd.f32 %v6424, %v6437
        %v6463 = vadd.f32 %v6425, %v6437
        %v6464 = vadd.f32 %v6426, %v6437
        %v6465 = vadd.f32 %v6427, %v6437
        %v6466 = vadd.f32 %v6428, %v6437
        %v6467 = vadd.f32 %v6429, %v6437
        %v6468 = vadd.f32 %v6430, %v6437
        %v6469 = vadd.f32 %v6431, %v6437
        %v6470 = vadd.f32 %v6432, %v6437
        %v6471 = vmax.f32 %v6439, 0.0
        %v6472 = vmax.f32 %v6440, 0.0
        %v6473 = vmax.f32 %v6441, 0.0
        %v6474 = vmax.f32 %v6442, 0.0
        %v6475 = vmax.f32 %v6443, 0.0
        %v6476 = vmax.f32 %v6444, 0.0
        %v6477 = vmax.f32 %v6445, 0.0
        %v6478 = vmax.f32 %v6446, 0.0
        %v6479 = vmax.f32 %v6447, 0.0
        %v6480 = vmax.f32 %v6448, 0.0
        %v6481 = vmax.f32 %v6449, 0.0
        %v6482 = vmax.f32 %v6450, 0.0
        %v6483 = vmax.f32 %v6451, 0.0
        %v6484 = vmax.f32 %v6452, 0.0
        %v6485 = vmax.f32 %v6453, 0.0
        %v6486 = vmax.f32 %v6454, 0.0
        %v6487 = vmax.f32 %v6455, 0.0
        %v6488 = vmax.f32 %v6456, 0.0
        %v6489 = vmax.f32 %v6457, 0.0
        %v6490 = vmax.f32 %v6458, 0.0
        %v6491 = vmax.f32 %v6459, 0.0
        %v6492 = vmax.f32 %v6460, 0.0
        %v6493 = vmax.f32 %v6461, 0.0
        %v6494 = vmax.f32 %v6462, 0.0
        %v6495 = vmax.f32 %v6463, 0.0
        %v6496 = vmax.f32 %v6464, 0.0
        %v6497 = vmax.f32 %v6465, 0.0
        %v6498 = vmax.f32 %v6466, 0.0
        %v6499 = vmax.f32 %v6467, 0.0
        %v6500 = vmax.f32 %v6468, 0.0
        %v6501 = vmax.f32 %v6469, 0.0
        %v6502 = vmax.f32 %v6470, 0.0
        %v6503 = vpack.c.bf16 %v6472, %v6471
        %v6504 = vpack.c.bf16 %v6474, %v6473
        %v6505 = vpack.c.bf16 %v6476, %v6475
        %v6506 = vpack.c.bf16 %v6478, %v6477
        %v6507 = vpack.c.bf16 %v6480, %v6479
        %v6508 = vpack.c.bf16 %v6482, %v6481
        %v6509 = vpack.c.bf16 %v6484, %v6483
        %v6510 = vpack.c.bf16 %v6486, %v6485
        %v6511 = vpack.c.bf16 %v6488, %v6487
        %v6512 = vpack.c.bf16 %v6490, %v6489
        %v6513 = vpack.c.bf16 %v6492, %v6491
        %v6514 = vpack.c.bf16 %v6494, %v6493
        %v6515 = vpack.c.bf16 %v6496, %v6495
        %v6516 = vpack.c.bf16 %v6498, %v6497
        %v6517 = vpack.c.bf16 %v6500, %v6499
        %v6518 = vpack.c.bf16 %v6502, %v6501
        %v6519 = vld [vmem:[%s15] sm:$0xf]
        %v6520 = vld [vmem:[%s15 + $0x4] sm:$0xf]
        %v6521 = vld [vmem:[%s15 + $0x8] sm:$0xf]
        %v6522 = vld [vmem:[%s15 + $0xc] sm:$0xf]
        %v6523 = vld [vmem:[%s15 + $0x10] sm:$0xf]
        %v6524 = vld [vmem:[%s15 + $0x14] sm:$0xf]
        %v6525 = vld [vmem:[%s15 + $0x18] sm:$0xf]
        %v6526 = vld [vmem:[%s15 + $0x1c] sm:$0xf]
        %v6527 = vld [vmem:[%s16] sm:$0x1]
        %v6529 = vlaneseq
        %v6530 = vshrl.u32 %v6529, 7
        %v6531 = vsub.s32 0, %v6530
        %v6532 = vrot.slane %v6527, %v6531
        %v6542 = vunpack.c.l.b16 %v6519
        %v6543 = vunpack.c.l.b16 %v6520
        %v6544 = vunpack.c.l.b16 %v6521
        %v6545 = vunpack.c.l.b16 %v6522
        %v6546 = vunpack.c.l.b16 %v6523
        %v6547 = vunpack.c.l.b16 %v6524
        %v6548 = vunpack.c.l.b16 %v6525
        %v6549 = vunpack.c.l.b16 %v6526
        %v6550 = vpack.c.b16 %v6543, %v6542
        %v6551 = vpack.c.b16 %v6545, %v6544
        %v6552 = vpack.c.b16 %v6547, %v6546
        %v6553 = vpack.c.b16 %v6549, %v6548
        %v6559 = vsel %vm1635, %v6503, 0
        %v6562 = vsel %vm1635, %v6504, 0
        %v6565 = vsel %vm1635, %v6505, 0
        %v6568 = vsel %vm1635, %v6506, 0
        %v6571 = vsel %vm1635, %v6507, 0
        %v6574 = vsel %vm1635, %v6508, 0
        %v6577 = vsel %vm1635, %v6509, 0
        %v6580 = vsel %vm1635, %v6510, 0
        %v6583 = vsel %vm1635, %v6511, 0
        %v6586 = vsel %vm1635, %v6512, 0
        %v6589 = vsel %vm1635, %v6513, 0
        %v6592 = vsel %vm1635, %v6514, 0
        %v6595 = vsel %vm1635, %v6515, 0
        %v6598 = vsel %vm1635, %v6516, 0
        %v6601 = vsel %vm1635, %v6517, 0
        %v6604 = vsel %vm1635, %v6518, 0
        %6606 = vmatprep.subr.bf16.mxu0 0
        %6607 = vmatpush1.bf16.msra.mxu0 %v6550
        %6608 = vmatprep.subr.bf16.mxu0 0
        %6609 = vmatpush1.bf16.msra.mxu0 %v6551
        %6610 = vmatprep.subr.bf16.mxu0 0
        %6611 = vmatpush1.bf16.msra.mxu0 %v6552
        %6612 = vmatprep.subr.bf16.mxu0 0
        %6613 = vmatpush1.bf16.msra.mxu0 %v6553
        %6614 = vmatprep.subr.bf16.mxu0 0
        %6615 = vmatpush1.bf16.msra.mxu0 0
        %6616 = vmatprep.subr.bf16.mxu0 0
        %6617 = vmatpush1.bf16.msra.mxu0 0
        %6618 = vmatprep.subr.bf16.mxu0 0
        %6619 = vmatpush1.bf16.msra.mxu0 0
        %6620 = vmatprep.subr.bf16.mxu0 0
        %6621 = vmatpush1.bf16.msra.mxu0 0
        %6622 = vmatprep.subr.bf16.mxu0 0
        %6623 = vmatpush1.bf16.msra.mxu0 0
        %6624 = vmatprep.subr.bf16.mxu0 0
        %6625 = vmatpush1.bf16.msra.mxu0 0
        %6626 = vmatprep.subr.bf16.mxu0 0
        %6627 = vmatpush1.bf16.msra.mxu0 0
        %6628 = vmatprep.subr.bf16.mxu0 0
        %6629 = vmatpush1.bf16.msra.mxu0 0
        %6630 = vmatprep.subr.bf16.mxu0 0
        %6631 = vmatpush1.bf16.msra.mxu0 0
        %6632 = vmatprep.subr.bf16.mxu0 0
        %6633 = vmatpush1.bf16.msra.mxu0 0
        %6634 = vmatprep.subr.bf16.mxu0 0
        %6635 = vmatpush1.bf16.msra.mxu0 0
        %6636 = vmatprep.subr.bf16.mxu0 0
        %6637 = vmatpush1.bf16.msra.mxu0 0
        %6638 = vmatprep.mubr.bf16.mxu0 0
        %6639 = vmatmul.mubr.bf16.gmra.mrb[0].mxu0 %v6559
        %v6640 = vpop.f32.mrb[0].mxu0
        %v6641 = vadd.f32 %v6532, %v6640
        %v6642 = vpop.f32.mrb[0].mxu0
        %v6643 = vpop.f32.mrb[0].mxu0
        %v6644 = vadd.f32 %v6532, %v6643
        %v6645 = vpop.f32.mrb[0].mxu0
        %6646 = vmatprep.mubr.bf16.mxu0 0
        %6647 = vmatmul.mubr.bf16.gmra.mrb[0].mxu0 %v6562
        %v6648 = vpop.f32.mrb[0].mxu0
        %v6649 = vadd.f32 %v6532, %v6648
        %v6650 = vpop.f32.mrb[0].mxu0
        %v6651 = vpop.f32.mrb[0].mxu0
        %v6652 = vadd.f32 %v6532, %v6651
        %v6653 = vpop.f32.mrb[0].mxu0
        %6654 = vmatprep.mubr.bf16.mxu0 0
        %6655 = vmatmul.mubr.bf16.gmra.mrb[0].mxu0 %v6565
        %v6656 = vpop.f32.mrb[0].mxu0
        %v6657 = vadd.f32 %v6532, %v6656
        %v6658 = vpop.f32.mrb[0].mxu0
        %v6659 = vpop.f32.mrb[0].mxu0
        %v6660 = vadd.f32 %v6532, %v6659
        %v6661 = vpop.f32.mrb[0].mxu0
        %6662 = vmatprep.mubr.bf16.mxu0 0
        %6663 = vmatmul.mubr.bf16.gmra.mrb[0].mxu0 %v6568
        %v6664 = vpop.f32.mrb[0].mxu0
        %v6665 = vadd.f32 %v6532, %v6664
        %v6666 = vpop.f32.mrb[0].mxu0
        %v6667 = vpop.f32.mrb[0].mxu0
        %v6668 = vadd.f32 %v6532, %v6667
        %v6669 = vpop.f32.mrb[0].mxu0
        %6670 = vmatprep.mubr.bf16.mxu0 0
        %6671 = vmatmul.mubr.bf16.gmra.mrb[0].mxu0 %v6571
        %v6672 = vpop.f32.mrb[0].mxu0
        %v6673 = vadd.f32 %v6532, %v6672
        %v6674 = vpop.f32.mrb[0].mxu0
        %v6675 = vpop.f32.mrb[0].mxu0
        %v6676 = vadd.f32 %v6532, %v6675
        %v6677 = vpop.f32.mrb[0].mxu0
        %6678 = vmatprep.mubr.bf16.mxu0 0
        %6679 = vmatmul.mubr.bf16.gmra.mrb[0].mxu0 %v6574
        %v6680 = vpop.f32.mrb[0].mxu0
        %v6681 = vadd.f32 %v6532, %v6680
        %v6682 = vpop.f32.mrb[0].mxu0
        %v6683 = vpop.f32.mrb[0].mxu0
        %v6684 = vadd.f32 %v6532, %v6683
        %v6685 = vpop.f32.mrb[0].mxu0
        %6686 = vmatprep.mubr.bf16.mxu0 0
        %6687 = vmatmul.mubr.bf16.gmra.mrb[0].mxu0 %v6577
        %v6688 = vpop.f32.mrb[0].mxu0
        %v6689 = vadd.f32 %v6532, %v6688
        %v6690 = vpop.f32.mrb[0].mxu0
        %v6691 = vpop.f32.mrb[0].mxu0
        %v6692 = vadd.f32 %v6532, %v6691
        %v6693 = vpop.f32.mrb[0].mxu0
        %6694 = vmatprep.mubr.bf16.mxu0 0
        %6695 = vmatmul.mubr.bf16.gmra.mrb[0].mxu0 %v6580
        %v6696 = vpop.f32.mrb[0].mxu0
        %v6697 = vadd.f32 %v6532, %v6696
        %v6698 = vpop.f32.mrb[0].mxu0
        %v6699 = vpop.f32.mrb[0].mxu0
        %v6700 = vadd.f32 %v6532, %v6699
        %v6701 = vpop.f32.mrb[0].mxu0
        %6702 = vmatprep.mubr.bf16.mxu0 0
        %6703 = vmatmul.mubr.bf16.gmra.mrb[0].mxu0 %v6583
        %v6704 = vpop.f32.mrb[0].mxu0
        %v6705 = vadd.f32 %v6532, %v6704
        %v6706 = vpop.f32.mrb[0].mxu0
        %v6707 = vpop.f32.mrb[0].mxu0
        %v6708 = vadd.f32 %v6532, %v6707
        %v6709 = vpop.f32.mrb[0].mxu0
        %6710 = vmatprep.mubr.bf16.mxu0 0
        %6711 = vmatmul.mubr.bf16.gmra.mrb[0].mxu0 %v6586
        %v6712 = vpop.f32.mrb[0].mxu0
        %v6713 = vadd.f32 %v6532, %v6712
        %v6714 = vpop.f32.mrb[0].mxu0
        %v6715 = vpop.f32.mrb[0].mxu0
        %v6716 = vadd.f32 %v6532, %v6715
        %v6717 = vpop.f32.mrb[0].mxu0
        %6718 = vmatprep.mubr.bf16.mxu0 0
        %6719 = vmatmul.mubr.bf16.gmra.mrb[0].mxu0 %v6589
        %v6720 = vpop.f32.mrb[0].mxu0
        %v6721 = vadd.f32 %v6532, %v6720
        %v6722 = vpop.f32.mrb[0].mxu0
        %v6723 = vpop.f32.mrb[0].mxu0
        %v6724 = vadd.f32 %v6532, %v6723
        %v6725 = vpop.f32.mrb[0].mxu0
        %6726 = vmatprep.mubr.bf16.mxu0 0
        %6727 = vmatmul.mubr.bf16.gmra.mrb[0].mxu0 %v6592
        %v6728 = vpop.f32.mrb[0].mxu0
        %v6729 = vadd.f32 %v6532, %v6728
        %v6730 = vpop.f32.mrb[0].mxu0
        %v6731 = vpop.f32.mrb[0].mxu0
        %v6732 = vadd.f32 %v6532, %v6731
        %v6733 = vpop.f32.mrb[0].mxu0
        %6734 = vmatprep.mubr.bf16.mxu0 0
        %6735 = vmatmul.mubr.bf16.gmra.mrb[0].mxu0 %v6595
        %v6736 = vpop.f32.mrb[0].mxu0
        %v6737 = vadd.f32 %v6532, %v6736
        %v6738 = vpop.f32.mrb[0].mxu0
        %v6739 = vpop.f32.mrb[0].mxu0
        %v6740 = vadd.f32 %v6532, %v6739
        %v6741 = vpop.f32.mrb[0].mxu0
        %6742 = vmatprep.mubr.bf16.mxu0 0
        %6743 = vmatmul.mubr.bf16.gmra.mrb[0].mxu0 %v6598
        %v6744 = vpop.f32.mrb[0].mxu0
        %v6745 = vadd.f32 %v6532, %v6744
        %v6746 = vpop.f32.mrb[0].mxu0
        %v6747 = vpop.f32.mrb[0].mxu0
        %v6748 = vadd.f32 %v6532, %v6747
        %v6749 = vpop.f32.mrb[0].mxu0
        %6750 = vmatprep.mubr.bf16.mxu0 0
        %6751 = vmatmul.mubr.bf16.gmra.mrb[0].mxu0 %v6601
        %v6752 = vpop.f32.mrb[0].mxu0
        %v6753 = vadd.f32 %v6532, %v6752
        %v6754 = vpop.f32.mrb[0].mxu0
        %v6755 = vpop.f32.mrb[0].mxu0
        %v6756 = vadd.f32 %v6532, %v6755
        %v6757 = vpop.f32.mrb[0].mxu0
        %6758 = vmatprep.mubr.bf16.mxu0 0
        %6759 = vmatmul.mubr.bf16.gmra.mrb[0].mxu0 %v6604
        %v6760 = vpop.f32.mrb[0].mxu0
        %v6761 = vadd.f32 %v6532, %v6760
        %v6762 = vpop.f32.mrb[0].mxu0
        %v6763 = vpop.f32.mrb[0].mxu0
        %v6764 = vadd.f32 %v6532, %v6763
        %v6765 = vpop.f32.mrb[0].mxu0
        %6766 = vdwg.mxu0
        %v6767 = vmax.f32 %v6641, 0.0
        %v6768 = vmax.f32 %v6644, 0.0
        %v6769 = vmax.f32 %v6649, 0.0
        %v6770 = vmax.f32 %v6652, 0.0
        %v6771 = vmax.f32 %v6657, 0.0
        %v6772 = vmax.f32 %v6660, 0.0
        %v6773 = vmax.f32 %v6665, 0.0
        %v6774 = vmax.f32 %v6668, 0.0
        %v6775 = vmax.f32 %v6673, 0.0
        %v6776 = vmax.f32 %v6676, 0.0
        %v6777 = vmax.f32 %v6681, 0.0
        %v6778 = vmax.f32 %v6684, 0.0
        %v6779 = vmax.f32 %v6689, 0.0
        %v6780 = vmax.f32 %v6692, 0.0
        %v6781 = vmax.f32 %v6697, 0.0
        %v6782 = vmax.f32 %v6700, 0.0
        %v6783 = vmax.f32 %v6705, 0.0
        %v6784 = vmax.f32 %v6708, 0.0
        %v6785 = vmax.f32 %v6713, 0.0
        %v6786 = vmax.f32 %v6716, 0.0
        %v6787 = vmax.f32 %v6721, 0.0
        %v6788 = vmax.f32 %v6724, 0.0
        %v6789 = vmax.f32 %v6729, 0.0
        %v6790 = vmax.f32 %v6732, 0.0
        %v6791 = vmax.f32 %v6737, 0.0
        %v6792 = vmax.f32 %v6740, 0.0
        %v6793 = vmax.f32 %v6745, 0.0
        %v6794 = vmax.f32 %v6748, 0.0
        %v6795 = vmax.f32 %v6753, 0.0
        %v6796 = vmax.f32 %v6756, 0.0
        %v6797 = vmax.f32 %v6761, 0.0
        %v6798 = vmax.f32 %v6764, 0.0
        %v6799 = vpack.c.bf16 %v6768, %v6767
        %v6800 = vpack.c.bf16 %v6770, %v6769
        %v6801 = vpack.c.bf16 %v6772, %v6771
        %v6802 = vpack.c.bf16 %v6774, %v6773
        %v6803 = vpack.c.bf16 %v6776, %v6775
        %v6804 = vpack.c.bf16 %v6778, %v6777
        %v6805 = vpack.c.bf16 %v6780, %v6779
        %v6806 = vpack.c.bf16 %v6782, %v6781
        %v6807 = vpack.c.bf16 %v6784, %v6783
        %v6808 = vpack.c.bf16 %v6786, %v6785
        %v6809 = vpack.c.bf16 %v6788, %v6787
        %v6810 = vpack.c.bf16 %v6790, %v6789
        %v6811 = vpack.c.bf16 %v6792, %v6791
        %v6812 = vpack.c.bf16 %v6794, %v6793
        %v6813 = vpack.c.bf16 %v6796, %v6795
        %v6814 = vpack.c.bf16 %v6798, %v6797
        %v6815 = vld [vmem:[#allocation8] sm:$0xff]
        %v6816 = vld [vmem:[#allocation8 + $0x8] sm:$0xff]
        %v6817 = vld [vmem:[#allocation8 + $0x10] sm:$0xff]
        %v6818 = vld [vmem:[#allocation8 + $0x18] sm:$0xff]
        %v6819 = vld [vmem:[#allocation8 + $0x20] sm:$0xff]
        %v6820 = vld [vmem:[#allocation8 + $0x28] sm:$0xff]
        %v6821 = vld [vmem:[#allocation8 + $0x30] sm:$0xff]
        %v6822 = vld [vmem:[#allocation8 + $0x38] sm:$0xff]
        %v6823 = vld [vmem:[#allocation8 + $0x40] sm:$0xff]
        %v6824 = vld [vmem:[#allocation8 + $0x48] sm:$0xff]
        %v6825 = vld [vmem:[#allocation8 + $0x50] sm:$0xff]
        %v6826 = vld [vmem:[#allocation8 + $0x58] sm:$0xff]
        %v6827 = vld [vmem:[#allocation8 + $0x60] sm:$0xff]
        %v6828 = vld [vmem:[#allocation8 + $0x68] sm:$0xff]
        %v6829 = vld [vmem:[#allocation8 + $0x70] sm:$0xff]
        %v6830 = vld [vmem:[#allocation8 + $0x78] sm:$0xff]
        %v6831 = vld [vmem:[#allocation8 + $0x80] sm:$0xff]
        %v6832 = vld [vmem:[#allocation8 + $0x88] sm:$0xff]
        %v6833 = vld [vmem:[#allocation8 + $0x90] sm:$0xff]
        %v6834 = vld [vmem:[#allocation8 + $0x98] sm:$0xff]
        %v6835 = vld [vmem:[#allocation8 + $0xa0] sm:$0xff]
        %v6836 = vld [vmem:[#allocation8 + $0xa8] sm:$0xff]
        %v6837 = vld [vmem:[#allocation8 + $0xb0] sm:$0xff]
        %v6838 = vld [vmem:[#allocation8 + $0xb8] sm:$0xff]
        %v6839 = vld [vmem:[#allocation8 + $0xc0] sm:$0xff]
        %v6840 = vld [vmem:[#allocation8 + $0xc8] sm:$0xff]
        %v6841 = vld [vmem:[#allocation8 + $0xd0] sm:$0xff]
        %v6842 = vld [vmem:[#allocation8 + $0xd8] sm:$0xff]
        %v6843 = vld [vmem:[#allocation8 + $0xe0] sm:$0xff]
        %v6844 = vld [vmem:[#allocation8 + $0xe8] sm:$0xff]
        %v6845 = vld [vmem:[#allocation8 + $0xf0] sm:$0xff]
        %v6846 = vld [vmem:[#allocation8 + $0xf8] sm:$0xff]
        %v6847 = vld [vmem:[#allocation8 + $0x100] sm:$0xff]
        %v6848 = vld [vmem:[#allocation8 + $0x108] sm:$0xff]
        %v6849 = vld [vmem:[#allocation8 + $0x110] sm:$0xff]
        %v6850 = vld [vmem:[#allocation8 + $0x118] sm:$0xff]
        %v6851 = vld [vmem:[#allocation8 + $0x120] sm:$0xff]
        %v6852 = vld [vmem:[#allocation8 + $0x128] sm:$0xff]
        %v6853 = vld [vmem:[#allocation8 + $0x130] sm:$0xff]
        %v6854 = vld [vmem:[#allocation8 + $0x138] sm:$0xff]
        %v6855 = vld [vmem:[#allocation8 + $0x140] sm:$0xff]
        %v6856 = vld [vmem:[#allocation8 + $0x148] sm:$0xff]
        %v6857 = vld [vmem:[#allocation8 + $0x150] sm:$0xff]
        %v6858 = vld [vmem:[#allocation8 + $0x158] sm:$0xff]
        %v6859 = vld [vmem:[#allocation8 + $0x160] sm:$0xff]
        %v6860 = vld [vmem:[#allocation8 + $0x168] sm:$0xff]
        %v6861 = vld [vmem:[#allocation8 + $0x170] sm:$0xff]
        %v6862 = vld [vmem:[#allocation8 + $0x178] sm:$0xff]
        %v6863 = vld [vmem:[#allocation8 + $0x180] sm:$0xff]
        %v6864 = vld [vmem:[#allocation8 + $0x188] sm:$0xff]
        %v6865 = vld [vmem:[#allocation8 + $0x190] sm:$0xff]
        %v6866 = vld [vmem:[#allocation8 + $0x198] sm:$0xff]
        %v6867 = vld [vmem:[#allocation8 + $0x1a0] sm:$0xff]
        %v6868 = vld [vmem:[#allocation8 + $0x1a8] sm:$0xff]
        %v6869 = vld [vmem:[#allocation8 + $0x1b0] sm:$0xff]
        %v6870 = vld [vmem:[#allocation8 + $0x1b8] sm:$0xff]
        %v6871 = vld [vmem:[#allocation8 + $0x1c0] sm:$0xff]
        %v6872 = vld [vmem:[#allocation8 + $0x1c8] sm:$0xff]
        %v6873 = vld [vmem:[#allocation8 + $0x1d0] sm:$0xff]
        %v6874 = vld [vmem:[#allocation8 + $0x1d8] sm:$0xff]
        %v6875 = vld [vmem:[#allocation8 + $0x1e0] sm:$0xff]
        %v6876 = vld [vmem:[#allocation8 + $0x1e8] sm:$0xff]
        %v6877 = vld [vmem:[#allocation8 + $0x1f0] sm:$0xff]
        %v6878 = vld [vmem:[#allocation8 + $0x1f8] sm:$0xff]
        %v6943 = vunpack.c.l.b16 %v6815
        %v6944 = vunpack.c.h.b16 %v6815
        %v6945 = vunpack.c.l.b16 %v6816
        %v6946 = vunpack.c.h.b16 %v6816
        %v6947 = vunpack.c.l.b16 %v6817
        %v6948 = vunpack.c.h.b16 %v6817
        %v6949 = vunpack.c.l.b16 %v6818
        %v6950 = vunpack.c.h.b16 %v6818
        %v6951 = vunpack.c.l.b16 %v6819
        %v6952 = vunpack.c.h.b16 %v6819
        %v6953 = vunpack.c.l.b16 %v6820
        %v6954 = vunpack.c.h.b16 %v6820
        %v6955 = vunpack.c.l.b16 %v6821
        %v6956 = vunpack.c.h.b16 %v6821
        %v6957 = vunpack.c.l.b16 %v6822
        %v6958 = vunpack.c.h.b16 %v6822
        %v6959 = vunpack.c.l.b16 %v6823
        %v6960 = vunpack.c.h.b16 %v6823
        %v6961 = vunpack.c.l.b16 %v6824
        %v6962 = vunpack.c.h.b16 %v6824
        %v6963 = vunpack.c.l.b16 %v6825
        %v6964 = vunpack.c.h.b16 %v6825
        %v6965 = vunpack.c.l.b16 %v6826
        %v6966 = vunpack.c.h.b16 %v6826
        %v6967 = vunpack.c.l.b16 %v6827
        %v6968 = vunpack.c.h.b16 %v6827
        %v6969 = vunpack.c.l.b16 %v6828
        %v6970 = vunpack.c.h.b16 %v6828
        %v6971 = vunpack.c.l.b16 %v6829
        %v6972 = vunpack.c.h.b16 %v6829
        %v6973 = vunpack.c.l.b16 %v6830
        %v6974 = vunpack.c.h.b16 %v6830
        %v6975 = vunpack.c.l.b16 %v6831
        %v6976 = vunpack.c.h.b16 %v6831
        %v6977 = vunpack.c.l.b16 %v6832
        %v6978 = vunpack.c.h.b16 %v6832
        %v6979 = vunpack.c.l.b16 %v6833
        %v6980 = vunpack.c.h.b16 %v6833
        %v6981 = vunpack.c.l.b16 %v6834
        %v6982 = vunpack.c.h.b16 %v6834
        %v6983 = vunpack.c.l.b16 %v6835
        %v6984 = vunpack.c.h.b16 %v6835
        %v6985 = vunpack.c.l.b16 %v6836
        %v6986 = vunpack.c.h.b16 %v6836
        %v6987 = vunpack.c.l.b16 %v6837
        %v6988 = vunpack.c.h.b16 %v6837
        %v6989 = vunpack.c.l.b16 %v6838
        %v6990 = vunpack.c.h.b16 %v6838
        %v6991 = vunpack.c.l.b16 %v6839
        %v6992 = vunpack.c.h.b16 %v6839
        %v6993 = vunpack.c.l.b16 %v6840
        %v6994 = vunpack.c.h.b16 %v6840
        %v6995 = vunpack.c.l.b16 %v6841
        %v6996 = vunpack.c.h.b16 %v6841
        %v6997 = vunpack.c.l.b16 %v6842
        %v6998 = vunpack.c.h.b16 %v6842
        %v6999 = vunpack.c.l.b16 %v6843
        %v7000 = vunpack.c.h.b16 %v6843
        %v7001 = vunpack.c.l.b16 %v6844
        %v7002 = vunpack.c.h.b16 %v6844
        %v7003 = vunpack.c.l.b16 %v6845
        %v7004 = vunpack.c.h.b16 %v6845
        %v7005 = vunpack.c.l.b16 %v6846
        %v7006 = vunpack.c.h.b16 %v6846
        %v7007 = vunpack.c.l.b16 %v6847
        %v7008 = vunpack.c.h.b16 %v6847
        %v7009 = vunpack.c.l.b16 %v6848
        %v7010 = vunpack.c.h.b16 %v6848
        %v7011 = vunpack.c.l.b16 %v6849
        %v7012 = vunpack.c.h.b16 %v6849
        %v7013 = vunpack.c.l.b16 %v6850
        %v7014 = vunpack.c.h.b16 %v6850
        %v7015 = vunpack.c.l.b16 %v6851
        %v7016 = vunpack.c.h.b16 %v6851
        %v7017 = vunpack.c.l.b16 %v6852
        %v7018 = vunpack.c.h.b16 %v6852
        %v7019 = vunpack.c.l.b16 %v6853
        %v7020 = vunpack.c.h.b16 %v6853
        %v7021 = vunpack.c.l.b16 %v6854
        %v7022 = vunpack.c.h.b16 %v6854
        %v7023 = vunpack.c.l.b16 %v6855
        %v7024 = vunpack.c.h.b16 %v6855
        %v7025 = vunpack.c.l.b16 %v6856
        %v7026 = vunpack.c.h.b16 %v6856
        %v7027 = vunpack.c.l.b16 %v6857
        %v7028 = vunpack.c.h.b16 %v6857
        %v7029 = vunpack.c.l.b16 %v6858
        %v7030 = vunpack.c.h.b16 %v6858
        %v7031 = vunpack.c.l.b16 %v6859
        %v7032 = vunpack.c.h.b16 %v6859
        %v7033 = vunpack.c.l.b16 %v6860
        %v7034 = vunpack.c.h.b16 %v6860
        %v7035 = vunpack.c.l.b16 %v6861
        %v7036 = vunpack.c.h.b16 %v6861
        %v7037 = vunpack.c.l.b16 %v6862
        %v7038 = vunpack.c.h.b16 %v6862
        %v7039 = vunpack.c.l.b16 %v6863
        %v7040 = vunpack.c.h.b16 %v6863
        %v7041 = vunpack.c.l.b16 %v6864
        %v7042 = vunpack.c.h.b16 %v6864
        %v7043 = vunpack.c.l.b16 %v6865
        %v7044 = vunpack.c.h.b16 %v6865
        %v7045 = vunpack.c.l.b16 %v6866
        %v7046 = vunpack.c.h.b16 %v6866
        %v7047 = vunpack.c.l.b16 %v6867
        %v7048 = vunpack.c.h.b16 %v6867
        %v7049 = vunpack.c.l.b16 %v6868
        %v7050 = vunpack.c.h.b16 %v6868
        %v7051 = vunpack.c.l.b16 %v6869
        %v7052 = vunpack.c.h.b16 %v6869
        %v7053 = vunpack.c.l.b16 %v6870
        %v7054 = vunpack.c.h.b16 %v6870
        %v7055 = vunpack.c.l.b16 %v6871
        %v7056 = vunpack.c.h.b16 %v6871
        %v7057 = vunpack.c.l.b16 %v6872
        %v7058 = vunpack.c.h.b16 %v6872
        %v7059 = vunpack.c.l.b16 %v6873
        %v7060 = vunpack.c.h.b16 %v6873
        %v7061 = vunpack.c.l.b16 %v6874
        %v7062 = vunpack.c.h.b16 %v6874
        %v7063 = vunpack.c.l.b16 %v6875
        %v7064 = vunpack.c.h.b16 %v6875
        %v7065 = vunpack.c.l.b16 %v6876
        %v7066 = vunpack.c.h.b16 %v6876
        %v7067 = vunpack.c.l.b16 %v6877
        %v7068 = vunpack.c.h.b16 %v6877
        %v7069 = vunpack.c.l.b16 %v6878
        %v7070 = vunpack.c.h.b16 %v6878
        %v7071 = vpack.c.b16 %v6951, %v6943
        %v7072 = vpack.c.b16 %v6952, %v6944
        %v7073 = vpack.c.b16 %v6953, %v6945
        %v7074 = vpack.c.b16 %v6954, %v6946
        %v7075 = vpack.c.b16 %v6955, %v6947
        %v7076 = vpack.c.b16 %v6956, %v6948
        %v7077 = vpack.c.b16 %v6957, %v6949
        %v7078 = vpack.c.b16 %v6958, %v6950
        %v7079 = vpack.c.b16 %v6967, %v6959
        %v7080 = vpack.c.b16 %v6968, %v6960
        %v7081 = vpack.c.b16 %v6969, %v6961
        %v7082 = vpack.c.b16 %v6970, %v6962
        %v7083 = vpack.c.b16 %v6971, %v6963
        %v7084 = vpack.c.b16 %v6972, %v6964
        %v7085 = vpack.c.b16 %v6973, %v6965
        %v7086 = vpack.c.b16 %v6974, %v6966
        %v7087 = vpack.c.b16 %v6983, %v6975
        %v7088 = vpack.c.b16 %v6984, %v6976
        %v7089 = vpack.c.b16 %v6985, %v6977
        %v7090 = vpack.c.b16 %v6986, %v6978
        %v7091 = vpack.c.b16 %v6987, %v6979
        %v7092 = vpack.c.b16 %v6988, %v6980
        %v7093 = vpack.c.b16 %v6989, %v6981
        %v7094 = vpack.c.b16 %v6990, %v6982
        %v7095 = vpack.c.b16 %v6999, %v6991
        %v7096 = vpack.c.b16 %v7000, %v6992
        %v7097 = vpack.c.b16 %v7001, %v6993
        %v7098 = vpack.c.b16 %v7002, %v6994
        %v7099 = vpack.c.b16 %v7003, %v6995
        %v7100 = vpack.c.b16 %v7004, %v6996
        %v7101 = vpack.c.b16 %v7005, %v6997
        %v7102 = vpack.c.b16 %v7006, %v6998
        %v7103 = vpack.c.b16 %v7015, %v7007
        %v7104 = vpack.c.b16 %v7016, %v7008
        %v7105 = vpack.c.b16 %v7017, %v7009
        %v7106 = vpack.c.b16 %v7018, %v7010
        %v7107 = vpack.c.b16 %v7019, %v7011
        %v7108 = vpack.c.b16 %v7020, %v7012
        %v7109 = vpack.c.b16 %v7021, %v7013
        %v7110 = vpack.c.b16 %v7022, %v7014
        %v7111 = vpack.c.b16 %v7031, %v7023
        %v7112 = vpack.c.b16 %v7032, %v7024
        %v7113 = vpack.c.b16 %v7033, %v7025
        %v7114 = vpack.c.b16 %v7034, %v7026
        %v7115 = vpack.c.b16 %v7035, %v7027
        %v7116 = vpack.c.b16 %v7036, %v7028
        %v7117 = vpack.c.b16 %v7037, %v7029
        %v7118 = vpack.c.b16 %v7038, %v7030
        %v7119 = vpack.c.b16 %v7047, %v7039
        %v7120 = vpack.c.b16 %v7048, %v7040
        %v7121 = vpack.c.b16 %v7049, %v7041
        %v7122 = vpack.c.b16 %v7050, %v7042
        %v7123 = vpack.c.b16 %v7051, %v7043
        %v7124 = vpack.c.b16 %v7052, %v7044
        %v7125 = vpack.c.b16 %v7053, %v7045
        %v7126 = vpack.c.b16 %v7054, %v7046
        %v7127 = vpack.c.b16 %v7063, %v7055
        %v7128 = vpack.c.b16 %v7064, %v7056
        %v7129 = vpack.c.b16 %v7065, %v7057
        %v7130 = vpack.c.b16 %v7066, %v7058
        %v7131 = vpack.c.b16 %v7067, %v7059
        %v7132 = vpack.c.b16 %v7068, %v7060
        %v7133 = vpack.c.b16 %v7069, %v7061
        %v7134 = vpack.c.b16 %v7070, %v7062
        %7199 = vmatprep.subr.bf16.mxu0 %v7072
        %7200 = vmatpush1.bf16.msra.mxu0 %v7071
        %7201 = vmatprep.subr.bf16.mxu0 %v7080
        %7202 = vmatpush1.bf16.msra.mxu0 %v7079
        %7203 = vmatprep.subr.bf16.mxu0 %v7088
        %7204 = vmatpush1.bf16.msra.mxu0 %v7087
        %7205 = vmatprep.subr.bf16.mxu0 %v7096
        %7206 = vmatpush1.bf16.msra.mxu0 %v7095
        %7207 = vmatprep.subr.bf16.mxu0 %v7104
        %7208 = vmatpush1.bf16.msra.mxu0 %v7103
        %7209 = vmatprep.subr.bf16.mxu0 %v7112
        %7210 = vmatpush1.bf16.msra.mxu0 %v7111
        %7211 = vmatprep.subr.bf16.mxu0 %v7120
        %7212 = vmatpush1.bf16.msra.mxu0 %v7119
        %7213 = vmatprep.subr.bf16.mxu0 %v7128
        %7214 = vmatpush1.bf16.msra.mxu0 %v7127
        %7215 = vmatprep.subr.bf16.mxu0 0
        %7216 = vmatpush1.bf16.msra.mxu0 0
        %7217 = vmatprep.subr.bf16.mxu0 0
        %7218 = vmatpush1.bf16.msra.mxu0 0
        %7219 = vmatprep.subr.bf16.mxu0 0
        %7220 = vmatpush1.bf16.msra.mxu0 0
        %7221 = vmatprep.subr.bf16.mxu0 0
        %7222 = vmatpush1.bf16.msra.mxu0 0
        %7223 = vmatprep.subr.bf16.mxu0 0
        %7224 = vmatpush1.bf16.msra.mxu0 0
        %7225 = vmatprep.subr.bf16.mxu0 0
        %7226 = vmatpush1.bf16.msra.mxu0 0
        %7227 = vmatprep.subr.bf16.mxu0 0
        %7228 = vmatpush1.bf16.msra.mxu0 0
        %7229 = vmatprep.subr.bf16.mxu0 0
        %7230 = vmatpush1.bf16.msra.mxu0 0
        %7231 = vmatprep.mubr.bf16.mxu0 0
        %7232 = vmatmul.mubr.bf16.gmra.mrb[0].mxu0 %v6799
        %v7233 = vpop.f32.mrb[0].mxu0
        %v7234 = vadd.f32 0.0, %v7233
        %v7235 = vpop.f32.mrb[0].mxu0
        %v7236 = vadd.f32 0.0, %v7235
        %v7237 = vpop.f32.mrb[0].mxu0
        %v7238 = vadd.f32 0.0, %v7237
        %v7239 = vpop.f32.mrb[0].mxu0
        %v7240 = vadd.f32 0.0, %v7239
        %7241 = vmatprep.mubr.bf16.mxu0 0
        %7242 = vmatmul.mubr.bf16.gmra.mrb[0].mxu0 %v6800
        %v7243 = vpop.f32.mrb[0].mxu0
        %v7244 = vadd.f32 0.0, %v7243
        %v7245 = vpop.f32.mrb[0].mxu0
        %v7246 = vadd.f32 0.0, %v7245
        %v7247 = vpop.f32.mrb[0].mxu0
        %v7248 = vadd.f32 0.0, %v7247
        %v7249 = vpop.f32.mrb[0].mxu0
        %v7250 = vadd.f32 0.0, %v7249
        %7251 = vmatprep.mubr.bf16.mxu0 0
        %7252 = vmatmul.mubr.bf16.gmra.mrb[0].mxu0 %v6801
        %v7253 = vpop.f32.mrb[0].mxu0
        %v7254 = vadd.f32 0.0, %v7253
        %v7255 = vpop.f32.mrb[0].mxu0
        %v7256 = vadd.f32 0.0, %v7255
        %v7257 = vpop.f32.mrb[0].mxu0
        %v7258 = vadd.f32 0.0, %v7257
        %v7259 = vpop.f32.mrb[0].mxu0
        %v7260 = vadd.f32 0.0, %v7259
        %7261 = vmatprep.mubr.bf16.mxu0 0
        %7262 = vmatmul.mubr.bf16.gmra.mrb[0].mxu0 %v6802
        %v7263 = vpop.f32.mrb[0].mxu0
        %v7264 = vadd.f32 0.0, %v7263
        %v7265 = vpop.f32.mrb[0].mxu0
        %v7266 = vadd.f32 0.0, %v7265
        %v7267 = vpop.f32.mrb[0].mxu0
        %v7268 = vadd.f32 0.0, %v7267
        %v7269 = vpop.f32.mrb[0].mxu0
        %v7270 = vadd.f32 0.0, %v7269
        %7271 = vmatprep.mubr.bf16.mxu0 0
        %7272 = vmatmul.mubr.bf16.gmra.mrb[0].mxu0 %v6803
        %v7273 = vpop.f32.mrb[0].mxu0
        %v7274 = vadd.f32 0.0, %v7273
        %v7275 = vpop.f32.mrb[0].mxu0
        %v7276 = vadd.f32 0.0, %v7275
        %v7277 = vpop.f32.mrb[0].mxu0
        %v7278 = vadd.f32 0.0, %v7277
        %v7279 = vpop.f32.mrb[0].mxu0
        %v7280 = vadd.f32 0.0, %v7279
        %7281 = vmatprep.mubr.bf16.mxu0 0
        %7282 = vmatmul.mubr.bf16.gmra.mrb[0].mxu0 %v6804
        %v7283 = vpop.f32.mrb[0].mxu0
        %v7284 = vadd.f32 0.0, %v7283
        %v7285 = vpop.f32.mrb[0].mxu0
        %v7286 = vadd.f32 0.0, %v7285
        %v7287 = vpop.f32.mrb[0].mxu0
        %v7288 = vadd.f32 0.0, %v7287
        %v7289 = vpop.f32.mrb[0].mxu0
        %v7290 = vadd.f32 0.0, %v7289
        %7291 = vmatprep.mubr.bf16.mxu0 0
        %7292 = vmatmul.mubr.bf16.gmra.mrb[0].mxu0 %v6805
        %v7293 = vpop.f32.mrb[0].mxu0
        %v7294 = vadd.f32 0.0, %v7293
        %v7295 = vpop.f32.mrb[0].mxu0
        %v7296 = vadd.f32 0.0, %v7295
        %v7297 = vpop.f32.mrb[0].mxu0
        %v7298 = vadd.f32 0.0, %v7297
        %v7299 = vpop.f32.mrb[0].mxu0
        %v7300 = vadd.f32 0.0, %v7299
        %7301 = vmatprep.mubr.bf16.mxu0 0
        %7302 = vmatmul.mubr.bf16.gmra.mrb[0].mxu0 %v6806
        %v7303 = vpop.f32.mrb[0].mxu0
        %v7304 = vadd.f32 0.0, %v7303
        %v7305 = vpop.f32.mrb[0].mxu0
        %v7306 = vadd.f32 0.0, %v7305
        %v7307 = vpop.f32.mrb[0].mxu0
        %v7308 = vadd.f32 0.0, %v7307
        %v7309 = vpop.f32.mrb[0].mxu0
        %v7310 = vadd.f32 0.0, %v7309
        %7311 = vmatprep.mubr.bf16.mxu0 0
        %7312 = vmatmul.mubr.bf16.gmra.mrb[0].mxu0 %v6807
        %v7313 = vpop.f32.mrb[0].mxu0
        %v7314 = vadd.f32 0.0, %v7313
        %v7315 = vpop.f32.mrb[0].mxu0
        %v7316 = vadd.f32 0.0, %v7315
        %v7317 = vpop.f32.mrb[0].mxu0
        %v7318 = vadd.f32 0.0, %v7317
        %v7319 = vpop.f32.mrb[0].mxu0
        %v7320 = vadd.f32 0.0, %v7319
        %7321 = vmatprep.mubr.bf16.mxu0 0
        %7322 = vmatmul.mubr.bf16.gmra.mrb[0].mxu0 %v6808
        %v7323 = vpop.f32.mrb[0].mxu0
        %v7324 = vadd.f32 0.0, %v7323
        %v7325 = vpop.f32.mrb[0].mxu0
        %v7326 = vadd.f32 0.0, %v7325
        %v7327 = vpop.f32.mrb[0].mxu0
        %v7328 = vadd.f32 0.0, %v7327
        %v7329 = vpop.f32.mrb[0].mxu0
        %v7330 = vadd.f32 0.0, %v7329
        %7331 = vmatprep.mubr.bf16.mxu0 0
        %7332 = vmatmul.mubr.bf16.gmra.mrb[0].mxu0 %v6809
        %v7333 = vpop.f32.mrb[0].mxu0
        %v7334 = vadd.f32 0.0, %v7333
        %v7335 = vpop.f32.mrb[0].mxu0
        %v7336 = vadd.f32 0.0, %v7335
        %v7337 = vpop.f32.mrb[0].mxu0
        %v7338 = vadd.f32 0.0, %v7337
        %v7339 = vpop.f32.mrb[0].mxu0
        %v7340 = vadd.f32 0.0, %v7339
        %7341 = vmatprep.mubr.bf16.mxu0 0
        %7342 = vmatmul.mubr.bf16.gmra.mrb[0].mxu0 %v6810
        %v7343 = vpop.f32.mrb[0].mxu0
        %v7344 = vadd.f32 0.0, %v7343
        %v7345 = vpop.f32.mrb[0].mxu0
        %v7346 = vadd.f32 0.0, %v7345
        %v7347 = vpop.f32.mrb[0].mxu0
        %v7348 = vadd.f32 0.0, %v7347
        %v7349 = vpop.f32.mrb[0].mxu0
        %v7350 = vadd.f32 0.0, %v7349
        %7351 = vmatprep.mubr.bf16.mxu0 0
        %7352 = vmatmul.mubr.bf16.gmra.mrb[0].mxu0 %v6811
        %v7353 = vpop.f32.mrb[0].mxu0
        %v7354 = vadd.f32 0.0, %v7353
        %v7355 = vpop.f32.mrb[0].mxu0
        %v7356 = vadd.f32 0.0, %v7355
        %v7357 = vpop.f32.mrb[0].mxu0
        %v7358 = vadd.f32 0.0, %v7357
        %v7359 = vpop.f32.mrb[0].mxu0
        %v7360 = vadd.f32 0.0, %v7359
        %7361 = vmatprep.mubr.bf16.mxu0 0
        %7362 = vmatmul.mubr.bf16.gmra.mrb[0].mxu0 %v6812
        %v7363 = vpop.f32.mrb[0].mxu0
        %v7364 = vadd.f32 0.0, %v7363
        %v7365 = vpop.f32.mrb[0].mxu0
        %v7366 = vadd.f32 0.0, %v7365
        %v7367 = vpop.f32.mrb[0].mxu0
        %v7368 = vadd.f32 0.0, %v7367
        %v7369 = vpop.f32.mrb[0].mxu0
        %v7370 = vadd.f32 0.0, %v7369
        %7371 = vmatprep.mubr.bf16.mxu0 0
        %7372 = vmatmul.mubr.bf16.gmra.mrb[0].mxu0 %v6813
        %v7373 = vpop.f32.mrb[0].mxu0
        %v7374 = vadd.f32 0.0, %v7373
        %v7375 = vpop.f32.mrb[0].mxu0
        %v7376 = vadd.f32 0.0, %v7375
        %v7377 = vpop.f32.mrb[0].mxu0
        %v7378 = vadd.f32 0.0, %v7377
        %v7379 = vpop.f32.mrb[0].mxu0
        %v7380 = vadd.f32 0.0, %v7379
        %7381 = vmatprep.mubr.bf16.mxu0 0
        %7382 = vmatmul.mubr.bf16.gmra.mrb[0].mxu0 %v6814
        %v7383 = vpop.f32.mrb[0].mxu0
        %v7384 = vadd.f32 0.0, %v7383
        %v7385 = vpop.f32.mrb[0].mxu0
        %v7386 = vadd.f32 0.0, %v7385
        %v7387 = vpop.f32.mrb[0].mxu0
        %v7388 = vadd.f32 0.0, %v7387
        %v7389 = vpop.f32.mrb[0].mxu0
        %v7390 = vadd.f32 0.0, %v7389
        %7391 = vdwg.mxu0
        %7392 = vmatprep.subr.bf16.mxu0 %v7074
        %7393 = vmatpush1.bf16.msra.mxu0 %v7073
        %7394 = vmatprep.subr.bf16.mxu0 %v7082
        %7395 = vmatpush1.bf16.msra.mxu0 %v7081
        %7396 = vmatprep.subr.bf16.mxu0 %v7090
        %7397 = vmatpush1.bf16.msra.mxu0 %v7089
        %7398 = vmatprep.subr.bf16.mxu0 %v7098
        %7399 = vmatpush1.bf16.msra.mxu0 %v7097
        %7400 = vmatprep.subr.bf16.mxu0 %v7106
        %7401 = vmatpush1.bf16.msra.mxu0 %v7105
        %7402 = vmatprep.subr.bf16.mxu0 %v7114
        %7403 = vmatpush1.bf16.msra.mxu0 %v7113
        %7404 = vmatprep.subr.bf16.mxu0 %v7122
        %7405 = vmatpush1.bf16.msra.mxu0 %v7121
        %7406 = vmatprep.subr.bf16.mxu0 %v7130
        %7407 = vmatpush1.bf16.msra.mxu0 %v7129
        %7408 = vmatprep.subr.bf16.mxu0 0
        %7409 = vmatpush1.bf16.msra.mxu0 0
        %7410 = vmatprep.subr.bf16.mxu0 0
        %7411 = vmatpush1.bf16.msra.mxu0 0
        %7412 = vmatprep.subr.bf16.mxu0 0
        %7413 = vmatpush1.bf16.msra.mxu0 0
        %7414 = vmatprep.subr.bf16.mxu0 0
        %7415 = vmatpush1.bf16.msra.mxu0 0
        %7416 = vmatprep.subr.bf16.mxu0 0
        %7417 = vmatpush1.bf16.msra.mxu0 0
        %7418 = vmatprep.subr.bf16.mxu0 0
        %7419 = vmatpush1.bf16.msra.mxu0 0
        %7420 = vmatprep.subr.bf16.mxu0 0
        %7421 = vmatpush1.bf16.msra.mxu0 0
        %7422 = vmatprep.subr.bf16.mxu0 0
        %7423 = vmatpush1.bf16.msra.mxu0 0
        %7424 = vmatprep.mubr.bf16.mxu0 0
        %7425 = vmatmul.mubr.bf16.gmra.mrb[0].mxu0 %v6799
        %v7426 = vpop.f32.mrb[0].mxu0
        %v7427 = vadd.f32 0.0, %v7426
        %v7428 = vpop.f32.mrb[0].mxu0
        %v7429 = vadd.f32 0.0, %v7428
        %v7430 = vpop.f32.mrb[0].mxu0
        %v7431 = vadd.f32 0.0, %v7430
        %v7432 = vpop.f32.mrb[0].mxu0
        %v7433 = vadd.f32 0.0, %v7432
        %7434 = vmatprep.mubr.bf16.mxu0 0
        %7435 = vmatmul.mubr.bf16.gmra.mrb[0].mxu0 %v6800
        %v7436 = vpop.f32.mrb[0].mxu0
        %v7437 = vadd.f32 0.0, %v7436
        %v7438 = vpop.f32.mrb[0].mxu0
        %v7439 = vadd.f32 0.0, %v7438
        %v7440 = vpop.f32.mrb[0].mxu0
        %v7441 = vadd.f32 0.0, %v7440
        %v7442 = vpop.f32.mrb[0].mxu0
        %v7443 = vadd.f32 0.0, %v7442
        %7444 = vmatprep.mubr.bf16.mxu0 0
        %7445 = vmatmul.mubr.bf16.gmra.mrb[0].mxu0 %v6801
        %v7446 = vpop.f32.mrb[0].mxu0
        %v7447 = vadd.f32 0.0, %v7446
        %v7448 = vpop.f32.mrb[0].mxu0
        %v7449 = vadd.f32 0.0, %v7448
        %v7450 = vpop.f32.mrb[0].mxu0
        %v7451 = vadd.f32 0.0, %v7450
        %v7452 = vpop.f32.mrb[0].mxu0
        %v7453 = vadd.f32 0.0, %v7452
        %7454 = vmatprep.mubr.bf16.mxu0 0
        %7455 = vmatmul.mubr.bf16.gmra.mrb[0].mxu0 %v6802
        %v7456 = vpop.f32.mrb[0].mxu0
        %v7457 = vadd.f32 0.0, %v7456
        %v7458 = vpop.f32.mrb[0].mxu0
        %v7459 = vadd.f32 0.0, %v7458
        %v7460 = vpop.f32.mrb[0].mxu0
        %v7461 = vadd.f32 0.0, %v7460
        %v7462 = vpop.f32.mrb[0].mxu0
        %v7463 = vadd.f32 0.0, %v7462
        %7464 = vmatprep.mubr.bf16.mxu0 0
        %7465 = vmatmul.mubr.bf16.gmra.mrb[0].mxu0 %v6803
        %v7466 = vpop.f32.mrb[0].mxu0
        %v7467 = vadd.f32 0.0, %v7466
        %v7468 = vpop.f32.mrb[0].mxu0
        %v7469 = vadd.f32 0.0, %v7468
        %v7470 = vpop.f32.mrb[0].mxu0
        %v7471 = vadd.f32 0.0, %v7470
        %v7472 = vpop.f32.mrb[0].mxu0
        %v7473 = vadd.f32 0.0, %v7472
        %7474 = vmatprep.mubr.bf16.mxu0 0
        %7475 = vmatmul.mubr.bf16.gmra.mrb[0].mxu0 %v6804
        %v7476 = vpop.f32.mrb[0].mxu0
        %v7477 = vadd.f32 0.0, %v7476
        %v7478 = vpop.f32.mrb[0].mxu0
        %v7479 = vadd.f32 0.0, %v7478
        %v7480 = vpop.f32.mrb[0].mxu0
        %v7481 = vadd.f32 0.0, %v7480
        %v7482 = vpop.f32.mrb[0].mxu0
        %v7483 = vadd.f32 0.0, %v7482
        %7484 = vmatprep.mubr.bf16.mxu0 0
        %7485 = vmatmul.mubr.bf16.gmra.mrb[0].mxu0 %v6805
        %v7486 = vpop.f32.mrb[0].mxu0
        %v7487 = vadd.f32 0.0, %v7486
        %v7488 = vpop.f32.mrb[0].mxu0
        %v7489 = vadd.f32 0.0, %v7488
        %v7490 = vpop.f32.mrb[0].mxu0
        %v7491 = vadd.f32 0.0, %v7490
        %v7492 = vpop.f32.mrb[0].mxu0
        %v7493 = vadd.f32 0.0, %v7492
        %7494 = vmatprep.mubr.bf16.mxu0 0
        %7495 = vmatmul.mubr.bf16.gmra.mrb[0].mxu0 %v6806
        %v7496 = vpop.f32.mrb[0].mxu0
        %v7497 = vadd.f32 0.0, %v7496
        %v7498 = vpop.f32.mrb[0].mxu0
        %v7499 = vadd.f32 0.0, %v7498
        %v7500 = vpop.f32.mrb[0].mxu0
        %v7501 = vadd.f32 0.0, %v7500
        %v7502 = vpop.f32.mrb[0].mxu0
        %v7503 = vadd.f32 0.0, %v7502
        %7504 = vmatprep.mubr.bf16.mxu0 0
        %7505 = vmatmul.mubr.bf16.gmra.mrb[0].mxu0 %v6807
        %v7506 = vpop.f32.mrb[0].mxu0
        %v7507 = vadd.f32 0.0, %v7506
        %v7508 = vpop.f32.mrb[0].mxu0
        %v7509 = vadd.f32 0.0, %v7508
        %v7510 = vpop.f32.mrb[0].mxu0
        %v7511 = vadd.f32 0.0, %v7510
        %v7512 = vpop.f32.mrb[0].mxu0
        %v7513 = vadd.f32 0.0, %v7512
        %7514 = vmatprep.mubr.bf16.mxu0 0
        %7515 = vmatmul.mubr.bf16.gmra.mrb[0].mxu0 %v6808
        %v7516 = vpop.f32.mrb[0].mxu0
        %v7517 = vadd.f32 0.0, %v7516
        %v7518 = vpop.f32.mrb[0].mxu0
        %v7519 = vadd.f32 0.0, %v7518
        %v7520 = vpop.f32.mrb[0].mxu0
        %v7521 = vadd.f32 0.0, %v7520
        %v7522 = vpop.f32.mrb[0].mxu0
        %v7523 = vadd.f32 0.0, %v7522
        %7524 = vmatprep.mubr.bf16.mxu0 0
        %7525 = vmatmul.mubr.bf16.gmra.mrb[0].mxu0 %v6809
        %v7526 = vpop.f32.mrb[0].mxu0
        %v7527 = vadd.f32 0.0, %v7526
        %v7528 = vpop.f32.mrb[0].mxu0
        %v7529 = vadd.f32 0.0, %v7528
        %v7530 = vpop.f32.mrb[0].mxu0
        %v7531 = vadd.f32 0.0, %v7530
        %v7532 = vpop.f32.mrb[0].mxu0
        %v7533 = vadd.f32 0.0, %v7532
        %7534 = vmatprep.mubr.bf16.mxu0 0
        %7535 = vmatmul.mubr.bf16.gmra.mrb[0].mxu0 %v6810
        %v7536 = vpop.f32.mrb[0].mxu0
        %v7537 = vadd.f32 0.0, %v7536
        %v7538 = vpop.f32.mrb[0].mxu0
        %v7539 = vadd.f32 0.0, %v7538
        %v7540 = vpop.f32.mrb[0].mxu0
        %v7541 = vadd.f32 0.0, %v7540
        %v7542 = vpop.f32.mrb[0].mxu0
        %v7543 = vadd.f32 0.0, %v7542
        %7544 = vmatprep.mubr.bf16.mxu0 0
        %7545 = vmatmul.mubr.bf16.gmra.mrb[0].mxu0 %v6811
        %v7546 = vpop.f32.mrb[0].mxu0
        %v7547 = vadd.f32 0.0, %v7546
        %v7548 = vpop.f32.mrb[0].mxu0
        %v7549 = vadd.f32 0.0, %v7548
        %v7550 = vpop.f32.mrb[0].mxu0
        %v7551 = vadd.f32 0.0, %v7550
        %v7552 = vpop.f32.mrb[0].mxu0
        %v7553 = vadd.f32 0.0, %v7552
        %7554 = vmatprep.mubr.bf16.mxu0 0
        %7555 = vmatmul.mubr.bf16.gmra.mrb[0].mxu0 %v6812
        %v7556 = vpop.f32.mrb[0].mxu0
        %v7557 = vadd.f32 0.0, %v7556
        %v7558 = vpop.f32.mrb[0].mxu0
        %v7559 = vadd.f32 0.0, %v7558
        %v7560 = vpop.f32.mrb[0].mxu0
        %v7561 = vadd.f32 0.0, %v7560
        %v7562 = vpop.f32.mrb[0].mxu0
        %v7563 = vadd.f32 0.0, %v7562
        %7564 = vmatprep.mubr.bf16.mxu0 0
        %7565 = vmatmul.mubr.bf16.gmra.mrb[0].mxu0 %v6813
        %v7566 = vpop.f32.mrb[0].mxu0
        %v7567 = vadd.f32 0.0, %v7566
        %v7568 = vpop.f32.mrb[0].mxu0
        %v7569 = vadd.f32 0.0, %v7568
        %v7570 = vpop.f32.mrb[0].mxu0
        %v7571 = vadd.f32 0.0, %v7570
        %v7572 = vpop.f32.mrb[0].mxu0
        %v7573 = vadd.f32 0.0, %v7572
        %7574 = vmatprep.mubr.bf16.mxu0 0
        %7575 = vmatmul.mubr.bf16.gmra.mrb[0].mxu0 %v6814
        %v7576 = vpop.f32.mrb[0].mxu0
        %v7577 = vadd.f32 0.0, %v7576
        %v7578 = vpop.f32.mrb[0].mxu0
        %v7579 = vadd.f32 0.0, %v7578
        %v7580 = vpop.f32.mrb[0].mxu0
        %v7581 = vadd.f32 0.0, %v7580
        %v7582 = vpop.f32.mrb[0].mxu0
        %v7583 = vadd.f32 0.0, %v7582
        %7584 = vdwg.mxu0
        %7585 = vmatprep.subr.bf16.mxu0 %v7076
        %7586 = vmatpush1.bf16.msra.mxu0 %v7075
        %7587 = vmatprep.subr.bf16.mxu0 %v7084
        %7588 = vmatpush1.bf16.msra.mxu0 %v7083
        %7589 = vmatprep.subr.bf16.mxu0 %v7092
        %7590 = vmatpush1.bf16.msra.mxu0 %v7091
        %7591 = vmatprep.subr.bf16.mxu0 %v7100
        %7592 = vmatpush1.bf16.msra.mxu0 %v7099
        %7593 = vmatprep.subr.bf16.mxu0 %v7108
        %7594 = vmatpush1.bf16.msra.mxu0 %v7107
        %7595 = vmatprep.subr.bf16.mxu0 %v7116
        %7596 = vmatpush1.bf16.msra.mxu0 %v7115
        %7597 = vmatprep.subr.bf16.mxu0 %v7124
        %7598 = vmatpush1.bf16.msra.mxu0 %v7123
        %7599 = vmatprep.subr.bf16.mxu0 %v7132
        %7600 = vmatpush1.bf16.msra.mxu0 %v7131
        %7601 = vmatprep.subr.bf16.mxu0 0
        %7602 = vmatpush1.bf16.msra.mxu0 0
        %7603 = vmatprep.subr.bf16.mxu0 0
        %7604 = vmatpush1.bf16.msra.mxu0 0
        %7605 = vmatprep.subr.bf16.mxu0 0
        %7606 = vmatpush1.bf16.msra.mxu0 0
        %7607 = vmatprep.subr.bf16.mxu0 0
        %7608 = vmatpush1.bf16.msra.mxu0 0
        %7609 = vmatprep.subr.bf16.mxu0 0
        %7610 = vmatpush1.bf16.msra.mxu0 0
        %7611 = vmatprep.subr.bf16.mxu0 0
        %7612 = vmatpush1.bf16.msra.mxu0 0
        %7613 = vmatprep.subr.bf16.mxu0 0
        %7614 = vmatpush1.bf16.msra.mxu0 0
        %7615 = vmatprep.subr.bf16.mxu0 0
        %7616 = vmatpush1.bf16.msra.mxu0 0
        %7617 = vmatprep.mubr.bf16.mxu0 0
        %7618 = vmatmul.mubr.bf16.gmra.mrb[0].mxu0 %v6799
        %v7619 = vpop.f32.mrb[0].mxu0
        %v7620 = vadd.f32 0.0, %v7619
        %v7621 = vpop.f32.mrb[0].mxu0
        %v7622 = vadd.f32 0.0, %v7621
        %v7623 = vpop.f32.mrb[0].mxu0
        %v7624 = vadd.f32 0.0, %v7623
        %v7625 = vpop.f32.mrb[0].mxu0
        %v7626 = vadd.f32 0.0, %v7625
        %7627 = vmatprep.mubr.bf16.mxu0 0
        %7628 = vmatmul.mubr.bf16.gmra.mrb[0].mxu0 %v6800
        %v7629 = vpop.f32.mrb[0].mxu0
        %v7630 = vadd.f32 0.0, %v7629
        %v7631 = vpop.f32.mrb[0].mxu0
        %v7632 = vadd.f32 0.0, %v7631
        %v7633 = vpop.f32.mrb[0].mxu0
        %v7634 = vadd.f32 0.0, %v7633
        %v7635 = vpop.f32.mrb[0].mxu0
        %v7636 = vadd.f32 0.0, %v7635
        %7637 = vmatprep.mubr.bf16.mxu0 0
        %7638 = vmatmul.mubr.bf16.gmra.mrb[0].mxu0 %v6801
        %v7639 = vpop.f32.mrb[0].mxu0
        %v7640 = vadd.f32 0.0, %v7639
        %v7641 = vpop.f32.mrb[0].mxu0
        %v7642 = vadd.f32 0.0, %v7641
        %v7643 = vpop.f32.mrb[0].mxu0
        %v7644 = vadd.f32 0.0, %v7643
        %v7645 = vpop.f32.mrb[0].mxu0
        %v7646 = vadd.f32 0.0, %v7645
        %7647 = vmatprep.mubr.bf16.mxu0 0
        %7648 = vmatmul.mubr.bf16.gmra.mrb[0].mxu0 %v6802
        %v7649 = vpop.f32.mrb[0].mxu0
        %v7650 = vadd.f32 0.0, %v7649
        %v7651 = vpop.f32.mrb[0].mxu0
        %v7652 = vadd.f32 0.0, %v7651
        %v7653 = vpop.f32.mrb[0].mxu0
        %v7654 = vadd.f32 0.0, %v7653
        %v7655 = vpop.f32.mrb[0].mxu0
        %v7656 = vadd.f32 0.0, %v7655
        %7657 = vmatprep.mubr.bf16.mxu0 0
        %7658 = vmatmul.mubr.bf16.gmra.mrb[0].mxu0 %v6803
        %v7659 = vpop.f32.mrb[0].mxu0
        %v7660 = vadd.f32 0.0, %v7659
        %v7661 = vpop.f32.mrb[0].mxu0
        %v7662 = vadd.f32 0.0, %v7661
        %v7663 = vpop.f32.mrb[0].mxu0
        %v7664 = vadd.f32 0.0, %v7663
        %v7665 = vpop.f32.mrb[0].mxu0
        %v7666 = vadd.f32 0.0, %v7665
        %7667 = vmatprep.mubr.bf16.mxu0 0
        %7668 = vmatmul.mubr.bf16.gmra.mrb[0].mxu0 %v6804
        %v7669 = vpop.f32.mrb[0].mxu0
        %v7670 = vadd.f32 0.0, %v7669
        %v7671 = vpop.f32.mrb[0].mxu0
        %v7672 = vadd.f32 0.0, %v7671
        %v7673 = vpop.f32.mrb[0].mxu0
        %v7674 = vadd.f32 0.0, %v7673
        %v7675 = vpop.f32.mrb[0].mxu0
        %v7676 = vadd.f32 0.0, %v7675
        %7677 = vmatprep.mubr.bf16.mxu0 0
        %7678 = vmatmul.mubr.bf16.gmra.mrb[0].mxu0 %v6805
        %v7679 = vpop.f32.mrb[0].mxu0
        %v7680 = vadd.f32 0.0, %v7679
        %v7681 = vpop.f32.mrb[0].mxu0
        %v7682 = vadd.f32 0.0, %v7681
        %v7683 = vpop.f32.mrb[0].mxu0
        %v7684 = vadd.f32 0.0, %v7683
        %v7685 = vpop.f32.mrb[0].mxu0
        %v7686 = vadd.f32 0.0, %v7685
        %7687 = vmatprep.mubr.bf16.mxu0 0
        %7688 = vmatmul.mubr.bf16.gmra.mrb[0].mxu0 %v6806
        %v7689 = vpop.f32.mrb[0].mxu0
        %v7690 = vadd.f32 0.0, %v7689
        %v7691 = vpop.f32.mrb[0].mxu0
        %v7692 = vadd.f32 0.0, %v7691
        %v7693 = vpop.f32.mrb[0].mxu0
        %v7694 = vadd.f32 0.0, %v7693
        %v7695 = vpop.f32.mrb[0].mxu0
        %v7696 = vadd.f32 0.0, %v7695
        %7697 = vmatprep.mubr.bf16.mxu0 0
        %7698 = vmatmul.mubr.bf16.gmra.mrb[0].mxu0 %v6807
        %v7699 = vpop.f32.mrb[0].mxu0
        %v7700 = vadd.f32 0.0, %v7699
        %v7701 = vpop.f32.mrb[0].mxu0
        %v7702 = vadd.f32 0.0, %v7701
        %v7703 = vpop.f32.mrb[0].mxu0
        %v7704 = vadd.f32 0.0, %v7703
        %v7705 = vpop.f32.mrb[0].mxu0
        %v7706 = vadd.f32 0.0, %v7705
        %7707 = vmatprep.mubr.bf16.mxu0 0
        %7708 = vmatmul.mubr.bf16.gmra.mrb[0].mxu0 %v6808
        %v7709 = vpop.f32.mrb[0].mxu0
        %v7710 = vadd.f32 0.0, %v7709
        %v7711 = vpop.f32.mrb[0].mxu0
        %v7712 = vadd.f32 0.0, %v7711
        %v7713 = vpop.f32.mrb[0].mxu0
        %v7714 = vadd.f32 0.0, %v7713
        %v7715 = vpop.f32.mrb[0].mxu0
        %v7716 = vadd.f32 0.0, %v7715
        %7717 = vmatprep.mubr.bf16.mxu0 0
        %7718 = vmatmul.mubr.bf16.gmra.mrb[0].mxu0 %v6809
        %v7719 = vpop.f32.mrb[0].mxu0
        %v7720 = vadd.f32 0.0, %v7719
        %v7721 = vpop.f32.mrb[0].mxu0
        %v7722 = vadd.f32 0.0, %v7721
        %v7723 = vpop.f32.mrb[0].mxu0
        %v7724 = vadd.f32 0.0, %v7723
        %v7725 = vpop.f32.mrb[0].mxu0
        %v7726 = vadd.f32 0.0, %v7725
        %7727 = vmatprep.mubr.bf16.mxu0 0
        %7728 = vmatmul.mubr.bf16.gmra.mrb[0].mxu0 %v6810
        %v7729 = vpop.f32.mrb[0].mxu0
        %v7730 = vadd.f32 0.0, %v7729
        %v7731 = vpop.f32.mrb[0].mxu0
        %v7732 = vadd.f32 0.0, %v7731
        %v7733 = vpop.f32.mrb[0].mxu0
        %v7734 = vadd.f32 0.0, %v7733
        %v7735 = vpop.f32.mrb[0].mxu0
        %v7736 = vadd.f32 0.0, %v7735
        %7737 = vmatprep.mubr.bf16.mxu0 0
        %7738 = vmatmul.mubr.bf16.gmra.mrb[0].mxu0 %v6811
        %v7739 = vpop.f32.mrb[0].mxu0
        %v7740 = vadd.f32 0.0, %v7739
        %v7741 = vpop.f32.mrb[0].mxu0
        %v7742 = vadd.f32 0.0, %v7741
        %v7743 = vpop.f32.mrb[0].mxu0
        %v7744 = vadd.f32 0.0, %v7743
        %v7745 = vpop.f32.mrb[0].mxu0
        %v7746 = vadd.f32 0.0, %v7745
        %7747 = vmatprep.mubr.bf16.mxu0 0
        %7748 = vmatmul.mubr.bf16.gmra.mrb[0].mxu0 %v6812
        %v7749 = vpop.f32.mrb[0].mxu0
        %v7750 = vadd.f32 0.0, %v7749
        %v7751 = vpop.f32.mrb[0].mxu0
        %v7752 = vadd.f32 0.0, %v7751
        %v7753 = vpop.f32.mrb[0].mxu0
        %v7754 = vadd.f32 0.0, %v7753
        %v7755 = vpop.f32.mrb[0].mxu0
        %v7756 = vadd.f32 0.0, %v7755
        %7757 = vmatprep.mubr.bf16.mxu0 0
        %7758 = vmatmul.mubr.bf16.gmra.mrb[0].mxu0 %v6813
        %v7759 = vpop.f32.mrb[0].mxu0
        %v7760 = vadd.f32 0.0, %v7759
        %v7761 = vpop.f32.mrb[0].mxu0
        %v7762 = vadd.f32 0.0, %v7761
        %v7763 = vpop.f32.mrb[0].mxu0
        %v7764 = vadd.f32 0.0, %v7763
        %v7765 = vpop.f32.mrb[0].mxu0
        %v7766 = vadd.f32 0.0, %v7765
        %7767 = vmatprep.mubr.bf16.mxu0 0
        %7768 = vmatmul.mubr.bf16.gmra.mrb[0].mxu0 %v6814
        %v7769 = vpop.f32.mrb[0].mxu0
        %v7770 = vadd.f32 0.0, %v7769
        %v7771 = vpop.f32.mrb[0].mxu0
        %v7772 = vadd.f32 0.0, %v7771
        %v7773 = vpop.f32.mrb[0].mxu0
        %v7774 = vadd.f32 0.0, %v7773
        %v7775 = vpop.f32.mrb[0].mxu0
        %v7776 = vadd.f32 0.0, %v7775
        %7777 = vdwg.mxu0
        %7778 = vmatprep.subr.bf16.mxu0 %v7078
        %7779 = vmatpush1.bf16.msra.mxu0 %v7077
        %7780 = vmatprep.subr.bf16.mxu0 %v7086
        %7781 = vmatpush1.bf16.msra.mxu0 %v7085
        %7782 = vmatprep.subr.bf16.mxu0 %v7094
        %7783 = vmatpush1.bf16.msra.mxu0 %v7093
        %7784 = vmatprep.subr.bf16.mxu0 %v7102
        %7785 = vmatpush1.bf16.msra.mxu0 %v7101
        %7786 = vmatprep.subr.bf16.mxu0 %v7110
        %7787 = vmatpush1.bf16.msra.mxu0 %v7109
        %7788 = vmatprep.subr.bf16.mxu0 %v7118
        %7789 = vmatpush1.bf16.msra.mxu0 %v7117
        %7790 = vmatprep.subr.bf16.mxu0 %v7126
        %7791 = vmatpush1.bf16.msra.mxu0 %v7125
        %7792 = vmatprep.subr.bf16.mxu0 %v7134
        %7793 = vmatpush1.bf16.msra.mxu0 %v7133
        %7794 = vmatprep.subr.bf16.mxu0 0
        %7795 = vmatpush1.bf16.msra.mxu0 0
        %7796 = vmatprep.subr.bf16.mxu0 0
        %7797 = vmatpush1.bf16.msra.mxu0 0
        %7798 = vmatprep.subr.bf16.mxu0 0
        %7799 = vmatpush1.bf16.msra.mxu0 0
        %7800 = vmatprep.subr.bf16.mxu0 0
        %7801 = vmatpush1.bf16.msra.mxu0 0
        %7802 = vmatprep.subr.bf16.mxu0 0
        %7803 = vmatpush1.bf16.msra.mxu0 0
        %7804 = vmatprep.subr.bf16.mxu0 0
        %7805 = vmatpush1.bf16.msra.mxu0 0
        %7806 = vmatprep.subr.bf16.mxu0 0
        %7807 = vmatpush1.bf16.msra.mxu0 0
        %7808 = vmatprep.subr.bf16.mxu0 0
        %7809 = vmatpush1.bf16.msra.mxu0 0
        %7810 = vmatprep.mubr.bf16.mxu0 0
        %7811 = vmatmul.mubr.bf16.gmra.mrb[0].mxu0 %v6799
        %v7812 = vpop.f32.mrb[0].mxu0
        %v7813 = vadd.f32 0.0, %v7812
        %v7814 = vpop.f32.mrb[0].mxu0
        %v7815 = vadd.f32 0.0, %v7814
        %v7816 = vpop.f32.mrb[0].mxu0
        %v7817 = vadd.f32 0.0, %v7816
        %v7818 = vpop.f32.mrb[0].mxu0
        %v7819 = vadd.f32 0.0, %v7818
        %7820 = vmatprep.mubr.bf16.mxu0 0
        %7821 = vmatmul.mubr.bf16.gmra.mrb[0].mxu0 %v6800
        %v7822 = vpop.f32.mrb[0].mxu0
        %v7823 = vadd.f32 0.0, %v7822
        %v7824 = vpop.f32.mrb[0].mxu0
        %v7825 = vadd.f32 0.0, %v7824
        %v7826 = vpop.f32.mrb[0].mxu0
        %v7827 = vadd.f32 0.0, %v7826
        %v7828 = vpop.f32.mrb[0].mxu0
        %v7829 = vadd.f32 0.0, %v7828
        %7830 = vmatprep.mubr.bf16.mxu0 0
        %7831 = vmatmul.mubr.bf16.gmra.mrb[0].mxu0 %v6801
        %v7832 = vpop.f32.mrb[0].mxu0
        %v7833 = vadd.f32 0.0, %v7832
        %v7834 = vpop.f32.mrb[0].mxu0
        %v7835 = vadd.f32 0.0, %v7834
        %v7836 = vpop.f32.mrb[0].mxu0
        %v7837 = vadd.f32 0.0, %v7836
        %v7838 = vpop.f32.mrb[0].mxu0
        %v7839 = vadd.f32 0.0, %v7838
        %7840 = vmatprep.mubr.bf16.mxu0 0
        %7841 = vmatmul.mubr.bf16.gmra.mrb[0].mxu0 %v6802
        %v7842 = vpop.f32.mrb[0].mxu0
        %v7843 = vadd.f32 0.0, %v7842
        %v7844 = vpop.f32.mrb[0].mxu0
        %v7845 = vadd.f32 0.0, %v7844
        %v7846 = vpop.f32.mrb[0].mxu0
        %v7847 = vadd.f32 0.0, %v7846
        %v7848 = vpop.f32.mrb[0].mxu0
        %v7849 = vadd.f32 0.0, %v7848
        %7850 = vmatprep.mubr.bf16.mxu0 0
        %7851 = vmatmul.mubr.bf16.gmra.mrb[0].mxu0 %v6803
        %v7852 = vpop.f32.mrb[0].mxu0
        %v7853 = vadd.f32 0.0, %v7852
        %v7854 = vpop.f32.mrb[0].mxu0
        %v7855 = vadd.f32 0.0, %v7854
        %v7856 = vpop.f32.mrb[0].mxu0
        %v7857 = vadd.f32 0.0, %v7856
        %v7858 = vpop.f32.mrb[0].mxu0
        %v7859 = vadd.f32 0.0, %v7858
        %7860 = vmatprep.mubr.bf16.mxu0 0
        %7861 = vmatmul.mubr.bf16.gmra.mrb[0].mxu0 %v6804
        %v7862 = vpop.f32.mrb[0].mxu0
        %v7863 = vadd.f32 0.0, %v7862
        %v7864 = vpop.f32.mrb[0].mxu0
        %v7865 = vadd.f32 0.0, %v7864
        %v7866 = vpop.f32.mrb[0].mxu0
        %v7867 = vadd.f32 0.0, %v7866
        %v7868 = vpop.f32.mrb[0].mxu0
        %v7869 = vadd.f32 0.0, %v7868
        %7870 = vmatprep.mubr.bf16.mxu0 0
        %7871 = vmatmul.mubr.bf16.gmra.mrb[0].mxu0 %v6805
        %v7872 = vpop.f32.mrb[0].mxu0
        %v7873 = vadd.f32 0.0, %v7872
        %v7874 = vpop.f32.mrb[0].mxu0
        %v7875 = vadd.f32 0.0, %v7874
        %v7876 = vpop.f32.mrb[0].mxu0
        %v7877 = vadd.f32 0.0, %v7876
        %v7878 = vpop.f32.mrb[0].mxu0
        %v7879 = vadd.f32 0.0, %v7878
        %7880 = vmatprep.mubr.bf16.mxu0 0
        %7881 = vmatmul.mubr.bf16.gmra.mrb[0].mxu0 %v6806
        %v7882 = vpop.f32.mrb[0].mxu0
        %v7883 = vadd.f32 0.0, %v7882
        %v7884 = vpop.f32.mrb[0].mxu0
        %v7885 = vadd.f32 0.0, %v7884
        %v7886 = vpop.f32.mrb[0].mxu0
        %v7887 = vadd.f32 0.0, %v7886
        %v7888 = vpop.f32.mrb[0].mxu0
        %v7889 = vadd.f32 0.0, %v7888
        %7890 = vmatprep.mubr.bf16.mxu0 0
        %7891 = vmatmul.mubr.bf16.gmra.mrb[0].mxu0 %v6807
        %v7892 = vpop.f32.mrb[0].mxu0
        %v7893 = vadd.f32 0.0, %v7892
        %v7894 = vpop.f32.mrb[0].mxu0
        %v7895 = vadd.f32 0.0, %v7894
        %v7896 = vpop.f32.mrb[0].mxu0
        %v7897 = vadd.f32 0.0, %v7896
        %v7898 = vpop.f32.mrb[0].mxu0
        %v7899 = vadd.f32 0.0, %v7898
        %7900 = vmatprep.mubr.bf16.mxu0 0
        %7901 = vmatmul.mubr.bf16.gmra.mrb[0].mxu0 %v6808
        %v7902 = vpop.f32.mrb[0].mxu0
        %v7903 = vadd.f32 0.0, %v7902
        %v7904 = vpop.f32.mrb[0].mxu0
        %v7905 = vadd.f32 0.0, %v7904
        %v7906 = vpop.f32.mrb[0].mxu0
        %v7907 = vadd.f32 0.0, %v7906
        %v7908 = vpop.f32.mrb[0].mxu0
        %v7909 = vadd.f32 0.0, %v7908
        %7910 = vmatprep.mubr.bf16.mxu0 0
        %7911 = vmatmul.mubr.bf16.gmra.mrb[0].mxu0 %v6809
        %v7912 = vpop.f32.mrb[0].mxu0
        %v7913 = vadd.f32 0.0, %v7912
        %v7914 = vpop.f32.mrb[0].mxu0
        %v7915 = vadd.f32 0.0, %v7914
        %v7916 = vpop.f32.mrb[0].mxu0
        %v7917 = vadd.f32 0.0, %v7916
        %v7918 = vpop.f32.mrb[0].mxu0
        %v7919 = vadd.f32 0.0, %v7918
        %7920 = vmatprep.mubr.bf16.mxu0 0
        %7921 = vmatmul.mubr.bf16.gmra.mrb[0].mxu0 %v6810
        %v7922 = vpop.f32.mrb[0].mxu0
        %v7923 = vadd.f32 0.0, %v7922
        %v7924 = vpop.f32.mrb[0].mxu0
        %v7925 = vadd.f32 0.0, %v7924
        %v7926 = vpop.f32.mrb[0].mxu0
        %v7927 = vadd.f32 0.0, %v7926
        %v7928 = vpop.f32.mrb[0].mxu0
        %v7929 = vadd.f32 0.0, %v7928
        %7930 = vmatprep.mubr.bf16.mxu0 0
        %7931 = vmatmul.mubr.bf16.gmra.mrb[0].mxu0 %v6811
        %v7932 = vpop.f32.mrb[0].mxu0
        %v7933 = vadd.f32 0.0, %v7932
        %v7934 = vpop.f32.mrb[0].mxu0
        %v7935 = vadd.f32 0.0, %v7934
        %v7936 = vpop.f32.mrb[0].mxu0
        %v7937 = vadd.f32 0.0, %v7936
        %v7938 = vpop.f32.mrb[0].mxu0
        %v7939 = vadd.f32 0.0, %v7938
        %7940 = vmatprep.mubr.bf16.mxu0 0
        %7941 = vmatmul.mubr.bf16.gmra.mrb[0].mxu0 %v6812
        %v7942 = vpop.f32.mrb[0].mxu0
        %v7943 = vadd.f32 0.0, %v7942
        %v7944 = vpop.f32.mrb[0].mxu0
        %v7945 = vadd.f32 0.0, %v7944
        %v7946 = vpop.f32.mrb[0].mxu0
        %v7947 = vadd.f32 0.0, %v7946
        %v7948 = vpop.f32.mrb[0].mxu0
        %v7949 = vadd.f32 0.0, %v7948
        %7950 = vmatprep.mubr.bf16.mxu0 0
        %7951 = vmatmul.mubr.bf16.gmra.mrb[0].mxu0 %v6813
        %v7952 = vpop.f32.mrb[0].mxu0
        %v7953 = vadd.f32 0.0, %v7952
        %v7954 = vpop.f32.mrb[0].mxu0
        %v7955 = vadd.f32 0.0, %v7954
        %v7956 = vpop.f32.mrb[0].mxu0
        %v7957 = vadd.f32 0.0, %v7956
        %v7958 = vpop.f32.mrb[0].mxu0
        %v7959 = vadd.f32 0.0, %v7958
        %7960 = vmatprep.mubr.bf16.mxu0 0
        %7961 = vmatmul.mubr.bf16.gmra.mrb[0].mxu0 %v6814
        %v7962 = vpop.f32.mrb[0].mxu0
        %v7963 = vadd.f32 0.0, %v7962
        %v7964 = vpop.f32.mrb[0].mxu0
        %v7965 = vadd.f32 0.0, %v7964
        %v7966 = vpop.f32.mrb[0].mxu0
        %v7967 = vadd.f32 0.0, %v7966
        %v7968 = vpop.f32.mrb[0].mxu0
        %v7969 = vadd.f32 0.0, %v7968
        %7970 = vdwg.mxu0
        %v7971 = vmax.f32 %v7234, %v7238
        %v7972 = vmax.f32 %v7971, %v7244
        %v7973 = vmax.f32 %v7972, %v7248
        %v7974 = vmax.f32 %v7973, %v7254
        %v7975 = vmax.f32 %v7974, %v7258
        %v7976 = vmax.f32 %v7975, %v7264
        %v7977 = vmax.f32 %v7976, %v7268
        %v7978 = vmax.f32 %v7977, %v7274
        %v7979 = vmax.f32 %v7978, %v7278
        %v7980 = vmax.f32 %v7979, %v7284
        %v7981 = vmax.f32 %v7980, %v7288
        %v7982 = vmax.f32 %v7981, %v7294
        %v7983 = vmax.f32 %v7982, %v7298
        %v7984 = vmax.f32 %v7983, %v7304
        %v7985 = vmax.f32 %v7984, %v7308
        %v7986 = vrot.slane %v7985, 4
        %v7987 = vmax.f32 %v7985, %v7986
        %v7988 = vrot.slane %v7987, 2
        %v7989 = vmax.f32 %v7987, %v7988
        %v7990 = vrot.slane %v7989, 1
        %v7991 = vmax.f32 %v7989, %v7990
        %v7992 = vmax.f32 %v7236, %v7240
        %v7993 = vmax.f32 %v7992, %v7246
        %v7994 = vmax.f32 %v7993, %v7250
        %v7995 = vmax.f32 %v7994, %v7256
        %v7996 = vmax.f32 %v7995, %v7260
        %v7997 = vmax.f32 %v7996, %v7266
        %v7998 = vmax.f32 %v7997, %v7270
        %v7999 = vmax.f32 %v7998, %v7276
        %v8000 = vmax.f32 %v7999, %v7280
        %v8001 = vmax.f32 %v8000, %v7286
        %v8002 = vmax.f32 %v8001, %v7290
        %v8003 = vmax.f32 %v8002, %v7296
        %v8004 = vmax.f32 %v8003, %v7300
        %v8005 = vmax.f32 %v8004, %v7306
        %v8006 = vmax.f32 %v8005, %v7310
        %v8007 = vrot.slane %v8006, 4
        %v8008 = vmax.f32 %v8006, %v8007
        %v8009 = vrot.slane %v8008, 2
        %v8010 = vmax.f32 %v8008, %v8009
        %v8011 = vrot.slane %v8010, 1
        %v8012 = vmax.f32 %v8010, %v8011
        %v8013 = vmax.f32 %v7427, %v7431
        %v8014 = vmax.f32 %v8013, %v7437
        %v8015 = vmax.f32 %v8014, %v7441
        %v8016 = vmax.f32 %v8015, %v7447
        %v8017 = vmax.f32 %v8016, %v7451
        %v8018 = vmax.f32 %v8017, %v7457
        %v8019 = vmax.f32 %v8018, %v7461
        %v8020 = vmax.f32 %v8019, %v7467
        %v8021 = vmax.f32 %v8020, %v7471
        %v8022 = vmax.f32 %v8021, %v7477
        %v8023 = vmax.f32 %v8022, %v7481
        %v8024 = vmax.f32 %v8023, %v7487
        %v8025 = vmax.f32 %v8024, %v7491
        %v8026 = vmax.f32 %v8025, %v7497
        %v8027 = vmax.f32 %v8026, %v7501
        %v8028 = vrot.slane %v8027, 4
        %v8029 = vmax.f32 %v8027, %v8028
        %v8030 = vrot.slane %v8029, 2
        %v8031 = vmax.f32 %v8029, %v8030
        %v8032 = vrot.slane %v8031, 1
        %v8033 = vmax.f32 %v8031, %v8032
        %v8034 = vmax.f32 %v7429, %v7433
        %v8035 = vmax.f32 %v8034, %v7439
        %v8036 = vmax.f32 %v8035, %v7443
        %v8037 = vmax.f32 %v8036, %v7449
        %v8038 = vmax.f32 %v8037, %v7453
        %v8039 = vmax.f32 %v8038, %v7459
        %v8040 = vmax.f32 %v8039, %v7463
        %v8041 = vmax.f32 %v8040, %v7469
        %v8042 = vmax.f32 %v8041, %v7473
        %v8043 = vmax.f32 %v8042, %v7479
        %v8044 = vmax.f32 %v8043, %v7483
        %v8045 = vmax.f32 %v8044, %v7489
        %v8046 = vmax.f32 %v8045, %v7493
        %v8047 = vmax.f32 %v8046, %v7499
        %v8048 = vmax.f32 %v8047, %v7503
        %v8049 = vrot.slane %v8048, 4
        %v8050 = vmax.f32 %v8048, %v8049
        %v8051 = vrot.slane %v8050, 2
        %v8052 = vmax.f32 %v8050, %v8051
        %v8053 = vrot.slane %v8052, 1
        %v8054 = vmax.f32 %v8052, %v8053
        %v8055 = vmax.f32 %v7620, %v7624
        %v8056 = vmax.f32 %v8055, %v7630
        %v8057 = vmax.f32 %v8056, %v7634
        %v8058 = vmax.f32 %v8057, %v7640
        %v8059 = vmax.f32 %v8058, %v7644
        %v8060 = vmax.f32 %v8059, %v7650
        %v8061 = vmax.f32 %v8060, %v7654
        %v8062 = vmax.f32 %v8061, %v7660
        %v8063 = vmax.f32 %v8062, %v7664
        %v8064 = vmax.f32 %v8063, %v7670
        %v8065 = vmax.f32 %v8064, %v7674
        %v8066 = vmax.f32 %v8065, %v7680
        %v8067 = vmax.f32 %v8066, %v7684
        %v8068 = vmax.f32 %v8067, %v7690
        %v8069 = vmax.f32 %v8068, %v7694
        %v8070 = vrot.slane %v8069, 4
        %v8071 = vmax.f32 %v8069, %v8070
        %v8072 = vrot.slane %v8071, 2
        %v8073 = vmax.f32 %v8071, %v8072
        %v8074 = vrot.slane %v8073, 1
        %v8075 = vmax.f32 %v8073, %v8074
        %v8076 = vmax.f32 %v7622, %v7626
        %v8077 = vmax.f32 %v8076, %v7632
        %v8078 = vmax.f32 %v8077, %v7636
        %v8079 = vmax.f32 %v8078, %v7642
        %v8080 = vmax.f32 %v8079, %v7646
        %v8081 = vmax.f32 %v8080, %v7652
        %v8082 = vmax.f32 %v8081, %v7656
        %v8083 = vmax.f32 %v8082, %v7662
        %v8084 = vmax.f32 %v8083, %v7666
        %v8085 = vmax.f32 %v8084, %v7672
        %v8086 = vmax.f32 %v8085, %v7676
        %v8087 = vmax.f32 %v8086, %v7682
        %v8088 = vmax.f32 %v8087, %v7686
        %v8089 = vmax.f32 %v8088, %v7692
        %v8090 = vmax.f32 %v8089, %v7696
        %v8091 = vrot.slane %v8090, 4
        %v8092 = vmax.f32 %v8090, %v8091
        %v8093 = vrot.slane %v8092, 2
        %v8094 = vmax.f32 %v8092, %v8093
        %v8095 = vrot.slane %v8094, 1
        %v8096 = vmax.f32 %v8094, %v8095
        %v8097 = vmax.f32 %v7813, %v7817
        %v8098 = vmax.f32 %v8097, %v7823
        %v8099 = vmax.f32 %v8098, %v7827
        %v8100 = vmax.f32 %v8099, %v7833
        %v8101 = vmax.f32 %v8100, %v7837
        %v8102 = vmax.f32 %v8101, %v7843
        %v8103 = vmax.f32 %v8102, %v7847
        %v8104 = vmax.f32 %v8103, %v7853
        %v8105 = vmax.f32 %v8104, %v7857
        %v8106 = vmax.f32 %v8105, %v7863
        %v8107 = vmax.f32 %v8106, %v7867
        %v8108 = vmax.f32 %v8107, %v7873
        %v8109 = vmax.f32 %v8108, %v7877
        %v8110 = vmax.f32 %v8109, %v7883
        %v8111 = vmax.f32 %v8110, %v7887
        %v8112 = vrot.slane %v8111, 4
        %v8113 = vmax.f32 %v8111, %v8112
        %v8114 = vrot.slane %v8113, 2
        %v8115 = vmax.f32 %v8113, %v8114
        %v8116 = vrot.slane %v8115, 1
        %v8117 = vmax.f32 %v8115, %v8116
        %v8118 = vmax.f32 %v7815, %v7819
        %v8119 = vmax.f32 %v8118, %v7825
        %v8120 = vmax.f32 %v8119, %v7829
        %v8121 = vmax.f32 %v8120, %v7835
        %v8122 = vmax.f32 %v8121, %v7839
        %v8123 = vmax.f32 %v8122, %v7845
        %v8124 = vmax.f32 %v8123, %v7849
        %v8125 = vmax.f32 %v8124, %v7855
        %v8126 = vmax.f32 %v8125, %v7859
        %v8127 = vmax.f32 %v8126, %v7865
        %v8128 = vmax.f32 %v8127, %v7869
        %v8129 = vmax.f32 %v8128, %v7875
        %v8130 = vmax.f32 %v8129, %v7879
        %v8131 = vmax.f32 %v8130, %v7885
        %v8132 = vmax.f32 %v8131, %v7889
        %v8133 = vrot.slane %v8132, 4
        %v8134 = vmax.f32 %v8132, %v8133
        %v8135 = vrot.slane %v8134, 2
        %v8136 = vmax.f32 %v8134, %v8135
        %v8137 = vrot.slane %v8136, 1
        %v8138 = vmax.f32 %v8136, %v8137
        %v8139 = vmax.f32 %v7314, %v7318
        %v8140 = vmax.f32 %v8139, %v7324
        %v8141 = vmax.f32 %v8140, %v7328
        %v8142 = vmax.f32 %v8141, %v7334
        %v8143 = vmax.f32 %v8142, %v7338
        %v8144 = vmax.f32 %v8143, %v7344
        %v8145 = vmax.f32 %v8144, %v7348
        %v8146 = vmax.f32 %v8145, %v7354
        %v8147 = vmax.f32 %v8146, %v7358
        %v8148 = vmax.f32 %v8147, %v7364
        %v8149 = vmax.f32 %v8148, %v7368
        %v8150 = vmax.f32 %v8149, %v7374
        %v8151 = vmax.f32 %v8150, %v7378
        %v8152 = vmax.f32 %v8151, %v7384
        %v8153 = vmax.f32 %v8152, %v7388
        %v8154 = vrot.slane %v8153, 4
        %v8155 = vmax.f32 %v8153, %v8154
        %v8156 = vrot.slane %v8155, 2
        %v8157 = vmax.f32 %v8155, %v8156
        %v8158 = vrot.slane %v8157, 1
        %v8159 = vmax.f32 %v8157, %v8158
        %v8160 = vmax.f32 %v7316, %v7320
        %v8161 = vmax.f32 %v8160, %v7326
        %v8162 = vmax.f32 %v8161, %v7330
        %v8163 = vmax.f32 %v8162, %v7336
        %v8164 = vmax.f32 %v8163, %v7340
        %v8165 = vmax.f32 %v8164, %v7346
        %v8166 = vmax.f32 %v8165, %v7350
        %v8167 = vmax.f32 %v8166, %v7356
        %v8168 = vmax.f32 %v8167, %v7360
        %v8169 = vmax.f32 %v8168, %v7366
        %v8170 = vmax.f32 %v8169, %v7370
        %v8171 = vmax.f32 %v8170, %v7376
        %v8172 = vmax.f32 %v8171, %v7380
        %v8173 = vmax.f32 %v8172, %v7386
        %v8174 = vmax.f32 %v8173, %v7390
        %v8175 = vrot.slane %v8174, 4
        %v8176 = vmax.f32 %v8174, %v8175
        %v8177 = vrot.slane %v8176, 2
        %v8178 = vmax.f32 %v8176, %v8177
        %v8179 = vrot.slane %v8178, 1
        %v8180 = vmax.f32 %v8178, %v8179
        %v8181 = vmax.f32 %v7507, %v7511
        %v8182 = vmax.f32 %v8181, %v7517
        %v8183 = vmax.f32 %v8182, %v7521
        %v8184 = vmax.f32 %v8183, %v7527
        %v8185 = vmax.f32 %v8184, %v7531
        %v8186 = vmax.f32 %v8185, %v7537
        %v8187 = vmax.f32 %v8186, %v7541
        %v8188 = vmax.f32 %v8187, %v7547
        %v8189 = vmax.f32 %v8188, %v7551
        %v8190 = vmax.f32 %v8189, %v7557
        %v8191 = vmax.f32 %v8190, %v7561
        %v8192 = vmax.f32 %v8191, %v7567
        %v8193 = vmax.f32 %v8192, %v7571
        %v8194 = vmax.f32 %v8193, %v7577
        %v8195 = vmax.f32 %v8194, %v7581
        %v8196 = vrot.slane %v8195, 4
        %v8197 = vmax.f32 %v8195, %v8196
        %v8198 = vrot.slane %v8197, 2
        %v8199 = vmax.f32 %v8197, %v8198
        %v8200 = vrot.slane %v8199, 1
        %v8201 = vmax.f32 %v8199, %v8200
        %v8202 = vmax.f32 %v7509, %v7513
        %v8203 = vmax.f32 %v8202, %v7519
        %v8204 = vmax.f32 %v8203, %v7523
        %v8205 = vmax.f32 %v8204, %v7529
        %v8206 = vmax.f32 %v8205, %v7533
        %v8207 = vmax.f32 %v8206, %v7539
        %v8208 = vmax.f32 %v8207, %v7543
        %v8209 = vmax.f32 %v8208, %v7549
        %v8210 = vmax.f32 %v8209, %v7553
        %v8211 = vmax.f32 %v8210, %v7559
        %v8212 = vmax.f32 %v8211, %v7563
        %v8213 = vmax.f32 %v8212, %v7569
        %v8214 = vmax.f32 %v8213, %v7573
        %v8215 = vmax.f32 %v8214, %v7579
        %v8216 = vmax.f32 %v8215, %v7583
        %v8217 = vrot.slane %v8216, 4
        %v8218 = vmax.f32 %v8216, %v8217
        %v8219 = vrot.slane %v8218, 2
        %v8220 = vmax.f32 %v8218, %v8219
        %v8221 = vrot.slane %v8220, 1
        %v8222 = vmax.f32 %v8220, %v8221
        %v8223 = vmax.f32 %v7700, %v7704
        %v8224 = vmax.f32 %v8223, %v7710
        %v8225 = vmax.f32 %v8224, %v7714
        %v8226 = vmax.f32 %v8225, %v7720
        %v8227 = vmax.f32 %v8226, %v7724
        %v8228 = vmax.f32 %v8227, %v7730
        %v8229 = vmax.f32 %v8228, %v7734
        %v8230 = vmax.f32 %v8229, %v7740
        %v8231 = vmax.f32 %v8230, %v7744
        %v8232 = vmax.f32 %v8231, %v7750
        %v8233 = vmax.f32 %v8232, %v7754
        %v8234 = vmax.f32 %v8233, %v7760
        %v8235 = vmax.f32 %v8234, %v7764
        %v8236 = vmax.f32 %v8235, %v7770
        %v8237 = vmax.f32 %v8236, %v7774
        %v8238 = vrot.slane %v8237, 4
        %v8239 = vmax.f32 %v8237, %v8238
        %v8240 = vrot.slane %v8239, 2
        %v8241 = vmax.f32 %v8239, %v8240
        %v8242 = vrot.slane %v8241, 1
        %v8243 = vmax.f32 %v8241, %v8242
        %v8244 = vmax.f32 %v7702, %v7706
        %v8245 = vmax.f32 %v8244, %v7712
        %v8246 = vmax.f32 %v8245, %v7716
        %v8247 = vmax.f32 %v8246, %v7722
        %v8248 = vmax.f32 %v8247, %v7726
        %v8249 = vmax.f32 %v8248, %v7732
        %v8250 = vmax.f32 %v8249, %v7736
        %v8251 = vmax.f32 %v8250, %v7742
        %v8252 = vmax.f32 %v8251, %v7746
        %v8253 = vmax.f32 %v8252, %v7752
        %v8254 = vmax.f32 %v8253, %v7756
        %v8255 = vmax.f32 %v8254, %v7762
        %v8256 = vmax.f32 %v8255, %v7766
        %v8257 = vmax.f32 %v8256, %v7772
        %v8258 = vmax.f32 %v8257, %v7776
        %v8259 = vrot.slane %v8258, 4
        %v8260 = vmax.f32 %v8258, %v8259
        %v8261 = vrot.slane %v8260, 2
        %v8262 = vmax.f32 %v8260, %v8261
        %v8263 = vrot.slane %v8262, 1
        %v8264 = vmax.f32 %v8262, %v8263
        %v8265 = vmax.f32 %v7893, %v7897
        %v8266 = vmax.f32 %v8265, %v7903
        %v8267 = vmax.f32 %v8266, %v7907
        %v8268 = vmax.f32 %v8267, %v7913
        %v8269 = vmax.f32 %v8268, %v7917
        %v8270 = vmax.f32 %v8269, %v7923
        %v8271 = vmax.f32 %v8270, %v7927
        %v8272 = vmax.f32 %v8271, %v7933
        %v8273 = vmax.f32 %v8272, %v7937
        %v8274 = vmax.f32 %v8273, %v7943
        %v8275 = vmax.f32 %v8274, %v7947
        %v8276 = vmax.f32 %v8275, %v7953
        %v8277 = vmax.f32 %v8276, %v7957
        %v8278 = vmax.f32 %v8277, %v7963
        %v8279 = vmax.f32 %v8278, %v7967
        %v8280 = vrot.slane %v8279, 4
        %v8281 = vmax.f32 %v8279, %v8280
        %v8282 = vrot.slane %v8281, 2
        %v8283 = vmax.f32 %v8281, %v8282
        %v8284 = vrot.slane %v8283, 1
        %v8285 = vmax.f32 %v8283, %v8284
        %v8286 = vmax.f32 %v7895, %v7899
        %v8287 = vmax.f32 %v8286, %v7905
        %v8288 = vmax.f32 %v8287, %v7909
        %v8289 = vmax.f32 %v8288, %v7915
        %v8290 = vmax.f32 %v8289, %v7919
        %v8291 = vmax.f32 %v8290, %v7925
        %v8292 = vmax.f32 %v8291, %v7929
        %v8293 = vmax.f32 %v8292, %v7935
        %v8294 = vmax.f32 %v8293, %v7939
        %v8295 = vmax.f32 %v8294, %v7945
        %v8296 = vmax.f32 %v8295, %v7949
        %v8297 = vmax.f32 %v8296, %v7955
        %v8298 = vmax.f32 %v8297, %v7959
        %v8299 = vmax.f32 %v8298, %v7965
        %v8300 = vmax.f32 %v8299, %v7969
        %v8301 = vrot.slane %v8300, 4
        %v8302 = vmax.f32 %v8300, %v8301
        %v8303 = vrot.slane %v8302, 2
        %v8304 = vmax.f32 %v8302, %v8303
        %v8305 = vrot.slane %v8304, 1
        %v8306 = vmax.f32 %v8304, %v8305
        %v8307 = vld [vmem:[%s18] sm:$0xff]
        %v8309 = vlaneseq
        %v8310 = vshrl.u32 %v8309, 7
        %v8311 = vsub.s32 0, %v8310
        %v8312 = vrot.slane %v8307, %v8311
        %v8313 = vlaneseq
        %v8314 = vshrl.u32 %v8313, 7
        %v8315 = vsub.s32 1, %v8314
        %v8316 = vrot.slane %v8307, %v8315
        %v8317 = vlaneseq
        %v8318 = vshrl.u32 %v8317, 7
        %v8319 = vsub.s32 2, %v8318
        %v8320 = vrot.slane %v8307, %v8319
        %v8321 = vlaneseq
        %v8322 = vshrl.u32 %v8321, 7
        %v8323 = vsub.s32 3, %v8322
        %v8324 = vrot.slane %v8307, %v8323
        %v8325 = vlaneseq
        %v8326 = vshrl.u32 %v8325, 7
        %v8327 = vsub.s32 4, %v8326
        %v8328 = vrot.slane %v8307, %v8327
        %v8329 = vlaneseq
        %v8330 = vshrl.u32 %v8329, 7
        %v8331 = vsub.s32 5, %v8330
        %v8332 = vrot.slane %v8307, %v8331
        %v8333 = vlaneseq
        %v8334 = vshrl.u32 %v8333, 7
        %v8335 = vsub.s32 6, %v8334
        %v8336 = vrot.slane %v8307, %v8335
        %v8337 = vlaneseq
        %v8338 = vshrl.u32 %v8337, 7
        %v8339 = vsub.s32 7, %v8338
        %v8340 = vrot.slane %v8307, %v8339
        %v8349 = vadd.f32 %v7991, %v8312
        %v8350 = vadd.f32 %v8012, %v8316
        %v8351 = vadd.f32 %v8033, %v8320
        %v8352 = vadd.f32 %v8054, %v8324
        %v8353 = vadd.f32 %v8075, %v8328
        %v8354 = vadd.f32 %v8096, %v8332
        %v8355 = vadd.f32 %v8117, %v8336
        %v8356 = vadd.f32 %v8138, %v8340
        %v8357 = vadd.f32 %v8159, %v8312
        %v8358 = vadd.f32 %v8180, %v8316
        %v8359 = vadd.f32 %v8201, %v8320
        %v8360 = vadd.f32 %v8222, %v8324
        %v8361 = vadd.f32 %v8243, %v8328
        %v8362 = vadd.f32 %v8264, %v8332
        %v8363 = vadd.f32 %v8285, %v8336
        %v8364 = vadd.f32 %v8306, %v8340
        %v8365 = vpack.c.bf16 %v8349, %v8349
        %v8366 = vpack.c.bf16 %v8350, %v8350
        %v8367 = vpack.c.bf16 %v8351, %v8351
        %v8368 = vpack.c.bf16 %v8352, %v8352
        %v8369 = vpack.c.bf16 %v8353, %v8353
        %v8370 = vpack.c.bf16 %v8354, %v8354
        %v8371 = vpack.c.bf16 %v8355, %v8355
        %v8372 = vpack.c.bf16 %v8356, %v8356
        %v8373 = vpack.c.bf16 %v8357, %v8357
        %v8374 = vpack.c.bf16 %v8358, %v8358
        %v8375 = vpack.c.bf16 %v8359, %v8359
        %v8376 = vpack.c.bf16 %v8360, %v8360
        %v8377 = vpack.c.bf16 %v8361, %v8361
        %v8378 = vpack.c.bf16 %v8362, %v8362
        %v8379 = vpack.c.bf16 %v8363, %v8363
        %v8380 = vpack.c.bf16 %v8364, %v8364
        %v8381 = vld [vmem:[#allocation10] sm:$0xff]
        %v8382 = vld [vmem:[#allocation10 + $0x8] sm:$0xff]
        %v8383 = vld [vmem:[#allocation10 + $0x10] sm:$0xff]
        %v8384 = vld [vmem:[#allocation10 + $0x18] sm:$0xff]
        %v8385 = vld [vmem:[#allocation10 + $0x20] sm:$0xff]
        %v8386 = vld [vmem:[#allocation10 + $0x28] sm:$0xff]
        %v8387 = vld [vmem:[#allocation10 + $0x30] sm:$0xff]
        %v8388 = vld [vmem:[#allocation10 + $0x38] sm:$0xff]
        %v8389 = vld [vmem:[#allocation10 + $0x40] sm:$0xff]
        %v8390 = vld [vmem:[#allocation10 + $0x48] sm:$0xff]
        %v8391 = vld [vmem:[#allocation10 + $0x50] sm:$0xff]
        %v8392 = vld [vmem:[#allocation10 + $0x58] sm:$0xff]
        %v8393 = vld [vmem:[#allocation10 + $0x60] sm:$0xff]
        %v8394 = vld [vmem:[#allocation10 + $0x68] sm:$0xff]
        %v8395 = vld [vmem:[#allocation10 + $0x70] sm:$0xff]
        %v8396 = vld [vmem:[#allocation10 + $0x78] sm:$0xff]
        %v8397 = vld [vmem:[#allocation10 + $0x80] sm:$0xff]
        %v8398 = vld [vmem:[#allocation10 + $0x88] sm:$0xff]
        %v8399 = vld [vmem:[#allocation10 + $0x90] sm:$0xff]
        %v8400 = vld [vmem:[#allocation10 + $0x98] sm:$0xff]
        %v8401 = vld [vmem:[#allocation10 + $0xa0] sm:$0xff]
        %v8402 = vld [vmem:[#allocation10 + $0xa8] sm:$0xff]
        %v8403 = vld [vmem:[#allocation10 + $0xb0] sm:$0xff]
        %v8404 = vld [vmem:[#allocation10 + $0xb8] sm:$0xff]
        %v8405 = vld [vmem:[#allocation10 + $0xc0] sm:$0xff]
        %v8406 = vld [vmem:[#allocation10 + $0xc8] sm:$0xff]
        %v8407 = vld [vmem:[#allocation10 + $0xd0] sm:$0xff]
        %v8408 = vld [vmem:[#allocation10 + $0xd8] sm:$0xff]
        %v8409 = vld [vmem:[#allocation10 + $0xe0] sm:$0xff]
        %v8410 = vld [vmem:[#allocation10 + $0xe8] sm:$0xff]
        %v8411 = vld [vmem:[#allocation10 + $0xf0] sm:$0xff]
        %v8412 = vld [vmem:[#allocation10 + $0xf8] sm:$0xff]
        %v8413 = vld [vmem:[#allocation10 + $0x100] sm:$0xff]
        %v8414 = vld [vmem:[#allocation10 + $0x108] sm:$0xff]
        %v8415 = vld [vmem:[#allocation10 + $0x110] sm:$0xff]
        %v8416 = vld [vmem:[#allocation10 + $0x118] sm:$0xff]
        %v8417 = vld [vmem:[#allocation10 + $0x120] sm:$0xff]
        %v8418 = vld [vmem:[#allocation10 + $0x128] sm:$0xff]
        %v8419 = vld [vmem:[#allocation10 + $0x130] sm:$0xff]
        %v8420 = vld [vmem:[#allocation10 + $0x138] sm:$0xff]
        %v8421 = vld [vmem:[#allocation10 + $0x140] sm:$0xff]
        %v8422 = vld [vmem:[#allocation10 + $0x148] sm:$0xff]
        %v8423 = vld [vmem:[#allocation10 + $0x150] sm:$0xff]
        %v8424 = vld [vmem:[#allocation10 + $0x158] sm:$0xff]
        %v8425 = vld [vmem:[#allocation10 + $0x160] sm:$0xff]
        %v8426 = vld [vmem:[#allocation10 + $0x168] sm:$0xff]
        %v8427 = vld [vmem:[#allocation10 + $0x170] sm:$0xff]
        %v8428 = vld [vmem:[#allocation10 + $0x178] sm:$0xff]
        %v8429 = vld [vmem:[#allocation10 + $0x180] sm:$0xff]
        %v8430 = vld [vmem:[#allocation10 + $0x188] sm:$0xff]
        %v8431 = vld [vmem:[#allocation10 + $0x190] sm:$0xff]
        %v8432 = vld [vmem:[#allocation10 + $0x198] sm:$0xff]
        %v8433 = vld [vmem:[#allocation10 + $0x1a0] sm:$0xff]
        %v8434 = vld [vmem:[#allocation10 + $0x1a8] sm:$0xff]
        %v8435 = vld [vmem:[#allocation10 + $0x1b0] sm:$0xff]
        %v8436 = vld [vmem:[#allocation10 + $0x1b8] sm:$0xff]
        %v8437 = vld [vmem:[#allocation10 + $0x1c0] sm:$0xff]
        %v8438 = vld [vmem:[#allocation10 + $0x1c8] sm:$0xff]
        %v8439 = vld [vmem:[#allocation10 + $0x1d0] sm:$0xff]
        %v8440 = vld [vmem:[#allocation10 + $0x1d8] sm:$0xff]
        %v8441 = vld [vmem:[#allocation10 + $0x1e0] sm:$0xff]
        %v8442 = vld [vmem:[#allocation10 + $0x1e8] sm:$0xff]
        %v8443 = vld [vmem:[#allocation10 + $0x1f0] sm:$0xff]
        %v8444 = vld [vmem:[#allocation10 + $0x1f8] sm:$0xff]
        %v8445 = vld [vmem:[#allocation10 + $0x200] sm:$0xff]
        %v8446 = vld [vmem:[#allocation10 + $0x208] sm:$0xff]
        %v8447 = vld [vmem:[#allocation10 + $0x210] sm:$0xff]
        %v8448 = vld [vmem:[#allocation10 + $0x218] sm:$0xff]
        %v8449 = vld [vmem:[#allocation10 + $0x220] sm:$0xff]
        %v8450 = vld [vmem:[#allocation10 + $0x228] sm:$0xff]
        %v8451 = vld [vmem:[#allocation10 + $0x230] sm:$0xff]
        %v8452 = vld [vmem:[#allocation10 + $0x238] sm:$0xff]
        %v8453 = vld [vmem:[#allocation10 + $0x240] sm:$0xff]
        %v8454 = vld [vmem:[#allocation10 + $0x248] sm:$0xff]
        %v8455 = vld [vmem:[#allocation10 + $0x250] sm:$0xff]
        %v8456 = vld [vmem:[#allocation10 + $0x258] sm:$0xff]
        %v8457 = vld [vmem:[#allocation10 + $0x260] sm:$0xff]
        %v8458 = vld [vmem:[#allocation10 + $0x268] sm:$0xff]
        %v8459 = vld [vmem:[#allocation10 + $0x270] sm:$0xff]
        %v8460 = vld [vmem:[#allocation10 + $0x278] sm:$0xff]
        %v8461 = vld [vmem:[#allocation10 + $0x280] sm:$0xff]
        %v8462 = vld [vmem:[#allocation10 + $0x288] sm:$0xff]
        %v8463 = vld [vmem:[#allocation10 + $0x290] sm:$0xff]
        %v8464 = vld [vmem:[#allocation10 + $0x298] sm:$0xff]
        %v8465 = vld [vmem:[#allocation10 + $0x2a0] sm:$0xff]
        %v8466 = vld [vmem:[#allocation10 + $0x2a8] sm:$0xff]
        %v8467 = vld [vmem:[#allocation10 + $0x2b0] sm:$0xff]
        %v8468 = vld [vmem:[#allocation10 + $0x2b8] sm:$0xff]
        %v8469 = vld [vmem:[#allocation10 + $0x2c0] sm:$0xff]
        %v8470 = vld [vmem:[#allocation10 + $0x2c8] sm:$0xff]
        %v8471 = vld [vmem:[#allocation10 + $0x2d0] sm:$0xff]
        %v8472 = vld [vmem:[#allocation10 + $0x2d8] sm:$0xff]
        %v8473 = vld [vmem:[#allocation10 + $0x2e0] sm:$0xff]
        %v8474 = vld [vmem:[#allocation10 + $0x2e8] sm:$0xff]
        %v8475 = vld [vmem:[#allocation10 + $0x2f0] sm:$0xff]
        %v8476 = vld [vmem:[#allocation10 + $0x2f8] sm:$0xff]
        %v8477 = vld [vmem:[#allocation10 + $0x300] sm:$0xff]
        %v8478 = vld [vmem:[#allocation10 + $0x308] sm:$0xff]
        %v8479 = vld [vmem:[#allocation10 + $0x310] sm:$0xff]
        %v8480 = vld [vmem:[#allocation10 + $0x318] sm:$0xff]
        %v8481 = vld [vmem:[#allocation10 + $0x320] sm:$0xff]
        %v8482 = vld [vmem:[#allocation10 + $0x328] sm:$0xff]
        %v8483 = vld [vmem:[#allocation10 + $0x330] sm:$0xff]
        %v8484 = vld [vmem:[#allocation10 + $0x338] sm:$0xff]
        %v8485 = vld [vmem:[#allocation10 + $0x340] sm:$0xff]
        %v8486 = vld [vmem:[#allocation10 + $0x348] sm:$0xff]
        %v8487 = vld [vmem:[#allocation10 + $0x350] sm:$0xff]
        %v8488 = vld [vmem:[#allocation10 + $0x358] sm:$0xff]
        %v8489 = vld [vmem:[#allocation10 + $0x360] sm:$0xff]
        %v8490 = vld [vmem:[#allocation10 + $0x368] sm:$0xff]
        %v8491 = vld [vmem:[#allocation10 + $0x370] sm:$0xff]
        %v8492 = vld [vmem:[#allocation10 + $0x378] sm:$0xff]
        %v8493 = vld [vmem:[#allocation10 + $0x380] sm:$0xff]
        %v8494 = vld [vmem:[#allocation10 + $0x388] sm:$0xff]
        %v8495 = vld [vmem:[#allocation10 + $0x390] sm:$0xff]
        %v8496 = vld [vmem:[#allocation10 + $0x398] sm:$0xff]
        %v8497 = vld [vmem:[#allocation10 + $0x3a0] sm:$0xff]
        %v8498 = vld [vmem:[#allocation10 + $0x3a8] sm:$0xff]
        %v8499 = vld [vmem:[#allocation10 + $0x3b0] sm:$0xff]
        %v8500 = vld [vmem:[#allocation10 + $0x3b8] sm:$0xff]
        %v8501 = vld [vmem:[#allocation10 + $0x3c0] sm:$0xff]
        %v8502 = vld [vmem:[#allocation10 + $0x3c8] sm:$0xff]
        %v8503 = vld [vmem:[#allocation10 + $0x3d0] sm:$0xff]
        %v8504 = vld [vmem:[#allocation10 + $0x3d8] sm:$0xff]
        %v8505 = vld [vmem:[#allocation10 + $0x3e0] sm:$0xff]
        %v8506 = vld [vmem:[#allocation10 + $0x3e8] sm:$0xff]
        %v8507 = vld [vmem:[#allocation10 + $0x3f0] sm:$0xff]
        %v8508 = vld [vmem:[#allocation10 + $0x3f8] sm:$0xff]
        %v8509 = vld [vmem:[#allocation10 + $0x400] sm:$0xff]
        %v8510 = vld [vmem:[#allocation10 + $0x408] sm:$0xff]
        %v8511 = vld [vmem:[#allocation10 + $0x410] sm:$0xff]
        %v8512 = vld [vmem:[#allocation10 + $0x418] sm:$0xff]
        %v8513 = vld [vmem:[#allocation10 + $0x420] sm:$0xff]
        %v8514 = vld [vmem:[#allocation10 + $0x428] sm:$0xff]
        %v8515 = vld [vmem:[#allocation10 + $0x430] sm:$0xff]
        %v8516 = vld [vmem:[#allocation10 + $0x438] sm:$0xff]
        %v8517 = vld [vmem:[#allocation10 + $0x440] sm:$0xff]
        %v8518 = vld [vmem:[#allocation10 + $0x448] sm:$0xff]
        %v8519 = vld [vmem:[#allocation10 + $0x450] sm:$0xff]
        %v8520 = vld [vmem:[#allocation10 + $0x458] sm:$0xff]
        %v8521 = vld [vmem:[#allocation10 + $0x460] sm:$0xff]
        %v8522 = vld [vmem:[#allocation10 + $0x468] sm:$0xff]
        %v8523 = vld [vmem:[#allocation10 + $0x470] sm:$0xff]
        %v8524 = vld [vmem:[#allocation10 + $0x478] sm:$0xff]
        %v8525 = vld [vmem:[#allocation10 + $0x480] sm:$0xff]
        %v8526 = vld [vmem:[#allocation10 + $0x488] sm:$0xff]
        %v8527 = vld [vmem:[#allocation10 + $0x490] sm:$0xff]
        %v8528 = vld [vmem:[#allocation10 + $0x498] sm:$0xff]
        %v8529 = vld [vmem:[#allocation10 + $0x4a0] sm:$0xff]
        %v8530 = vld [vmem:[#allocation10 + $0x4a8] sm:$0xff]
        %v8531 = vld [vmem:[#allocation10 + $0x4b0] sm:$0xff]
        %v8532 = vld [vmem:[#allocation10 + $0x4b8] sm:$0xff]
        %v8533 = vld [vmem:[#allocation10 + $0x4c0] sm:$0xff]
        %v8534 = vld [vmem:[#allocation10 + $0x4c8] sm:$0xff]
        %v8535 = vld [vmem:[#allocation10 + $0x4d0] sm:$0xff]
        %v8536 = vld [vmem:[#allocation10 + $0x4d8] sm:$0xff]
        %v8537 = vld [vmem:[#allocation10 + $0x4e0] sm:$0xff]
        %v8538 = vld [vmem:[#allocation10 + $0x4e8] sm:$0xff]
        %v8539 = vld [vmem:[#allocation10 + $0x4f0] sm:$0xff]
        %v8540 = vld [vmem:[#allocation10 + $0x4f8] sm:$0xff]
        %v8541 = vld [vmem:[#allocation10 + $0x500] sm:$0xff]
        %v8542 = vld [vmem:[#allocation10 + $0x508] sm:$0xff]
        %v8543 = vld [vmem:[#allocation10 + $0x510] sm:$0xff]
        %v8544 = vld [vmem:[#allocation10 + $0x518] sm:$0xff]
        %v8545 = vld [vmem:[#allocation10 + $0x520] sm:$0xff]
        %v8546 = vld [vmem:[#allocation10 + $0x528] sm:$0xff]
        %v8547 = vld [vmem:[#allocation10 + $0x530] sm:$0xff]
        %v8548 = vld [vmem:[#allocation10 + $0x538] sm:$0xff]
        %v8549 = vld [vmem:[#allocation10 + $0x540] sm:$0xff]
        %v8550 = vld [vmem:[#allocation10 + $0x548] sm:$0xff]
        %v8551 = vld [vmem:[#allocation10 + $0x550] sm:$0xff]
        %v8552 = vld [vmem:[#allocation10 + $0x558] sm:$0xff]
        %v8553 = vld [vmem:[#allocation10 + $0x560] sm:$0xff]
        %v8554 = vld [vmem:[#allocation10 + $0x568] sm:$0xff]
        %v8555 = vld [vmem:[#allocation10 + $0x570] sm:$0xff]
        %v8556 = vld [vmem:[#allocation10 + $0x578] sm:$0xff]
        %v8557 = vld [vmem:[#allocation10 + $0x580] sm:$0xff]
        %v8558 = vld [vmem:[#allocation10 + $0x588] sm:$0xff]
        %v8559 = vld [vmem:[#allocation10 + $0x590] sm:$0xff]
        %v8560 = vld [vmem:[#allocation10 + $0x598] sm:$0xff]
        %v8561 = vld [vmem:[#allocation10 + $0x5a0] sm:$0xff]
        %v8562 = vld [vmem:[#allocation10 + $0x5a8] sm:$0xff]
        %v8563 = vld [vmem:[#allocation10 + $0x5b0] sm:$0xff]
        %v8564 = vld [vmem:[#allocation10 + $0x5b8] sm:$0xff]
        %v8565 = vld [vmem:[#allocation10 + $0x5c0] sm:$0xff]
        %v8566 = vld [vmem:[#allocation10 + $0x5c8] sm:$0xff]
        %v8567 = vld [vmem:[#allocation10 + $0x5d0] sm:$0xff]
        %v8568 = vld [vmem:[#allocation10 + $0x5d8] sm:$0xff]
        %v8569 = vld [vmem:[#allocation10 + $0x5e0] sm:$0xff]
        %v8570 = vld [vmem:[#allocation10 + $0x5e8] sm:$0xff]
        %v8571 = vld [vmem:[#allocation10 + $0x5f0] sm:$0xff]
        %v8572 = vld [vmem:[#allocation10 + $0x5f8] sm:$0xff]
        %v8573 = vld [vmem:[#allocation10 + $0x600] sm:$0xff]
        %v8574 = vld [vmem:[#allocation10 + $0x608] sm:$0xff]
        %v8575 = vld [vmem:[#allocation10 + $0x610] sm:$0xff]
        %v8576 = vld [vmem:[#allocation10 + $0x618] sm:$0xff]
        %v8577 = vld [vmem:[#allocation10 + $0x620] sm:$0xff]
        %v8578 = vld [vmem:[#allocation10 + $0x628] sm:$0xff]
        %v8579 = vld [vmem:[#allocation10 + $0x630] sm:$0xff]
        %v8580 = vld [vmem:[#allocation10 + $0x638] sm:$0xff]
        %v8581 = vld [vmem:[#allocation10 + $0x640] sm:$0xff]
        %v8582 = vld [vmem:[#allocation10 + $0x648] sm:$0xff]
        %v8583 = vld [vmem:[#allocation10 + $0x650] sm:$0xff]
        %v8584 = vld [vmem:[#allocation10 + $0x658] sm:$0xff]
        %v8585 = vld [vmem:[#allocation10 + $0x660] sm:$0xff]
        %v8586 = vld [vmem:[#allocation10 + $0x668] sm:$0xff]
        %v8587 = vld [vmem:[#allocation10 + $0x670] sm:$0xff]
        %v8588 = vld [vmem:[#allocation10 + $0x678] sm:$0xff]
        %v8589 = vld [vmem:[#allocation10 + $0x680] sm:$0xff]
        %v8590 = vld [vmem:[#allocation10 + $0x688] sm:$0xff]
        %v8591 = vld [vmem:[#allocation10 + $0x690] sm:$0xff]
        %v8592 = vld [vmem:[#allocation10 + $0x698] sm:$0xff]
        %v8593 = vld [vmem:[#allocation10 + $0x6a0] sm:$0xff]
        %v8594 = vld [vmem:[#allocation10 + $0x6a8] sm:$0xff]
        %v8595 = vld [vmem:[#allocation10 + $0x6b0] sm:$0xff]
        %v8596 = vld [vmem:[#allocation10 + $0x6b8] sm:$0xff]
        %v8597 = vld [vmem:[#allocation10 + $0x6c0] sm:$0xff]
        %v8598 = vld [vmem:[#allocation10 + $0x6c8] sm:$0xff]
        %v8599 = vld [vmem:[#allocation10 + $0x6d0] sm:$0xff]
        %v8600 = vld [vmem:[#allocation10 + $0x6d8] sm:$0xff]
        %v8601 = vld [vmem:[#allocation10 + $0x6e0] sm:$0xff]
        %v8602 = vld [vmem:[#allocation10 + $0x6e8] sm:$0xff]
        %v8603 = vld [vmem:[#allocation10 + $0x6f0] sm:$0xff]
        %v8604 = vld [vmem:[#allocation10 + $0x6f8] sm:$0xff]
        %v8605 = vld [vmem:[#allocation10 + $0x700] sm:$0xff]
        %v8606 = vld [vmem:[#allocation10 + $0x708] sm:$0xff]
        %v8607 = vld [vmem:[#allocation10 + $0x710] sm:$0xff]
        %v8608 = vld [vmem:[#allocation10 + $0x718] sm:$0xff]
        %v8609 = vld [vmem:[#allocation10 + $0x720] sm:$0xff]
        %v8610 = vld [vmem:[#allocation10 + $0x728] sm:$0xff]
        %v8611 = vld [vmem:[#allocation10 + $0x730] sm:$0xff]
        %v8612 = vld [vmem:[#allocation10 + $0x738] sm:$0xff]
        %v8613 = vld [vmem:[#allocation10 + $0x740] sm:$0xff]
        %v8614 = vld [vmem:[#allocation10 + $0x748] sm:$0xff]
        %v8615 = vld [vmem:[#allocation10 + $0x750] sm:$0xff]
        %v8616 = vld [vmem:[#allocation10 + $0x758] sm:$0xff]
        %v8617 = vld [vmem:[#allocation10 + $0x760] sm:$0xff]
        %v8618 = vld [vmem:[#allocation10 + $0x768] sm:$0xff]
        %v8619 = vld [vmem:[#allocation10 + $0x770] sm:$0xff]
        %v8620 = vld [vmem:[#allocation10 + $0x778] sm:$0xff]
        %v8621 = vld [vmem:[#allocation10 + $0x780] sm:$0xff]
        %v8622 = vld [vmem:[#allocation10 + $0x788] sm:$0xff]
        %v8623 = vld [vmem:[#allocation10 + $0x790] sm:$0xff]
        %v8624 = vld [vmem:[#allocation10 + $0x798] sm:$0xff]
        %v8625 = vld [vmem:[#allocation10 + $0x7a0] sm:$0xff]
        %v8626 = vld [vmem:[#allocation10 + $0x7a8] sm:$0xff]
        %v8627 = vld [vmem:[#allocation10 + $0x7b0] sm:$0xff]
        %v8628 = vld [vmem:[#allocation10 + $0x7b8] sm:$0xff]
        %v8629 = vld [vmem:[#allocation10 + $0x7c0] sm:$0xff]
        %v8630 = vld [vmem:[#allocation10 + $0x7c8] sm:$0xff]
        %v8631 = vld [vmem:[#allocation10 + $0x7d0] sm:$0xff]
        %v8632 = vld [vmem:[#allocation10 + $0x7d8] sm:$0xff]
        %v8633 = vld [vmem:[#allocation10 + $0x7e0] sm:$0xff]
        %v8634 = vld [vmem:[#allocation10 + $0x7e8] sm:$0xff]
        %v8635 = vld [vmem:[#allocation10 + $0x7f0] sm:$0xff]
        %v8636 = vld [vmem:[#allocation10 + $0x7f8] sm:$0xff]
        %v8637 = vld [vmem:[%s20] sm:$0xf]
        %v8639 = vlaneseq
        %v8640 = vshrl.u32 %v8639, 7
        %v8641 = vsub.s32 0, %v8640
        %v8642 = vrot.slane %v8637, %v8641
        %v8643 = vlaneseq
        %v8644 = vshrl.u32 %v8643, 7
        %v8645 = vsub.s32 1, %v8644
        %v8646 = vrot.slane %v8637, %v8645
        %v8647 = vlaneseq
        %v8648 = vshrl.u32 %v8647, 7
        %v8649 = vsub.s32 2, %v8648
        %v8650 = vrot.slane %v8637, %v8649
        %v8651 = vlaneseq
        %v8652 = vshrl.u32 %v8651, 7
        %v8653 = vsub.s32 3, %v8652
        %v8654 = vrot.slane %v8637, %v8653
        %v8675 = vunpack.c.l.b16 %v8365
        %v8676 = vunpack.c.l.b16 %v8366
        %v8677 = vunpack.c.l.b16 %v8367
        %v8678 = vunpack.c.l.b16 %v8368
        %v8679 = vunpack.c.l.b16 %v8369
        %v8680 = vunpack.c.l.b16 %v8370
        %v8681 = vunpack.c.l.b16 %v8371
        %v8682 = vunpack.c.l.b16 %v8372
        %v8683 = vunpack.c.l.b16 %v8373
        %v8684 = vunpack.c.l.b16 %v8374
        %v8685 = vunpack.c.l.b16 %v8375
        %v8686 = vunpack.c.l.b16 %v8376
        %v8687 = vunpack.c.l.b16 %v8377
        %v8688 = vunpack.c.l.b16 %v8378
        %v8689 = vunpack.c.l.b16 %v8379
        %v8690 = vunpack.c.l.b16 %v8380
        %v8691 = vrot.slane %v8683, 7
        %v8692 = vsel %vm3786, %v8691, %v8675
        %v8693 = vrot.slane %v8684, 7
        %v8694 = vsel %vm3786, %v8693, %v8676
        %v8695 = vrot.slane %v8685, 7
        %v8696 = vsel %vm3786, %v8695, %v8677
        %v8697 = vrot.slane %v8686, 7
        %v8698 = vsel %vm3786, %v8697, %v8678
        %v8699 = vrot.slane %v8687, 7
        %v8700 = vsel %vm3786, %v8699, %v8679
        %v8701 = vrot.slane %v8688, 7
        %v8702 = vsel %vm3786, %v8701, %v8680
        %v8703 = vrot.slane %v8689, 7
        %v8704 = vsel %vm3786, %v8703, %v8681
        %v8705 = vrot.slane %v8690, 7
        %v8706 = vsel %vm3786, %v8705, %v8682
        %v8707 = vpack.c.b16 %v8692, %v8692
        %v8708 = vpack.c.b16 %v8694, %v8694
        %v8709 = vpack.c.b16 %v8696, %v8696
        %v8710 = vpack.c.b16 %v8698, %v8698
        %v8711 = vpack.c.b16 %v8700, %v8700
        %v8712 = vpack.c.b16 %v8702, %v8702
        %v8713 = vpack.c.b16 %v8704, %v8704
        %v8714 = vpack.c.b16 %v8706, %v8706
        %v8979 = vunpack.c.l.b16 %v8381
        %v8980 = vunpack.c.h.b16 %v8381
        %v8981 = vunpack.c.l.b16 %v8382
        %v8982 = vunpack.c.h.b16 %v8382
        %v8983 = vunpack.c.l.b16 %v8383
        %v8984 = vunpack.c.h.b16 %v8383
        %v8985 = vunpack.c.l.b16 %v8384
        %v8986 = vunpack.c.h.b16 %v8384
        %v8987 = vunpack.c.l.b16 %v8385
        %v8988 = vunpack.c.h.b16 %v8385
        %v8989 = vunpack.c.l.b16 %v8386
        %v8990 = vunpack.c.h.b16 %v8386
        %v8991 = vunpack.c.l.b16 %v8387
        %v8992 = vunpack.c.h.b16 %v8387
        %v8993 = vunpack.c.l.b16 %v8388
        %v8994 = vunpack.c.h.b16 %v8388
        %v8995 = vunpack.c.l.b16 %v8389
        %v8996 = vunpack.c.h.b16 %v8389
        %v8997 = vunpack.c.l.b16 %v8390
        %v8998 = vunpack.c.h.b16 %v8390
        %v8999 = vunpack.c.l.b16 %v8391
        %v9000 = vunpack.c.h.b16 %v8391
        %v9001 = vunpack.c.l.b16 %v8392
        %v9002 = vunpack.c.h.b16 %v8392
        %v9003 = vunpack.c.l.b16 %v8393
        %v9004 = vunpack.c.h.b16 %v8393
        %v9005 = vunpack.c.l.b16 %v8394
        %v9006 = vunpack.c.h.b16 %v8394
        %v9007 = vunpack.c.l.b16 %v8395
        %v9008 = vunpack.c.h.b16 %v8395
        %v9009 = vunpack.c.l.b16 %v8396
        %v9010 = vunpack.c.h.b16 %v8396
        %v9011 = vunpack.c.l.b16 %v8397
        %v9012 = vunpack.c.h.b16 %v8397
        %v9013 = vunpack.c.l.b16 %v8398
        %v9014 = vunpack.c.h.b16 %v8398
        %v9015 = vunpack.c.l.b16 %v8399
        %v9016 = vunpack.c.h.b16 %v8399
        %v9017 = vunpack.c.l.b16 %v8400
        %v9018 = vunpack.c.h.b16 %v8400
        %v9019 = vunpack.c.l.b16 %v8401
        %v9020 = vunpack.c.h.b16 %v8401
        %v9021 = vunpack.c.l.b16 %v8402
        %v9022 = vunpack.c.h.b16 %v8402
        %v9023 = vunpack.c.l.b16 %v8403
        %v9024 = vunpack.c.h.b16 %v8403
        %v9025 = vunpack.c.l.b16 %v8404
        %v9026 = vunpack.c.h.b16 %v8404
        %v9027 = vunpack.c.l.b16 %v8405
        %v9028 = vunpack.c.h.b16 %v8405
        %v9029 = vunpack.c.l.b16 %v8406
        %v9030 = vunpack.c.h.b16 %v8406
        %v9031 = vunpack.c.l.b16 %v8407
        %v9032 = vunpack.c.h.b16 %v8407
        %v9033 = vunpack.c.l.b16 %v8408
        %v9034 = vunpack.c.h.b16 %v8408
        %v9035 = vunpack.c.l.b16 %v8409
        %v9036 = vunpack.c.h.b16 %v8409
        %v9037 = vunpack.c.l.b16 %v8410
        %v9038 = vunpack.c.h.b16 %v8410
        %v9039 = vunpack.c.l.b16 %v8411
        %v9040 = vunpack.c.h.b16 %v8411
        %v9041 = vunpack.c.l.b16 %v8412
        %v9042 = vunpack.c.h.b16 %v8412
        %v9043 = vunpack.c.l.b16 %v8413
        %v9044 = vunpack.c.h.b16 %v8413
        %v9045 = vunpack.c.l.b16 %v8414
        %v9046 = vunpack.c.h.b16 %v8414
        %v9047 = vunpack.c.l.b16 %v8415
        %v9048 = vunpack.c.h.b16 %v8415
        %v9049 = vunpack.c.l.b16 %v8416
        %v9050 = vunpack.c.h.b16 %v8416
        %v9051 = vunpack.c.l.b16 %v8417
        %v9052 = vunpack.c.h.b16 %v8417
        %v9053 = vunpack.c.l.b16 %v8418
        %v9054 = vunpack.c.h.b16 %v8418
        %v9055 = vunpack.c.l.b16 %v8419
        %v9056 = vunpack.c.h.b16 %v8419
        %v9057 = vunpack.c.l.b16 %v8420
        %v9058 = vunpack.c.h.b16 %v8420
        %v9059 = vunpack.c.l.b16 %v8421
        %v9060 = vunpack.c.h.b16 %v8421
        %v9061 = vunpack.c.l.b16 %v8422
        %v9062 = vunpack.c.h.b16 %v8422
        %v9063 = vunpack.c.l.b16 %v8423
        %v9064 = vunpack.c.h.b16 %v8423
        %v9065 = vunpack.c.l.b16 %v8424
        %v9066 = vunpack.c.h.b16 %v8424
        %v9067 = vunpack.c.l.b16 %v8425
        %v9068 = vunpack.c.h.b16 %v8425
        %v9069 = vunpack.c.l.b16 %v8426
        %v9070 = vunpack.c.h.b16 %v8426
        %v9071 = vunpack.c.l.b16 %v8427
        %v9072 = vunpack.c.h.b16 %v8427
        %v9073 = vunpack.c.l.b16 %v8428
        %v9074 = vunpack.c.h.b16 %v8428
        %v9075 = vunpack.c.l.b16 %v8429
        %v9076 = vunpack.c.h.b16 %v8429
        %v9077 = vunpack.c.l.b16 %v8430
        %v9078 = vunpack.c.h.b16 %v8430
        %v9079 = vunpack.c.l.b16 %v8431
        %v9080 = vunpack.c.h.b16 %v8431
        %v9081 = vunpack.c.l.b16 %v8432
        %v9082 = vunpack.c.h.b16 %v8432
        %v9083 = vunpack.c.l.b16 %v8433
        %v9084 = vunpack.c.h.b16 %v8433
        %v9085 = vunpack.c.l.b16 %v8434
        %v9086 = vunpack.c.h.b16 %v8434
        %v9087 = vunpack.c.l.b16 %v8435
        %v9088 = vunpack.c.h.b16 %v8435
        %v9089 = vunpack.c.l.b16 %v8436
        %v9090 = vunpack.c.h.b16 %v8436
        %v9091 = vunpack.c.l.b16 %v8437
        %v9092 = vunpack.c.h.b16 %v8437
        %v9093 = vunpack.c.l.b16 %v8438
        %v9094 = vunpack.c.h.b16 %v8438
        %v9095 = vunpack.c.l.b16 %v8439
        %v9096 = vunpack.c.h.b16 %v8439
        %v9097 = vunpack.c.l.b16 %v8440
        %v9098 = vunpack.c.h.b16 %v8440
        %v9099 = vunpack.c.l.b16 %v8441
        %v9100 = vunpack.c.h.b16 %v8441
        %v9101 = vunpack.c.l.b16 %v8442
        %v9102 = vunpack.c.h.b16 %v8442
        %v9103 = vunpack.c.l.b16 %v8443
        %v9104 = vunpack.c.h.b16 %v8443
        %v9105 = vunpack.c.l.b16 %v8444
        %v9106 = vunpack.c.h.b16 %v8444
        %v9107 = vunpack.c.l.b16 %v8445
        %v9108 = vunpack.c.h.b16 %v8445
        %v9109 = vunpack.c.l.b16 %v8446
        %v9110 = vunpack.c.h.b16 %v8446
        %v9111 = vunpack.c.l.b16 %v8447
        %v9112 = vunpack.c.h.b16 %v8447
        %v9113 = vunpack.c.l.b16 %v8448
        %v9114 = vunpack.c.h.b16 %v8448
        %v9115 = vunpack.c.l.b16 %v8449
        %v9116 = vunpack.c.h.b16 %v8449
        %v9117 = vunpack.c.l.b16 %v8450
        %v9118 = vunpack.c.h.b16 %v8450
        %v9119 = vunpack.c.l.b16 %v8451
        %v9120 = vunpack.c.h.b16 %v8451
        %v9121 = vunpack.c.l.b16 %v8452
        %v9122 = vunpack.c.h.b16 %v8452
        %v9123 = vunpack.c.l.b16 %v8453
        %v9124 = vunpack.c.h.b16 %v8453
        %v9125 = vunpack.c.l.b16 %v8454
        %v9126 = vunpack.c.h.b16 %v8454
        %v9127 = vunpack.c.l.b16 %v8455
        %v9128 = vunpack.c.h.b16 %v8455
        %v9129 = vunpack.c.l.b16 %v8456
        %v9130 = vunpack.c.h.b16 %v8456
        %v9131 = vunpack.c.l.b16 %v8457
        %v9132 = vunpack.c.h.b16 %v8457
        %v9133 = vunpack.c.l.b16 %v8458
        %v9134 = vunpack.c.h.b16 %v8458
        %v9135 = vunpack.c.l.b16 %v8459
        %v9136 = vunpack.c.h.b16 %v8459
        %v9137 = vunpack.c.l.b16 %v8460
        %v9138 = vunpack.c.h.b16 %v8460
        %v9139 = vunpack.c.l.b16 %v8461
        %v9140 = vunpack.c.h.b16 %v8461
        %v9141 = vunpack.c.l.b16 %v8462
        %v9142 = vunpack.c.h.b16 %v8462
        %v9143 = vunpack.c.l.b16 %v8463
        %v9144 = vunpack.c.h.b16 %v8463
        %v9145 = vunpack.c.l.b16 %v8464
        %v9146 = vunpack.c.h.b16 %v8464
        %v9147 = vunpack.c.l.b16 %v8465
        %v9148 = vunpack.c.h.b16 %v8465
        %v9149 = vunpack.c.l.b16 %v8466
        %v9150 = vunpack.c.h.b16 %v8466
        %v9151 = vunpack.c.l.b16 %v8467
        %v9152 = vunpack.c.h.b16 %v8467
        %v9153 = vunpack.c.l.b16 %v8468
        %v9154 = vunpack.c.h.b16 %v8468
        %v9155 = vunpack.c.l.b16 %v8469
        %v9156 = vunpack.c.h.b16 %v8469
        %v9157 = vunpack.c.l.b16 %v8470
        %v9158 = vunpack.c.h.b16 %v8470
        %v9159 = vunpack.c.l.b16 %v8471
        %v9160 = vunpack.c.h.b16 %v8471
        %v9161 = vunpack.c.l.b16 %v8472
        %v9162 = vunpack.c.h.b16 %v8472
        %v9163 = vunpack.c.l.b16 %v8473
        %v9164 = vunpack.c.h.b16 %v8473
        %v9165 = vunpack.c.l.b16 %v8474
        %v9166 = vunpack.c.h.b16 %v8474
        %v9167 = vunpack.c.l.b16 %v8475
        %v9168 = vunpack.c.h.b16 %v8475
        %v9169 = vunpack.c.l.b16 %v8476
        %v9170 = vunpack.c.h.b16 %v8476
        %v9171 = vunpack.c.l.b16 %v8477
        %v9172 = vunpack.c.h.b16 %v8477
        %v9173 = vunpack.c.l.b16 %v8478
        %v9174 = vunpack.c.h.b16 %v8478
        %v9175 = vunpack.c.l.b16 %v8479
        %v9176 = vunpack.c.h.b16 %v8479
        %v9177 = vunpack.c.l.b16 %v8480
        %v9178 = vunpack.c.h.b16 %v8480
        %v9179 = vunpack.c.l.b16 %v8481
        %v9180 = vunpack.c.h.b16 %v8481
        %v9181 = vunpack.c.l.b16 %v8482
        %v9182 = vunpack.c.h.b16 %v8482
        %v9183 = vunpack.c.l.b16 %v8483
        %v9184 = vunpack.c.h.b16 %v8483
        %v9185 = vunpack.c.l.b16 %v8484
        %v9186 = vunpack.c.h.b16 %v8484
        %v9187 = vunpack.c.l.b16 %v8485
        %v9188 = vunpack.c.h.b16 %v8485
        %v9189 = vunpack.c.l.b16 %v8486
        %v9190 = vunpack.c.h.b16 %v8486
        %v9191 = vunpack.c.l.b16 %v8487
        %v9192 = vunpack.c.h.b16 %v8487
        %v9193 = vunpack.c.l.b16 %v8488
        %v9194 = vunpack.c.h.b16 %v8488
        %v9195 = vunpack.c.l.b16 %v8489
        %v9196 = vunpack.c.h.b16 %v8489
        %v9197 = vunpack.c.l.b16 %v8490
        %v9198 = vunpack.c.h.b16 %v8490
        %v9199 = vunpack.c.l.b16 %v8491
        %v9200 = vunpack.c.h.b16 %v8491
        %v9201 = vunpack.c.l.b16 %v8492
        %v9202 = vunpack.c.h.b16 %v8492
        %v9203 = vunpack.c.l.b16 %v8493
        %v9204 = vunpack.c.h.b16 %v8493
        %v9205 = vunpack.c.l.b16 %v8494
        %v9206 = vunpack.c.h.b16 %v8494
        %v9207 = vunpack.c.l.b16 %v8495
        %v9208 = vunpack.c.h.b16 %v8495
        %v9209 = vunpack.c.l.b16 %v8496
        %v9210 = vunpack.c.h.b16 %v8496
        %v9211 = vunpack.c.l.b16 %v8497
        %v9212 = vunpack.c.h.b16 %v8497
        %v9213 = vunpack.c.l.b16 %v8498
        %v9214 = vunpack.c.h.b16 %v8498
        %v9215 = vunpack.c.l.b16 %v8499
        %v9216 = vunpack.c.h.b16 %v8499
        %v9217 = vunpack.c.l.b16 %v8500
        %v9218 = vunpack.c.h.b16 %v8500
        %v9219 = vunpack.c.l.b16 %v8501
        %v9220 = vunpack.c.h.b16 %v8501
        %v9221 = vunpack.c.l.b16 %v8502
        %v9222 = vunpack.c.h.b16 %v8502
        %v9223 = vunpack.c.l.b16 %v8503
        %v9224 = vunpack.c.h.b16 %v8503
        %v9225 = vunpack.c.l.b16 %v8504
        %v9226 = vunpack.c.h.b16 %v8504
        %v9227 = vunpack.c.l.b16 %v8505
        %v9228 = vunpack.c.h.b16 %v8505
        %v9229 = vunpack.c.l.b16 %v8506
        %v9230 = vunpack.c.h.b16 %v8506
        %v9231 = vunpack.c.l.b16 %v8507
        %v9232 = vunpack.c.h.b16 %v8507
        %v9233 = vunpack.c.l.b16 %v8508
        %v9234 = vunpack.c.h.b16 %v8508
        %v9235 = vunpack.c.l.b16 %v8509
        %v9236 = vunpack.c.h.b16 %v8509
        %v9237 = vunpack.c.l.b16 %v8510
        %v9238 = vunpack.c.h.b16 %v8510
        %v9239 = vunpack.c.l.b16 %v8511
        %v9240 = vunpack.c.h.b16 %v8511
        %v9241 = vunpack.c.l.b16 %v8512
        %v9242 = vunpack.c.h.b16 %v8512
        %v9243 = vunpack.c.l.b16 %v8513
        %v9244 = vunpack.c.h.b16 %v8513
        %v9245 = vunpack.c.l.b16 %v8514
        %v9246 = vunpack.c.h.b16 %v8514
        %v9247 = vunpack.c.l.b16 %v8515
        %v9248 = vunpack.c.h.b16 %v8515
        %v9249 = vunpack.c.l.b16 %v8516
        %v9250 = vunpack.c.h.b16 %v8516
        %v9251 = vunpack.c.l.b16 %v8517
        %v9252 = vunpack.c.h.b16 %v8517
        %v9253 = vunpack.c.l.b16 %v8518
        %v9254 = vunpack.c.h.b16 %v8518
        %v9255 = vunpack.c.l.b16 %v8519
        %v9256 = vunpack.c.h.b16 %v8519
        %v9257 = vunpack.c.l.b16 %v8520
        %v9258 = vunpack.c.h.b16 %v8520
        %v9259 = vunpack.c.l.b16 %v8521
        %v9260 = vunpack.c.h.b16 %v8521
        %v9261 = vunpack.c.l.b16 %v8522
        %v9262 = vunpack.c.h.b16 %v8522
        %v9263 = vunpack.c.l.b16 %v8523
        %v9264 = vunpack.c.h.b16 %v8523
        %v9265 = vunpack.c.l.b16 %v8524
        %v9266 = vunpack.c.h.b16 %v8524
        %v9267 = vunpack.c.l.b16 %v8525
        %v9268 = vunpack.c.h.b16 %v8525
        %v9269 = vunpack.c.l.b16 %v8526
        %v9270 = vunpack.c.h.b16 %v8526
        %v9271 = vunpack.c.l.b16 %v8527
        %v9272 = vunpack.c.h.b16 %v8527
        %v9273 = vunpack.c.l.b16 %v8528
        %v9274 = vunpack.c.h.b16 %v8528
        %v9275 = vunpack.c.l.b16 %v8529
        %v9276 = vunpack.c.h.b16 %v8529
        %v9277 = vunpack.c.l.b16 %v8530
        %v9278 = vunpack.c.h.b16 %v8530
        %v9279 = vunpack.c.l.b16 %v8531
        %v9280 = vunpack.c.h.b16 %v8531
        %v9281 = vunpack.c.l.b16 %v8532
        %v9282 = vunpack.c.h.b16 %v8532
        %v9283 = vunpack.c.l.b16 %v8533
        %v9284 = vunpack.c.h.b16 %v8533
        %v9285 = vunpack.c.l.b16 %v8534
        %v9286 = vunpack.c.h.b16 %v8534
        %v9287 = vunpack.c.l.b16 %v8535
        %v9288 = vunpack.c.h.b16 %v8535
        %v9289 = vunpack.c.l.b16 %v8536
        %v9290 = vunpack.c.h.b16 %v8536
        %v9291 = vunpack.c.l.b16 %v8537
        %v9292 = vunpack.c.h.b16 %v8537
        %v9293 = vunpack.c.l.b16 %v8538
        %v9294 = vunpack.c.h.b16 %v8538
        %v9295 = vunpack.c.l.b16 %v8539
        %v9296 = vunpack.c.h.b16 %v8539
        %v9297 = vunpack.c.l.b16 %v8540
        %v9298 = vunpack.c.h.b16 %v8540
        %v9299 = vunpack.c.l.b16 %v8541
        %v9300 = vunpack.c.h.b16 %v8541
        %v9301 = vunpack.c.l.b16 %v8542
        %v9302 = vunpack.c.h.b16 %v8542
        %v9303 = vunpack.c.l.b16 %v8543
        %v9304 = vunpack.c.h.b16 %v8543
        %v9305 = vunpack.c.l.b16 %v8544
        %v9306 = vunpack.c.h.b16 %v8544
        %v9307 = vunpack.c.l.b16 %v8545
        %v9308 = vunpack.c.h.b16 %v8545
        %v9309 = vunpack.c.l.b16 %v8546
        %v9310 = vunpack.c.h.b16 %v8546
        %v9311 = vunpack.c.l.b16 %v8547
        %v9312 = vunpack.c.h.b16 %v8547
        %v9313 = vunpack.c.l.b16 %v8548
        %v9314 = vunpack.c.h.b16 %v8548
        %v9315 = vunpack.c.l.b16 %v8549
        %v9316 = vunpack.c.h.b16 %v8549
        %v9317 = vunpack.c.l.b16 %v8550
        %v9318 = vunpack.c.h.b16 %v8550
        %v9319 = vunpack.c.l.b16 %v8551
        %v9320 = vunpack.c.h.b16 %v8551
        %v9321 = vunpack.c.l.b16 %v8552
        %v9322 = vunpack.c.h.b16 %v8552
        %v9323 = vunpack.c.l.b16 %v8553
        %v9324 = vunpack.c.h.b16 %v8553
        %v9325 = vunpack.c.l.b16 %v8554
        %v9326 = vunpack.c.h.b16 %v8554
        %v9327 = vunpack.c.l.b16 %v8555
        %v9328 = vunpack.c.h.b16 %v8555
        %v9329 = vunpack.c.l.b16 %v8556
        %v9330 = vunpack.c.h.b16 %v8556
        %v9331 = vunpack.c.l.b16 %v8557
        %v9332 = vunpack.c.h.b16 %v8557
        %v9333 = vunpack.c.l.b16 %v8558
        %v9334 = vunpack.c.h.b16 %v8558
        %v9335 = vunpack.c.l.b16 %v8559
        %v9336 = vunpack.c.h.b16 %v8559
        %v9337 = vunpack.c.l.b16 %v8560
        %v9338 = vunpack.c.h.b16 %v8560
        %v9339 = vunpack.c.l.b16 %v8561
        %v9340 = vunpack.c.h.b16 %v8561
        %v9341 = vunpack.c.l.b16 %v8562
        %v9342 = vunpack.c.h.b16 %v8562
        %v9343 = vunpack.c.l.b16 %v8563
        %v9344 = vunpack.c.h.b16 %v8563
        %v9345 = vunpack.c.l.b16 %v8564
        %v9346 = vunpack.c.h.b16 %v8564
        %v9347 = vunpack.c.l.b16 %v8565
        %v9348 = vunpack.c.h.b16 %v8565
        %v9349 = vunpack.c.l.b16 %v8566
        %v9350 = vunpack.c.h.b16 %v8566
        %v9351 = vunpack.c.l.b16 %v8567
        %v9352 = vunpack.c.h.b16 %v8567
        %v9353 = vunpack.c.l.b16 %v8568
        %v9354 = vunpack.c.h.b16 %v8568
        %v9355 = vunpack.c.l.b16 %v8569
        %v9356 = vunpack.c.h.b16 %v8569
        %v9357 = vunpack.c.l.b16 %v8570
        %v9358 = vunpack.c.h.b16 %v8570
        %v9359 = vunpack.c.l.b16 %v8571
        %v9360 = vunpack.c.h.b16 %v8571
        %v9361 = vunpack.c.l.b16 %v8572
        %v9362 = vunpack.c.h.b16 %v8572
        %v9363 = vunpack.c.l.b16 %v8573
        %v9364 = vunpack.c.h.b16 %v8573
        %v9365 = vunpack.c.l.b16 %v8574
        %v9366 = vunpack.c.h.b16 %v8574
        %v9367 = vunpack.c.l.b16 %v8575
        %v9368 = vunpack.c.h.b16 %v8575
        %v9369 = vunpack.c.l.b16 %v8576
        %v9370 = vunpack.c.h.b16 %v8576
        %v9371 = vunpack.c.l.b16 %v8577
        %v9372 = vunpack.c.h.b16 %v8577
        %v9373 = vunpack.c.l.b16 %v8578
        %v9374 = vunpack.c.h.b16 %v8578
        %v9375 = vunpack.c.l.b16 %v8579
        %v9376 = vunpack.c.h.b16 %v8579
        %v9377 = vunpack.c.l.b16 %v8580
        %v9378 = vunpack.c.h.b16 %v8580
        %v9379 = vunpack.c.l.b16 %v8581
        %v9380 = vunpack.c.h.b16 %v8581
        %v9381 = vunpack.c.l.b16 %v8582
        %v9382 = vunpack.c.h.b16 %v8582
        %v9383 = vunpack.c.l.b16 %v8583
        %v9384 = vunpack.c.h.b16 %v8583
        %v9385 = vunpack.c.l.b16 %v8584
        %v9386 = vunpack.c.h.b16 %v8584
        %v9387 = vunpack.c.l.b16 %v8585
        %v9388 = vunpack.c.h.b16 %v8585
        %v9389 = vunpack.c.l.b16 %v8586
        %v9390 = vunpack.c.h.b16 %v8586
        %v9391 = vunpack.c.l.b16 %v8587
        %v9392 = vunpack.c.h.b16 %v8587
        %v9393 = vunpack.c.l.b16 %v8588
        %v9394 = vunpack.c.h.b16 %v8588
        %v9395 = vunpack.c.l.b16 %v8589
        %v9396 = vunpack.c.h.b16 %v8589
        %v9397 = vunpack.c.l.b16 %v8590
        %v9398 = vunpack.c.h.b16 %v8590
        %v9399 = vunpack.c.l.b16 %v8591
        %v9400 = vunpack.c.h.b16 %v8591
        %v9401 = vunpack.c.l.b16 %v8592
        %v9402 = vunpack.c.h.b16 %v8592
        %v9403 = vunpack.c.l.b16 %v8593
        %v9404 = vunpack.c.h.b16 %v8593
        %v9405 = vunpack.c.l.b16 %v8594
        %v9406 = vunpack.c.h.b16 %v8594
        %v9407 = vunpack.c.l.b16 %v8595
        %v9408 = vunpack.c.h.b16 %v8595
        %v9409 = vunpack.c.l.b16 %v8596
        %v9410 = vunpack.c.h.b16 %v8596
        %v9411 = vunpack.c.l.b16 %v8597
        %v9412 = vunpack.c.h.b16 %v8597
        %v9413 = vunpack.c.l.b16 %v8598
        %v9414 = vunpack.c.h.b16 %v8598
        %v9415 = vunpack.c.l.b16 %v8599
        %v9416 = vunpack.c.h.b16 %v8599
        %v9417 = vunpack.c.l.b16 %v8600
        %v9418 = vunpack.c.h.b16 %v8600
        %v9419 = vunpack.c.l.b16 %v8601
        %v9420 = vunpack.c.h.b16 %v8601
        %v9421 = vunpack.c.l.b16 %v8602
        %v9422 = vunpack.c.h.b16 %v8602
        %v9423 = vunpack.c.l.b16 %v8603
        %v9424 = vunpack.c.h.b16 %v8603
        %v9425 = vunpack.c.l.b16 %v8604
        %v9426 = vunpack.c.h.b16 %v8604
        %v9427 = vunpack.c.l.b16 %v8605
        %v9428 = vunpack.c.h.b16 %v8605
        %v9429 = vunpack.c.l.b16 %v8606
        %v9430 = vunpack.c.h.b16 %v8606
        %v9431 = vunpack.c.l.b16 %v8607
        %v9432 = vunpack.c.h.b16 %v8607
        %v9433 = vunpack.c.l.b16 %v8608
        %v9434 = vunpack.c.h.b16 %v8608
        %v9435 = vunpack.c.l.b16 %v8609
        %v9436 = vunpack.c.h.b16 %v8609
        %v9437 = vunpack.c.l.b16 %v8610
        %v9438 = vunpack.c.h.b16 %v8610
        %v9439 = vunpack.c.l.b16 %v8611
        %v9440 = vunpack.c.h.b16 %v8611
        %v9441 = vunpack.c.l.b16 %v8612
        %v9442 = vunpack.c.h.b16 %v8612
        %v9443 = vunpack.c.l.b16 %v8613
        %v9444 = vunpack.c.h.b16 %v8613
        %v9445 = vunpack.c.l.b16 %v8614
        %v9446 = vunpack.c.h.b16 %v8614
        %v9447 = vunpack.c.l.b16 %v8615
        %v9448 = vunpack.c.h.b16 %v8615
        %v9449 = vunpack.c.l.b16 %v8616
        %v9450 = vunpack.c.h.b16 %v8616
        %v9451 = vunpack.c.l.b16 %v8617
        %v9452 = vunpack.c.h.b16 %v8617
        %v9453 = vunpack.c.l.b16 %v8618
        %v9454 = vunpack.c.h.b16 %v8618
        %v9455 = vunpack.c.l.b16 %v8619
        %v9456 = vunpack.c.h.b16 %v8619
        %v9457 = vunpack.c.l.b16 %v8620
        %v9458 = vunpack.c.h.b16 %v8620
        %v9459 = vunpack.c.l.b16 %v8621
        %v9460 = vunpack.c.h.b16 %v8621
        %v9461 = vunpack.c.l.b16 %v8622
        %v9462 = vunpack.c.h.b16 %v8622
        %v9463 = vunpack.c.l.b16 %v8623
        %v9464 = vunpack.c.h.b16 %v8623
        %v9465 = vunpack.c.l.b16 %v8624
        %v9466 = vunpack.c.h.b16 %v8624
        %v9467 = vunpack.c.l.b16 %v8625
        %v9468 = vunpack.c.h.b16 %v8625
        %v9469 = vunpack.c.l.b16 %v8626
        %v9470 = vunpack.c.h.b16 %v8626
        %v9471 = vunpack.c.l.b16 %v8627
        %v9472 = vunpack.c.h.b16 %v8627
        %v9473 = vunpack.c.l.b16 %v8628
        %v9474 = vunpack.c.h.b16 %v8628
        %v9475 = vunpack.c.l.b16 %v8629
        %v9476 = vunpack.c.h.b16 %v8629
        %v9477 = vunpack.c.l.b16 %v8630
        %v9478 = vunpack.c.h.b16 %v8630
        %v9479 = vunpack.c.l.b16 %v8631
        %v9480 = vunpack.c.h.b16 %v8631
        %v9481 = vunpack.c.l.b16 %v8632
        %v9482 = vunpack.c.h.b16 %v8632
        %v9483 = vunpack.c.l.b16 %v8633
        %v9484 = vunpack.c.h.b16 %v8633
        %v9485 = vunpack.c.l.b16 %v8634
        %v9486 = vunpack.c.h.b16 %v8634
        %v9487 = vunpack.c.l.b16 %v8635
        %v9488 = vunpack.c.h.b16 %v8635
        %v9489 = vunpack.c.l.b16 %v8636
        %v9490 = vunpack.c.h.b16 %v8636
        %v9491 = vpack.c.b16 %v8983, %v8979
        %v9492 = vpack.c.b16 %v8984, %v8980
        %v9493 = vpack.c.b16 %v8985, %v8981
        %v9494 = vpack.c.b16 %v8986, %v8982
        %v9495 = vpack.c.b16 %v8991, %v8987
        %v9496 = vpack.c.b16 %v8992, %v8988
        %v9497 = vpack.c.b16 %v8993, %v8989
        %v9498 = vpack.c.b16 %v8994, %v8990
        %v9499 = vpack.c.b16 %v8999, %v8995
        %v9500 = vpack.c.b16 %v9000, %v8996
        %v9501 = vpack.c.b16 %v9001, %v8997
        %v9502 = vpack.c.b16 %v9002, %v8998
        %v9503 = vpack.c.b16 %v9007, %v9003
        %v9504 = vpack.c.b16 %v9008, %v9004
        %v9505 = vpack.c.b16 %v9009, %v9005
        %v9506 = vpack.c.b16 %v9010, %v9006
        %v9507 = vpack.c.b16 %v9015, %v9011
        %v9508 = vpack.c.b16 %v9016, %v9012
        %v9509 = vpack.c.b16 %v9017, %v9013
        %v9510 = vpack.c.b16 %v9018, %v9014
        %v9511 = vpack.c.b16 %v9023, %v9019
        %v9512 = vpack.c.b16 %v9024, %v9020
        %v9513 = vpack.c.b16 %v9025, %v9021
        %v9514 = vpack.c.b16 %v9026, %v9022
        %v9515 = vpack.c.b16 %v9031, %v9027
        %v9516 = vpack.c.b16 %v9032, %v9028
        %v9517 = vpack.c.b16 %v9033, %v9029
        %v9518 = vpack.c.b16 %v9034, %v9030
        %v9519 = vpack.c.b16 %v9039, %v9035
        %v9520 = vpack.c.b16 %v9040, %v9036
        %v9521 = vpack.c.b16 %v9041, %v9037
        %v9522 = vpack.c.b16 %v9042, %v9038
        %v9523 = vpack.c.b16 %v9047, %v9043
        %v9524 = vpack.c.b16 %v9048, %v9044
        %v9525 = vpack.c.b16 %v9049, %v9045
        %v9526 = vpack.c.b16 %v9050, %v9046
        %v9527 = vpack.c.b16 %v9055, %v9051
        %v9528 = vpack.c.b16 %v9056, %v9052
        %v9529 = vpack.c.b16 %v9057, %v9053
        %v9530 = vpack.c.b16 %v9058, %v9054
        %v9531 = vpack.c.b16 %v9063, %v9059
        %v9532 = vpack.c.b16 %v9064, %v9060
        %v9533 = vpack.c.b16 %v9065, %v9061
        %v9534 = vpack.c.b16 %v9066, %v9062
        %v9535 = vpack.c.b16 %v9071, %v9067
        %v9536 = vpack.c.b16 %v9072, %v9068
        %v9537 = vpack.c.b16 %v9073, %v9069
        %v9538 = vpack.c.b16 %v9074, %v9070
        %v9539 = vpack.c.b16 %v9079, %v9075
        %v9540 = vpack.c.b16 %v9080, %v9076
        %v9541 = vpack.c.b16 %v9081, %v9077
        %v9542 = vpack.c.b16 %v9082, %v9078
        %v9543 = vpack.c.b16 %v9087, %v9083
        %v9544 = vpack.c.b16 %v9088, %v9084
        %v9545 = vpack.c.b16 %v9089, %v9085
        %v9546 = vpack.c.b16 %v9090, %v9086
        %v9547 = vpack.c.b16 %v9095, %v9091
        %v9548 = vpack.c.b16 %v9096, %v9092
        %v9549 = vpack.c.b16 %v9097, %v9093
        %v9550 = vpack.c.b16 %v9098, %v9094
        %v9551 = vpack.c.b16 %v9103, %v9099
        %v9552 = vpack.c.b16 %v9104, %v9100
        %v9553 = vpack.c.b16 %v9105, %v9101
        %v9554 = vpack.c.b16 %v9106, %v9102
        %v9555 = vpack.c.b16 %v9111, %v9107
        %v9556 = vpack.c.b16 %v9112, %v9108
        %v9557 = vpack.c.b16 %v9113, %v9109
        %v9558 = vpack.c.b16 %v9114, %v9110
        %v9559 = vpack.c.b16 %v9119, %v9115
        %v9560 = vpack.c.b16 %v9120, %v9116
        %v9561 = vpack.c.b16 %v9121, %v9117
        %v9562 = vpack.c.b16 %v9122, %v9118
        %v9563 = vpack.c.b16 %v9127, %v9123
        %v9564 = vpack.c.b16 %v9128, %v9124
        %v9565 = vpack.c.b16 %v9129, %v9125
        %v9566 = vpack.c.b16 %v9130, %v9126
        %v9567 = vpack.c.b16 %v9135, %v9131
        %v9568 = vpack.c.b16 %v9136, %v9132
        %v9569 = vpack.c.b16 %v9137, %v9133
        %v9570 = vpack.c.b16 %v9138, %v9134
        %v9571 = vpack.c.b16 %v9143, %v9139
        %v9572 = vpack.c.b16 %v9144, %v9140
        %v9573 = vpack.c.b16 %v9145, %v9141
        %v9574 = vpack.c.b16 %v9146, %v9142
        %v9575 = vpack.c.b16 %v9151, %v9147
        %v9576 = vpack.c.b16 %v9152, %v9148
        %v9577 = vpack.c.b16 %v9153, %v9149
        %v9578 = vpack.c.b16 %v9154, %v9150
        %v9579 = vpack.c.b16 %v9159, %v9155
        %v9580 = vpack.c.b16 %v9160, %v9156
        %v9581 = vpack.c.b16 %v9161, %v9157
        %v9582 = vpack.c.b16 %v9162, %v9158
        %v9583 = vpack.c.b16 %v9167, %v9163
        %v9584 = vpack.c.b16 %v9168, %v9164
        %v9585 = vpack.c.b16 %v9169, %v9165
        %v9586 = vpack.c.b16 %v9170, %v9166
        %v9587 = vpack.c.b16 %v9175, %v9171
        %v9588 = vpack.c.b16 %v9176, %v9172
        %v9589 = vpack.c.b16 %v9177, %v9173
        %v9590 = vpack.c.b16 %v9178, %v9174
        %v9591 = vpack.c.b16 %v9183, %v9179
        %v9592 = vpack.c.b16 %v9184, %v9180
        %v9593 = vpack.c.b16 %v9185, %v9181
        %v9594 = vpack.c.b16 %v9186, %v9182
        %v9595 = vpack.c.b16 %v9191, %v9187
        %v9596 = vpack.c.b16 %v9192, %v9188
        %v9597 = vpack.c.b16 %v9193, %v9189
        %v9598 = vpack.c.b16 %v9194, %v9190
        %v9599 = vpack.c.b16 %v9199, %v9195
        %v9600 = vpack.c.b16 %v9200, %v9196
        %v9601 = vpack.c.b16 %v9201, %v9197
        %v9602 = vpack.c.b16 %v9202, %v9198
        %v9603 = vpack.c.b16 %v9207, %v9203
        %v9604 = vpack.c.b16 %v9208, %v9204
        %v9605 = vpack.c.b16 %v9209, %v9205
        %v9606 = vpack.c.b16 %v9210, %v9206
        %v9607 = vpack.c.b16 %v9215, %v9211
        %v9608 = vpack.c.b16 %v9216, %v9212
        %v9609 = vpack.c.b16 %v9217, %v9213
        %v9610 = vpack.c.b16 %v9218, %v9214
        %v9611 = vpack.c.b16 %v9223, %v9219
        %v9612 = vpack.c.b16 %v9224, %v9220
        %v9613 = vpack.c.b16 %v9225, %v9221
        %v9614 = vpack.c.b16 %v9226, %v9222
        %v9615 = vpack.c.b16 %v9231, %v9227
        %v9616 = vpack.c.b16 %v9232, %v9228
        %v9617 = vpack.c.b16 %v9233, %v9229
        %v9618 = vpack.c.b16 %v9234, %v9230
        %v9619 = vpack.c.b16 %v9239, %v9235
        %v9620 = vpack.c.b16 %v9240, %v9236
        %v9621 = vpack.c.b16 %v9241, %v9237
        %v9622 = vpack.c.b16 %v9242, %v9238
        %v9623 = vpack.c.b16 %v9247, %v9243
        %v9624 = vpack.c.b16 %v9248, %v9244
        %v9625 = vpack.c.b16 %v9249, %v9245
        %v9626 = vpack.c.b16 %v9250, %v9246
        %v9627 = vpack.c.b16 %v9255, %v9251
        %v9628 = vpack.c.b16 %v9256, %v9252
        %v9629 = vpack.c.b16 %v9257, %v9253
        %v9630 = vpack.c.b16 %v9258, %v9254
        %v9631 = vpack.c.b16 %v9263, %v9259
        %v9632 = vpack.c.b16 %v9264, %v9260
        %v9633 = vpack.c.b16 %v9265, %v9261
        %v9634 = vpack.c.b16 %v9266, %v9262
        %v9635 = vpack.c.b16 %v9271, %v9267
        %v9636 = vpack.c.b16 %v9272, %v9268
        %v9637 = vpack.c.b16 %v9273, %v9269
        %v9638 = vpack.c.b16 %v9274, %v9270
        %v9639 = vpack.c.b16 %v9279, %v9275
        %v9640 = vpack.c.b16 %v9280, %v9276
        %v9641 = vpack.c.b16 %v9281, %v9277
        %v9642 = vpack.c.b16 %v9282, %v9278
        %v9643 = vpack.c.b16 %v9287, %v9283
        %v9644 = vpack.c.b16 %v9288, %v9284
        %v9645 = vpack.c.b16 %v9289, %v9285
        %v9646 = vpack.c.b16 %v9290, %v9286
        %v9647 = vpack.c.b16 %v9295, %v9291
        %v9648 = vpack.c.b16 %v9296, %v9292
        %v9649 = vpack.c.b16 %v9297, %v9293
        %v9650 = vpack.c.b16 %v9298, %v9294
        %v9651 = vpack.c.b16 %v9303, %v9299
        %v9652 = vpack.c.b16 %v9304, %v9300
        %v9653 = vpack.c.b16 %v9305, %v9301
        %v9654 = vpack.c.b16 %v9306, %v9302
        %v9655 = vpack.c.b16 %v9311, %v9307
        %v9656 = vpack.c.b16 %v9312, %v9308
        %v9657 = vpack.c.b16 %v9313, %v9309
        %v9658 = vpack.c.b16 %v9314, %v9310
        %v9659 = vpack.c.b16 %v9319, %v9315
        %v9660 = vpack.c.b16 %v9320, %v9316
        %v9661 = vpack.c.b16 %v9321, %v9317
        %v9662 = vpack.c.b16 %v9322, %v9318
        %v9663 = vpack.c.b16 %v9327, %v9323
        %v9664 = vpack.c.b16 %v9328, %v9324
        %v9665 = vpack.c.b16 %v9329, %v9325
        %v9666 = vpack.c.b16 %v9330, %v9326
        %v9667 = vpack.c.b16 %v9335, %v9331
        %v9668 = vpack.c.b16 %v9336, %v9332
        %v9669 = vpack.c.b16 %v9337, %v9333
        %v9670 = vpack.c.b16 %v9338, %v9334
        %v9671 = vpack.c.b16 %v9343, %v9339
        %v9672 = vpack.c.b16 %v9344, %v9340
        %v9673 = vpack.c.b16 %v9345, %v9341
        %v9674 = vpack.c.b16 %v9346, %v9342
        %v9675 = vpack.c.b16 %v9351, %v9347
        %v9676 = vpack.c.b16 %v9352, %v9348
        %v9677 = vpack.c.b16 %v9353, %v9349
        %v9678 = vpack.c.b16 %v9354, %v9350
        %v9679 = vpack.c.b16 %v9359, %v9355
        %v9680 = vpack.c.b16 %v9360, %v9356
        %v9681 = vpack.c.b16 %v9361, %v9357
        %v9682 = vpack.c.b16 %v9362, %v9358
        %v9683 = vpack.c.b16 %v9367, %v9363
        %v9684 = vpack.c.b16 %v9368, %v9364
        %v9685 = vpack.c.b16 %v9369, %v9365
        %v9686 = vpack.c.b16 %v9370, %v9366
        %v9687 = vpack.c.b16 %v9375, %v9371
        %v9688 = vpack.c.b16 %v9376, %v9372
        %v9689 = vpack.c.b16 %v9377, %v9373
        %v9690 = vpack.c.b16 %v9378, %v9374
        %v9691 = vpack.c.b16 %v9383, %v9379
        %v9692 = vpack.c.b16 %v9384, %v9380
        %v9693 = vpack.c.b16 %v9385, %v9381
        %v9694 = vpack.c.b16 %v9386, %v9382
        %v9695 = vpack.c.b16 %v9391, %v9387
        %v9696 = vpack.c.b16 %v9392, %v9388
        %v9697 = vpack.c.b16 %v9393, %v9389
        %v9698 = vpack.c.b16 %v9394, %v9390
        %v9699 = vpack.c.b16 %v9399, %v9395
        %v9700 = vpack.c.b16 %v9400, %v9396
        %v9701 = vpack.c.b16 %v9401, %v9397
        %v9702 = vpack.c.b16 %v9402, %v9398
        %v9703 = vpack.c.b16 %v9407, %v9403
        %v9704 = vpack.c.b16 %v9408, %v9404
        %v9705 = vpack.c.b16 %v9409, %v9405
        %v9706 = vpack.c.b16 %v9410, %v9406
        %v9707 = vpack.c.b16 %v9415, %v9411
        %v9708 = vpack.c.b16 %v9416, %v9412
        %v9709 = vpack.c.b16 %v9417, %v9413
        %v9710 = vpack.c.b16 %v9418, %v9414
        %v9711 = vpack.c.b16 %v9423, %v9419
        %v9712 = vpack.c.b16 %v9424, %v9420
        %v9713 = vpack.c.b16 %v9425, %v9421
        %v9714 = vpack.c.b16 %v9426, %v9422
        %v9715 = vpack.c.b16 %v9431, %v9427
        %v9716 = vpack.c.b16 %v9432, %v9428
        %v9717 = vpack.c.b16 %v9433, %v9429
        %v9718 = vpack.c.b16 %v9434, %v9430
        %v9719 = vpack.c.b16 %v9439, %v9435
        %v9720 = vpack.c.b16 %v9440, %v9436
        %v9721 = vpack.c.b16 %v9441, %v9437
        %v9722 = vpack.c.b16 %v9442, %v9438
        %v9723 = vpack.c.b16 %v9447, %v9443
        %v9724 = vpack.c.b16 %v9448, %v9444
        %v9725 = vpack.c.b16 %v9449, %v9445
        %v9726 = vpack.c.b16 %v9450, %v9446
        %v9727 = vpack.c.b16 %v9455, %v9451
        %v9728 = vpack.c.b16 %v9456, %v9452
        %v9729 = vpack.c.b16 %v9457, %v9453
        %v9730 = vpack.c.b16 %v9458, %v9454
        %v9731 = vpack.c.b16 %v9463, %v9459
        %v9732 = vpack.c.b16 %v9464, %v9460
        %v9733 = vpack.c.b16 %v9465, %v9461
        %v9734 = vpack.c.b16 %v9466, %v9462
        %v9735 = vpack.c.b16 %v9471, %v9467
        %v9736 = vpack.c.b16 %v9472, %v9468
        %v9737 = vpack.c.b16 %v9473, %v9469
        %v9738 = vpack.c.b16 %v9474, %v9470
        %v9739 = vpack.c.b16 %v9479, %v9475
        %v9740 = vpack.c.b16 %v9480, %v9476
        %v9741 = vpack.c.b16 %v9481, %v9477
        %v9742 = vpack.c.b16 %v9482, %v9478
        %v9743 = vpack.c.b16 %v9487, %v9483
        %v9744 = vpack.c.b16 %v9488, %v9484
        %v9745 = vpack.c.b16 %v9489, %v9485
        %v9746 = vpack.c.b16 %v9490, %v9486
        %10003 = vmatprep.subr.bf16.mxu0 %v9492
        %10004 = vmatpush1.bf16.msra.mxu0 %v9491
        %10005 = vmatprep.subr.bf16.mxu0 %v9496
        %10006 = vmatpush1.bf16.msra.mxu0 %v9495
        %10007 = vmatprep.subr.bf16.mxu0 %v9500
        %10008 = vmatpush1.bf16.msra.mxu0 %v9499
        %10009 = vmatprep.subr.bf16.mxu0 %v9504
        %10010 = vmatpush1.bf16.msra.mxu0 %v9503
        %10011 = vmatprep.subr.bf16.mxu0 %v9508
        %10012 = vmatpush1.bf16.msra.mxu0 %v9507
        %10013 = vmatprep.subr.bf16.mxu0 %v9512
        %10014 = vmatpush1.bf16.msra.mxu0 %v9511
        %10015 = vmatprep.subr.bf16.mxu0 %v9516
        %10016 = vmatpush1.bf16.msra.mxu0 %v9515
        %10017 = vmatprep.subr.bf16.mxu0 %v9520
        %10018 = vmatpush1.bf16.msra.mxu0 %v9519
        %10019 = vmatprep.subr.bf16.mxu0 %v9524
        %10020 = vmatpush1.bf16.msra.mxu0 %v9523
        %10021 = vmatprep.subr.bf16.mxu0 %v9528
        %10022 = vmatpush1.bf16.msra.mxu0 %v9527
        %10023 = vmatprep.subr.bf16.mxu0 %v9532
        %10024 = vmatpush1.bf16.msra.mxu0 %v9531
        %10025 = vmatprep.subr.bf16.mxu0 %v9536
        %10026 = vmatpush1.bf16.msra.mxu0 %v9535
        %10027 = vmatprep.subr.bf16.mxu0 %v9540
        %10028 = vmatpush1.bf16.msra.mxu0 %v9539
        %10029 = vmatprep.subr.bf16.mxu0 %v9544
        %10030 = vmatpush1.bf16.msra.mxu0 %v9543
        %10031 = vmatprep.subr.bf16.mxu0 %v9548
        %10032 = vmatpush1.bf16.msra.mxu0 %v9547
        %10033 = vmatprep.subr.bf16.mxu0 %v9552
        %10034 = vmatpush1.bf16.msra.mxu0 %v9551
        %10035 = vmatprep.mubr.bf16.mxu0 %v8708
        %10036 = vmatmul.mubr.bf16.gmra.mrb[0].mxu0 %v8707
        %v10037 = vpop.f32.mrb[0].mxu0
        %v10038 = vadd.f32 %v8642, %v10037
        %v10039 = vpop.f32.mrb[0].mxu0
        %v10040 = vadd.f32 %v8646, %v10039
        %v10041 = vpop.f32.mrb[0].mxu0
        %v10042 = vpop.f32.mrb[0].mxu0
        %10043 = vdwg.mxu0
        %10044 = vmatprep.subr.bf16.mxu0 %v9556
        %10045 = vmatpush1.bf16.msra.mxu0 %v9555
        %10046 = vmatprep.subr.bf16.mxu0 %v9560
        %10047 = vmatpush1.bf16.msra.mxu0 %v9559
        %10048 = vmatprep.subr.bf16.mxu0 %v9564
        %10049 = vmatpush1.bf16.msra.mxu0 %v9563
        %10050 = vmatprep.subr.bf16.mxu0 %v9568
        %10051 = vmatpush1.bf16.msra.mxu0 %v9567
        %10052 = vmatprep.subr.bf16.mxu0 %v9572
        %10053 = vmatpush1.bf16.msra.mxu0 %v9571
        %10054 = vmatprep.subr.bf16.mxu0 %v9576
        %10055 = vmatpush1.bf16.msra.mxu0 %v9575
        %10056 = vmatprep.subr.bf16.mxu0 %v9580
        %10057 = vmatpush1.bf16.msra.mxu0 %v9579
        %10058 = vmatprep.subr.bf16.mxu0 %v9584
        %10059 = vmatpush1.bf16.msra.mxu0 %v9583
        %10060 = vmatprep.subr.bf16.mxu0 %v9588
        %10061 = vmatpush1.bf16.msra.mxu0 %v9587
        %10062 = vmatprep.subr.bf16.mxu0 %v9592
        %10063 = vmatpush1.bf16.msra.mxu0 %v9591
        %10064 = vmatprep.subr.bf16.mxu0 %v9596
        %10065 = vmatpush1.bf16.msra.mxu0 %v9595
        %10066 = vmatprep.subr.bf16.mxu0 %v9600
        %10067 = vmatpush1.bf16.msra.mxu0 %v9599
        %10068 = vmatprep.subr.bf16.mxu0 %v9604
        %10069 = vmatpush1.bf16.msra.mxu0 %v9603
        %10070 = vmatprep.subr.bf16.mxu0 %v9608
        %10071 = vmatpush1.bf16.msra.mxu0 %v9607
        %10072 = vmatprep.subr.bf16.mxu0 %v9612
        %10073 = vmatpush1.bf16.msra.mxu0 %v9611
        %10074 = vmatprep.subr.bf16.mxu0 %v9616
        %10075 = vmatpush1.bf16.msra.mxu0 %v9615
        %10076 = vmatprep.mubr.bf16.mxu0 %v8710
        %10077 = vmatmul.mubr.bf16.gmra.mrb[0].mxu0 %v8709
        %v10078 = vpop.f32.mrb[0].mxu0
        %v10079 = vadd.f32 %v10038, %v10078
        %v10080 = vpop.f32.mrb[0].mxu0
        %v10081 = vadd.f32 %v10040, %v10080
        %v10082 = vpop.f32.mrb[0].mxu0
        %v10083 = vpop.f32.mrb[0].mxu0
        %10084 = vdwg.mxu0
        %10085 = vmatprep.subr.bf16.mxu0 %v9620
        %10086 = vmatpush1.bf16.msra.mxu0 %v9619
        %10087 = vmatprep.subr.bf16.mxu0 %v9624
        %10088 = vmatpush1.bf16.msra.mxu0 %v9623
        %10089 = vmatprep.subr.bf16.mxu0 %v9628
        %10090 = vmatpush1.bf16.msra.mxu0 %v9627
        %10091 = vmatprep.subr.bf16.mxu0 %v9632
        %10092 = vmatpush1.bf16.msra.mxu0 %v9631
        %10093 = vmatprep.subr.bf16.mxu0 %v9636
        %10094 = vmatpush1.bf16.msra.mxu0 %v9635
        %10095 = vmatprep.subr.bf16.mxu0 %v9640
        %10096 = vmatpush1.bf16.msra.mxu0 %v9639
        %10097 = vmatprep.subr.bf16.mxu0 %v9644
        %10098 = vmatpush1.bf16.msra.mxu0 %v9643
        %10099 = vmatprep.subr.bf16.mxu0 %v9648
        %10100 = vmatpush1.bf16.msra.mxu0 %v9647
        %10101 = vmatprep.subr.bf16.mxu0 %v9652
        %10102 = vmatpush1.bf16.msra.mxu0 %v9651
        %10103 = vmatprep.subr.bf16.mxu0 %v9656
        %10104 = vmatpush1.bf16.msra.mxu0 %v9655
        %10105 = vmatprep.subr.bf16.mxu0 %v9660
        %10106 = vmatpush1.bf16.msra.mxu0 %v9659
        %10107 = vmatprep.subr.bf16.mxu0 %v9664
        %10108 = vmatpush1.bf16.msra.mxu0 %v9663
        %10109 = vmatprep.subr.bf16.mxu0 %v9668
        %10110 = vmatpush1.bf16.msra.mxu0 %v9667
        %10111 = vmatprep.subr.bf16.mxu0 %v9672
        %10112 = vmatpush1.bf16.msra.mxu0 %v9671
        %10113 = vmatprep.subr.bf16.mxu0 %v9676
        %10114 = vmatpush1.bf16.msra.mxu0 %v9675
        %10115 = vmatprep.subr.bf16.mxu0 %v9680
        %10116 = vmatpush1.bf16.msra.mxu0 %v9679
        %10117 = vmatprep.mubr.bf16.mxu0 %v8712
        %10118 = vmatmul.mubr.bf16.gmra.mrb[0].mxu0 %v8711
        %v10119 = vpop.f32.mrb[0].mxu0
        %v10120 = vadd.f32 %v10079, %v10119
        %v10121 = vpop.f32.mrb[0].mxu0
        %v10122 = vadd.f32 %v10081, %v10121
        %v10123 = vpop.f32.mrb[0].mxu0
        %v10124 = vpop.f32.mrb[0].mxu0
        %10125 = vdwg.mxu0
        %10126 = vmatprep.subr.bf16.mxu0 %v9684
        %10127 = vmatpush1.bf16.msra.mxu0 %v9683
        %10128 = vmatprep.subr.bf16.mxu0 %v9688
        %10129 = vmatpush1.bf16.msra.mxu0 %v9687
        %10130 = vmatprep.subr.bf16.mxu0 %v9692
        %10131 = vmatpush1.bf16.msra.mxu0 %v9691
        %10132 = vmatprep.subr.bf16.mxu0 %v9696
        %10133 = vmatpush1.bf16.msra.mxu0 %v9695
        %10134 = vmatprep.subr.bf16.mxu0 %v9700
        %10135 = vmatpush1.bf16.msra.mxu0 %v9699
        %10136 = vmatprep.subr.bf16.mxu0 %v9704
        %10137 = vmatpush1.bf16.msra.mxu0 %v9703
        %10138 = vmatprep.subr.bf16.mxu0 %v9708
        %10139 = vmatpush1.bf16.msra.mxu0 %v9707
        %10140 = vmatprep.subr.bf16.mxu0 %v9712
        %10141 = vmatpush1.bf16.msra.mxu0 %v9711
        %10142 = vmatprep.subr.bf16.mxu0 %v9716
        %10143 = vmatpush1.bf16.msra.mxu0 %v9715
        %10144 = vmatprep.subr.bf16.mxu0 %v9720
        %10145 = vmatpush1.bf16.msra.mxu0 %v9719
        %10146 = vmatprep.subr.bf16.mxu0 %v9724
        %10147 = vmatpush1.bf16.msra.mxu0 %v9723
        %10148 = vmatprep.subr.bf16.mxu0 %v9728
        %10149 = vmatpush1.bf16.msra.mxu0 %v9727
        %10150 = vmatprep.subr.bf16.mxu0 %v9732
        %10151 = vmatpush1.bf16.msra.mxu0 %v9731
        %10152 = vmatprep.subr.bf16.mxu0 %v9736
        %10153 = vmatpush1.bf16.msra.mxu0 %v9735
        %10154 = vmatprep.subr.bf16.mxu0 %v9740
        %10155 = vmatpush1.bf16.msra.mxu0 %v9739
        %10156 = vmatprep.subr.bf16.mxu0 %v9744
        %10157 = vmatpush1.bf16.msra.mxu0 %v9743
        %10158 = vmatprep.mubr.bf16.mxu0 %v8714
        %10159 = vmatmul.mubr.bf16.gmra.mrb[0].mxu0 %v8713
        %v10160 = vpop.f32.mrb[0].mxu0
        %v10161 = vadd.f32 %v10120, %v10160
        %v10162 = vpop.f32.mrb[0].mxu0
        %v10163 = vadd.f32 %v10122, %v10162
        %v10164 = vpop.f32.mrb[0].mxu0
        %v10165 = vpop.f32.mrb[0].mxu0
        %10166 = vdwg.mxu0
        %10167 = vmatprep.subr.bf16.mxu0 %v9494
        %10168 = vmatpush1.bf16.msra.mxu0 %v9493
        %10169 = vmatprep.subr.bf16.mxu0 %v9498
        %10170 = vmatpush1.bf16.msra.mxu0 %v9497
        %10171 = vmatprep.subr.bf16.mxu0 %v9502
        %10172 = vmatpush1.bf16.msra.mxu0 %v9501
        %10173 = vmatprep.subr.bf16.mxu0 %v9506
        %10174 = vmatpush1.bf16.msra.mxu0 %v9505
        %10175 = vmatprep.subr.bf16.mxu0 %v9510
        %10176 = vmatpush1.bf16.msra.mxu0 %v9509
        %10177 = vmatprep.subr.bf16.mxu0 %v9514
        %10178 = vmatpush1.bf16.msra.mxu0 %v9513
        %10179 = vmatprep.subr.bf16.mxu0 %v9518
        %10180 = vmatpush1.bf16.msra.mxu0 %v9517
        %10181 = vmatprep.subr.bf16.mxu0 %v9522
        %10182 = vmatpush1.bf16.msra.mxu0 %v9521
        %10183 = vmatprep.subr.bf16.mxu0 %v9526
        %10184 = vmatpush1.bf16.msra.mxu0 %v9525
        %10185 = vmatprep.subr.bf16.mxu0 %v9530
        %10186 = vmatpush1.bf16.msra.mxu0 %v9529
        %10187 = vmatprep.subr.bf16.mxu0 %v9534
        %10188 = vmatpush1.bf16.msra.mxu0 %v9533
        %10189 = vmatprep.subr.bf16.mxu0 %v9538
        %10190 = vmatpush1.bf16.msra.mxu0 %v9537
        %10191 = vmatprep.subr.bf16.mxu0 %v9542
        %10192 = vmatpush1.bf16.msra.mxu0 %v9541
        %10193 = vmatprep.subr.bf16.mxu0 %v9546
        %10194 = vmatpush1.bf16.msra.mxu0 %v9545
        %10195 = vmatprep.subr.bf16.mxu0 %v9550
        %10196 = vmatpush1.bf16.msra.mxu0 %v9549
        %10197 = vmatprep.subr.bf16.mxu0 %v9554
        %10198 = vmatpush1.bf16.msra.mxu0 %v9553
        %10199 = vmatprep.mubr.bf16.mxu0 %v8708
        %10200 = vmatmul.mubr.bf16.gmra.mrb[0].mxu0 %v8707
        %v10201 = vpop.f32.mrb[0].mxu0
        %v10202 = vadd.f32 %v8650, %v10201
        %v10203 = vpop.f32.mrb[0].mxu0
        %v10204 = vadd.f32 %v8654, %v10203
        %v10205 = vpop.f32.mrb[0].mxu0
        %v10206 = vpop.f32.mrb[0].mxu0
        %10207 = vdwg.mxu0
        %10208 = vmatprep.subr.bf16.mxu0 %v9558
        %10209 = vmatpush1.bf16.msra.mxu0 %v9557
        %10210 = vmatprep.subr.bf16.mxu0 %v9562
        %10211 = vmatpush1.bf16.msra.mxu0 %v9561
        %10212 = vmatprep.subr.bf16.mxu0 %v9566
        %10213 = vmatpush1.bf16.msra.mxu0 %v9565
        %10214 = vmatprep.subr.bf16.mxu0 %v9570
        %10215 = vmatpush1.bf16.msra.mxu0 %v9569
        %10216 = vmatprep.subr.bf16.mxu0 %v9574
        %10217 = vmatpush1.bf16.msra.mxu0 %v9573
        %10218 = vmatprep.subr.bf16.mxu0 %v9578
        %10219 = vmatpush1.bf16.msra.mxu0 %v9577
        %10220 = vmatprep.subr.bf16.mxu0 %v9582
        %10221 = vmatpush1.bf16.msra.mxu0 %v9581
        %10222 = vmatprep.subr.bf16.mxu0 %v9586
        %10223 = vmatpush1.bf16.msra.mxu0 %v9585
        %10224 = vmatprep.subr.bf16.mxu0 %v9590
        %10225 = vmatpush1.bf16.msra.mxu0 %v9589
        %10226 = vmatprep.subr.bf16.mxu0 %v9594
        %10227 = vmatpush1.bf16.msra.mxu0 %v9593
        %10228 = vmatprep.subr.bf16.mxu0 %v9598
        %10229 = vmatpush1.bf16.msra.mxu0 %v9597
        %10230 = vmatprep.subr.bf16.mxu0 %v9602
        %10231 = vmatpush1.bf16.msra.mxu0 %v9601
        %10232 = vmatprep.subr.bf16.mxu0 %v9606
        %10233 = vmatpush1.bf16.msra.mxu0 %v9605
        %10234 = vmatprep.subr.bf16.mxu0 %v9610
        %10235 = vmatpush1.bf16.msra.mxu0 %v9609
        %10236 = vmatprep.subr.bf16.mxu0 %v9614
        %10237 = vmatpush1.bf16.msra.mxu0 %v9613
        %10238 = vmatprep.subr.bf16.mxu0 %v9618
        %10239 = vmatpush1.bf16.msra.mxu0 %v9617
        %10240 = vmatprep.mubr.bf16.mxu0 %v8710
        %10241 = vmatmul.mubr.bf16.gmra.mrb[0].mxu0 %v8709
        %v10242 = vpop.f32.mrb[0].mxu0
        %v10243 = vadd.f32 %v10202, %v10242
        %v10244 = vpop.f32.mrb[0].mxu0
        %v10245 = vadd.f32 %v10204, %v10244
        %v10246 = vpop.f32.mrb[0].mxu0
        %v10247 = vpop.f32.mrb[0].mxu0
        %10248 = vdwg.mxu0
        %10249 = vmatprep.subr.bf16.mxu0 %v9622
        %10250 = vmatpush1.bf16.msra.mxu0 %v9621
        %10251 = vmatprep.subr.bf16.mxu0 %v9626
        %10252 = vmatpush1.bf16.msra.mxu0 %v9625
        %10253 = vmatprep.subr.bf16.mxu0 %v9630
        %10254 = vmatpush1.bf16.msra.mxu0 %v9629
        %10255 = vmatprep.subr.bf16.mxu0 %v9634
        %10256 = vmatpush1.bf16.msra.mxu0 %v9633
        %10257 = vmatprep.subr.bf16.mxu0 %v9638
        %10258 = vmatpush1.bf16.msra.mxu0 %v9637
        %10259 = vmatprep.subr.bf16.mxu0 %v9642
        %10260 = vmatpush1.bf16.msra.mxu0 %v9641
        %10261 = vmatprep.subr.bf16.mxu0 %v9646
        %10262 = vmatpush1.bf16.msra.mxu0 %v9645
        %10263 = vmatprep.subr.bf16.mxu0 %v9650
        %10264 = vmatpush1.bf16.msra.mxu0 %v9649
        %10265 = vmatprep.subr.bf16.mxu0 %v9654
        %10266 = vmatpush1.bf16.msra.mxu0 %v9653
        %10267 = vmatprep.subr.bf16.mxu0 %v9658
        %10268 = vmatpush1.bf16.msra.mxu0 %v9657
        %10269 = vmatprep.subr.bf16.mxu0 %v9662
        %10270 = vmatpush1.bf16.msra.mxu0 %v9661
        %10271 = vmatprep.subr.bf16.mxu0 %v9666
        %10272 = vmatpush1.bf16.msra.mxu0 %v9665
        %10273 = vmatprep.subr.bf16.mxu0 %v9670
        %10274 = vmatpush1.bf16.msra.mxu0 %v9669
        %10275 = vmatprep.subr.bf16.mxu0 %v9674
        %10276 = vmatpush1.bf16.msra.mxu0 %v9673
        %10277 = vmatprep.subr.bf16.mxu0 %v9678
        %10278 = vmatpush1.bf16.msra.mxu0 %v9677
        %10279 = vmatprep.subr.bf16.mxu0 %v9682
        %10280 = vmatpush1.bf16.msra.mxu0 %v9681
        %10281 = vmatprep.mubr.bf16.mxu0 %v8712
        %10282 = vmatmul.mubr.bf16.gmra.mrb[0].mxu0 %v8711
        %v10283 = vpop.f32.mrb[0].mxu0
        %v10284 = vadd.f32 %v10243, %v10283
        %v10285 = vpop.f32.mrb[0].mxu0
        %v10286 = vadd.f32 %v10245, %v10285
        %v10287 = vpop.f32.mrb[0].mxu0
        %v10288 = vpop.f32.mrb[0].mxu0
        %10289 = vdwg.mxu0
        %10290 = vmatprep.subr.bf16.mxu0 %v9686
        %10291 = vmatpush1.bf16.msra.mxu0 %v9685
        %10292 = vmatprep.subr.bf16.mxu0 %v9690
        %10293 = vmatpush1.bf16.msra.mxu0 %v9689
        %10294 = vmatprep.subr.bf16.mxu0 %v9694
        %10295 = vmatpush1.bf16.msra.mxu0 %v9693
        %10296 = vmatprep.subr.bf16.mxu0 %v9698
        %10297 = vmatpush1.bf16.msra.mxu0 %v9697
        %10298 = vmatprep.subr.bf16.mxu0 %v9702
        %10299 = vmatpush1.bf16.msra.mxu0 %v9701
        %10300 = vmatprep.subr.bf16.mxu0 %v9706
        %10301 = vmatpush1.bf16.msra.mxu0 %v9705
        %10302 = vmatprep.subr.bf16.mxu0 %v9710
        %10303 = vmatpush1.bf16.msra.mxu0 %v9709
        %10304 = vmatprep.subr.bf16.mxu0 %v9714
        %10305 = vmatpush1.bf16.msra.mxu0 %v9713
        %10306 = vmatprep.subr.bf16.mxu0 %v9718
        %10307 = vmatpush1.bf16.msra.mxu0 %v9717
        %10308 = vmatprep.subr.bf16.mxu0 %v9722
        %10309 = vmatpush1.bf16.msra.mxu0 %v9721
        %10310 = vmatprep.subr.bf16.mxu0 %v9726
        %10311 = vmatpush1.bf16.msra.mxu0 %v9725
        %10312 = vmatprep.subr.bf16.mxu0 %v9730
        %10313 = vmatpush1.bf16.msra.mxu0 %v9729
        %10314 = vmatprep.subr.bf16.mxu0 %v9734
        %10315 = vmatpush1.bf16.msra.mxu0 %v9733
        %10316 = vmatprep.subr.bf16.mxu0 %v9738
        %10317 = vmatpush1.bf16.msra.mxu0 %v9737
        %10318 = vmatprep.subr.bf16.mxu0 %v9742
        %10319 = vmatpush1.bf16.msra.mxu0 %v9741
        %10320 = vmatprep.subr.bf16.mxu0 %v9746
        %10321 = vmatpush1.bf16.msra.mxu0 %v9745
        %10322 = vmatprep.mubr.bf16.mxu0 %v8714
        %10323 = vmatmul.mubr.bf16.gmra.mrb[0].mxu0 %v8713
        %v10324 = vpop.f32.mrb[0].mxu0
        %v10325 = vadd.f32 %v10284, %v10324
        %v10326 = vpop.f32.mrb[0].mxu0
        %v10327 = vadd.f32 %v10286, %v10326
        %v10328 = vpop.f32.mrb[0].mxu0
        %v10329 = vpop.f32.mrb[0].mxu0
        %10330 = vdwg.mxu0
        %v10331 = vmax.f32 %v10161, 0.0
        %v10332 = vmax.f32 %v10163, 0.0
        %v10333 = vmax.f32 %v10325, 0.0
        %v10334 = vmax.f32 %v10327, 0.0
        %v10335 = vpack.c.bf16 %v10331, %v10331
        %v10336 = vpack.c.bf16 %v10332, %v10332
        %v10337 = vpack.c.bf16 %v10333, %v10333
        %v10338 = vpack.c.bf16 %v10334, %v10334
        %v10339 = vld [vmem:[#allocation11] sm:$0xff]
        %v10340 = vld [vmem:[#allocation11 + $0x8] sm:$0xff]
        %v10341 = vld [vmem:[#allocation11 + $0x10] sm:$0xff]
        %v10342 = vld [vmem:[#allocation11 + $0x18] sm:$0xff]
        %v10343 = vld [vmem:[#allocation11 + $0x20] sm:$0xff]
        %v10344 = vld [vmem:[#allocation11 + $0x28] sm:$0xff]
        %v10345 = vld [vmem:[#allocation11 + $0x30] sm:$0xff]
        %v10346 = vld [vmem:[#allocation11 + $0x38] sm:$0xff]
        %v10347 = vld [vmem:[#allocation11 + $0x40] sm:$0xff]
        %v10348 = vld [vmem:[#allocation11 + $0x48] sm:$0xff]
        %v10349 = vld [vmem:[#allocation11 + $0x50] sm:$0xff]
        %v10350 = vld [vmem:[#allocation11 + $0x58] sm:$0xff]
        %v10351 = vld [vmem:[#allocation11 + $0x60] sm:$0xff]
        %v10352 = vld [vmem:[#allocation11 + $0x68] sm:$0xff]
        %v10353 = vld [vmem:[#allocation11 + $0x70] sm:$0xff]
        %v10354 = vld [vmem:[#allocation11 + $0x78] sm:$0xff]
        %v10355 = vld [vmem:[#allocation11 + $0x80] sm:$0xff]
        %v10356 = vld [vmem:[#allocation11 + $0x88] sm:$0xff]
        %v10357 = vld [vmem:[#allocation11 + $0x90] sm:$0xff]
        %v10358 = vld [vmem:[#allocation11 + $0x98] sm:$0xff]
        %v10359 = vld [vmem:[#allocation11 + $0xa0] sm:$0xff]
        %v10360 = vld [vmem:[#allocation11 + $0xa8] sm:$0xff]
        %v10361 = vld [vmem:[#allocation11 + $0xb0] sm:$0xff]
        %v10362 = vld [vmem:[#allocation11 + $0xb8] sm:$0xff]
        %v10363 = vld [vmem:[#allocation11 + $0xc0] sm:$0xff]
        %v10364 = vld [vmem:[#allocation11 + $0xc8] sm:$0xff]
        %v10365 = vld [vmem:[#allocation11 + $0xd0] sm:$0xff]
        %v10366 = vld [vmem:[#allocation11 + $0xd8] sm:$0xff]
        %v10367 = vld [vmem:[#allocation11 + $0xe0] sm:$0xff]
        %v10368 = vld [vmem:[#allocation11 + $0xe8] sm:$0xff]
        %v10369 = vld [vmem:[#allocation11 + $0xf0] sm:$0xff]
        %v10370 = vld [vmem:[#allocation11 + $0xf8] sm:$0xff]
        %v10371 = vld [vmem:[#allocation11 + $0x100] sm:$0xff]
        %v10372 = vld [vmem:[#allocation11 + $0x108] sm:$0xff]
        %v10373 = vld [vmem:[#allocation11 + $0x110] sm:$0xff]
        %v10374 = vld [vmem:[#allocation11 + $0x118] sm:$0xff]
        %v10375 = vld [vmem:[#allocation11 + $0x120] sm:$0xff]
        %v10376 = vld [vmem:[#allocation11 + $0x128] sm:$0xff]
        %v10377 = vld [vmem:[#allocation11 + $0x130] sm:$0xff]
        %v10378 = vld [vmem:[#allocation11 + $0x138] sm:$0xff]
        %v10379 = vld [vmem:[#allocation11 + $0x140] sm:$0xff]
        %v10380 = vld [vmem:[#allocation11 + $0x148] sm:$0xff]
        %v10381 = vld [vmem:[#allocation11 + $0x150] sm:$0xff]
        %v10382 = vld [vmem:[#allocation11 + $0x158] sm:$0xff]
        %v10383 = vld [vmem:[#allocation11 + $0x160] sm:$0xff]
        %v10384 = vld [vmem:[#allocation11 + $0x168] sm:$0xff]
        %v10385 = vld [vmem:[#allocation11 + $0x170] sm:$0xff]
        %v10386 = vld [vmem:[#allocation11 + $0x178] sm:$0xff]
        %v10387 = vld [vmem:[#allocation11 + $0x180] sm:$0xff]
        %v10388 = vld [vmem:[#allocation11 + $0x188] sm:$0xff]
        %v10389 = vld [vmem:[#allocation11 + $0x190] sm:$0xff]
        %v10390 = vld [vmem:[#allocation11 + $0x198] sm:$0xff]
        %v10391 = vld [vmem:[#allocation11 + $0x1a0] sm:$0xff]
        %v10392 = vld [vmem:[#allocation11 + $0x1a8] sm:$0xff]
        %v10393 = vld [vmem:[#allocation11 + $0x1b0] sm:$0xff]
        %v10394 = vld [vmem:[#allocation11 + $0x1b8] sm:$0xff]
        %v10395 = vld [vmem:[#allocation11 + $0x1c0] sm:$0xff]
        %v10396 = vld [vmem:[#allocation11 + $0x1c8] sm:$0xff]
        %v10397 = vld [vmem:[#allocation11 + $0x1d0] sm:$0xff]
        %v10398 = vld [vmem:[#allocation11 + $0x1d8] sm:$0xff]
        %v10399 = vld [vmem:[#allocation11 + $0x1e0] sm:$0xff]
        %v10400 = vld [vmem:[#allocation11 + $0x1e8] sm:$0xff]
        %v10401 = vld [vmem:[#allocation11 + $0x1f0] sm:$0xff]
        %v10402 = vld [vmem:[#allocation11 + $0x1f8] sm:$0xff]
        %v10403 = vld [vmem:[%s22] sm:$0x3]
        %v10405 = vlaneseq
        %v10406 = vshrl.u32 %v10405, 7
        %v10407 = vsub.s32 0, %v10406
        %v10408 = vrot.slane %v10403, %v10407
        %v10409 = vlaneseq
        %v10410 = vshrl.u32 %v10409, 7
        %v10411 = vsub.s32 1, %v10410
        %v10412 = vrot.slane %v10403, %v10411
        %v10479 = vunpack.c.l.b16 %v10339
        %v10480 = vunpack.c.h.b16 %v10339
        %v10481 = vunpack.c.l.b16 %v10340
        %v10482 = vunpack.c.h.b16 %v10340
        %v10483 = vunpack.c.l.b16 %v10341
        %v10484 = vunpack.c.h.b16 %v10341
        %v10485 = vunpack.c.l.b16 %v10342
        %v10486 = vunpack.c.h.b16 %v10342
        %v10487 = vunpack.c.l.b16 %v10343
        %v10488 = vunpack.c.h.b16 %v10343
        %v10489 = vunpack.c.l.b16 %v10344
        %v10490 = vunpack.c.h.b16 %v10344
        %v10491 = vunpack.c.l.b16 %v10345
        %v10492 = vunpack.c.h.b16 %v10345
        %v10493 = vunpack.c.l.b16 %v10346
        %v10494 = vunpack.c.h.b16 %v10346
        %v10495 = vunpack.c.l.b16 %v10347
        %v10496 = vunpack.c.h.b16 %v10347
        %v10497 = vunpack.c.l.b16 %v10348
        %v10498 = vunpack.c.h.b16 %v10348
        %v10499 = vunpack.c.l.b16 %v10349
        %v10500 = vunpack.c.h.b16 %v10349
        %v10501 = vunpack.c.l.b16 %v10350
        %v10502 = vunpack.c.h.b16 %v10350
        %v10503 = vunpack.c.l.b16 %v10351
        %v10504 = vunpack.c.h.b16 %v10351
        %v10505 = vunpack.c.l.b16 %v10352
        %v10506 = vunpack.c.h.b16 %v10352
        %v10507 = vunpack.c.l.b16 %v10353
        %v10508 = vunpack.c.h.b16 %v10353
        %v10509 = vunpack.c.l.b16 %v10354
        %v10510 = vunpack.c.h.b16 %v10354
        %v10511 = vunpack.c.l.b16 %v10355
        %v10512 = vunpack.c.h.b16 %v10355
        %v10513 = vunpack.c.l.b16 %v10356
        %v10514 = vunpack.c.h.b16 %v10356
        %v10515 = vunpack.c.l.b16 %v10357
        %v10516 = vunpack.c.h.b16 %v10357
        %v10517 = vunpack.c.l.b16 %v10358
        %v10518 = vunpack.c.h.b16 %v10358
        %v10519 = vunpack.c.l.b16 %v10359
        %v10520 = vunpack.c.h.b16 %v10359
        %v10521 = vunpack.c.l.b16 %v10360
        %v10522 = vunpack.c.h.b16 %v10360
        %v10523 = vunpack.c.l.b16 %v10361
        %v10524 = vunpack.c.h.b16 %v10361
        %v10525 = vunpack.c.l.b16 %v10362
        %v10526 = vunpack.c.h.b16 %v10362
        %v10527 = vunpack.c.l.b16 %v10363
        %v10528 = vunpack.c.h.b16 %v10363
        %v10529 = vunpack.c.l.b16 %v10364
        %v10530 = vunpack.c.h.b16 %v10364
        %v10531 = vunpack.c.l.b16 %v10365
        %v10532 = vunpack.c.h.b16 %v10365
        %v10533 = vunpack.c.l.b16 %v10366
        %v10534 = vunpack.c.h.b16 %v10366
        %v10535 = vunpack.c.l.b16 %v10367
        %v10536 = vunpack.c.h.b16 %v10367
        %v10537 = vunpack.c.l.b16 %v10368
        %v10538 = vunpack.c.h.b16 %v10368
        %v10539 = vunpack.c.l.b16 %v10369
        %v10540 = vunpack.c.h.b16 %v10369
        %v10541 = vunpack.c.l.b16 %v10370
        %v10542 = vunpack.c.h.b16 %v10370
        %v10543 = vunpack.c.l.b16 %v10371
        %v10544 = vunpack.c.h.b16 %v10371
        %v10545 = vunpack.c.l.b16 %v10372
        %v10546 = vunpack.c.h.b16 %v10372
        %v10547 = vunpack.c.l.b16 %v10373
        %v10548 = vunpack.c.h.b16 %v10373
        %v10549 = vunpack.c.l.b16 %v10374
        %v10550 = vunpack.c.h.b16 %v10374
        %v10551 = vunpack.c.l.b16 %v10375
        %v10552 = vunpack.c.h.b16 %v10375
        %v10553 = vunpack.c.l.b16 %v10376
        %v10554 = vunpack.c.h.b16 %v10376
        %v10555 = vunpack.c.l.b16 %v10377
        %v10556 = vunpack.c.h.b16 %v10377
        %v10557 = vunpack.c.l.b16 %v10378
        %v10558 = vunpack.c.h.b16 %v10378
        %v10559 = vunpack.c.l.b16 %v10379
        %v10560 = vunpack.c.h.b16 %v10379
        %v10561 = vunpack.c.l.b16 %v10380
        %v10562 = vunpack.c.h.b16 %v10380
        %v10563 = vunpack.c.l.b16 %v10381
        %v10564 = vunpack.c.h.b16 %v10381
        %v10565 = vunpack.c.l.b16 %v10382
        %v10566 = vunpack.c.h.b16 %v10382
        %v10567 = vunpack.c.l.b16 %v10383
        %v10568 = vunpack.c.h.b16 %v10383
        %v10569 = vunpack.c.l.b16 %v10384
        %v10570 = vunpack.c.h.b16 %v10384
        %v10571 = vunpack.c.l.b16 %v10385
        %v10572 = vunpack.c.h.b16 %v10385
        %v10573 = vunpack.c.l.b16 %v10386
        %v10574 = vunpack.c.h.b16 %v10386
        %v10575 = vunpack.c.l.b16 %v10387
        %v10576 = vunpack.c.h.b16 %v10387
        %v10577 = vunpack.c.l.b16 %v10388
        %v10578 = vunpack.c.h.b16 %v10388
        %v10579 = vunpack.c.l.b16 %v10389
        %v10580 = vunpack.c.h.b16 %v10389
        %v10581 = vunpack.c.l.b16 %v10390
        %v10582 = vunpack.c.h.b16 %v10390
        %v10583 = vunpack.c.l.b16 %v10391
        %v10584 = vunpack.c.h.b16 %v10391
        %v10585 = vunpack.c.l.b16 %v10392
        %v10586 = vunpack.c.h.b16 %v10392
        %v10587 = vunpack.c.l.b16 %v10393
        %v10588 = vunpack.c.h.b16 %v10393
        %v10589 = vunpack.c.l.b16 %v10394
        %v10590 = vunpack.c.h.b16 %v10394
        %v10591 = vunpack.c.l.b16 %v10395
        %v10592 = vunpack.c.h.b16 %v10395
        %v10593 = vunpack.c.l.b16 %v10396
        %v10594 = vunpack.c.h.b16 %v10396
        %v10595 = vunpack.c.l.b16 %v10397
        %v10596 = vunpack.c.h.b16 %v10397
        %v10597 = vunpack.c.l.b16 %v10398
        %v10598 = vunpack.c.h.b16 %v10398
        %v10599 = vunpack.c.l.b16 %v10399
        %v10600 = vunpack.c.h.b16 %v10399
        %v10601 = vunpack.c.l.b16 %v10400
        %v10602 = vunpack.c.h.b16 %v10400
        %v10603 = vunpack.c.l.b16 %v10401
        %v10604 = vunpack.c.h.b16 %v10401
        %v10605 = vunpack.c.l.b16 %v10402
        %v10606 = vunpack.c.h.b16 %v10402
        %v10607 = vpack.c.b16 %v10481, %v10479
        %v10608 = vpack.c.b16 %v10482, %v10480
        %v10609 = vpack.c.b16 %v10485, %v10483
        %v10610 = vpack.c.b16 %v10486, %v10484
        %v10611 = vpack.c.b16 %v10489, %v10487
        %v10612 = vpack.c.b16 %v10490, %v10488
        %v10613 = vpack.c.b16 %v10493, %v10491
        %v10614 = vpack.c.b16 %v10494, %v10492
        %v10615 = vpack.c.b16 %v10497, %v10495
        %v10616 = vpack.c.b16 %v10498, %v10496
        %v10617 = vpack.c.b16 %v10501, %v10499
        %v10618 = vpack.c.b16 %v10502, %v10500
        %v10619 = vpack.c.b16 %v10505, %v10503
        %v10620 = vpack.c.b16 %v10506, %v10504
        %v10621 = vpack.c.b16 %v10509, %v10507
        %v10622 = vpack.c.b16 %v10510, %v10508
        %v10623 = vpack.c.b16 %v10513, %v10511
        %v10624 = vpack.c.b16 %v10514, %v10512
        %v10625 = vpack.c.b16 %v10517, %v10515
        %v10626 = vpack.c.b16 %v10518, %v10516
        %v10627 = vpack.c.b16 %v10521, %v10519
        %v10628 = vpack.c.b16 %v10522, %v10520
        %v10629 = vpack.c.b16 %v10525, %v10523
        %v10630 = vpack.c.b16 %v10526, %v10524
        %v10631 = vpack.c.b16 %v10529, %v10527
        %v10632 = vpack.c.b16 %v10530, %v10528
        %v10633 = vpack.c.b16 %v10533, %v10531
        %v10634 = vpack.c.b16 %v10534, %v10532
        %v10635 = vpack.c.b16 %v10537, %v10535
        %v10636 = vpack.c.b16 %v10538, %v10536
        %v10637 = vpack.c.b16 %v10541, %v10539
        %v10638 = vpack.c.b16 %v10542, %v10540
        %v10639 = vpack.c.b16 %v10545, %v10543
        %v10640 = vpack.c.b16 %v10546, %v10544
        %v10641 = vpack.c.b16 %v10549, %v10547
        %v10642 = vpack.c.b16 %v10550, %v10548
        %v10643 = vpack.c.b16 %v10553, %v10551
        %v10644 = vpack.c.b16 %v10554, %v10552
        %v10645 = vpack.c.b16 %v10557, %v10555
        %v10646 = vpack.c.b16 %v10558, %v10556
        %v10647 = vpack.c.b16 %v10561, %v10559
        %v10648 = vpack.c.b16 %v10562, %v10560
        %v10649 = vpack.c.b16 %v10565, %v10563
        %v10650 = vpack.c.b16 %v10566, %v10564
        %v10651 = vpack.c.b16 %v10569, %v10567
        %v10652 = vpack.c.b16 %v10570, %v10568
        %v10653 = vpack.c.b16 %v10573, %v10571
        %v10654 = vpack.c.b16 %v10574, %v10572
        %v10655 = vpack.c.b16 %v10577, %v10575
        %v10656 = vpack.c.b16 %v10578, %v10576
        %v10657 = vpack.c.b16 %v10581, %v10579
        %v10658 = vpack.c.b16 %v10582, %v10580
        %v10659 = vpack.c.b16 %v10585, %v10583
        %v10660 = vpack.c.b16 %v10586, %v10584
        %v10661 = vpack.c.b16 %v10589, %v10587
        %v10662 = vpack.c.b16 %v10590, %v10588
        %v10663 = vpack.c.b16 %v10593, %v10591
        %v10664 = vpack.c.b16 %v10594, %v10592
        %v10665 = vpack.c.b16 %v10597, %v10595
        %v10666 = vpack.c.b16 %v10598, %v10596
        %v10667 = vpack.c.b16 %v10601, %v10599
        %v10668 = vpack.c.b16 %v10602, %v10600
        %v10669 = vpack.c.b16 %v10605, %v10603
        %v10670 = vpack.c.b16 %v10606, %v10604
        %10735 = vmatprep.subr.bf16.mxu0 %v10608
        %10736 = vmatpush1.bf16.msra.mxu0 %v10607
        %10737 = vmatprep.subr.bf16.mxu0 %v10610
        %10738 = vmatpush1.bf16.msra.mxu0 %v10609
        %10739 = vmatprep.subr.bf16.mxu0 %v10612
        %10740 = vmatpush1.bf16.msra.mxu0 %v10611
        %10741 = vmatprep.subr.bf16.mxu0 %v10614
        %10742 = vmatpush1.bf16.msra.mxu0 %v10613
        %10743 = vmatprep.subr.bf16.mxu0 %v10616
        %10744 = vmatpush1.bf16.msra.mxu0 %v10615
        %10745 = vmatprep.subr.bf16.mxu0 %v10618
        %10746 = vmatpush1.bf16.msra.mxu0 %v10617
        %10747 = vmatprep.subr.bf16.mxu0 %v10620
        %10748 = vmatpush1.bf16.msra.mxu0 %v10619
        %10749 = vmatprep.subr.bf16.mxu0 %v10622
        %10750 = vmatpush1.bf16.msra.mxu0 %v10621
        %10751 = vmatprep.subr.bf16.mxu0 %v10624
        %10752 = vmatpush1.bf16.msra.mxu0 %v10623
        %10753 = vmatprep.subr.bf16.mxu0 %v10626
        %10754 = vmatpush1.bf16.msra.mxu0 %v10625
        %10755 = vmatprep.subr.bf16.mxu0 %v10628
        %10756 = vmatpush1.bf16.msra.mxu0 %v10627
        %10757 = vmatprep.subr.bf16.mxu0 %v10630
        %10758 = vmatpush1.bf16.msra.mxu0 %v10629
        %10759 = vmatprep.subr.bf16.mxu0 %v10632
        %10760 = vmatpush1.bf16.msra.mxu0 %v10631
        %10761 = vmatprep.subr.bf16.mxu0 %v10634
        %10762 = vmatpush1.bf16.msra.mxu0 %v10633
        %10763 = vmatprep.subr.bf16.mxu0 %v10636
        %10764 = vmatpush1.bf16.msra.mxu0 %v10635
        %10765 = vmatprep.subr.bf16.mxu0 %v10638
        %10766 = vmatpush1.bf16.msra.mxu0 %v10637
        %10767 = vmatprep.mubr.bf16.mxu0 %v10336
        %10768 = vmatmul.mubr.bf16.gmra.mrb[0].mxu0 %v10335
        %v10769 = vpop.f32.mrb[0].mxu0
        %v10770 = vadd.f32 %v10408, %v10769
        %v10771 = vpop.f32.mrb[0].mxu0
        %v10772 = vadd.f32 %v10412, %v10771
        %v10773 = vpop.f32.mrb[0].mxu0
        %v10774 = vpop.f32.mrb[0].mxu0
        %10775 = vdwg.mxu0
        %10776 = vmatprep.subr.bf16.mxu0 %v10640
        %10777 = vmatpush1.bf16.msra.mxu0 %v10639
        %10778 = vmatprep.subr.bf16.mxu0 %v10642
        %10779 = vmatpush1.bf16.msra.mxu0 %v10641
        %10780 = vmatprep.subr.bf16.mxu0 %v10644
        %10781 = vmatpush1.bf16.msra.mxu0 %v10643
        %10782 = vmatprep.subr.bf16.mxu0 %v10646
        %10783 = vmatpush1.bf16.msra.mxu0 %v10645
        %10784 = vmatprep.subr.bf16.mxu0 %v10648
        %10785 = vmatpush1.bf16.msra.mxu0 %v10647
        %10786 = vmatprep.subr.bf16.mxu0 %v10650
        %10787 = vmatpush1.bf16.msra.mxu0 %v10649
        %10788 = vmatprep.subr.bf16.mxu0 %v10652
        %10789 = vmatpush1.bf16.msra.mxu0 %v10651
        %10790 = vmatprep.subr.bf16.mxu0 %v10654
        %10791 = vmatpush1.bf16.msra.mxu0 %v10653
        %10792 = vmatprep.subr.bf16.mxu0 %v10656
        %10793 = vmatpush1.bf16.msra.mxu0 %v10655
        %10794 = vmatprep.subr.bf16.mxu0 %v10658
        %10795 = vmatpush1.bf16.msra.mxu0 %v10657
        %10796 = vmatprep.subr.bf16.mxu0 %v10660
        %10797 = vmatpush1.bf16.msra.mxu0 %v10659
        %10798 = vmatprep.subr.bf16.mxu0 %v10662
        %10799 = vmatpush1.bf16.msra.mxu0 %v10661
        %10800 = vmatprep.subr.bf16.mxu0 %v10664
        %10801 = vmatpush1.bf16.msra.mxu0 %v10663
        %10802 = vmatprep.subr.bf16.mxu0 %v10666
        %10803 = vmatpush1.bf16.msra.mxu0 %v10665
        %10804 = vmatprep.subr.bf16.mxu0 %v10668
        %10805 = vmatpush1.bf16.msra.mxu0 %v10667
        %10806 = vmatprep.subr.bf16.mxu0 %v10670
        %10807 = vmatpush1.bf16.msra.mxu0 %v10669
        %10808 = vmatprep.mubr.bf16.mxu0 %v10338
        %10809 = vmatmul.mubr.bf16.gmra.mrb[0].mxu0 %v10337
        %v10810 = vpop.f32.mrb[0].mxu0
        %v10811 = vadd.f32 %v10770, %v10810
        %v10812 = vpop.f32.mrb[0].mxu0
        %v10813 = vadd.f32 %v10772, %v10812
        %v10814 = vpop.f32.mrb[0].mxu0
        %v10815 = vpop.f32.mrb[0].mxu0
        %10816 = vdwg.mxu0
        %v10817 = vmax.f32 %v10811, 0.0
        %v10818 = vmax.f32 %v10813, 0.0
        %v10819 = vpack.c.bf16 %v10817, %v10817
        %v10820 = vpack.c.bf16 %v10818, %v10818
        %v10821 = vld [vmem:[%s23] sm:$0xf]
        %v10822 = vld [vmem:[%s23 + $0x4] sm:$0xf]
        %v10823 = vld [vmem:[%s23 + $0x8] sm:$0xf]
        %v10824 = vld [vmem:[%s23 + $0xc] sm:$0xf]
        %v10825 = vld [vmem:[%s23 + $0x10] sm:$0xf]
        %v10826 = vld [vmem:[%s23 + $0x14] sm:$0xf]
        %v10827 = vld [vmem:[%s23 + $0x18] sm:$0xf]
        %v10828 = vld [vmem:[%s23 + $0x1c] sm:$0xf]
        %v10829 = vld [vmem:[%s23 + $0x20] sm:$0xf]
        %v10830 = vld [vmem:[%s23 + $0x24] sm:$0xf]
        %v10831 = vld [vmem:[%s23 + $0x28] sm:$0xf]
        %v10832 = vld [vmem:[%s23 + $0x2c] sm:$0xf]
        %v10833 = vld [vmem:[%s23 + $0x30] sm:$0xf]
        %v10834 = vld [vmem:[%s23 + $0x34] sm:$0xf]
        %v10835 = vld [vmem:[%s23 + $0x38] sm:$0xf]
        %v10836 = vld [vmem:[%s23 + $0x3c] sm:$0xf]
        %v10837 = vld [vmem:[%s23 + $0x40] sm:$0xf]
        %v10838 = vld [vmem:[%s23 + $0x44] sm:$0xf]
        %v10839 = vld [vmem:[%s23 + $0x48] sm:$0xf]
        %v10840 = vld [vmem:[%s23 + $0x4c] sm:$0xf]
        %v10841 = vld [vmem:[%s23 + $0x50] sm:$0xf]
        %v10842 = vld [vmem:[%s23 + $0x54] sm:$0xf]
        %v10843 = vld [vmem:[%s23 + $0x58] sm:$0xf]
        %v10844 = vld [vmem:[%s23 + $0x5c] sm:$0xf]
        %v10845 = vld [vmem:[%s23 + $0x60] sm:$0xf]
        %v10846 = vld [vmem:[%s23 + $0x64] sm:$0xf]
        %v10847 = vld [vmem:[%s23 + $0x68] sm:$0xf]
        %v10848 = vld [vmem:[%s23 + $0x6c] sm:$0xf]
        %v10849 = vld [vmem:[%s23 + $0x70] sm:$0xf]
        %v10850 = vld [vmem:[%s23 + $0x74] sm:$0xf]
        %v10851 = vld [vmem:[%s23 + $0x78] sm:$0xf]
        %v10852 = vld [vmem:[%s23 + $0x7c] sm:$0xf]
        %v10853 = vld [vmem:[%s24] sm:$0x1]
        %v10855 = vlaneseq
        %v10856 = vshrl.u32 %v10855, 7
        %v10857 = vsub.s32 0, %v10856
        %v10858 = vrot.slane %v10853, %v10857
        %v10892 = vunpack.c.l.b16 %v10821
        %v10893 = vunpack.c.l.b16 %v10822
        %v10894 = vunpack.c.l.b16 %v10823
        %v10895 = vunpack.c.l.b16 %v10824
        %v10896 = vunpack.c.l.b16 %v10825
        %v10897 = vunpack.c.l.b16 %v10826
        %v10898 = vunpack.c.l.b16 %v10827
        %v10899 = vunpack.c.l.b16 %v10828
        %v10900 = vunpack.c.l.b16 %v10829
        %v10901 = vunpack.c.l.b16 %v10830
        %v10902 = vunpack.c.l.b16 %v10831
        %v10903 = vunpack.c.l.b16 %v10832
        %v10904 = vunpack.c.l.b16 %v10833
        %v10905 = vunpack.c.l.b16 %v10834
        %v10906 = vunpack.c.l.b16 %v10835
        %v10907 = vunpack.c.l.b16 %v10836
        %v10908 = vunpack.c.l.b16 %v10837
        %v10909 = vunpack.c.l.b16 %v10838
        %v10910 = vunpack.c.l.b16 %v10839
        %v10911 = vunpack.c.l.b16 %v10840
        %v10912 = vunpack.c.l.b16 %v10841
        %v10913 = vunpack.c.l.b16 %v10842
        %v10914 = vunpack.c.l.b16 %v10843
        %v10915 = vunpack.c.l.b16 %v10844
        %v10916 = vunpack.c.l.b16 %v10845
        %v10917 = vunpack.c.l.b16 %v10846
        %v10918 = vunpack.c.l.b16 %v10847
        %v10919 = vunpack.c.l.b16 %v10848
        %v10920 = vunpack.c.l.b16 %v10849
        %v10921 = vunpack.c.l.b16 %v10850
        %v10922 = vunpack.c.l.b16 %v10851
        %v10923 = vunpack.c.l.b16 %v10852
        %v10924 = vpack.c.b16 %v10893, %v10892
        %v10925 = vpack.c.b16 %v10895, %v10894
        %v10926 = vpack.c.b16 %v10897, %v10896
        %v10927 = vpack.c.b16 %v10899, %v10898
        %v10928 = vpack.c.b16 %v10901, %v10900
        %v10929 = vpack.c.b16 %v10903, %v10902
        %v10930 = vpack.c.b16 %v10905, %v10904
        %v10931 = vpack.c.b16 %v10907, %v10906
        %v10932 = vpack.c.b16 %v10909, %v10908
        %v10933 = vpack.c.b16 %v10911, %v10910
        %v10934 = vpack.c.b16 %v10913, %v10912
        %v10935 = vpack.c.b16 %v10915, %v10914
        %v10936 = vpack.c.b16 %v10917, %v10916
        %v10937 = vpack.c.b16 %v10919, %v10918
        %v10938 = vpack.c.b16 %v10921, %v10920
        %v10939 = vpack.c.b16 %v10923, %v10922
        %10956 = vmatprep.subr.bf16.mxu0 0
        %10957 = vmatpush1.bf16.msra.mxu0 %v10924
        %10958 = vmatprep.subr.bf16.mxu0 0
        %10959 = vmatpush1.bf16.msra.mxu0 %v10925
        %10960 = vmatprep.subr.bf16.mxu0 0
        %10961 = vmatpush1.bf16.msra.mxu0 %v10926
        %10962 = vmatprep.subr.bf16.mxu0 0
        %10963 = vmatpush1.bf16.msra.mxu0 %v10927
        %10964 = vmatprep.subr.bf16.mxu0 0
        %10965 = vmatpush1.bf16.msra.mxu0 %v10928
        %10966 = vmatprep.subr.bf16.mxu0 0
        %10967 = vmatpush1.bf16.msra.mxu0 %v10929
        %10968 = vmatprep.subr.bf16.mxu0 0
        %10969 = vmatpush1.bf16.msra.mxu0 %v10930
        %10970 = vmatprep.subr.bf16.mxu0 0
        %10971 = vmatpush1.bf16.msra.mxu0 %v10931
        %10972 = vmatprep.subr.bf16.mxu0 0
        %10973 = vmatpush1.bf16.msra.mxu0 %v10932
        %10974 = vmatprep.subr.bf16.mxu0 0
        %10975 = vmatpush1.bf16.msra.mxu0 %v10933
        %10976 = vmatprep.subr.bf16.mxu0 0
        %10977 = vmatpush1.bf16.msra.mxu0 %v10934
        %10978 = vmatprep.subr.bf16.mxu0 0
        %10979 = vmatpush1.bf16.msra.mxu0 %v10935
        %10980 = vmatprep.subr.bf16.mxu0 0
        %10981 = vmatpush1.bf16.msra.mxu0 %v10936
        %10982 = vmatprep.subr.bf16.mxu0 0
        %10983 = vmatpush1.bf16.msra.mxu0 %v10937
        %10984 = vmatprep.subr.bf16.mxu0 0
        %10985 = vmatpush1.bf16.msra.mxu0 %v10938
        %10986 = vmatprep.subr.bf16.mxu0 0
        %10987 = vmatpush1.bf16.msra.mxu0 %v10939
        %10988 = vmatprep.mubr.bf16.mxu0 %v10820
        %10989 = vmatmul.mubr.bf16.gmra.mrb[0].mxu0 %v10819
        %v10990 = vpop.f32.mrb[0].mxu0
        %v10991 = vadd.f32 %v10858, %v10990
        %v10992 = vpop.f32.mrb[0].mxu0
        %v10993 = vpop.f32.mrb[0].mxu0
        %v10994 = vpop.f32.mrb[0].mxu0
        %10995 = vdwg.mxu0
        %vm10996 = vcmask 9216
        %v10997 = vsel %vm10996, %v10991, -inf
        %10998 = vmax.xlane.f32.xlu0 %v10997
        %v10999 = vpop.xlane.xlu0 %10998
        %v11000 = vsub.f32 %v10991, %v10999
        %v11001 = vmul.f32 %v11000, 1.442695
        %v11002 = vpow.pop %v11001
        %v11003 = vsel %vm10996, %v11002, 0.0
        %11004 = vadd.xlane.f32.xlu0 %v11003
        %v11005 = vpop.xlane.xlu0 %11004
        %v11006 = vlog2.pop %v11005
        %v11007 = vmul.f32 %v11006, 0.6931472
        %v11008 = vadd.f32 %v10999, %v11007
        %v11009 = vsub.f32 %v10991, %v11008
        %11010 = vrot.lane.b32.xlu0 %v6107, 2
        %v11011 = vpop.permute.xlu0 %11010
        %vm11013 = vcmask 15360
        %v11014 = vsel %vm11013, %v11009, %v11011
        %vm11015 = vcmask 89088
        %v11016 = vsel %vm11015, %v11014, 0.0
        %11017 = vst [vmem:[%s846] sm:$0x3] %v11016
        %s11018 = sand.u32 %s581, 1
        %s11019 = scalar_lea.sflag [#allocation4], %s11018
        %s11020 = sand.u32 %s581, 1
        %s11021 = smul.addr %s11020, 2
        %s11022 = scalar_lea.vmem [#allocation13], %s11021
        // Predicated region
        $region145: #{tpu_custom_call.1} parent=119 // pred_check
          %p11023 = pneg %p591
        $region146: #{tpu_custom_call.1} parent=119 // pred_check_branch
          %11025 = sbr.rel (%p11023) target = $region148
        $region147: #{tpu_custom_call.1} parent=119 // pred_region
          %s11027 = ssub.s32 32, 32
          %11028 = vsyncadd %s11019, %s11027
          %s11029 = smul.addr %s43, 32
          %s11030 = scalar_lea.hbm %s25, %s11029
          %s11032 = sshll.u32 %s11022, 4
          %s11033 = int_to_ptr.vmem [resolvable:$true] %s11032
          %11035 = dma.vmem_to_hbm [thread:$0]  %s11033, 32, %s11030, %s11019
        $region148: #{tpu_custom_call.1} parent=119 // pred_fallthru
          _
      $region120: #{tpu_custom_call.1} parent=5 // pred_fallthru
        _
      %p11036 = scmp.le.s32.totalorder 2, %s38
      // Predicated region
      $region149: #{tpu_custom_call.1} parent=5 // pred_check
        %p11037 = pneg %p11036
      $region150: #{tpu_custom_call.1} parent=5 // pred_check_branch
        %11039 = sbr.rel (%p11037) target = $region152
      $region151: #{tpu_custom_call.1} parent=5 // pred_region
        %s11040 = ssub.s32 %s38, 2
        // Predicated region
        $region153: #{tpu_custom_call.1} parent=151 // pred_check
          %p11041 = pneg %p597
        $region154: #{tpu_custom_call.1} parent=151 // pred_check_branch
          %11043 = sbr.rel (%p11041) target = $region156
        $region155: #{tpu_custom_call.1} parent=151 // pred_region
          %s11044 = sand.u32 %s582, 1
          %s11045 = scalar_lea.sflag [#allocation4], %s11044
          %s11046 = sand.u32 %s582, 1
          %s11047 = smul.addr %s11046, 2
          %s11048 = scalar_lea.vmem [#allocation13], %s11047
          %11049 = dma.done %s11045, 32
        $region156: #{tpu_custom_call.1} parent=151 // pred_fallthru
          _
      $region152: #{tpu_custom_call.1} parent=5 // pred_fallthru
        _
    $region6: #{tpu_custom_call.1} parent=1 // loop_footer
      %s42 = sadd.s32 1, %s38
    $region7: #{tpu_custom_call.1} parent=1 // loop_footer_branch
      %37 = sbr.rel target = $region3
    $region8: #{tpu_custom_call.1} parent=1 // loop_exit
      _
    %11050 = vsyncpa [#allocation3], 1
    %s11051 = scalar_lea.sflag [#allocation3], 1
    %11052 = vsyncpa %s11051, 1
    %11053 = vsyncpa [#allocation6], 1
    %11054 = vsyncpa [#allocation9], 1
    %11055 = vsyncpa [#allocation12], 1
    %11056 = vsyncpa [#allocation4], 1
    %s11057 = scalar_lea.sflag [#allocation4], 1
    %11058 = vsyncpa %s11057, 1

</llo_original>
